<compile_context>
chip_gen: v7x
topology: tpu7x:2x2x1
jax: 0.10.0
libtpu: 0.0.40
codegen_flags: <defaults>
</compile_context>

<pallas_src>
import jax
import jax.numpy as jnp
from jax.experimental import pallas as pl
from jax.experimental.pallas import tpu as pltpu

# ----------------------------- configuration -----------------------------
IN_CH = 3                        # RGB
IMG = 16                         # scaled-down analog of the 432x432 resize
PATCH = 4                        # patch size
GRID = IMG // PATCH
NUM_PATCHES = GRID * GRID        # 16
CPP = IN_CH * PATCH * PATCH      # 48 (flattened conv patch)
D = 64                           # token feature dim
HIDDEN = 128                     # MLP hidden dim
STATE_TOKENS = 16                # recurrent state tokens
MEM_TOKENS = 8                   # pose-retriever memory tokens
TOK = NUM_PATCHES + 1            # patch tokens + pose token (17)
TOK_PAD = 24                     # token rows padded to a multiple of 8
HEAD_OUT = PATCH * PATCH * 3     # 48 meaningful head outputs per patch
HEAD_PAD = 128                   # lane-dense head slab; extra cols are zero
NEG_INF = -1e30


# --------------------------- in-kernel helpers ----------------------------
def _mxu(a, b):
    # bf16 operands into the MXU, f32 accumulation.  Weights are already
    # stored bf16, so the astype on the weight operand is a trace-time no-op.
    return jnp.dot(a.astype(jnp.bfloat16), b.astype(jnp.bfloat16),
                   preferred_element_type=jnp.float32)


def _ln(x, g, b, eps=1e-6):
    x = x.astype(jnp.float32)
    mu = jnp.mean(x, axis=-1, keepdims=True)
    var = jnp.mean(jnp.square(x - mu), axis=-1, keepdims=True)
    return (x - mu) * jax.lax.rsqrt(var + eps) * g + b


def _attn(q_in, kv_in, wq, wk, wv, wo, bo, key_bias=None):
    # 1/sqrt(D) is folded into wq at init -> no per-score multiply.
    q = _mxu(q_in, wq)
    k = _mxu(kv_in, wk)
    v = _mxu(kv_in, wv)
    s = jax.lax.dot_general(
        q.astype(jnp.bfloat16), k.astype(jnp.bfloat16),
        dimension_numbers=(((1,), (1,)), ((), ())),
        preferred_element_type=jnp.float32)
    if key_bias is not None:
        s = s + key_bias                       # mask padded key columns
    s = s - jnp.max(s, axis=-1, keepdims=True)
    p = jnp.exp(s)
    p = p * pl.reciprocal(jnp.sum(p, axis=-1, keepdims=True), approx=True)
    ctx = _mxu(p, v)
    return _mxu(ctx, wo) + bo


def _mlp(x, w1, b1, w2, b2):
    h = _mxu(x, w1) + b1
    h = jax.nn.gelu(h, approximate=True)       # f32 on VPU/EUP
    return _mxu(h, w2) + b2


# ------------------------------ Pallas kernels -----------------------------
def _encoder_kernel(patches_ref, patch_w, pos_emb_ref, evec_ref, e_b1_ref,
                    a_wq, a_wk, a_wv, a_wo, m_w1, m_w2, feat_ref):
    """F frames per step: patch embed + pos emb + ViT encoder block."""
    F = patches_ref.shape[0]
    N = F * NUM_PATCHES
    ev = evec_ref[...]                           # packed (7, D) small vectors
    patch_b, ln1_g, ln1_b = ev[0:1], ev[1:2], ev[2:3]
    ln2_g, ln2_b, a_bo, m_b2 = ev[3:4], ev[4:5], ev[5:6], ev[6:7]
    m_b1 = e_b1_ref[...]

    x = patches_ref[...].reshape(N, CPP)         # flatten frames into MXU rows
    tok = _mxu(x, patch_w[...]) + patch_b
    tok = (tok.reshape(F, NUM_PATCHES, D)
           + pos_emb_ref[...][None, :, :]).reshape(N, D)

    n1 = _ln(tok, ln1_g, ln1_b)
    q = _mxu(n1, a_wq[...]).reshape(F, NUM_PATCHES, D)   # wq pre-scaled
    k = _mxu(n1, a_wk[...]).reshape(F, NUM_PATCHES, D)
    v = _mxu(n1, a_wv[...]).reshape(F, NUM_PATCHES, D)
    s = jnp.einsum('bqd,bkd->bqk', q.astype(jnp.bfloat16),
                   k.astype(jnp.bfloat16), preferred_element_type=jnp.float32)
    s = s - jnp.max(s, axis=-1, keepdims=True)
    p = jnp.exp(s)
    p = p * pl.reciprocal(jnp.sum(p, axis=-1, keepdims=True), approx=True)
    ctx = jnp.einsum('bqk,bkd->bqd', p.astype(jnp.bfloat16),
                     v.astype(jnp.bfloat16),
                     preferred_element_type=jnp.float32).reshape(N, D)
    h = tok + _mxu(ctx, a_wo[...]) + a_bo

    n2 = _ln(h, ln2_g, ln2_b)
    feat = h + _mlp(n2, m_w1[...], m_b1, m_w2[...], m_b2)
    feat_ref[...] = feat.reshape(F, NUM_PATCHES, D).astype(feat_ref.dtype)


def _recurrent_kernel(feat_ref, state_tok_ref, mem_tok_ref, rvec_ref,
                      rvec128_ref,
                      inq_wq, inq_wk, inq_wv, inq_wo,
                      dsa_wq, dsa_wk, dsa_wv, dsa_wo,
                      dca_wq, dca_wk, dca_wv, dca_wo,
                      dm_w1, dm_w2,
                      st_wq, st_wk, st_wv, st_wo,
                      ma_wq, ma_wk, ma_wv, ma_wo,
                      head_w,
                      pts_ref):
    """Whole recurrent rollout in one grid step; frame loop lives in-kernel."""
    rv = rvec_ref[...]                       # packed (21, D) small vectors
    inq_bo = rv[0:1]
    dsa_g, dsa_b, dsa_bo = rv[1:2], rv[2:3], rv[3:4]
    dcat_g, dcat_b = rv[4:5], rv[5:6]
    dcas_g, dcas_b = rv[6:7], rv[7:8]
    dca_bo = rv[8:9]
    dml_g, dml_b, dm_b2 = rv[9:10], rv[10:11], rv[11:12]
    sts_g, sts_b = rv[12:13], rv[13:14]
    stt_g, stt_b = rv[14:15], rv[15:16]
    st_bo = rv[16:17]
    mln_g, mln_b = rv[17:18], rv[18:19]
    ma_bo = rv[19:20]
    pose_token = rv[20:21]
    rv128 = rvec128_ref[...]                 # packed (2, 128)
    dm_b1 = rv128[0:1]
    head_b = rv128[1:2]

    # Hoisted loop-invariant constants (JAX does not CSE broadcasts).
    col = jax.lax.broadcasted_iota(jnp.int32, (1, TOK_PAD), 1)
    key_bias = jnp.where(col < TOK, 0.0, NEG_INF).astype(jnp.float32)
    pad_rows = jnp.zeros((TOK_PAD - TOK, D), jnp.float32)

    B = feat_ref.shape[0]

    def step(b, state, mem):
        feat = feat_ref[b]                                   # (NUM_PATCHES, D)
        # _get_img_level_feat analog (token mean), computed from resident data
        gfeat = jnp.mean(feat, axis=0, keepdims=True)        # (1, D)

        # pose token (frame 0) vs pose_retriever.inquire (later frames)
        static_b = isinstance(b, int)
        if static_b and b == 0:
            pose_feat = pose_token
        else:
            inq = _attn(gfeat, mem, inq_wq[...], inq_wk[...], inq_wv[...],
                        inq_wo[...], inq_bo)
            pose_feat = inq if static_b else jnp.where(b == 0, pose_token, inq)

        # token assembly, padded to TOK_PAD rows (pose token kept at row 16;
        # self-attention is permutation-equivariant, pad keys are masked)
        tokens = jnp.concatenate([feat, pose_feat, pad_rows], axis=0)

        # ---- recurrent rollout: decoder block attending to the state ----
        n_sa = _ln(tokens, dsa_g, dsa_b)
        t = tokens + _attn(n_sa, n_sa, dsa_wq[...], dsa_wk[...], dsa_wv[...],
                           dsa_wo[...], dsa_bo, key_bias=key_bias)
        t = t + _attn(_ln(t, dcat_g, dcat_b), _ln(state, dcas_g, dcas_b),
                      dca_wq[...], dca_wk[...], dca_wv[...], dca_wo[...],
                      dca_bo)
        dec = t + _mlp(_ln(t, dml_g, dml_b), dm_w1[...], dm_b1,
                       dm_w2[...], dm_b2)

        # state update (state cross-attends to decoded tokens; pad keys masked)
        new_state = state + _attn(_ln(state, sts_g, sts_b),
                                  _ln(dec, stt_g, stt_b),
                                  st_wq[...], st_wk[...], st_wv[...],
                                  st_wo[...], st_bo, key_bias=key_bias)

        # memory update (pose_retriever.update_mem analog)
        out_pose = dec[NUM_PATCHES:NUM_PATCHES + 1, :]
        kv2 = jnp.concatenate([gfeat, out_pose], axis=0)     # (2, D)
        new_mem = mem + _attn(_ln(mem, mln_g, mln_b), kv2,
                              ma_wq[...], ma_wk[...], ma_wv[...], ma_wo[...],
                              ma_bo)

        # downstream point head -> lane-dense (NUM_PATCHES, HEAD_PAD) slab
        pts = _mxu(dec[:NUM_PATCHES, :], head_w[...]) + head_b
        pts_ref[b] = pts.astype(pts_ref.dtype)

        # prepare_input gives update_mask=1 / reset_mask=0 statically, so the
        # masked state/memory blends reduce to plain replacement.
        return new_state, new_mem

    state = state_tok_ref[...]     # _init_state analog
    mem = mem_tok_ref[...]         # pose_retriever.mem analog
    if B <= 4:
        # Short rollouts: fully unroll for LLO scheduler visibility.
        for b in range(B):
            state, mem = step(b, state, mem)
    else:
        def body(b, carry):
            return step(b, carry[0], carry[1])
        state, mem = jax.lax.fori_loop(0, B, body, (state, mem))


# ----------------------------- wrapper plumbing ----------------------------
def _const_spec(x):
    nd = x.ndim
    return pl.BlockSpec(x.shape, lambda i, nd=nd: (0,) * nd)


def encode_frames(params, patches):
    """Frame-batched encoder pass.  patches: (B, NUM_PATCHES, CPP)."""
    B = patches.shape[0]
    F = min(B, 8)
    while B % F:                    # largest frames-per-step divisor of B
        F -= 1
    a = params["enc_attn"]
    inputs = [patches, params["patch_w"], params["pos_emb"], params["evec"],
              params["enc_mlp_b1"],
              a["wq"], a["wk"], a["wv"], a["wo"],
              params["enc_mlp_w1"], params["enc_mlp_w2"]]
    in_specs = ([pl.BlockSpec((F, NUM_PATCHES, CPP), lambda i: (i, 0, 0))]
                + [_const_spec(x) for x in inputs[1:]])
    return pl.pallas_call(
        _encoder_kernel,
        grid=(B // F,),
        out_shape=jax.ShapeDtypeStruct((B, NUM_PATCHES, D), jnp.float32),
        in_specs=in_specs,
        out_specs=pl.BlockSpec((F, NUM_PATCHES, D), lambda i: (i, 0, 0)),
        compiler_params=pltpu.CompilerParams(
            dimension_semantics=("parallel",)),   # v7x: 2 TCs split frame blocks
    )(*inputs)


def recurrent_rollout(params, feat):
    """Sequential rollout over frames; ONE grid step, in-kernel frame loop."""
    B = feat.shape[0]

    def attn_ws(name):
        a = params[name]
        return [a["wq"], a["wk"], a["wv"], a["wo"]]

    inputs = ([feat, params["state_token"], params["mem_token"],
               params["rvec"], params["rvec128"]]
              + attn_ws("inquire_attn")
              + attn_ws("dec_sa")
              + attn_ws("dec_ca")
              + [params["dec_mlp_w1"], params["dec_mlp_w2"]]
              + attn_ws("state_ca")
              + attn_ws("mem_attn")
              + [params["head_w"]])
    in_specs = [_const_spec(x) for x in inputs]
    return pl.pallas_call(
        _recurrent_kernel,
        grid=(1,),
        out_shape=jax.ShapeDtypeStruct((B, NUM_PATCHES, HEAD_PAD), jnp.float32),
        in_specs=in_specs,
        out_specs=pl.BlockSpec((B, NUM_PATCHES, HEAD_PAD), lambda i: (0, 0, 0)),
        compiler_params=pltpu.CompilerParams(
            dimension_semantics=("arbitrary",)),   # truly sequential rollout
    )(*inputs)


# ----------------------------- parameter init -----------------------------
def _dense(key, shape, scale=0.02):
    return scale * jax.random.normal(key, shape, dtype=jnp.float32)


def _bf16_w(key, shape):
    return _dense(key, shape).astype(jnp.bfloat16)


def _init_attn(key):
    kq, kk, kv, ko = jax.random.split(key, 4)
    return {"wq": (_dense(kq, (D, D)) * (D ** -0.5)).astype(jnp.bfloat16),
            "wk": _bf16_w(kk, (D, D)),
            "wv": _bf16_w(kv, (D, D)),
            "wo": _bf16_w(ko, (D, D))}


def init_params(key):
    ks = iter(jax.random.split(key, 32))
    nk = lambda: next(ks)
    ones_d = jnp.ones((1, D), jnp.float32)
    zeros_d = jnp.zeros((1, D), jnp.float32)

    p = {}
    # patch embed (Conv2d(IN_CH, D, kernel=stride=PATCH) flattened to a matmul)
    p["patch_w"] = _bf16_w(nk(), (CPP, D))
    p["pos_emb"] = _dense(nk(), (NUM_PATCHES, D))
    pose_token = _dense(nk(), (1, D))
    p["state_token"] = _dense(nk(), (STATE_TOKENS, D))   # _init_state analog
    p["mem_token"] = _dense(nk(), (MEM_TOKENS, D))       # pose_retriever.mem

    # encoder block
    p["enc_attn"] = _init_attn(nk())
    p["enc_mlp_w1"] = _bf16_w(nk(), (D, HIDDEN))
    p["enc_mlp_w2"] = _bf16_w(nk(), (HIDDEN, D))
    p["enc_mlp_b1"] = jnp.zeros((1, HIDDEN), jnp.float32)
    # packed (7, D): [patch_b, ln1_g, ln1_b, ln2_g, ln2_b, attn_bo, mlp_b2]
    p["evec"] = jnp.concatenate(
        [zeros_d, ones_d, zeros_d, ones_d, zeros_d, zeros_d, zeros_d], axis=0)

    # pose_retriever.inquire / decoder rollout / state & memory updates
    p["inquire_attn"] = _init_attn(nk())
    p["dec_sa"] = _init_attn(nk())
    p["dec_ca"] = _init_attn(nk())
    p["dec_mlp_w1"] = _bf16_w(nk(), (D, HIDDEN))
    p["dec_mlp_w2"] = _bf16_w(nk(), (HIDDEN, D))
    p["state_ca"] = _init_attn(nk())
    p["mem_attn"] = _init_attn(nk())

    # downstream point head: lane-dense 128-wide slab, pad columns zeroed
    head_w = jnp.zeros((D, HEAD_PAD), jnp.float32)
    head_w = head_w.at[:, :HEAD_OUT].set(_dense(nk(), (D, HEAD_OUT)))
    p["head_w"] = head_w.astype(jnp.bfloat16)

    # packed (21, D) recurrent small vectors -- row order must match kernel
    p["rvec"] = jnp.concatenate([
        zeros_d,                     # 0  inquire bo
        ones_d, zeros_d,             # 1,2  dec_ln_sa g,b
        zeros_d,                     # 3  dec_sa bo
        ones_d, zeros_d,             # 4,5  dec_ln_ca_tokens g,b
        ones_d, zeros_d,             # 6,7  dec_ln_ca_state g,b
        zeros_d,                     # 8  dec_ca bo
        ones_d, zeros_d,             # 9,10 dec_ln_mlp g,b
        zeros_d,                     # 11 dec_mlp b2
        ones_d, zeros_d,             # 12,13 state_ln_state g,b
        ones_d, zeros_d,             # 14,15 state_ln_tokens g,b
        zeros_d,                     # 16 state_ca bo
        ones_d, zeros_d,             # 17,18 mem_ln g,b
        zeros_d,                     # 19 mem_attn bo
        pose_token,                  # 20 pose token
    ], axis=0)
    # packed (2, 128): [dec_mlp b1, head_b]
    p["rvec128"] = jnp.zeros((2, HEAD_PAD), jnp.float32)
    return p


# -------------------------------- forward --------------------------------
def cut3r_points_spatial_tower_forward(params, images):
    """images: (B, C, H, W) float32, NCHW like the PyTorch module."""
    B, C, _, _ = images.shape
    # prepare_input: bilinear resize (432 in the reference, IMG here); each
    # batch element becomes one view/frame with per-view batch b=1.
    imgs = jax.image.resize(images, (B, C, IMG, IMG), method="bilinear")

    # flatten Conv2d(stride=PATCH) patches once for all frames
    patches = imgs.reshape(B, C, GRID, PATCH, GRID, PATCH)
    patches = jnp.transpose(patches, (0, 2, 4, 1, 3, 5)).reshape(
        B, NUM_PATCHES, CPP)

    # frame-batched encoder (proxy for _encode_views)
    feat = encode_frames(params, patches)
    # sequential recurrent rollout + head (single pallas_call, in-kernel loop)
    pts_flat = recurrent_rollout(params, feat)             # (B, P, HEAD_PAD)
    pts_flat = pts_flat[..., :HEAD_OUT]                    # drop lane padding

    # per-patch pixel shuffle -> (frame*b, H, W, 3) with b=1, i.e. the
    # reference rearrange 'frame b H W c -> (b frame) H W c'.
    pts = pts_flat.reshape(B, GRID, GRID, PATCH, PATCH, 3)
    pts = jnp.transpose(pts, (0, 1, 3, 2, 4, 5)).reshape(B, IMG, IMG, 3)
    return pts


# --------------------------------- main ---------------------------------
if __name__ == "__main__":
    key = jax.random.PRNGKey(0)
    pkey, xkey = jax.random.split(key)
    params = init_params(pkey)
    # small NCHW input; the module resizes internally, so H/W need not match IMG
    images = jax.random.normal(xkey, (2, 3, 20, 20), dtype=jnp.float32)

    fwd = jax.jit(cut3r_points_spatial_tower_forward)
    out = fwd(params, images)
    out = jax.block_until_ready(out)

    assert out.shape == (2, IMG, IMG, 3), out.shape
    assert out.dtype == jnp.float32
    assert bool(jnp.all(jnp.isfinite(out)))
    print("KERNEL_OK")
</pallas_src>

<mosaic_0001>
module attributes {stable_mosaic.version = 11 : i64} {
  func.func @_encoder_kernel(%arg0: i32, %arg1: memref<2x16x48xf32, #tpu.memory_space<vmem>>, %arg2: memref<48x64xbf16, #tpu.memory_space<vmem>>, %arg3: memref<16x64xf32, #tpu.memory_space<vmem>>, %arg4: memref<7x64xf32, #tpu.memory_space<vmem>>, %arg5: memref<1x128xf32, #tpu.memory_space<vmem>>, %arg6: memref<64x64xbf16, #tpu.memory_space<vmem>>, %arg7: memref<64x64xbf16, #tpu.memory_space<vmem>>, %arg8: memref<64x64xbf16, #tpu.memory_space<vmem>>, %arg9: memref<64x64xbf16, #tpu.memory_space<vmem>>, %arg10: memref<64x128xbf16, #tpu.memory_space<vmem>>, %arg11: memref<128x64xbf16, #tpu.memory_space<vmem>>, %arg12: memref<2x16x64xf32, #tpu.memory_space<vmem>>) attributes {dimension_semantics = [#tpu.dimension_semantics<parallel>], iteration_bounds = array<i64: 1>, scalar_prefetch = 0 : i64, scratch_operands = 0 : i64, tpu.core_type = #tpu.core_type<tc>, window_params = [{transform_indices = @transform_0, window_bounds = array<i64: 2, 16, 48>}, {pipeline_mode = #tpu.pipeline_mode<synchronous>, transform_indices = @transform_1, window_bounds = array<i64: 48, 64>}, {pipeline_mode = #tpu.pipeline_mode<synchronous>, transform_indices = @transform_2, window_bounds = array<i64: 16, 64>}, {pipeline_mode = #tpu.pipeline_mode<synchronous>, transform_indices = @transform_3, window_bounds = array<i64: 7, 64>}, {pipeline_mode = #tpu.pipeline_mode<synchronous>, transform_indices = @transform_4, window_bounds = array<i64: 1, 128>}, {pipeline_mode = #tpu.pipeline_mode<synchronous>, transform_indices = @transform_5, window_bounds = array<i64: 64, 64>}, {pipeline_mode = #tpu.pipeline_mode<synchronous>, transform_indices = @transform_6, window_bounds = array<i64: 64, 64>}, {pipeline_mode = #tpu.pipeline_mode<synchronous>, transform_indices = @transform_7, window_bounds = array<i64: 64, 64>}, {pipeline_mode = #tpu.pipeline_mode<synchronous>, transform_indices = @transform_8, window_bounds = array<i64: 64, 64>}, {pipeline_mode = #tpu.pipeline_mode<synchronous>, transform_indices = @transform_9, window_bounds = array<i64: 64, 128>}, {pipeline_mode = #tpu.pipeline_mode<synchronous>, transform_indices = @transform_10, window_bounds = array<i64: 128, 64>}, {transform_indices = @transform_11, window_bounds = array<i64: 2, 16, 64>}]} {
    %c0 = arith.constant 0 : index
    %c0_0 = arith.constant 0 : index
    %0 = vector.load %arg4[%c0, %c0_0] : memref<7x64xf32, #tpu.memory_space<vmem>>, vector<7x64xf32>
    %1 = vector.extract_strided_slice %0 {offsets = [0, 0], sizes = [1, 64], strides = [1, 1]} : vector<7x64xf32> to vector<1x64xf32>
    %2 = vector.extract_strided_slice %0 {offsets = [1, 0], sizes = [1, 64], strides = [1, 1]} : vector<7x64xf32> to vector<1x64xf32>
    %3 = vector.extract_strided_slice %0 {offsets = [2, 0], sizes = [1, 64], strides = [1, 1]} : vector<7x64xf32> to vector<1x64xf32>
    %4 = vector.extract_strided_slice %0 {offsets = [3, 0], sizes = [1, 64], strides = [1, 1]} : vector<7x64xf32> to vector<1x64xf32>
    %5 = vector.extract_strided_slice %0 {offsets = [4, 0], sizes = [1, 64], strides = [1, 1]} : vector<7x64xf32> to vector<1x64xf32>
    %6 = vector.extract_strided_slice %0 {offsets = [5, 0], sizes = [1, 64], strides = [1, 1]} : vector<7x64xf32> to vector<1x64xf32>
    %7 = vector.extract_strided_slice %0 {offsets = [6, 0], sizes = [1, 64], strides = [1, 1]} : vector<7x64xf32> to vector<1x64xf32>
    %c0_1 = arith.constant 0 : index
    %c0_2 = arith.constant 0 : index
    %8 = vector.load %arg5[%c0_1, %c0_2] : memref<1x128xf32, #tpu.memory_space<vmem>>, vector<1x128xf32>
    %c0_3 = arith.constant 0 : index
    %c0_4 = arith.constant 0 : index
    %c0_5 = arith.constant 0 : index
    %9 = vector.load %arg1[%c0_3, %c0_4, %c0_5] : memref<2x16x48xf32, #tpu.memory_space<vmem>>, vector<2x16x48xf32>
    %10 = vector.shape_cast %9 : vector<2x16x48xf32> to vector<32x48xf32>
    %c0_6 = arith.constant 0 : index
    %c0_7 = arith.constant 0 : index
    %11 = vector.load %arg2[%c0_6, %c0_7] : memref<48x64xbf16, #tpu.memory_space<vmem>>, vector<48x64xbf16>
    %12 = arith.truncf %10 : vector<32x48xf32> to vector<32x48xbf16>
    %cst = arith.constant dense<0.000000e+00> : vector<32x64xf32>
    %13 = tpu.matmul %12, %11, %cst {dimension_numbers = #tpu.dot_dimension_numbers<[1], [0], [0], [1], [0, 0, 1, 1], [], []>} : vector<32x48xbf16>, vector<48x64xbf16>, vector<32x64xf32> -> vector<32x64xf32>
    %14 = vector.broadcast %1 : vector<1x64xf32> to vector<32x64xf32>
    %15 = arith.addf %13, %14 : vector<32x64xf32>
    %16 = vector.shape_cast %15 : vector<32x64xf32> to vector<2x16x64xf32>
    %c0_8 = arith.constant 0 : index
    %c0_9 = arith.constant 0 : index
    %17 = vector.load %arg3[%c0_8, %c0_9] : memref<16x64xf32, #tpu.memory_space<vmem>>, vector<16x64xf32>
    %18 = vector.shape_cast %17 : vector<16x64xf32> to vector<1x16x64xf32>
    %19 = vector.broadcast %18 : vector<1x16x64xf32> to vector<2x16x64xf32>
    %20 = arith.addf %16, %19 : vector<2x16x64xf32>
    %21 = vector.shape_cast %20 : vector<2x16x64xf32> to vector<32x64xf32>
    %cst_10 = arith.constant dense<0.000000e+00> : vector<32xf32>
    %22 = vector.multi_reduction <add>, %21, %cst_10 [1] : vector<32x64xf32> to vector<32xf32>
    %23 = vector.shape_cast %22 : vector<32xf32> to vector<32x1xf32>
    %cst_11 = arith.constant 6.400000e+01 : f32
    %24 = vector.broadcast %cst_11 : f32 to vector<32x1xf32>
    %25 = arith.divf %23, %24 : vector<32x1xf32>
    %26 = vector.broadcast %25 : vector<32x1xf32> to vector<32x64xf32>
    %27 = arith.subf %21, %26 : vector<32x64xf32>
    %28 = arith.mulf %27, %27 : vector<32x64xf32>
    %cst_12 = arith.constant dense<0.000000e+00> : vector<32xf32>
    %29 = vector.multi_reduction <add>, %28, %cst_12 [1] : vector<32x64xf32> to vector<32xf32>
    %30 = vector.shape_cast %29 : vector<32xf32> to vector<32x1xf32>
    %cst_13 = arith.constant 6.400000e+01 : f32
    %31 = vector.broadcast %cst_13 : f32 to vector<32x1xf32>
    %32 = arith.divf %30, %31 : vector<32x1xf32>
    %33 = vector.broadcast %25 : vector<32x1xf32> to vector<32x64xf32>
    %34 = arith.subf %21, %33 : vector<32x64xf32>
    %cst_14 = arith.constant 9.99999997E-7 : f32
    %35 = vector.broadcast %cst_14 : f32 to vector<32x1xf32>
    %36 = arith.addf %32, %35 : vector<32x1xf32>
    %37 = math.rsqrt %36 : vector<32x1xf32>
    %38 = vector.broadcast %37 : vector<32x1xf32> to vector<32x64xf32>
    %39 = arith.mulf %34, %38 : vector<32x64xf32>
    %40 = vector.broadcast %2 : vector<1x64xf32> to vector<32x64xf32>
    %41 = arith.mulf %39, %40 : vector<32x64xf32>
    %42 = vector.broadcast %3 : vector<1x64xf32> to vector<32x64xf32>
    %43 = arith.addf %41, %42 : vector<32x64xf32>
    %c0_15 = arith.constant 0 : index
    %c0_16 = arith.constant 0 : index
    %44 = vector.load %arg6[%c0_15, %c0_16] : memref<64x64xbf16, #tpu.memory_space<vmem>>, vector<64x64xbf16>
    %45 = arith.truncf %43 : vector<32x64xf32> to vector<32x64xbf16>
    %cst_17 = arith.constant dense<0.000000e+00> : vector<32x64xf32>
    %46 = tpu.matmul %45, %44, %cst_17 {dimension_numbers = #tpu.dot_dimension_numbers<[1], [0], [0], [1], [0, 0, 1, 1], [], []>} : vector<32x64xbf16>, vector<64x64xbf16>, vector<32x64xf32> -> vector<32x64xf32>
    %47 = vector.shape_cast %46 : vector<32x64xf32> to vector<2x16x64xf32>
    %c0_18 = arith.constant 0 : index
    %c0_19 = arith.constant 0 : index
    %48 = vector.load %arg7[%c0_18, %c0_19] : memref<64x64xbf16, #tpu.memory_space<vmem>>, vector<64x64xbf16>
    %49 = arith.truncf %43 : vector<32x64xf32> to vector<32x64xbf16>
    %cst_20 = arith.constant dense<0.000000e+00> : vector<32x64xf32>
    %50 = tpu.matmul %49, %48, %cst_20 {dimension_numbers = #tpu.dot_dimension_numbers<[1], [0], [0], [1], [0, 0, 1, 1], [], []>} : vector<32x64xbf16>, vector<64x64xbf16>, vector<32x64xf32> -> vector<32x64xf32>
    %51 = vector.shape_cast %50 : vector<32x64xf32> to vector<2x16x64xf32>
    %c0_21 = arith.constant 0 : index
    %c0_22 = arith.constant 0 : index
    %52 = vector.load %arg8[%c0_21, %c0_22] : memref<64x64xbf16, #tpu.memory_space<vmem>>, vector<64x64xbf16>
    %53 = arith.truncf %43 : vector<32x64xf32> to vector<32x64xbf16>
    %cst_23 = arith.constant dense<0.000000e+00> : vector<32x64xf32>
    %54 = tpu.matmul %53, %52, %cst_23 {dimension_numbers = #tpu.dot_dimension_numbers<[1], [0], [0], [1], [0, 0, 1, 1], [], []>} : vector<32x64xbf16>, vector<64x64xbf16>, vector<32x64xf32> -> vector<32x64xf32>
    %55 = vector.shape_cast %54 : vector<32x64xf32> to vector<2x16x64xf32>
    %56 = arith.truncf %47 : vector<2x16x64xf32> to vector<2x16x64xbf16>
    %57 = arith.truncf %51 : vector<2x16x64xf32> to vector<2x16x64xbf16>
    "tpu.trace_start"() <{level = 10 : i32, message = "bqd,bkd->bqk"}> : () -> ()
    %cst_24 = arith.constant dense<0.000000e+00> : vector<2x16x16xf32>
    %58 = tpu.matmul %56, %57, %cst_24 {dimension_numbers = #tpu.dot_dimension_numbers<[2], [2], [1], [1], [0, 0, 0, 1, 1, 1], [0], [0]>} : vector<2x16x64xbf16>, vector<2x16x64xbf16>, vector<2x16x16xf32> -> vector<2x16x16xf32>
    "tpu.trace_stop"() : () -> ()
    %cst_25 = arith.constant dense<0xFF800000> : vector<2x16xf32>
    %59 = vector.multi_reduction <maximumf>, %58, %cst_25 [2] : vector<2x16x16xf32> to vector<2x16xf32>
    %60 = vector.shape_cast %59 : vector<2x16xf32> to vector<2x16x1xf32>
    %61 = vector.broadcast %60 : vector<2x16x1xf32> to vector<2x16x16xf32>
    %62 = arith.subf %58, %61 : vector<2x16x16xf32>
    %63 = math.exp %62 : vector<2x16x16xf32>
    %cst_26 = arith.constant dense<0.000000e+00> : vector<2x16xf32>
    %64 = vector.multi_reduction <add>, %63, %cst_26 [2] : vector<2x16x16xf32> to vector<2x16xf32>
    %65 = vector.shape_cast %64 : vector<2x16xf32> to vector<2x16x1xf32>
    %66 = tpu.reciprocal %65 {approx = true} : vector<2x16x1xf32> -> vector<2x16x1xf32>
    %67 = vector.broadcast %66 : vector<2x16x1xf32> to vector<2x16x16xf32>
    %68 = arith.mulf %63, %67 : vector<2x16x16xf32>
    %69 = arith.truncf %68 : vector<2x16x16xf32> to vector<2x16x16xbf16>
    %70 = arith.truncf %55 : vector<2x16x64xf32> to vector<2x16x64xbf16>
    "tpu.trace_start"() <{level = 10 : i32, message = "bqk,bkd->bqd"}> : () -> ()
    %cst_27 = arith.constant dense<0.000000e+00> : vector<2x16x64xf32>
    %71 = tpu.matmul %69, %70, %cst_27 {dimension_numbers = #tpu.dot_dimension_numbers<[2], [1], [1], [2], [0, 0, 0, 1, 1, 2], [0], [0]>} : vector<2x16x16xbf16>, vector<2x16x64xbf16>, vector<2x16x64xf32> -> vector<2x16x64xf32>
    "tpu.trace_stop"() : () -> ()
    %72 = vector.shape_cast %71 : vector<2x16x64xf32> to vector<32x64xf32>
    %c0_28 = arith.constant 0 : index
    %c0_29 = arith.constant 0 : index
    %73 = vector.load %arg9[%c0_28, %c0_29] : memref<64x64xbf16, #tpu.memory_space<vmem>>, vector<64x64xbf16>
    %74 = arith.truncf %72 : vector<32x64xf32> to vector<32x64xbf16>
    %cst_30 = arith.constant dense<0.000000e+00> : vector<32x64xf32>
    %75 = tpu.matmul %74, %73, %cst_30 {dimension_numbers = #tpu.dot_dimension_numbers<[1], [0], [0], [1], [0, 0, 1, 1], [], []>} : vector<32x64xbf16>, vector<64x64xbf16>, vector<32x64xf32> -> vector<32x64xf32>
    %76 = arith.addf %21, %75 : vector<32x64xf32>
    %77 = vector.broadcast %6 : vector<1x64xf32> to vector<32x64xf32>
    %78 = arith.addf %76, %77 : vector<32x64xf32>
    %cst_31 = arith.constant dense<0.000000e+00> : vector<32xf32>
    %79 = vector.multi_reduction <add>, %78, %cst_31 [1] : vector<32x64xf32> to vector<32xf32>
    %80 = vector.shape_cast %79 : vector<32xf32> to vector<32x1xf32>
    %cst_32 = arith.constant 6.400000e+01 : f32
    %81 = vector.broadcast %cst_32 : f32 to vector<32x1xf32>
    %82 = arith.divf %80, %81 : vector<32x1xf32>
    %83 = vector.broadcast %82 : vector<32x1xf32> to vector<32x64xf32>
    %84 = arith.subf %78, %83 : vector<32x64xf32>
    %85 = arith.mulf %84, %84 : vector<32x64xf32>
    %cst_33 = arith.constant dense<0.000000e+00> : vector<32xf32>
    %86 = vector.multi_reduction <add>, %85, %cst_33 [1] : vector<32x64xf32> to vector<32xf32>
    %87 = vector.shape_cast %86 : vector<32xf32> to vector<32x1xf32>
    %cst_34 = arith.constant 6.400000e+01 : f32
    %88 = vector.broadcast %cst_34 : f32 to vector<32x1xf32>
    %89 = arith.divf %87, %88 : vector<32x1xf32>
    %90 = vector.broadcast %82 : vector<32x1xf32> to vector<32x64xf32>
    %91 = arith.subf %78, %90 : vector<32x64xf32>
    %cst_35 = arith.constant 9.99999997E-7 : f32
    %92 = vector.broadcast %cst_35 : f32 to vector<32x1xf32>
    %93 = arith.addf %89, %92 : vector<32x1xf32>
    %94 = math.rsqrt %93 : vector<32x1xf32>
    %95 = vector.broadcast %94 : vector<32x1xf32> to vector<32x64xf32>
    %96 = arith.mulf %91, %95 : vector<32x64xf32>
    %97 = vector.broadcast %4 : vector<1x64xf32> to vector<32x64xf32>
    %98 = arith.mulf %96, %97 : vector<32x64xf32>
    %99 = vector.broadcast %5 : vector<1x64xf32> to vector<32x64xf32>
    %100 = arith.addf %98, %99 : vector<32x64xf32>
    %c0_36 = arith.constant 0 : index
    %c0_37 = arith.constant 0 : index
    %101 = vector.load %arg10[%c0_36, %c0_37] : memref<64x128xbf16, #tpu.memory_space<vmem>>, vector<64x128xbf16>
    %c0_38 = arith.constant 0 : index
    %c0_39 = arith.constant 0 : index
    %102 = vector.load %arg11[%c0_38, %c0_39] : memref<128x64xbf16, #tpu.memory_space<vmem>>, vector<128x64xbf16>
    %103 = arith.truncf %100 : vector<32x64xf32> to vector<32x64xbf16>
    %cst_40 = arith.constant dense<0.000000e+00> : vector<32x128xf32>
    %104 = tpu.matmul %103, %101, %cst_40 {dimension_numbers = #tpu.dot_dimension_numbers<[1], [0], [0], [1], [0, 0, 1, 1], [], []>} : vector<32x64xbf16>, vector<64x128xbf16>, vector<32x128xf32> -> vector<32x128xf32>
    %105 = vector.broadcast %8 : vector<1x128xf32> to vector<32x128xf32>
    %106 = arith.addf %104, %105 : vector<32x128xf32>
    %107 = arith.mulf %106, %106 : vector<32x128xf32>
    %108 = arith.mulf %106, %107 : vector<32x128xf32>
    %cst_41 = arith.constant 4.471500e-02 : f32
    %109 = vector.broadcast %cst_41 : f32 to vector<32x128xf32>
    %110 = arith.mulf %109, %108 : vector<32x128xf32>
    %111 = arith.addf %106, %110 : vector<32x128xf32>
    %cst_42 = arith.constant 0.797884583 : f32
    %112 = vector.broadcast %cst_42 : f32 to vector<32x128xf32>
    %113 = arith.mulf %112, %111 : vector<32x128xf32>
    %114 = math.tanh %113 : vector<32x128xf32>
    %cst_43 = arith.constant 1.000000e+00 : f32
    %115 = vector.broadcast %cst_43 : f32 to vector<32x128xf32>
    %116 = arith.addf %115, %114 : vector<32x128xf32>
    %cst_44 = arith.constant 5.000000e-01 : f32
    %117 = vector.broadcast %cst_44 : f32 to vector<32x128xf32>
    %118 = arith.mulf %117, %116 : vector<32x128xf32>
    %119 = arith.mulf %106, %118 : vector<32x128xf32>
    %120 = arith.truncf %119 : vector<32x128xf32> to vector<32x128xbf16>
    %cst_45 = arith.constant dense<0.000000e+00> : vector<32x64xf32>
    %121 = tpu.matmul %120, %102, %cst_45 {dimension_numbers = #tpu.dot_dimension_numbers<[1], [0], [0], [1], [0, 0, 1, 1], [], []>} : vector<32x128xbf16>, vector<128x64xbf16>, vector<32x64xf32> -> vector<32x64xf32>
    %122 = vector.broadcast %7 : vector<1x64xf32> to vector<32x64xf32>
    %123 = arith.addf %121, %122 : vector<32x64xf32>
    %124 = arith.addf %78, %123 : vector<32x64xf32>
    %125 = vector.shape_cast %124 : vector<32x64xf32> to vector<2x16x64xf32>
    %c0_46 = arith.constant 0 : index
    %c0_47 = arith.constant 0 : index
    %c0_48 = arith.constant 0 : index
    %126 = vector.load %arg12[%c0_46, %c0_47, %c0_48] : memref<2x16x64xf32, #tpu.memory_space<vmem>>, vector<2x16x64xf32>
    tpu.vector_store %arg12[%c0_46, %c0_47, %c0_48], %125 {strides = array<i32>} : memref<2x16x64xf32, #tpu.memory_space<vmem>>, vector<2x16x64xf32>,
    return
  }
  func.func @transform_0(%arg0: i32) -> (i32, i32, i32) {
    %c0_i32 = arith.constant 0 : i32
    %c0_i32_0 = arith.constant 0 : i32
    %c0_i32_1 = arith.constant 0 : i32
    return %arg0, %c0_i32, %c0_i32_0 : i32, i32, i32
  }
  func.func @transform_1(%arg0: i32) -> (i32, i32) {
    %c0_i32 = arith.constant 0 : i32
    %c0_i32_0 = arith.constant 0 : i32
    %c0_i32_1 = arith.constant 0 : i32
    return %c0_i32, %c0_i32_0 : i32, i32
  }
  func.func @transform_2(%arg0: i32) -> (i32, i32) {
    %c0_i32 = arith.constant 0 : i32
    %c0_i32_0 = arith.constant 0 : i32
    %c0_i32_1 = arith.constant 0 : i32
    return %c0_i32, %c0_i32_0 : i32, i32
  }
  func.func @transform_3(%arg0: i32) -> (i32, i32) {
    %c0_i32 = arith.constant 0 : i32
    %c0_i32_0 = arith.constant 0 : i32
    %c0_i32_1 = arith.constant 0 : i32
    return %c0_i32, %c0_i32_0 : i32, i32
  }
  func.func @transform_4(%arg0: i32) -> (i32, i32) {
    %c0_i32 = arith.constant 0 : i32
    %c0_i32_0 = arith.constant 0 : i32
    %c0_i32_1 = arith.constant 0 : i32
    return %c0_i32, %c0_i32_0 : i32, i32
  }
  func.func @transform_5(%arg0: i32) -> (i32, i32) {
    %c0_i32 = arith.constant 0 : i32
    %c0_i32_0 = arith.constant 0 : i32
    %c0_i32_1 = arith.constant 0 : i32
    return %c0_i32, %c0_i32_0 : i32, i32
  }
  func.func @transform_6(%arg0: i32) -> (i32, i32) {
    %c0_i32 = arith.constant 0 : i32
    %c0_i32_0 = arith.constant 0 : i32
    %c0_i32_1 = arith.constant 0 : i32
    return %c0_i32, %c0_i32_0 : i32, i32
  }
  func.func @transform_7(%arg0: i32) -> (i32, i32) {
    %c0_i32 = arith.constant 0 : i32
    %c0_i32_0 = arith.constant 0 : i32
    %c0_i32_1 = arith.constant 0 : i32
    return %c0_i32, %c0_i32_0 : i32, i32
  }
  func.func @transform_8(%arg0: i32) -> (i32, i32) {
    %c0_i32 = arith.constant 0 : i32
    %c0_i32_0 = arith.constant 0 : i32
    %c0_i32_1 = arith.constant 0 : i32
    return %c0_i32, %c0_i32_0 : i32, i32
  }
  func.func @transform_9(%arg0: i32) -> (i32, i32) {
    %c0_i32 = arith.constant 0 : i32
    %c0_i32_0 = arith.constant 0 : i32
    %c0_i32_1 = arith.constant 0 : i32
    return %c0_i32, %c0_i32_0 : i32, i32
  }
  func.func @transform_10(%arg0: i32) -> (i32, i32) {
    %c0_i32 = arith.constant 0 : i32
    %c0_i32_0 = arith.constant 0 : i32
    %c0_i32_1 = arith.constant 0 : i32
    return %c0_i32, %c0_i32_0 : i32, i32
  }
  func.func @transform_11(%arg0: i32) -> (i32, i32, i32) {
    %c0_i32 = arith.constant 0 : i32
    %c0_i32_0 = arith.constant 0 : i32
    %c0_i32_1 = arith.constant 0 : i32
    return %arg0, %c0_i32, %c0_i32_0 : i32, i32, i32
  }
}

module attributes {stable_mosaic.version = 11 : i64} {
  func.func @_recurrent_kernel(%arg0: i32, %arg1: memref<2x16x64xf32, #tpu.memory_space<vmem>>, %arg2: memref<16x64xf32, #tpu.memory_space<vmem>>, %arg3: memref<8x64xf32, #tpu.memory_space<vmem>>, %arg4: memref<21x64xf32, #tpu.memory_space<vmem>>, %arg5: memref<2x128xf32, #tpu.memory_space<vmem>>, %arg6: memref<64x64xbf16, #tpu.memory_space<vmem>>, %arg7: memref<64x64xbf16, #tpu.memory_space<vmem>>, %arg8: memref<64x64xbf16, #tpu.memory_space<vmem>>, %arg9: memref<64x64xbf16, #tpu.memory_space<vmem>>, %arg10: memref<64x64xbf16, #tpu.memory_space<vmem>>, %arg11: memref<64x64xbf16, #tpu.memory_space<vmem>>, %arg12: memref<64x64xbf16, #tpu.memory_space<vmem>>, %arg13: memref<64x64xbf16, #tpu.memory_space<vmem>>, %arg14: memref<64x64xbf16, #tpu.memory_space<vmem>>, %arg15: memref<64x64xbf16, #tpu.memory_space<vmem>>, %arg16: memref<64x64xbf16, #tpu.memory_space<vmem>>, %arg17: memref<64x64xbf16, #tpu.memory_space<vmem>>, %arg18: memref<64x128xbf16, #tpu.memory_space<vmem>>, %arg19: memref<128x64xbf16, #tpu.memory_space<vmem>>, %arg20: memref<64x64xbf16, #tpu.memory_space<vmem>>, %arg21: memref<64x64xbf16, #tpu.memory_space<vmem>>, %arg22: memref<64x64xbf16, #tpu.memory_space<vmem>>, %arg23: memref<64x64xbf16, #tpu.memory_space<vmem>>, %arg24: memref<64x64xbf16, #tpu.memory_space<vmem>>, %arg25: memref<64x64xbf16, #tpu.memory_space<vmem>>, %arg26: memref<64x64xbf16, #tpu.memory_space<vmem>>, %arg27: memref<64x64xbf16, #tpu.memory_space<vmem>>, %arg28: memref<64x128xbf16, #tpu.memory_space<vmem>>, %arg29: memref<2x16x128xf32, #tpu.memory_space<vmem>>) attributes {dimension_semantics = [#tpu.dimension_semantics<arbitrary>], iteration_bounds = array<i64: 1>, scalar_prefetch = 0 : i64, scratch_operands = 0 : i64, tpu.core_type = #tpu.core_type<tc>, window_params = [{pipeline_mode = #tpu.pipeline_mode<synchronous>, transform_indices = @transform_0, window_bounds = array<i64: 2, 16, 64>}, {pipeline_mode = #tpu.pipeline_mode<synchronous>, transform_indices = @transform_1, window_bounds = array<i64: 16, 64>}, {pipeline_mode = #tpu.pipeline_mode<synchronous>, transform_indices = @transform_2, window_bounds = array<i64: 8, 64>}, {pipeline_mode = #tpu.pipeline_mode<synchronous>, transform_indices = @transform_3, window_bounds = array<i64: 21, 64>}, {pipeline_mode = #tpu.pipeline_mode<synchronous>, transform_indices = @transform_4, window_bounds = array<i64: 2, 128>}, {pipeline_mode = #tpu.pipeline_mode<synchronous>, transform_indices = @transform_5, window_bounds = array<i64: 64, 64>}, {pipeline_mode = #tpu.pipeline_mode<synchronous>, transform_indices = @transform_6, window_bounds = array<i64: 64, 64>}, {pipeline_mode = #tpu.pipeline_mode<synchronous>, transform_indices = @transform_7, window_bounds = array<i64: 64, 64>}, {pipeline_mode = #tpu.pipeline_mode<synchronous>, transform_indices = @transform_8, window_bounds = array<i64: 64, 64>}, {pipeline_mode = #tpu.pipeline_mode<synchronous>, transform_indices = @transform_9, window_bounds = array<i64: 64, 64>}, {pipeline_mode = #tpu.pipeline_mode<synchronous>, transform_indices = @transform_10, window_bounds = array<i64: 64, 64>}, {pipeline_mode = #tpu.pipeline_mode<synchronous>, transform_indices = @transform_11, window_bounds = array<i64: 64, 64>}, {pipeline_mode = #tpu.pipeline_mode<synchronous>, transform_indices = @transform_12, window_bounds = array<i64: 64, 64>}, {pipeline_mode = #tpu.pipeline_mode<synchronous>, transform_indices = @transform_13, window_bounds = array<i64: 64, 64>}, {pipeline_mode = #tpu.pipeline_mode<synchronous>, transform_indices = @transform_14, window_bounds = array<i64: 64, 64>}, {pipeline_mode = #tpu.pipeline_mode<synchronous>, transform_indices = @transform_15, window_bounds = array<i64: 64, 64>}, {pipeline_mode = #tpu.pipeline_mode<synchronous>, transform_indices = @transform_16, window_bounds = array<i64: 64, 64>}, {pipeline_mode = #tpu.pipeline_mode<synchronous>, transform_indices = @transform_17, window_bounds = array<i64: 64, 128>}, {pipeline_mode = #tpu.pipeline_mode<synchronous>, transform_indices = @transform_18, window_bounds = array<i64: 128, 64>}, {pipeline_mode = #tpu.pipeline_mode<synchronous>, transform_indices = @transform_19, window_bounds = array<i64: 64, 64>}, {pipeline_mode = #tpu.pipeline_mode<synchronous>, transform_indices = @transform_20, window_bounds = array<i64: 64, 64>}, {pipeline_mode = #tpu.pipeline_mode<synchronous>, transform_indices = @transform_21, window_bounds = array<i64: 64, 64>}, {pipeline_mode = #tpu.pipeline_mode<synchronous>, transform_indices = @transform_22, window_bounds = array<i64: 64, 64>}, {pipeline_mode = #tpu.pipeline_mode<synchronous>, transform_indices = @transform_23, window_bounds = array<i64: 64, 64>}, {pipeline_mode = #tpu.pipeline_mode<synchronous>, transform_indices = @transform_24, window_bounds = array<i64: 64, 64>}, {pipeline_mode = #tpu.pipeline_mode<synchronous>, transform_indices = @transform_25, window_bounds = array<i64: 64, 64>}, {pipeline_mode = #tpu.pipeline_mode<synchronous>, transform_indices = @transform_26, window_bounds = array<i64: 64, 64>}, {pipeline_mode = #tpu.pipeline_mode<synchronous>, transform_indices = @transform_27, window_bounds = array<i64: 64, 128>}, {pipeline_mode = #tpu.pipeline_mode<synchronous>, transform_indices = @transform_28, window_bounds = array<i64: 2, 16, 128>}]} {
    %c0 = arith.constant 0 : index
    %c0_0 = arith.constant 0 : index
    %0 = vector.load %arg4[%c0, %c0_0] : memref<21x64xf32, #tpu.memory_space<vmem>>, vector<21x64xf32>
    %1 = vector.extract_strided_slice %0 {offsets = [0, 0], sizes = [1, 64], strides = [1, 1]} : vector<21x64xf32> to vector<1x64xf32>
    %2 = vector.extract_strided_slice %0 {offsets = [1, 0], sizes = [1, 64], strides = [1, 1]} : vector<21x64xf32> to vector<1x64xf32>
    %3 = vector.extract_strided_slice %0 {offsets = [2, 0], sizes = [1, 64], strides = [1, 1]} : vector<21x64xf32> to vector<1x64xf32>
    %4 = vector.extract_strided_slice %0 {offsets = [3, 0], sizes = [1, 64], strides = [1, 1]} : vector<21x64xf32> to vector<1x64xf32>
    %5 = vector.extract_strided_slice %0 {offsets = [4, 0], sizes = [1, 64], strides = [1, 1]} : vector<21x64xf32> to vector<1x64xf32>
    %6 = vector.extract_strided_slice %0 {offsets = [5, 0], sizes = [1, 64], strides = [1, 1]} : vector<21x64xf32> to vector<1x64xf32>
    %7 = vector.extract_strided_slice %0 {offsets = [6, 0], sizes = [1, 64], strides = [1, 1]} : vector<21x64xf32> to vector<1x64xf32>
    %8 = vector.extract_strided_slice %0 {offsets = [7, 0], sizes = [1, 64], strides = [1, 1]} : vector<21x64xf32> to vector<1x64xf32>
    %9 = vector.extract_strided_slice %0 {offsets = [8, 0], sizes = [1, 64], strides = [1, 1]} : vector<21x64xf32> to vector<1x64xf32>
    %10 = vector.extract_strided_slice %0 {offsets = [9, 0], sizes = [1, 64], strides = [1, 1]} : vector<21x64xf32> to vector<1x64xf32>
    %11 = vector.extract_strided_slice %0 {offsets = [10, 0], sizes = [1, 64], strides = [1, 1]} : vector<21x64xf32> to vector<1x64xf32>
    %12 = vector.extract_strided_slice %0 {offsets = [11, 0], sizes = [1, 64], strides = [1, 1]} : vector<21x64xf32> to vector<1x64xf32>
    %13 = vector.extract_strided_slice %0 {offsets = [12, 0], sizes = [1, 64], strides = [1, 1]} : vector<21x64xf32> to vector<1x64xf32>
    %14 = vector.extract_strided_slice %0 {offsets = [13, 0], sizes = [1, 64], strides = [1, 1]} : vector<21x64xf32> to vector<1x64xf32>
    %15 = vector.extract_strided_slice %0 {offsets = [14, 0], sizes = [1, 64], strides = [1, 1]} : vector<21x64xf32> to vector<1x64xf32>
    %16 = vector.extract_strided_slice %0 {offsets = [15, 0], sizes = [1, 64], strides = [1, 1]} : vector<21x64xf32> to vector<1x64xf32>
    %17 = vector.extract_strided_slice %0 {offsets = [16, 0], sizes = [1, 64], strides = [1, 1]} : vector<21x64xf32> to vector<1x64xf32>
    %18 = vector.extract_strided_slice %0 {offsets = [17, 0], sizes = [1, 64], strides = [1, 1]} : vector<21x64xf32> to vector<1x64xf32>
    %19 = vector.extract_strided_slice %0 {offsets = [18, 0], sizes = [1, 64], strides = [1, 1]} : vector<21x64xf32> to vector<1x64xf32>
    %20 = vector.extract_strided_slice %0 {offsets = [19, 0], sizes = [1, 64], strides = [1, 1]} : vector<21x64xf32> to vector<1x64xf32>
    %21 = vector.extract_strided_slice %0 {offsets = [20, 0], sizes = [1, 64], strides = [1, 1]} : vector<21x64xf32> to vector<1x64xf32>
    %c0_1 = arith.constant 0 : index
    %c0_2 = arith.constant 0 : index
    %22 = vector.load %arg5[%c0_1, %c0_2] : memref<2x128xf32, #tpu.memory_space<vmem>>, vector<2x128xf32>
    %23 = vector.extract_strided_slice %22 {offsets = [0, 0], sizes = [1, 128], strides = [1, 1]} : vector<2x128xf32> to vector<1x128xf32>
    %24 = vector.extract_strided_slice %22 {offsets = [1, 0], sizes = [1, 128], strides = [1, 1]} : vector<2x128xf32> to vector<1x128xf32>
    %25 = tpu.iota {dimensions = array<i32: 1>} : vector<1x24xi32>
    %c17_i32 = arith.constant 17 : i32
    %26 = vector.broadcast %c17_i32 : i32 to vector<1x24xi32>
    %27 = arith.cmpi slt, %25, %26 : vector<1x24xi32>
    %cst = arith.constant 0.000000e+00 : f32
    %cst_3 = arith.constant -1.000000e+30 : f32
    %28 = vector.broadcast %cst : f32 to vector<1x24xf32>
    %29 = vector.broadcast %cst_3 : f32 to vector<1x24xf32>
    %30 = arith.select %27, %28, %29 : vector<1x24xi1>, vector<1x24xf32>
    %cst_4 = arith.constant 0.000000e+00 : f32
    %31 = vector.broadcast %cst_4 : f32 to vector<7x64xf32>
    %c0_5 = arith.constant 0 : index
    %c0_6 = arith.constant 0 : index
    %32 = vector.load %arg2[%c0_5, %c0_6] : memref<16x64xf32, #tpu.memory_space<vmem>>, vector<16x64xf32>
    %c0_7 = arith.constant 0 : index
    %c0_8 = arith.constant 0 : index
    %33 = vector.load %arg3[%c0_7, %c0_8] : memref<8x64xf32, #tpu.memory_space<vmem>>, vector<8x64xf32>
    %c0_9 = arith.constant 0 : index
    %c0_10 = arith.constant 0 : index
    %c0_11 = arith.constant 0 : index
    %34 = vector.load %arg1[%c0_9, %c0_10, %c0_11] : memref<2x16x64xf32, #tpu.memory_space<vmem>>, vector<1x16x64xf32>
    %35 = vector.shape_cast %34 : vector<1x16x64xf32> to vector<16x64xf32>
    %cst_12 = arith.constant dense<0.000000e+00> : vector<64xf32>
    %36 = vector.multi_reduction <add>, %35, %cst_12 [0] : vector<16x64xf32> to vector<64xf32>
    %37 = vector.shape_cast %36 : vector<64xf32> to vector<1x64xf32>
    %cst_13 = arith.constant 1.600000e+01 : f32
    %38 = vector.broadcast %cst_13 : f32 to vector<1x64xf32>
    %39 = arith.divf %37, %38 : vector<1x64xf32>
    %40 = tpu.concatenate %35, %21, %31 in 0 : vector<16x64xf32>, vector<1x64xf32>, vector<7x64xf32> -> vector<24x64xf32>
    %cst_14 = arith.constant dense<0.000000e+00> : vector<24xf32>
    %41 = vector.multi_reduction <add>, %40, %cst_14 [1] : vector<24x64xf32> to vector<24xf32>
    %42 = vector.shape_cast %41 : vector<24xf32> to vector<24x1xf32>
    %cst_15 = arith.constant 6.400000e+01 : f32
    %43 = vector.broadcast %cst_15 : f32 to vector<24x1xf32>
    %44 = arith.divf %42, %43 : vector<24x1xf32>
    %45 = vector.broadcast %44 : vector<24x1xf32> to vector<24x64xf32>
    %46 = arith.subf %40, %45 : vector<24x64xf32>
    %47 = arith.mulf %46, %46 : vector<24x64xf32>
    %cst_16 = arith.constant dense<0.000000e+00> : vector<24xf32>
    %48 = vector.multi_reduction <add>, %47, %cst_16 [1] : vector<24x64xf32> to vector<24xf32>
    %49 = vector.shape_cast %48 : vector<24xf32> to vector<24x1xf32>
    %cst_17 = arith.constant 6.400000e+01 : f32
    %50 = vector.broadcast %cst_17 : f32 to vector<24x1xf32>
    %51 = arith.divf %49, %50 : vector<24x1xf32>
    %52 = vector.broadcast %44 : vector<24x1xf32> to vector<24x64xf32>
    %53 = arith.subf %40, %52 : vector<24x64xf32>
    %cst_18 = arith.constant 9.99999997E-7 : f32
    %54 = vector.broadcast %cst_18 : f32 to vector<24x1xf32>
    %55 = arith.addf %51, %54 : vector<24x1xf32>
    %56 = math.rsqrt %55 : vector<24x1xf32>
    %57 = vector.broadcast %56 : vector<24x1xf32> to vector<24x64xf32>
    %58 = arith.mulf %53, %57 : vector<24x64xf32>
    %59 = vector.broadcast %2 : vector<1x64xf32> to vector<24x64xf32>
    %60 = arith.mulf %58, %59 : vector<24x64xf32>
    %61 = vector.broadcast %3 : vector<1x64xf32> to vector<24x64xf32>
    %62 = arith.addf %60, %61 : vector<24x64xf32>
    %c0_19 = arith.constant 0 : index
    %c0_20 = arith.constant 0 : index
    %63 = vector.load %arg10[%c0_19, %c0_20] : memref<64x64xbf16, #tpu.memory_space<vmem>>, vector<64x64xbf16>
    %c0_21 = arith.constant 0 : index
    %c0_22 = arith.constant 0 : index
    %64 = vector.load %arg11[%c0_21, %c0_22] : memref<64x64xbf16, #tpu.memory_space<vmem>>, vector<64x64xbf16>
    %c0_23 = arith.constant 0 : index
    %c0_24 = arith.constant 0 : index
    %65 = vector.load %arg12[%c0_23, %c0_24] : memref<64x64xbf16, #tpu.memory_space<vmem>>, vector<64x64xbf16>
    %c0_25 = arith.constant 0 : index
    %c0_26 = arith.constant 0 : index
    %66 = vector.load %arg13[%c0_25, %c0_26] : memref<64x64xbf16, #tpu.memory_space<vmem>>, vector<64x64xbf16>
    %67 = arith.truncf %62 : vector<24x64xf32> to vector<24x64xbf16>
    %cst_27 = arith.constant dense<0.000000e+00> : vector<24x64xf32>
    %68 = tpu.matmul %67, %63, %cst_27 {dimension_numbers = #tpu.dot_dimension_numbers<[1], [0], [0], [1], [0, 0, 1, 1], [], []>} : vector<24x64xbf16>, vector<64x64xbf16>, vector<24x64xf32> -> vector<24x64xf32>
    %69 = arith.truncf %62 : vector<24x64xf32> to vector<24x64xbf16>
    %cst_28 = arith.constant dense<0.000000e+00> : vector<24x64xf32>
    %70 = tpu.matmul %69, %64, %cst_28 {dimension_numbers = #tpu.dot_dimension_numbers<[1], [0], [0], [1], [0, 0, 1, 1], [], []>} : vector<24x64xbf16>, vector<64x64xbf16>, vector<24x64xf32> -> vector<24x64xf32>
    %71 = arith.truncf %62 : vector<24x64xf32> to vector<24x64xbf16>
    %cst_29 = arith.constant dense<0.000000e+00> : vector<24x64xf32>
    %72 = tpu.matmul %71, %65, %cst_29 {dimension_numbers = #tpu.dot_dimension_numbers<[1], [0], [0], [1], [0, 0, 1, 1], [], []>} : vector<24x64xbf16>, vector<64x64xbf16>, vector<24x64xf32> -> vector<24x64xf32>
    %73 = arith.truncf %68 : vector<24x64xf32> to vector<24x64xbf16>
    %74 = arith.truncf %70 : vector<24x64xf32> to vector<24x64xbf16>
    %cst_30 = arith.constant dense<0.000000e+00> : vector<24x24xf32>
    %75 = tpu.matmul %73, %74, %cst_30 {dimension_numbers = #tpu.dot_dimension_numbers<[1], [1], [0], [0], [0, 0, 1, 0], [], []>} : vector<24x64xbf16>, vector<24x64xbf16>, vector<24x24xf32> -> vector<24x24xf32>
    %76 = vector.broadcast %30 : vector<1x24xf32> to vector<24x24xf32>
    %77 = arith.addf %75, %76 : vector<24x24xf32>
    %cst_31 = arith.constant dense<0xFF800000> : vector<24xf32>
    %78 = vector.multi_reduction <maximumf>, %77, %cst_31 [1] : vector<24x24xf32> to vector<24xf32>
    %79 = vector.shape_cast %78 : vector<24xf32> to vector<24x1xf32>
    %80 = vector.broadcast %79 : vector<24x1xf32> to vector<24x24xf32>
    %81 = arith.subf %77, %80 : vector<24x24xf32>
    %82 = math.exp %81 : vector<24x24xf32>
    %cst_32 = arith.constant dense<0.000000e+00> : vector<24xf32>
    %83 = vector.multi_reduction <add>, %82, %cst_32 [1] : vector<24x24xf32> to vector<24xf32>
    %84 = vector.shape_cast %83 : vector<24xf32> to vector<24x1xf32>
    %85 = tpu.reciprocal %84 {approx = true} : vector<24x1xf32> -> vector<24x1xf32>
    %86 = vector.broadcast %85 : vector<24x1xf32> to vector<24x24xf32>
    %87 = arith.mulf %82, %86 : vector<24x24xf32>
    %88 = arith.truncf %87 : vector<24x24xf32> to vector<24x24xbf16>
    %89 = arith.truncf %72 : vector<24x64xf32> to vector<24x64xbf16>
    %cst_33 = arith.constant dense<0.000000e+00> : vector<24x64xf32>
    %90 = tpu.matmul %88, %89, %cst_33 {dimension_numbers = #tpu.dot_dimension_numbers<[1], [0], [0], [1], [0, 0, 1, 1], [], []>} : vector<24x24xbf16>, vector<24x64xbf16>, vector<24x64xf32> -> vector<24x64xf32>
    %91 = arith.truncf %90 : vector<24x64xf32> to vector<24x64xbf16>
    %cst_34 = arith.constant dense<0.000000e+00> : vector<24x64xf32>
    %92 = tpu.matmul %91, %66, %cst_34 {dimension_numbers = #tpu.dot_dimension_numbers<[1], [0], [0], [1], [0, 0, 1, 1], [], []>} : vector<24x64xbf16>, vector<64x64xbf16>, vector<24x64xf32> -> vector<24x64xf32>
    %93 = vector.broadcast %4 : vector<1x64xf32> to vector<24x64xf32>
    %94 = arith.addf %92, %93 : vector<24x64xf32>
    %95 = arith.addf %40, %94 : vector<24x64xf32>
    %cst_35 = arith.constant dense<0.000000e+00> : vector<24xf32>
    %96 = vector.multi_reduction <add>, %95, %cst_35 [1] : vector<24x64xf32> to vector<24xf32>
    %97 = vector.shape_cast %96 : vector<24xf32> to vector<24x1xf32>
    %cst_36 = arith.constant 6.400000e+01 : f32
    %98 = vector.broadcast %cst_36 : f32 to vector<24x1xf32>
    %99 = arith.divf %97, %98 : vector<24x1xf32>
    %100 = vector.broadcast %99 : vector<24x1xf32> to vector<24x64xf32>
    %101 = arith.subf %95, %100 : vector<24x64xf32>
    %102 = arith.mulf %101, %101 : vector<24x64xf32>
    %cst_37 = arith.constant dense<0.000000e+00> : vector<24xf32>
    %103 = vector.multi_reduction <add>, %102, %cst_37 [1] : vector<24x64xf32> to vector<24xf32>
    %104 = vector.shape_cast %103 : vector<24xf32> to vector<24x1xf32>
    %cst_38 = arith.constant 6.400000e+01 : f32
    %105 = vector.broadcast %cst_38 : f32 to vector<24x1xf32>
    %106 = arith.divf %104, %105 : vector<24x1xf32>
    %107 = vector.broadcast %99 : vector<24x1xf32> to vector<24x64xf32>
    %108 = arith.subf %95, %107 : vector<24x64xf32>
    %cst_39 = arith.constant 9.99999997E-7 : f32
    %109 = vector.broadcast %cst_39 : f32 to vector<24x1xf32>
    %110 = arith.addf %106, %109 : vector<24x1xf32>
    %111 = math.rsqrt %110 : vector<24x1xf32>
    %112 = vector.broadcast %111 : vector<24x1xf32> to vector<24x64xf32>
    %113 = arith.mulf %108, %112 : vector<24x64xf32>
    %114 = vector.broadcast %5 : vector<1x64xf32> to vector<24x64xf32>
    %115 = arith.mulf %113, %114 : vector<24x64xf32>
    %116 = vector.broadcast %6 : vector<1x64xf32> to vector<24x64xf32>
    %117 = arith.addf %115, %116 : vector<24x64xf32>
    %cst_40 = arith.constant dense<0.000000e+00> : vector<16xf32>
    %118 = vector.multi_reduction <add>, %32, %cst_40 [1] : vector<16x64xf32> to vector<16xf32>
    %119 = vector.shape_cast %118 : vector<16xf32> to vector<16x1xf32>
    %cst_41 = arith.constant 6.400000e+01 : f32
    %120 = vector.broadcast %cst_41 : f32 to vector<16x1xf32>
    %121 = arith.divf %119, %120 : vector<16x1xf32>
    %122 = vector.broadcast %121 : vector<16x1xf32> to vector<16x64xf32>
    %123 = arith.subf %32, %122 : vector<16x64xf32>
    %124 = arith.mulf %123, %123 : vector<16x64xf32>
    %cst_42 = arith.constant dense<0.000000e+00> : vector<16xf32>
    %125 = vector.multi_reduction <add>, %124, %cst_42 [1] : vector<16x64xf32> to vector<16xf32>
    %126 = vector.shape_cast %125 : vector<16xf32> to vector<16x1xf32>
    %cst_43 = arith.constant 6.400000e+01 : f32
    %127 = vector.broadcast %cst_43 : f32 to vector<16x1xf32>
    %128 = arith.divf %126, %127 : vector<16x1xf32>
    %129 = vector.broadcast %121 : vector<16x1xf32> to vector<16x64xf32>
    %130 = arith.subf %32, %129 : vector<16x64xf32>
    %cst_44 = arith.constant 9.99999997E-7 : f32
    %131 = vector.broadcast %cst_44 : f32 to vector<16x1xf32>
    %132 = arith.addf %128, %131 : vector<16x1xf32>
    %133 = math.rsqrt %132 : vector<16x1xf32>
    %134 = vector.broadcast %133 : vector<16x1xf32> to vector<16x64xf32>
    %135 = arith.mulf %130, %134 : vector<16x64xf32>
    %136 = vector.broadcast %7 : vector<1x64xf32> to vector<16x64xf32>
    %137 = arith.mulf %135, %136 : vector<16x64xf32>
    %138 = vector.broadcast %8 : vector<1x64xf32> to vector<16x64xf32>
    %139 = arith.addf %137, %138 : vector<16x64xf32>
    %c0_45 = arith.constant 0 : index
    %c0_46 = arith.constant 0 : index
    %140 = vector.load %arg14[%c0_45, %c0_46] : memref<64x64xbf16, #tpu.memory_space<vmem>>, vector<64x64xbf16>
    %c0_47 = arith.constant 0 : index
    %c0_48 = arith.constant 0 : index
    %141 = vector.load %arg15[%c0_47, %c0_48] : memref<64x64xbf16, #tpu.memory_space<vmem>>, vector<64x64xbf16>
    %c0_49 = arith.constant 0 : index
    %c0_50 = arith.constant 0 : index
    %142 = vector.load %arg16[%c0_49, %c0_50] : memref<64x64xbf16, #tpu.memory_space<vmem>>, vector<64x64xbf16>
    %c0_51 = arith.constant 0 : index
    %c0_52 = arith.constant 0 : index
    %143 = vector.load %arg17[%c0_51, %c0_52] : memref<64x64xbf16, #tpu.memory_space<vmem>>, vector<64x64xbf16>
    %144 = arith.truncf %117 : vector<24x64xf32> to vector<24x64xbf16>
    %cst_53 = arith.constant dense<0.000000e+00> : vector<24x64xf32>
    %145 = tpu.matmul %144, %140, %cst_53 {dimension_numbers = #tpu.dot_dimension_numbers<[1], [0], [0], [1], [0, 0, 1, 1], [], []>} : vector<24x64xbf16>, vector<64x64xbf16>, vector<24x64xf32> -> vector<24x64xf32>
    %146 = arith.truncf %139 : vector<16x64xf32> to vector<16x64xbf16>
    %cst_54 = arith.constant dense<0.000000e+00> : vector<16x64xf32>
    %147 = tpu.matmul %146, %141, %cst_54 {dimension_numbers = #tpu.dot_dimension_numbers<[1], [0], [0], [1], [0, 0, 1, 1], [], []>} : vector<16x64xbf16>, vector<64x64xbf16>, vector<16x64xf32> -> vector<16x64xf32>
    %148 = arith.truncf %139 : vector<16x64xf32> to vector<16x64xbf16>
    %cst_55 = arith.constant dense<0.000000e+00> : vector<16x64xf32>
    %149 = tpu.matmul %148, %142, %cst_55 {dimension_numbers = #tpu.dot_dimension_numbers<[1], [0], [0], [1], [0, 0, 1, 1], [], []>} : vector<16x64xbf16>, vector<64x64xbf16>, vector<16x64xf32> -> vector<16x64xf32>
    %150 = arith.truncf %145 : vector<24x64xf32> to vector<24x64xbf16>
    %151 = arith.truncf %147 : vector<16x64xf32> to vector<16x64xbf16>
    %cst_56 = arith.constant dense<0.000000e+00> : vector<24x16xf32>
    %152 = tpu.matmul %150, %151, %cst_56 {dimension_numbers = #tpu.dot_dimension_numbers<[1], [1], [0], [0], [0, 0, 1, 0], [], []>} : vector<24x64xbf16>, vector<16x64xbf16>, vector<24x16xf32> -> vector<24x16xf32>
    %cst_57 = arith.constant dense<0xFF800000> : vector<24xf32>
    %153 = vector.multi_reduction <maximumf>, %152, %cst_57 [1] : vector<24x16xf32> to vector<24xf32>
    %154 = vector.shape_cast %153 : vector<24xf32> to vector<24x1xf32>
    %155 = vector.broadcast %154 : vector<24x1xf32> to vector<24x16xf32>
    %156 = arith.subf %152, %155 : vector<24x16xf32>
    %157 = math.exp %156 : vector<24x16xf32>
    %cst_58 = arith.constant dense<0.000000e+00> : vector<24xf32>
    %158 = vector.multi_reduction <add>, %157, %cst_58 [1] : vector<24x16xf32> to vector<24xf32>
    %159 = vector.shape_cast %158 : vector<24xf32> to vector<24x1xf32>
    %160 = tpu.reciprocal %159 {approx = true} : vector<24x1xf32> -> vector<24x1xf32>
    %161 = vector.broadcast %160 : vector<24x1xf32> to vector<24x16xf32>
    %162 = arith.mulf %157, %161 : vector<24x16xf32>
    %163 = arith.truncf %162 : vector<24x16xf32> to vector<24x16xbf16>
    %164 = arith.truncf %149 : vector<16x64xf32> to vector<16x64xbf16>
    %cst_59 = arith.constant dense<0.000000e+00> : vector<24x64xf32>
    %165 = tpu.matmul %163, %164, %cst_59 {dimension_numbers = #tpu.dot_dimension_numbers<[1], [0], [0], [1], [0, 0, 1, 1], [], []>} : vector<24x16xbf16>, vector<16x64xbf16>, vector<24x64xf32> -> vector<24x64xf32>
    %166 = arith.truncf %165 : vector<24x64xf32> to vector<24x64xbf16>
    %cst_60 = arith.constant dense<0.000000e+00> : vector<24x64xf32>
    %167 = tpu.matmul %166, %143, %cst_60 {dimension_numbers = #tpu.dot_dimension_numbers<[1], [0], [0], [1], [0, 0, 1, 1], [], []>} : vector<24x64xbf16>, vector<64x64xbf16>, vector<24x64xf32> -> vector<24x64xf32>
    %168 = vector.broadcast %9 : vector<1x64xf32> to vector<24x64xf32>
    %169 = arith.addf %167, %168 : vector<24x64xf32>
    %170 = arith.addf %95, %169 : vector<24x64xf32>
    %cst_61 = arith.constant dense<0.000000e+00> : vector<24xf32>
    %171 = vector.multi_reduction <add>, %170, %cst_61 [1] : vector<24x64xf32> to vector<24xf32>
    %172 = vector.shape_cast %171 : vector<24xf32> to vector<24x1xf32>
    %cst_62 = arith.constant 6.400000e+01 : f32
    %173 = vector.broadcast %cst_62 : f32 to vector<24x1xf32>
    %174 = arith.divf %172, %173 : vector<24x1xf32>
    %175 = vector.broadcast %174 : vector<24x1xf32> to vector<24x64xf32>
    %176 = arith.subf %170, %175 : vector<24x64xf32>
    %177 = arith.mulf %176, %176 : vector<24x64xf32>
    %cst_63 = arith.constant dense<0.000000e+00> : vector<24xf32>
    %178 = vector.multi_reduction <add>, %177, %cst_63 [1] : vector<24x64xf32> to vector<24xf32>
    %179 = vector.shape_cast %178 : vector<24xf32> to vector<24x1xf32>
    %cst_64 = arith.constant 6.400000e+01 : f32
    %180 = vector.broadcast %cst_64 : f32 to vector<24x1xf32>
    %181 = arith.divf %179, %180 : vector<24x1xf32>
    %182 = vector.broadcast %174 : vector<24x1xf32> to vector<24x64xf32>
    %183 = arith.subf %170, %182 : vector<24x64xf32>
    %cst_65 = arith.constant 9.99999997E-7 : f32
    %184 = vector.broadcast %cst_65 : f32 to vector<24x1xf32>
    %185 = arith.addf %181, %184 : vector<24x1xf32>
    %186 = math.rsqrt %185 : vector<24x1xf32>
    %187 = vector.broadcast %186 : vector<24x1xf32> to vector<24x64xf32>
    %188 = arith.mulf %183, %187 : vector<24x64xf32>
    %189 = vector.broadcast %10 : vector<1x64xf32> to vector<24x64xf32>
    %190 = arith.mulf %188, %189 : vector<24x64xf32>
    %191 = vector.broadcast %11 : vector<1x64xf32> to vector<24x64xf32>
    %192 = arith.addf %190, %191 : vector<24x64xf32>
    %c0_66 = arith.constant 0 : index
    %c0_67 = arith.constant 0 : index
    %193 = vector.load %arg18[%c0_66, %c0_67] : memref<64x128xbf16, #tpu.memory_space<vmem>>, vector<64x128xbf16>
    %c0_68 = arith.constant 0 : index
    %c0_69 = arith.constant 0 : index
    %194 = vector.load %arg19[%c0_68, %c0_69] : memref<128x64xbf16, #tpu.memory_space<vmem>>, vector<128x64xbf16>
    %195 = arith.truncf %192 : vector<24x64xf32> to vector<24x64xbf16>
    %cst_70 = arith.constant dense<0.000000e+00> : vector<24x128xf32>
    %196 = tpu.matmul %195, %193, %cst_70 {dimension_numbers = #tpu.dot_dimension_numbers<[1], [0], [0], [1], [0, 0, 1, 1], [], []>} : vector<24x64xbf16>, vector<64x128xbf16>, vector<24x128xf32> -> vector<24x128xf32>
    %197 = vector.broadcast %23 : vector<1x128xf32> to vector<24x128xf32>
    %198 = arith.addf %196, %197 : vector<24x128xf32>
    %199 = arith.mulf %198, %198 : vector<24x128xf32>
    %200 = arith.mulf %198, %199 : vector<24x128xf32>
    %cst_71 = arith.constant 4.471500e-02 : f32
    %201 = vector.broadcast %cst_71 : f32 to vector<24x128xf32>
    %202 = arith.mulf %201, %200 : vector<24x128xf32>
    %203 = arith.addf %198, %202 : vector<24x128xf32>
    %cst_72 = arith.constant 0.797884583 : f32
    %204 = vector.broadcast %cst_72 : f32 to vector<24x128xf32>
    %205 = arith.mulf %204, %203 : vector<24x128xf32>
    %206 = math.tanh %205 : vector<24x128xf32>
    %cst_73 = arith.constant 1.000000e+00 : f32
    %207 = vector.broadcast %cst_73 : f32 to vector<24x128xf32>
    %208 = arith.addf %207, %206 : vector<24x128xf32>
    %cst_74 = arith.constant 5.000000e-01 : f32
    %209 = vector.broadcast %cst_74 : f32 to vector<24x128xf32>
    %210 = arith.mulf %209, %208 : vector<24x128xf32>
    %211 = arith.mulf %198, %210 : vector<24x128xf32>
    %212 = arith.truncf %211 : vector<24x128xf32> to vector<24x128xbf16>
    %cst_75 = arith.constant dense<0.000000e+00> : vector<24x64xf32>
    %213 = tpu.matmul %212, %194, %cst_75 {dimension_numbers = #tpu.dot_dimension_numbers<[1], [0], [0], [1], [0, 0, 1, 1], [], []>} : vector<24x128xbf16>, vector<128x64xbf16>, vector<24x64xf32> -> vector<24x64xf32>
    %214 = vector.broadcast %12 : vector<1x64xf32> to vector<24x64xf32>
    %215 = arith.addf %213, %214 : vector<24x64xf32>
    %216 = arith.addf %170, %215 : vector<24x64xf32>
    %cst_76 = arith.constant dense<0.000000e+00> : vector<16xf32>
    %217 = vector.multi_reduction <add>, %32, %cst_76 [1] : vector<16x64xf32> to vector<16xf32>
    %218 = vector.shape_cast %217 : vector<16xf32> to vector<16x1xf32>
    %cst_77 = arith.constant 6.400000e+01 : f32
    %219 = vector.broadcast %cst_77 : f32 to vector<16x1xf32>
    %220 = arith.divf %218, %219 : vector<16x1xf32>
    %221 = vector.broadcast %220 : vector<16x1xf32> to vector<16x64xf32>
    %222 = arith.subf %32, %221 : vector<16x64xf32>
    %223 = arith.mulf %222, %222 : vector<16x64xf32>
    %cst_78 = arith.constant dense<0.000000e+00> : vector<16xf32>
    %224 = vector.multi_reduction <add>, %223, %cst_78 [1] : vector<16x64xf32> to vector<16xf32>
    %225 = vector.shape_cast %224 : vector<16xf32> to vector<16x1xf32>
    %cst_79 = arith.constant 6.400000e+01 : f32
    %226 = vector.broadcast %cst_79 : f32 to vector<16x1xf32>
    %227 = arith.divf %225, %226 : vector<16x1xf32>
    %228 = vector.broadcast %220 : vector<16x1xf32> to vector<16x64xf32>
    %229 = arith.subf %32, %228 : vector<16x64xf32>
    %cst_80 = arith.constant 9.99999997E-7 : f32
    %230 = vector.broadcast %cst_80 : f32 to vector<16x1xf32>
    %231 = arith.addf %227, %230 : vector<16x1xf32>
    %232 = math.rsqrt %231 : vector<16x1xf32>
    %233 = vector.broadcast %232 : vector<16x1xf32> to vector<16x64xf32>
    %234 = arith.mulf %229, %233 : vector<16x64xf32>
    %235 = vector.broadcast %13 : vector<1x64xf32> to vector<16x64xf32>
    %236 = arith.mulf %234, %235 : vector<16x64xf32>
    %237 = vector.broadcast %14 : vector<1x64xf32> to vector<16x64xf32>
    %238 = arith.addf %236, %237 : vector<16x64xf32>
    %cst_81 = arith.constant dense<0.000000e+00> : vector<24xf32>
    %239 = vector.multi_reduction <add>, %216, %cst_81 [1] : vector<24x64xf32> to vector<24xf32>
    %240 = vector.shape_cast %239 : vector<24xf32> to vector<24x1xf32>
    %cst_82 = arith.constant 6.400000e+01 : f32
    %241 = vector.broadcast %cst_82 : f32 to vector<24x1xf32>
    %242 = arith.divf %240, %241 : vector<24x1xf32>
    %243 = vector.broadcast %242 : vector<24x1xf32> to vector<24x64xf32>
    %244 = arith.subf %216, %243 : vector<24x64xf32>
    %245 = arith.mulf %244, %244 : vector<24x64xf32>
    %cst_83 = arith.constant dense<0.000000e+00> : vector<24xf32>
    %246 = vector.multi_reduction <add>, %245, %cst_83 [1] : vector<24x64xf32> to vector<24xf32>
    %247 = vector.shape_cast %246 : vector<24xf32> to vector<24x1xf32>
    %cst_84 = arith.constant 6.400000e+01 : f32
    %248 = vector.broadcast %cst_84 : f32 to vector<24x1xf32>
    %249 = arith.divf %247, %248 : vector<24x1xf32>
    %250 = vector.broadcast %242 : vector<24x1xf32> to vector<24x64xf32>
    %251 = arith.subf %216, %250 : vector<24x64xf32>
    %cst_85 = arith.constant 9.99999997E-7 : f32
    %252 = vector.broadcast %cst_85 : f32 to vector<24x1xf32>
    %253 = arith.addf %249, %252 : vector<24x1xf32>
    %254 = math.rsqrt %253 : vector<24x1xf32>
    %255 = vector.broadcast %254 : vector<24x1xf32> to vector<24x64xf32>
    %256 = arith.mulf %251, %255 : vector<24x64xf32>
    %257 = vector.broadcast %15 : vector<1x64xf32> to vector<24x64xf32>
    %258 = arith.mulf %256, %257 : vector<24x64xf32>
    %259 = vector.broadcast %16 : vector<1x64xf32> to vector<24x64xf32>
    %260 = arith.addf %258, %259 : vector<24x64xf32>
    %c0_86 = arith.constant 0 : index
    %c0_87 = arith.constant 0 : index
    %261 = vector.load %arg20[%c0_86, %c0_87] : memref<64x64xbf16, #tpu.memory_space<vmem>>, vector<64x64xbf16>
    %c0_88 = arith.constant 0 : index
    %c0_89 = arith.constant 0 : index
    %262 = vector.load %arg21[%c0_88, %c0_89] : memref<64x64xbf16, #tpu.memory_space<vmem>>, vector<64x64xbf16>
    %c0_90 = arith.constant 0 : index
    %c0_91 = arith.constant 0 : index
    %263 = vector.load %arg22[%c0_90, %c0_91] : memref<64x64xbf16, #tpu.memory_space<vmem>>, vector<64x64xbf16>
    %c0_92 = arith.constant 0 : index
    %c0_93 = arith.constant 0 : index
    %264 = vector.load %arg23[%c0_92, %c0_93] : memref<64x64xbf16, #tpu.memory_space<vmem>>, vector<64x64xbf16>
    %265 = arith.truncf %238 : vector<16x64xf32> to vector<16x64xbf16>
    %cst_94 = arith.constant dense<0.000000e+00> : vector<16x64xf32>
    %266 = tpu.matmul %265, %261, %cst_94 {dimension_numbers = #tpu.dot_dimension_numbers<[1], [0], [0], [1], [0, 0, 1, 1], [], []>} : vector<16x64xbf16>, vector<64x64xbf16>, vector<16x64xf32> -> vector<16x64xf32>
    %267 = arith.truncf %260 : vector<24x64xf32> to vector<24x64xbf16>
    %cst_95 = arith.constant dense<0.000000e+00> : vector<24x64xf32>
    %268 = tpu.matmul %267, %262, %cst_95 {dimension_numbers = #tpu.dot_dimension_numbers<[1], [0], [0], [1], [0, 0, 1, 1], [], []>} : vector<24x64xbf16>, vector<64x64xbf16>, vector<24x64xf32> -> vector<24x64xf32>
    %269 = arith.truncf %260 : vector<24x64xf32> to vector<24x64xbf16>
    %cst_96 = arith.constant dense<0.000000e+00> : vector<24x64xf32>
    %270 = tpu.matmul %269, %263, %cst_96 {dimension_numbers = #tpu.dot_dimension_numbers<[1], [0], [0], [1], [0, 0, 1, 1], [], []>} : vector<24x64xbf16>, vector<64x64xbf16>, vector<24x64xf32> -> vector<24x64xf32>
    %271 = arith.truncf %266 : vector<16x64xf32> to vector<16x64xbf16>
    %272 = arith.truncf %268 : vector<24x64xf32> to vector<24x64xbf16>
    %cst_97 = arith.constant dense<0.000000e+00> : vector<16x24xf32>
    %273 = tpu.matmul %271, %272, %cst_97 {dimension_numbers = #tpu.dot_dimension_numbers<[1], [1], [0], [0], [0, 0, 1, 0], [], []>} : vector<16x64xbf16>, vector<24x64xbf16>, vector<16x24xf32> -> vector<16x24xf32>
    %274 = vector.broadcast %30 : vector<1x24xf32> to vector<16x24xf32>
    %275 = arith.addf %273, %274 : vector<16x24xf32>
    %cst_98 = arith.constant dense<0xFF800000> : vector<16xf32>
    %276 = vector.multi_reduction <maximumf>, %275, %cst_98 [1] : vector<16x24xf32> to vector<16xf32>
    %277 = vector.shape_cast %276 : vector<16xf32> to vector<16x1xf32>
    %278 = vector.broadcast %277 : vector<16x1xf32> to vector<16x24xf32>
    %279 = arith.subf %275, %278 : vector<16x24xf32>
    %280 = math.exp %279 : vector<16x24xf32>
    %cst_99 = arith.constant dense<0.000000e+00> : vector<16xf32>
    %281 = vector.multi_reduction <add>, %280, %cst_99 [1] : vector<16x24xf32> to vector<16xf32>
    %282 = vector.shape_cast %281 : vector<16xf32> to vector<16x1xf32>
    %283 = tpu.reciprocal %282 {approx = true} : vector<16x1xf32> -> vector<16x1xf32>
    %284 = vector.broadcast %283 : vector<16x1xf32> to vector<16x24xf32>
    %285 = arith.mulf %280, %284 : vector<16x24xf32>
    %286 = arith.truncf %285 : vector<16x24xf32> to vector<16x24xbf16>
    %287 = arith.truncf %270 : vector<24x64xf32> to vector<24x64xbf16>
    %cst_100 = arith.constant dense<0.000000e+00> : vector<16x64xf32>
    %288 = tpu.matmul %286, %287, %cst_100 {dimension_numbers = #tpu.dot_dimension_numbers<[1], [0], [0], [1], [0, 0, 1, 1], [], []>} : vector<16x24xbf16>, vector<24x64xbf16>, vector<16x64xf32> -> vector<16x64xf32>
    %289 = arith.truncf %288 : vector<16x64xf32> to vector<16x64xbf16>
    %cst_101 = arith.constant dense<0.000000e+00> : vector<16x64xf32>
    %290 = tpu.matmul %289, %264, %cst_101 {dimension_numbers = #tpu.dot_dimension_numbers<[1], [0], [0], [1], [0, 0, 1, 1], [], []>} : vector<16x64xbf16>, vector<64x64xbf16>, vector<16x64xf32> -> vector<16x64xf32>
    %291 = vector.broadcast %17 : vector<1x64xf32> to vector<16x64xf32>
    %292 = arith.addf %290, %291 : vector<16x64xf32>
    %293 = arith.addf %32, %292 : vector<16x64xf32>
    %294 = vector.extract_strided_slice %216 {offsets = [16, 0], sizes = [1, 64], strides = [1, 1]} : vector<24x64xf32> to vector<1x64xf32>
    %295 = tpu.concatenate %39, %294 in 0 : vector<1x64xf32>, vector<1x64xf32> -> vector<2x64xf32>
    %cst_102 = arith.constant dense<0.000000e+00> : vector<8xf32>
    %296 = vector.multi_reduction <add>, %33, %cst_102 [1] : vector<8x64xf32> to vector<8xf32>
    %297 = vector.shape_cast %296 : vector<8xf32> to vector<8x1xf32>
    %cst_103 = arith.constant 6.400000e+01 : f32
    %298 = vector.broadcast %cst_103 : f32 to vector<8x1xf32>
    %299 = arith.divf %297, %298 : vector<8x1xf32>
    %300 = vector.broadcast %299 : vector<8x1xf32> to vector<8x64xf32>
    %301 = arith.subf %33, %300 : vector<8x64xf32>
    %302 = arith.mulf %301, %301 : vector<8x64xf32>
    %cst_104 = arith.constant dense<0.000000e+00> : vector<8xf32>
    %303 = vector.multi_reduction <add>, %302, %cst_104 [1] : vector<8x64xf32> to vector<8xf32>
    %304 = vector.shape_cast %303 : vector<8xf32> to vector<8x1xf32>
    %cst_105 = arith.constant 6.400000e+01 : f32
    %305 = vector.broadcast %cst_105 : f32 to vector<8x1xf32>
    %306 = arith.divf %304, %305 : vector<8x1xf32>
    %307 = vector.broadcast %299 : vector<8x1xf32> to vector<8x64xf32>
    %308 = arith.subf %33, %307 : vector<8x64xf32>
    %cst_106 = arith.constant 9.99999997E-7 : f32
    %309 = vector.broadcast %cst_106 : f32 to vector<8x1xf32>
    %310 = arith.addf %306, %309 : vector<8x1xf32>
    %311 = math.rsqrt %310 : vector<8x1xf32>
    %312 = vector.broadcast %311 : vector<8x1xf32> to vector<8x64xf32>
    %313 = arith.mulf %308, %312 : vector<8x64xf32>
    %314 = vector.broadcast %18 : vector<1x64xf32> to vector<8x64xf32>
    %315 = arith.mulf %313, %314 : vector<8x64xf32>
    %316 = vector.broadcast %19 : vector<1x64xf32> to vector<8x64xf32>
    %317 = arith.addf %315, %316 : vector<8x64xf32>
    %c0_107 = arith.constant 0 : index
    %c0_108 = arith.constant 0 : index
    %318 = vector.load %arg24[%c0_107, %c0_108] : memref<64x64xbf16, #tpu.memory_space<vmem>>, vector<64x64xbf16>
    %c0_109 = arith.constant 0 : index
    %c0_110 = arith.constant 0 : index
    %319 = vector.load %arg25[%c0_109, %c0_110] : memref<64x64xbf16, #tpu.memory_space<vmem>>, vector<64x64xbf16>
    %c0_111 = arith.constant 0 : index
    %c0_112 = arith.constant 0 : index
    %320 = vector.load %arg26[%c0_111, %c0_112] : memref<64x64xbf16, #tpu.memory_space<vmem>>, vector<64x64xbf16>
    %c0_113 = arith.constant 0 : index
    %c0_114 = arith.constant 0 : index
    %321 = vector.load %arg27[%c0_113, %c0_114] : memref<64x64xbf16, #tpu.memory_space<vmem>>, vector<64x64xbf16>
    %322 = arith.truncf %317 : vector<8x64xf32> to vector<8x64xbf16>
    %cst_115 = arith.constant dense<0.000000e+00> : vector<8x64xf32>
    %323 = tpu.matmul %322, %318, %cst_115 {dimension_numbers = #tpu.dot_dimension_numbers<[1], [0], [0], [1], [0, 0, 1, 1], [], []>} : vector<8x64xbf16>, vector<64x64xbf16>, vector<8x64xf32> -> vector<8x64xf32>
    %324 = arith.truncf %295 : vector<2x64xf32> to vector<2x64xbf16>
    %cst_116 = arith.constant dense<0.000000e+00> : vector<2x64xf32>
    %325 = tpu.matmul %324, %319, %cst_116 {dimension_numbers = #tpu.dot_dimension_numbers<[1], [0], [0], [1], [0, 0, 1, 1], [], []>} : vector<2x64xbf16>, vector<64x64xbf16>, vector<2x64xf32> -> vector<2x64xf32>
    %326 = arith.truncf %295 : vector<2x64xf32> to vector<2x64xbf16>
    %cst_117 = arith.constant dense<0.000000e+00> : vector<2x64xf32>
    %327 = tpu.matmul %326, %320, %cst_117 {dimension_numbers = #tpu.dot_dimension_numbers<[1], [0], [0], [1], [0, 0, 1, 1], [], []>} : vector<2x64xbf16>, vector<64x64xbf16>, vector<2x64xf32> -> vector<2x64xf32>
    %328 = arith.truncf %323 : vector<8x64xf32> to vector<8x64xbf16>
    %329 = arith.truncf %325 : vector<2x64xf32> to vector<2x64xbf16>
    %cst_118 = arith.constant dense<0.000000e+00> : vector<8x2xf32>
    %330 = tpu.matmul %328, %329, %cst_118 {dimension_numbers = #tpu.dot_dimension_numbers<[1], [1], [0], [0], [0, 0, 1, 0], [], []>} : vector<8x64xbf16>, vector<2x64xbf16>, vector<8x2xf32> -> vector<8x2xf32>
    %cst_119 = arith.constant dense<0xFF800000> : vector<8xf32>
    %331 = vector.multi_reduction <maximumf>, %330, %cst_119 [1] : vector<8x2xf32> to vector<8xf32>
    %332 = vector.shape_cast %331 : vector<8xf32> to vector<8x1xf32>
    %333 = vector.broadcast %332 : vector<8x1xf32> to vector<8x2xf32>
    %334 = arith.subf %330, %333 : vector<8x2xf32>
    %335 = math.exp %334 : vector<8x2xf32>
    %cst_120 = arith.constant dense<0.000000e+00> : vector<8xf32>
    %336 = vector.multi_reduction <add>, %335, %cst_120 [1] : vector<8x2xf32> to vector<8xf32>
    %337 = vector.shape_cast %336 : vector<8xf32> to vector<8x1xf32>
    %338 = tpu.reciprocal %337 {approx = true} : vector<8x1xf32> -> vector<8x1xf32>
    %339 = vector.broadcast %338 : vector<8x1xf32> to vector<8x2xf32>
    %340 = arith.mulf %335, %339 : vector<8x2xf32>
    %341 = arith.truncf %340 : vector<8x2xf32> to vector<8x2xbf16>
    %342 = arith.truncf %327 : vector<2x64xf32> to vector<2x64xbf16>
    %cst_121 = arith.constant dense<0.000000e+00> : vector<8x64xf32>
    %343 = tpu.matmul %341, %342, %cst_121 {dimension_numbers = #tpu.dot_dimension_numbers<[1], [0], [0], [1], [0, 0, 1, 1], [], []>} : vector<8x2xbf16>, vector<2x64xbf16>, vector<8x64xf32> -> vector<8x64xf32>
    %344 = arith.truncf %343 : vector<8x64xf32> to vector<8x64xbf16>
    %cst_122 = arith.constant dense<0.000000e+00> : vector<8x64xf32>
    %345 = tpu.matmul %344, %321, %cst_122 {dimension_numbers = #tpu.dot_dimension_numbers<[1], [0], [0], [1], [0, 0, 1, 1], [], []>} : vector<8x64xbf16>, vector<64x64xbf16>, vector<8x64xf32> -> vector<8x64xf32>
    %346 = vector.broadcast %20 : vector<1x64xf32> to vector<8x64xf32>
    %347 = arith.addf %345, %346 : vector<8x64xf32>
    %348 = arith.addf %33, %347 : vector<8x64xf32>
    %349 = vector.extract_strided_slice %216 {offsets = [0, 0], sizes = [16, 64], strides = [1, 1]} : vector<24x64xf32> to vector<16x64xf32>
    %c0_123 = arith.constant 0 : index
    %c0_124 = arith.constant 0 : index
    %350 = vector.load %arg28[%c0_123, %c0_124] : memref<64x128xbf16, #tpu.memory_space<vmem>>, vector<64x128xbf16>
    %351 = arith.truncf %349 : vector<16x64xf32> to vector<16x64xbf16>
    %cst_125 = arith.constant dense<0.000000e+00> : vector<16x128xf32>
    %352 = tpu.matmul %351, %350, %cst_125 {dimension_numbers = #tpu.dot_dimension_numbers<[1], [0], [0], [1], [0, 0, 1, 1], [], []>} : vector<16x64xbf16>, vector<64x128xbf16>, vector<16x128xf32> -> vector<16x128xf32>
    %353 = vector.broadcast %24 : vector<1x128xf32> to vector<16x128xf32>
    %354 = arith.addf %352, %353 : vector<16x128xf32>
    %c0_126 = arith.constant 0 : index
    %c0_127 = arith.constant 0 : index
    %c0_128 = arith.constant 0 : index
    %355 = vector.load %arg29[%c0_126, %c0_127, %c0_128] : memref<2x16x128xf32, #tpu.memory_space<vmem>>, vector<1x16x128xf32>
    %356 = vector.shape_cast %355 : vector<1x16x128xf32> to vector<16x128xf32>
    %357 = vector.shape_cast %354 : vector<16x128xf32> to vector<1x16x128xf32>
    tpu.vector_store %arg29[%c0_126, %c0_127, %c0_128], %357 {strides = array<i32>} : memref<2x16x128xf32, #tpu.memory_space<vmem>>, vector<1x16x128xf32>,
    %c1 = arith.constant 1 : index
    %c0_129 = arith.constant 0 : index
    %c0_130 = arith.constant 0 : index
    %358 = vector.load %arg1[%c1, %c0_129, %c0_130] : memref<2x16x64xf32, #tpu.memory_space<vmem>>, vector<1x16x64xf32>
    %359 = vector.shape_cast %358 : vector<1x16x64xf32> to vector<16x64xf32>
    %cst_131 = arith.constant dense<0.000000e+00> : vector<64xf32>
    %360 = vector.multi_reduction <add>, %359, %cst_131 [0] : vector<16x64xf32> to vector<64xf32>
    %361 = vector.shape_cast %360 : vector<64xf32> to vector<1x64xf32>
    %cst_132 = arith.constant 1.600000e+01 : f32
    %362 = vector.broadcast %cst_132 : f32 to vector<1x64xf32>
    %363 = arith.divf %361, %362 : vector<1x64xf32>
    %c0_133 = arith.constant 0 : index
    %c0_134 = arith.constant 0 : index
    %364 = vector.load %arg6[%c0_133, %c0_134] : memref<64x64xbf16, #tpu.memory_space<vmem>>, vector<64x64xbf16>
    %c0_135 = arith.constant 0 : index
    %c0_136 = arith.constant 0 : index
    %365 = vector.load %arg7[%c0_135, %c0_136] : memref<64x64xbf16, #tpu.memory_space<vmem>>, vector<64x64xbf16>
    %c0_137 = arith.constant 0 : index
    %c0_138 = arith.constant 0 : index
    %366 = vector.load %arg8[%c0_137, %c0_138] : memref<64x64xbf16, #tpu.memory_space<vmem>>, vector<64x64xbf16>
    %c0_139 = arith.constant 0 : index
    %c0_140 = arith.constant 0 : index
    %367 = vector.load %arg9[%c0_139, %c0_140] : memref<64x64xbf16, #tpu.memory_space<vmem>>, vector<64x64xbf16>
    %368 = arith.truncf %363 : vector<1x64xf32> to vector<1x64xbf16>
    %cst_141 = arith.constant dense<0.000000e+00> : vector<1x64xf32>
    %369 = tpu.matmul %368, %364, %cst_141 {dimension_numbers = #tpu.dot_dimension_numbers<[1], [0], [0], [1], [0, 0, 1, 1], [], []>} : vector<1x64xbf16>, vector<64x64xbf16>, vector<1x64xf32> -> vector<1x64xf32>
    %370 = arith.truncf %348 : vector<8x64xf32> to vector<8x64xbf16>
    %cst_142 = arith.constant dense<0.000000e+00> : vector<8x64xf32>
    %371 = tpu.matmul %370, %365, %cst_142 {dimension_numbers = #tpu.dot_dimension_numbers<[1], [0], [0], [1], [0, 0, 1, 1], [], []>} : vector<8x64xbf16>, vector<64x64xbf16>, vector<8x64xf32> -> vector<8x64xf32>
    %372 = arith.truncf %348 : vector<8x64xf32> to vector<8x64xbf16>
    %cst_143 = arith.constant dense<0.000000e+00> : vector<8x64xf32>
    %373 = tpu.matmul %372, %366, %cst_143 {dimension_numbers = #tpu.dot_dimension_numbers<[1], [0], [0], [1], [0, 0, 1, 1], [], []>} : vector<8x64xbf16>, vector<64x64xbf16>, vector<8x64xf32> -> vector<8x64xf32>
    %374 = arith.truncf %369 : vector<1x64xf32> to vector<1x64xbf16>
    %375 = arith.truncf %371 : vector<8x64xf32> to vector<8x64xbf16>
    %cst_144 = arith.constant dense<0.000000e+00> : vector<1x8xf32>
    %376 = tpu.matmul %374, %375, %cst_144 {dimension_numbers = #tpu.dot_dimension_numbers<[1], [1], [0], [0], [0, 0, 1, 0], [], []>} : vector<1x64xbf16>, vector<8x64xbf16>, vector<1x8xf32> -> vector<1x8xf32>
    %cst_145 = arith.constant dense<0xFF800000> : vector<1xf32>
    %377 = vector.multi_reduction <maximumf>, %376, %cst_145 [1] : vector<1x8xf32> to vector<1xf32>
    %378 = vector.shape_cast %377 : vector<1xf32> to vector<1x1xf32>
    %379 = vector.broadcast %378 : vector<1x1xf32> to vector<1x8xf32>
    %380 = arith.subf %376, %379 : vector<1x8xf32>
    %381 = math.exp %380 : vector<1x8xf32>
    %cst_146 = arith.constant dense<0.000000e+00> : vector<1xf32>
    %382 = vector.multi_reduction <add>, %381, %cst_146 [1] : vector<1x8xf32> to vector<1xf32>
    %383 = vector.shape_cast %382 : vector<1xf32> to vector<1x1xf32>
    %384 = tpu.reciprocal %383 {approx = true} : vector<1x1xf32> -> vector<1x1xf32>
    %385 = vector.broadcast %384 : vector<1x1xf32> to vector<1x8xf32>
    %386 = arith.mulf %381, %385 : vector<1x8xf32>
    %387 = arith.truncf %386 : vector<1x8xf32> to vector<1x8xbf16>
    %388 = arith.truncf %373 : vector<8x64xf32> to vector<8x64xbf16>
    %cst_147 = arith.constant dense<0.000000e+00> : vector<1x64xf32>
    %389 = tpu.matmul %387, %388, %cst_147 {dimension_numbers = #tpu.dot_dimension_numbers<[1], [0], [0], [1], [0, 0, 1, 1], [], []>} : vector<1x8xbf16>, vector<8x64xbf16>, vector<1x64xf32> -> vector<1x64xf32>
    %390 = arith.truncf %389 : vector<1x64xf32> to vector<1x64xbf16>
    %cst_148 = arith.constant dense<0.000000e+00> : vector<1x64xf32>
    %391 = tpu.matmul %390, %367, %cst_148 {dimension_numbers = #tpu.dot_dimension_numbers<[1], [0], [0], [1], [0, 0, 1, 1], [], []>} : vector<1x64xbf16>, vector<64x64xbf16>, vector<1x64xf32> -> vector<1x64xf32>
    %392 = arith.addf %391, %1 : vector<1x64xf32>
    %393 = tpu.concatenate %359, %392, %31 in 0 : vector<16x64xf32>, vector<1x64xf32>, vector<7x64xf32> -> vector<24x64xf32>
    %cst_149 = arith.constant dense<0.000000e+00> : vector<24xf32>
    %394 = vector.multi_reduction <add>, %393, %cst_149 [1] : vector<24x64xf32> to vector<24xf32>
    %395 = vector.shape_cast %394 : vector<24xf32> to vector<24x1xf32>
    %cst_150 = arith.constant 6.400000e+01 : f32
    %396 = vector.broadcast %cst_150 : f32 to vector<24x1xf32>
    %397 = arith.divf %395, %396 : vector<24x1xf32>
    %398 = vector.broadcast %397 : vector<24x1xf32> to vector<24x64xf32>
    %399 = arith.subf %393, %398 : vector<24x64xf32>
    %400 = arith.mulf %399, %399 : vector<24x64xf32>
    %cst_151 = arith.constant dense<0.000000e+00> : vector<24xf32>
    %401 = vector.multi_reduction <add>, %400, %cst_151 [1] : vector<24x64xf32> to vector<24xf32>
    %402 = vector.shape_cast %401 : vector<24xf32> to vector<24x1xf32>
    %cst_152 = arith.constant 6.400000e+01 : f32
    %403 = vector.broadcast %cst_152 : f32 to vector<24x1xf32>
    %404 = arith.divf %402, %403 : vector<24x1xf32>
    %405 = vector.broadcast %397 : vector<24x1xf32> to vector<24x64xf32>
    %406 = arith.subf %393, %405 : vector<24x64xf32>
    %cst_153 = arith.constant 9.99999997E-7 : f32
    %407 = vector.broadcast %cst_153 : f32 to vector<24x1xf32>
    %408 = arith.addf %404, %407 : vector<24x1xf32>
    %409 = math.rsqrt %408 : vector<24x1xf32>
    %410 = vector.broadcast %409 : vector<24x1xf32> to vector<24x64xf32>
    %411 = arith.mulf %406, %410 : vector<24x64xf32>
    %412 = vector.broadcast %2 : vector<1x64xf32> to vector<24x64xf32>
    %413 = arith.mulf %411, %412 : vector<24x64xf32>
    %414 = vector.broadcast %3 : vector<1x64xf32> to vector<24x64xf32>
    %415 = arith.addf %413, %414 : vector<24x64xf32>
    %c0_154 = arith.constant 0 : index
    %c0_155 = arith.constant 0 : index
    %416 = vector.load %arg10[%c0_154, %c0_155] : memref<64x64xbf16, #tpu.memory_space<vmem>>, vector<64x64xbf16>
    %c0_156 = arith.constant 0 : index
    %c0_157 = arith.constant 0 : index
    %417 = vector.load %arg11[%c0_156, %c0_157] : memref<64x64xbf16, #tpu.memory_space<vmem>>, vector<64x64xbf16>
    %c0_158 = arith.constant 0 : index
    %c0_159 = arith.constant 0 : index
    %418 = vector.load %arg12[%c0_158, %c0_159] : memref<64x64xbf16, #tpu.memory_space<vmem>>, vector<64x64xbf16>
    %c0_160 = arith.constant 0 : index
    %c0_161 = arith.constant 0 : index
    %419 = vector.load %arg13[%c0_160, %c0_161] : memref<64x64xbf16, #tpu.memory_space<vmem>>, vector<64x64xbf16>
    %420 = arith.truncf %415 : vector<24x64xf32> to vector<24x64xbf16>
    %cst_162 = arith.constant dense<0.000000e+00> : vector<24x64xf32>
    %421 = tpu.matmul %420, %416, %cst_162 {dimension_numbers = #tpu.dot_dimension_numbers<[1], [0], [0], [1], [0, 0, 1, 1], [], []>} : vector<24x64xbf16>, vector<64x64xbf16>, vector<24x64xf32> -> vector<24x64xf32>
    %422 = arith.truncf %415 : vector<24x64xf32> to vector<24x64xbf16>
    %cst_163 = arith.constant dense<0.000000e+00> : vector<24x64xf32>
    %423 = tpu.matmul %422, %417, %cst_163 {dimension_numbers = #tpu.dot_dimension_numbers<[1], [0], [0], [1], [0, 0, 1, 1], [], []>} : vector<24x64xbf16>, vector<64x64xbf16>, vector<24x64xf32> -> vector<24x64xf32>
    %424 = arith.truncf %415 : vector<24x64xf32> to vector<24x64xbf16>
    %cst_164 = arith.constant dense<0.000000e+00> : vector<24x64xf32>
    %425 = tpu.matmul %424, %418, %cst_164 {dimension_numbers = #tpu.dot_dimension_numbers<[1], [0], [0], [1], [0, 0, 1, 1], [], []>} : vector<24x64xbf16>, vector<64x64xbf16>, vector<24x64xf32> -> vector<24x64xf32>
    %426 = arith.truncf %421 : vector<24x64xf32> to vector<24x64xbf16>
    %427 = arith.truncf %423 : vector<24x64xf32> to vector<24x64xbf16>
    %cst_165 = arith.constant dense<0.000000e+00> : vector<24x24xf32>
    %428 = tpu.matmul %426, %427, %cst_165 {dimension_numbers = #tpu.dot_dimension_numbers<[1], [1], [0], [0], [0, 0, 1, 0], [], []>} : vector<24x64xbf16>, vector<24x64xbf16>, vector<24x24xf32> -> vector<24x24xf32>
    %429 = vector.broadcast %30 : vector<1x24xf32> to vector<24x24xf32>
    %430 = arith.addf %428, %429 : vector<24x24xf32>
    %cst_166 = arith.constant dense<0xFF800000> : vector<24xf32>
    %431 = vector.multi_reduction <maximumf>, %430, %cst_166 [1] : vector<24x24xf32> to vector<24xf32>
    %432 = vector.shape_cast %431 : vector<24xf32> to vector<24x1xf32>
    %433 = vector.broadcast %432 : vector<24x1xf32> to vector<24x24xf32>
    %434 = arith.subf %430, %433 : vector<24x24xf32>
    %435 = math.exp %434 : vector<24x24xf32>
    %cst_167 = arith.constant dense<0.000000e+00> : vector<24xf32>
    %436 = vector.multi_reduction <add>, %435, %cst_167 [1] : vector<24x24xf32> to vector<24xf32>
    %437 = vector.shape_cast %436 : vector<24xf32> to vector<24x1xf32>
    %438 = tpu.reciprocal %437 {approx = true} : vector<24x1xf32> -> vector<24x1xf32>
    %439 = vector.broadcast %438 : vector<24x1xf32> to vector<24x24xf32>
    %440 = arith.mulf %435, %439 : vector<24x24xf32>
    %441 = arith.truncf %440 : vector<24x24xf32> to vector<24x24xbf16>
    %442 = arith.truncf %425 : vector<24x64xf32> to vector<24x64xbf16>
    %cst_168 = arith.constant dense<0.000000e+00> : vector<24x64xf32>
    %443 = tpu.matmul %441, %442, %cst_168 {dimension_numbers = #tpu.dot_dimension_numbers<[1], [0], [0], [1], [0, 0, 1, 1], [], []>} : vector<24x24xbf16>, vector<24x64xbf16>, vector<24x64xf32> -> vector<24x64xf32>
    %444 = arith.truncf %443 : vector<24x64xf32> to vector<24x64xbf16>
    %cst_169 = arith.constant dense<0.000000e+00> : vector<24x64xf32>
    %445 = tpu.matmul %444, %419, %cst_169 {dimension_numbers = #tpu.dot_dimension_numbers<[1], [0], [0], [1], [0, 0, 1, 1], [], []>} : vector<24x64xbf16>, vector<64x64xbf16>, vector<24x64xf32> -> vector<24x64xf32>
    %446 = vector.broadcast %4 : vector<1x64xf32> to vector<24x64xf32>
    %447 = arith.addf %445, %446 : vector<24x64xf32>
    %448 = arith.addf %393, %447 : vector<24x64xf32>
    %cst_170 = arith.constant dense<0.000000e+00> : vector<24xf32>
    %449 = vector.multi_reduction <add>, %448, %cst_170 [1] : vector<24x64xf32> to vector<24xf32>
    %450 = vector.shape_cast %449 : vector<24xf32> to vector<24x1xf32>
    %cst_171 = arith.constant 6.400000e+01 : f32
    %451 = vector.broadcast %cst_171 : f32 to vector<24x1xf32>
    %452 = arith.divf %450, %451 : vector<24x1xf32>
    %453 = vector.broadcast %452 : vector<24x1xf32> to vector<24x64xf32>
    %454 = arith.subf %448, %453 : vector<24x64xf32>
    %455 = arith.mulf %454, %454 : vector<24x64xf32>
    %cst_172 = arith.constant dense<0.000000e+00> : vector<24xf32>
    %456 = vector.multi_reduction <add>, %455, %cst_172 [1] : vector<24x64xf32> to vector<24xf32>
    %457 = vector.shape_cast %456 : vector<24xf32> to vector<24x1xf32>
    %cst_173 = arith.constant 6.400000e+01 : f32
    %458 = vector.broadcast %cst_173 : f32 to vector<24x1xf32>
    %459 = arith.divf %457, %458 : vector<24x1xf32>
    %460 = vector.broadcast %452 : vector<24x1xf32> to vector<24x64xf32>
    %461 = arith.subf %448, %460 : vector<24x64xf32>
    %cst_174 = arith.constant 9.99999997E-7 : f32
    %462 = vector.broadcast %cst_174 : f32 to vector<24x1xf32>
    %463 = arith.addf %459, %462 : vector<24x1xf32>
    %464 = math.rsqrt %463 : vector<24x1xf32>
    %465 = vector.broadcast %464 : vector<24x1xf32> to vector<24x64xf32>
    %466 = arith.mulf %461, %465 : vector<24x64xf32>
    %467 = vector.broadcast %5 : vector<1x64xf32> to vector<24x64xf32>
    %468 = arith.mulf %466, %467 : vector<24x64xf32>
    %469 = vector.broadcast %6 : vector<1x64xf32> to vector<24x64xf32>
    %470 = arith.addf %468, %469 : vector<24x64xf32>
    %cst_175 = arith.constant dense<0.000000e+00> : vector<16xf32>
    %471 = vector.multi_reduction <add>, %293, %cst_175 [1] : vector<16x64xf32> to vector<16xf32>
    %472 = vector.shape_cast %471 : vector<16xf32> to vector<16x1xf32>
    %cst_176 = arith.constant 6.400000e+01 : f32
    %473 = vector.broadcast %cst_176 : f32 to vector<16x1xf32>
    %474 = arith.divf %472, %473 : vector<16x1xf32>
    %475 = vector.broadcast %474 : vector<16x1xf32> to vector<16x64xf32>
    %476 = arith.subf %293, %475 : vector<16x64xf32>
    %477 = arith.mulf %476, %476 : vector<16x64xf32>
    %cst_177 = arith.constant dense<0.000000e+00> : vector<16xf32>
    %478 = vector.multi_reduction <add>, %477, %cst_177 [1] : vector<16x64xf32> to vector<16xf32>
    %479 = vector.shape_cast %478 : vector<16xf32> to vector<16x1xf32>
    %cst_178 = arith.constant 6.400000e+01 : f32
    %480 = vector.broadcast %cst_178 : f32 to vector<16x1xf32>
    %481 = arith.divf %479, %480 : vector<16x1xf32>
    %482 = vector.broadcast %474 : vector<16x1xf32> to vector<16x64xf32>
    %483 = arith.subf %293, %482 : vector<16x64xf32>
    %cst_179 = arith.constant 9.99999997E-7 : f32
    %484 = vector.broadcast %cst_179 : f32 to vector<16x1xf32>
    %485 = arith.addf %481, %484 : vector<16x1xf32>
    %486 = math.rsqrt %485 : vector<16x1xf32>
    %487 = vector.broadcast %486 : vector<16x1xf32> to vector<16x64xf32>
    %488 = arith.mulf %483, %487 : vector<16x64xf32>
    %489 = vector.broadcast %7 : vector<1x64xf32> to vector<16x64xf32>
    %490 = arith.mulf %488, %489 : vector<16x64xf32>
    %491 = vector.broadcast %8 : vector<1x64xf32> to vector<16x64xf32>
    %492 = arith.addf %490, %491 : vector<16x64xf32>
    %c0_180 = arith.constant 0 : index
    %c0_181 = arith.constant 0 : index
    %493 = vector.load %arg14[%c0_180, %c0_181] : memref<64x64xbf16, #tpu.memory_space<vmem>>, vector<64x64xbf16>
    %c0_182 = arith.constant 0 : index
    %c0_183 = arith.constant 0 : index
    %494 = vector.load %arg15[%c0_182, %c0_183] : memref<64x64xbf16, #tpu.memory_space<vmem>>, vector<64x64xbf16>
    %c0_184 = arith.constant 0 : index
    %c0_185 = arith.constant 0 : index
    %495 = vector.load %arg16[%c0_184, %c0_185] : memref<64x64xbf16, #tpu.memory_space<vmem>>, vector<64x64xbf16>
    %c0_186 = arith.constant 0 : index
    %c0_187 = arith.constant 0 : index
    %496 = vector.load %arg17[%c0_186, %c0_187] : memref<64x64xbf16, #tpu.memory_space<vmem>>, vector<64x64xbf16>
    %497 = arith.truncf %470 : vector<24x64xf32> to vector<24x64xbf16>
    %cst_188 = arith.constant dense<0.000000e+00> : vector<24x64xf32>
    %498 = tpu.matmul %497, %493, %cst_188 {dimension_numbers = #tpu.dot_dimension_numbers<[1], [0], [0], [1], [0, 0, 1, 1], [], []>} : vector<24x64xbf16>, vector<64x64xbf16>, vector<24x64xf32> -> vector<24x64xf32>
    %499 = arith.truncf %492 : vector<16x64xf32> to vector<16x64xbf16>
    %cst_189 = arith.constant dense<0.000000e+00> : vector<16x64xf32>
    %500 = tpu.matmul %499, %494, %cst_189 {dimension_numbers = #tpu.dot_dimension_numbers<[1], [0], [0], [1], [0, 0, 1, 1], [], []>} : vector<16x64xbf16>, vector<64x64xbf16>, vector<16x64xf32> -> vector<16x64xf32>
    %501 = arith.truncf %492 : vector<16x64xf32> to vector<16x64xbf16>
    %cst_190 = arith.constant dense<0.000000e+00> : vector<16x64xf32>
    %502 = tpu.matmul %501, %495, %cst_190 {dimension_numbers = #tpu.dot_dimension_numbers<[1], [0], [0], [1], [0, 0, 1, 1], [], []>} : vector<16x64xbf16>, vector<64x64xbf16>, vector<16x64xf32> -> vector<16x64xf32>
    %503 = arith.truncf %498 : vector<24x64xf32> to vector<24x64xbf16>
    %504 = arith.truncf %500 : vector<16x64xf32> to vector<16x64xbf16>
    %cst_191 = arith.constant dense<0.000000e+00> : vector<24x16xf32>
    %505 = tpu.matmul %503, %504, %cst_191 {dimension_numbers = #tpu.dot_dimension_numbers<[1], [1], [0], [0], [0, 0, 1, 0], [], []>} : vector<24x64xbf16>, vector<16x64xbf16>, vector<24x16xf32> -> vector<24x16xf32>
    %cst_192 = arith.constant dense<0xFF800000> : vector<24xf32>
    %506 = vector.multi_reduction <maximumf>, %505, %cst_192 [1] : vector<24x16xf32> to vector<24xf32>
    %507 = vector.shape_cast %506 : vector<24xf32> to vector<24x1xf32>
    %508 = vector.broadcast %507 : vector<24x1xf32> to vector<24x16xf32>
    %509 = arith.subf %505, %508 : vector<24x16xf32>
    %510 = math.exp %509 : vector<24x16xf32>
    %cst_193 = arith.constant dense<0.000000e+00> : vector<24xf32>
    %511 = vector.multi_reduction <add>, %510, %cst_193 [1] : vector<24x16xf32> to vector<24xf32>
    %512 = vector.shape_cast %511 : vector<24xf32> to vector<24x1xf32>
    %513 = tpu.reciprocal %512 {approx = true} : vector<24x1xf32> -> vector<24x1xf32>
    %514 = vector.broadcast %513 : vector<24x1xf32> to vector<24x16xf32>
    %515 = arith.mulf %510, %514 : vector<24x16xf32>
    %516 = arith.truncf %515 : vector<24x16xf32> to vector<24x16xbf16>
    %517 = arith.truncf %502 : vector<16x64xf32> to vector<16x64xbf16>
    %cst_194 = arith.constant dense<0.000000e+00> : vector<24x64xf32>
    %518 = tpu.matmul %516, %517, %cst_194 {dimension_numbers = #tpu.dot_dimension_numbers<[1], [0], [0], [1], [0, 0, 1, 1], [], []>} : vector<24x16xbf16>, vector<16x64xbf16>, vector<24x64xf32> -> vector<24x64xf32>
    %519 = arith.truncf %518 : vector<24x64xf32> to vector<24x64xbf16>
    %cst_195 = arith.constant dense<0.000000e+00> : vector<24x64xf32>
    %520 = tpu.matmul %519, %496, %cst_195 {dimension_numbers = #tpu.dot_dimension_numbers<[1], [0], [0], [1], [0, 0, 1, 1], [], []>} : vector<24x64xbf16>, vector<64x64xbf16>, vector<24x64xf32> -> vector<24x64xf32>
    %521 = vector.broadcast %9 : vector<1x64xf32> to vector<24x64xf32>
    %522 = arith.addf %520, %521 : vector<24x64xf32>
    %523 = arith.addf %448, %522 : vector<24x64xf32>
    %cst_196 = arith.constant dense<0.000000e+00> : vector<24xf32>
    %524 = vector.multi_reduction <add>, %523, %cst_196 [1] : vector<24x64xf32> to vector<24xf32>
    %525 = vector.shape_cast %524 : vector<24xf32> to vector<24x1xf32>
    %cst_197 = arith.constant 6.400000e+01 : f32
    %526 = vector.broadcast %cst_197 : f32 to vector<24x1xf32>
    %527 = arith.divf %525, %526 : vector<24x1xf32>
    %528 = vector.broadcast %527 : vector<24x1xf32> to vector<24x64xf32>
    %529 = arith.subf %523, %528 : vector<24x64xf32>
    %530 = arith.mulf %529, %529 : vector<24x64xf32>
    %cst_198 = arith.constant dense<0.000000e+00> : vector<24xf32>
    %531 = vector.multi_reduction <add>, %530, %cst_198 [1] : vector<24x64xf32> to vector<24xf32>
    %532 = vector.shape_cast %531 : vector<24xf32> to vector<24x1xf32>
    %cst_199 = arith.constant 6.400000e+01 : f32
    %533 = vector.broadcast %cst_199 : f32 to vector<24x1xf32>
    %534 = arith.divf %532, %533 : vector<24x1xf32>
    %535 = vector.broadcast %527 : vector<24x1xf32> to vector<24x64xf32>
    %536 = arith.subf %523, %535 : vector<24x64xf32>
    %cst_200 = arith.constant 9.99999997E-7 : f32
    %537 = vector.broadcast %cst_200 : f32 to vector<24x1xf32>
    %538 = arith.addf %534, %537 : vector<24x1xf32>
    %539 = math.rsqrt %538 : vector<24x1xf32>
    %540 = vector.broadcast %539 : vector<24x1xf32> to vector<24x64xf32>
    %541 = arith.mulf %536, %540 : vector<24x64xf32>
    %542 = vector.broadcast %10 : vector<1x64xf32> to vector<24x64xf32>
    %543 = arith.mulf %541, %542 : vector<24x64xf32>
    %544 = vector.broadcast %11 : vector<1x64xf32> to vector<24x64xf32>
    %545 = arith.addf %543, %544 : vector<24x64xf32>
    %c0_201 = arith.constant 0 : index
    %c0_202 = arith.constant 0 : index
    %546 = vector.load %arg18[%c0_201, %c0_202] : memref<64x128xbf16, #tpu.memory_space<vmem>>, vector<64x128xbf16>
    %c0_203 = arith.constant 0 : index
    %c0_204 = arith.constant 0 : index
    %547 = vector.load %arg19[%c0_203, %c0_204] : memref<128x64xbf16, #tpu.memory_space<vmem>>, vector<128x64xbf16>
    %548 = arith.truncf %545 : vector<24x64xf32> to vector<24x64xbf16>
    %cst_205 = arith.constant dense<0.000000e+00> : vector<24x128xf32>
    %549 = tpu.matmul %548, %546, %cst_205 {dimension_numbers = #tpu.dot_dimension_numbers<[1], [0], [0], [1], [0, 0, 1, 1], [], []>} : vector<24x64xbf16>, vector<64x128xbf16>, vector<24x128xf32> -> vector<24x128xf32>
    %550 = vector.broadcast %23 : vector<1x128xf32> to vector<24x128xf32>
    %551 = arith.addf %549, %550 : vector<24x128xf32>
    %552 = arith.mulf %551, %551 : vector<24x128xf32>
    %553 = arith.mulf %551, %552 : vector<24x128xf32>
    %cst_206 = arith.constant 4.471500e-02 : f32
    %554 = vector.broadcast %cst_206 : f32 to vector<24x128xf32>
    %555 = arith.mulf %554, %553 : vector<24x128xf32>
    %556 = arith.addf %551, %555 : vector<24x128xf32>
    %cst_207 = arith.constant 0.797884583 : f32
    %557 = vector.broadcast %cst_207 : f32 to vector<24x128xf32>
    %558 = arith.mulf %557, %556 : vector<24x128xf32>
    %559 = math.tanh %558 : vector<24x128xf32>
    %cst_208 = arith.constant 1.000000e+00 : f32
    %560 = vector.broadcast %cst_208 : f32 to vector<24x128xf32>
    %561 = arith.addf %560, %559 : vector<24x128xf32>
    %cst_209 = arith.constant 5.000000e-01 : f32
    %562 = vector.broadcast %cst_209 : f32 to vector<24x128xf32>
    %563 = arith.mulf %562, %561 : vector<24x128xf32>
    %564 = arith.mulf %551, %563 : vector<24x128xf32>
    %565 = arith.truncf %564 : vector<24x128xf32> to vector<24x128xbf16>
    %cst_210 = arith.constant dense<0.000000e+00> : vector<24x64xf32>
    %566 = tpu.matmul %565, %547, %cst_210 {dimension_numbers = #tpu.dot_dimension_numbers<[1], [0], [0], [1], [0, 0, 1, 1], [], []>} : vector<24x128xbf16>, vector<128x64xbf16>, vector<24x64xf32> -> vector<24x64xf32>
    %567 = vector.broadcast %12 : vector<1x64xf32> to vector<24x64xf32>
    %568 = arith.addf %566, %567 : vector<24x64xf32>
    %569 = arith.addf %523, %568 : vector<24x64xf32>
    %570 = vector.extract_strided_slice %569 {offsets = [0, 0], sizes = [16, 64], strides = [1, 1]} : vector<24x64xf32> to vector<16x64xf32>
    %c0_211 = arith.constant 0 : index
    %c0_212 = arith.constant 0 : index
    %571 = vector.load %arg28[%c0_211, %c0_212] : memref<64x128xbf16, #tpu.memory_space<vmem>>, vector<64x128xbf16>
    %572 = arith.truncf %570 : vector<16x64xf32> to vector<16x64xbf16>
    %cst_213 = arith.constant dense<0.000000e+00> : vector<16x128xf32>
    %573 = tpu.matmul %572, %571, %cst_213 {dimension_numbers = #tpu.dot_dimension_numbers<[1], [0], [0], [1], [0, 0, 1, 1], [], []>} : vector<16x64xbf16>, vector<64x128xbf16>, vector<16x128xf32> -> vector<16x128xf32>
    %574 = vector.broadcast %24 : vector<1x128xf32> to vector<16x128xf32>
    %575 = arith.addf %573, %574 : vector<16x128xf32>
    %c1_214 = arith.constant 1 : index
    %c0_215 = arith.constant 0 : index
    %c0_216 = arith.constant 0 : index
    %576 = vector.load %arg29[%c1_214, %c0_215, %c0_216] : memref<2x16x128xf32, #tpu.memory_space<vmem>>, vector<1x16x128xf32>
    %577 = vector.shape_cast %576 : vector<1x16x128xf32> to vector<16x128xf32>
    %578 = vector.shape_cast %575 : vector<16x128xf32> to vector<1x16x128xf32>
    tpu.vector_store %arg29[%c1_214, %c0_215, %c0_216], %578 {strides = array<i32>} : memref<2x16x128xf32, #tpu.memory_space<vmem>>, vector<1x16x128xf32>,
    return
  }
  func.func @transform_0(%arg0: i32) -> (i32, i32, i32) {
    %c0_i32 = arith.constant 0 : i32
    %c0_i32_0 = arith.constant 0 : i32
    %c0_i32_1 = arith.constant 0 : i32
    %c0_i32_2 = arith.constant 0 : i32
    return %c0_i32, %c0_i32_0, %c0_i32_1 : i32, i32, i32
  }
  func.func @transform_1(%arg0: i32) -> (i32, i32) {
    %c0_i32 = arith.constant 0 : i32
    %c0_i32_0 = arith.constant 0 : i32
    %c0_i32_1 = arith.constant 0 : i32
    return %c0_i32, %c0_i32_0 : i32, i32
  }
  func.func @transform_2(%arg0: i32) -> (i32, i32) {
    %c0_i32 = arith.constant 0 : i32
    %c0_i32_0 = arith.constant 0 : i32
    %c0_i32_1 = arith.constant 0 : i32
    return %c0_i32, %c0_i32_0 : i32, i32
  }
  func.func @transform_3(%arg0: i32) -> (i32, i32) {
    %c0_i32 = arith.constant 0 : i32
    %c0_i32_0 = arith.constant 0 : i32
    %c0_i32_1 = arith.constant 0 : i32
    return %c0_i32, %c0_i32_0 : i32, i32
  }
  func.func @transform_4(%arg0: i32) -> (i32, i32) {
    %c0_i32 = arith.constant 0 : i32
    %c0_i32_0 = arith.constant 0 : i32
    %c0_i32_1 = arith.constant 0 : i32
    return %c0_i32, %c0_i32_0 : i32, i32
  }
  func.func @transform_5(%arg0: i32) -> (i32, i32) {
    %c0_i32 = arith.constant 0 : i32
    %c0_i32_0 = arith.constant 0 : i32
    %c0_i32_1 = arith.constant 0 : i32
    return %c0_i32, %c0_i32_0 : i32, i32
  }
  func.func @transform_6(%arg0: i32) -> (i32, i32) {
    %c0_i32 = arith.constant 0 : i32
    %c0_i32_0 = arith.constant 0 : i32
    %c0_i32_1 = arith.constant 0 : i32
    return %c0_i32, %c0_i32_0 : i32, i32
  }
  func.func @transform_7(%arg0: i32) -> (i32, i32) {
    %c0_i32 = arith.constant 0 : i32
    %c0_i32_0 = arith.constant 0 : i32
    %c0_i32_1 = arith.constant 0 : i32
    return %c0_i32, %c0_i32_0 : i32, i32
  }
  func.func @transform_8(%arg0: i32) -> (i32, i32) {
    %c0_i32 = arith.constant 0 : i32
    %c0_i32_0 = arith.constant 0 : i32
    %c0_i32_1 = arith.constant 0 : i32
    return %c0_i32, %c0_i32_0 : i32, i32
  }
  func.func @transform_9(%arg0: i32) -> (i32, i32) {
    %c0_i32 = arith.constant 0 : i32
    %c0_i32_0 = arith.constant 0 : i32
    %c0_i32_1 = arith.constant 0 : i32
    return %c0_i32, %c0_i32_0 : i32, i32
  }
  func.func @transform_10(%arg0: i32) -> (i32, i32) {
    %c0_i32 = arith.constant 0 : i32
    %c0_i32_0 = arith.constant 0 : i32
    %c0_i32_1 = arith.constant 0 : i32
    return %c0_i32, %c0_i32_0 : i32, i32
  }
  func.func @transform_11(%arg0: i32) -> (i32, i32) {
    %c0_i32 = arith.constant 0 : i32
    %c0_i32_0 = arith.constant 0 : i32
    %c0_i32_1 = arith.constant 0 : i32
    return %c0_i32, %c0_i32_0 : i32, i32
  }
  func.func @transform_12(%arg0: i32) -> (i32, i32) {
    %c0_i32 = arith.constant 0 : i32
    %c0_i32_0 = arith.constant 0 : i32
    %c0_i32_1 = arith.constant 0 : i32
    return %c0_i32, %c0_i32_0 : i32, i32
  }
  func.func @transform_13(%arg0: i32) -> (i32, i32) {
    %c0_i32 = arith.constant 0 : i32
    %c0_i32_0 = arith.constant 0 : i32
    %c0_i32_1 = arith.constant 0 : i32
    return %c0_i32, %c0_i32_0 : i32, i32
  }
  func.func @transform_14(%arg0: i32) -> (i32, i32) {
    %c0_i32 = arith.constant 0 : i32
    %c0_i32_0 = arith.constant 0 : i32
    %c0_i32_1 = arith.constant 0 : i32
    return %c0_i32, %c0_i32_0 : i32, i32
  }
  func.func @transform_15(%arg0: i32) -> (i32, i32) {
    %c0_i32 = arith.constant 0 : i32
    %c0_i32_0 = arith.constant 0 : i32
    %c0_i32_1 = arith.constant 0 : i32
    return %c0_i32, %c0_i32_0 : i32, i32
  }
  func.func @transform_16(%arg0: i32) -> (i32, i32) {
    %c0_i32 = arith.constant 0 : i32
    %c0_i32_0 = arith.constant 0 : i32
    %c0_i32_1 = arith.constant 0 : i32
    return %c0_i32, %c0_i32_0 : i32, i32
  }
  func.func @transform_17(%arg0: i32) -> (i32, i32) {
    %c0_i32 = arith.constant 0 : i32
    %c0_i32_0 = arith.constant 0 : i32
    %c0_i32_1 = arith.constant 0 : i32
    return %c0_i32, %c0_i32_0 : i32, i32
  }
  func.func @transform_18(%arg0: i32) -> (i32, i32) {
    %c0_i32 = arith.constant 0 : i32
    %c0_i32_0 = arith.constant 0 : i32
    %c0_i32_1 = arith.constant 0 : i32
    return %c0_i32, %c0_i32_0 : i32, i32
  }
  func.func @transform_19(%arg0: i32) -> (i32, i32) {
    %c0_i32 = arith.constant 0 : i32
    %c0_i32_0 = arith.constant 0 : i32
    %c0_i32_1 = arith.constant 0 : i32
    return %c0_i32, %c0_i32_0 : i32, i32
  }
  func.func @transform_20(%arg0: i32) -> (i32, i32) {
    %c0_i32 = arith.constant 0 : i32
    %c0_i32_0 = arith.constant 0 : i32
    %c0_i32_1 = arith.constant 0 : i32
    return %c0_i32, %c0_i32_0 : i32, i32
  }
  func.func @transform_21(%arg0: i32) -> (i32, i32) {
    %c0_i32 = arith.constant 0 : i32
    %c0_i32_0 = arith.constant 0 : i32
    %c0_i32_1 = arith.constant 0 : i32
    return %c0_i32, %c0_i32_0 : i32, i32
  }
  func.func @transform_22(%arg0: i32) -> (i32, i32) {
    %c0_i32 = arith.constant 0 : i32
    %c0_i32_0 = arith.constant 0 : i32
    %c0_i32_1 = arith.constant 0 : i32
    return %c0_i32, %c0_i32_0 : i32, i32
  }
  func.func @transform_23(%arg0: i32) -> (i32, i32) {
    %c0_i32 = arith.constant 0 : i32
    %c0_i32_0 = arith.constant 0 : i32
    %c0_i32_1 = arith.constant 0 : i32
    return %c0_i32, %c0_i32_0 : i32, i32
  }
  func.func @transform_24(%arg0: i32) -> (i32, i32) {
    %c0_i32 = arith.constant 0 : i32
    %c0_i32_0 = arith.constant 0 : i32
    %c0_i32_1 = arith.constant 0 : i32
    return %c0_i32, %c0_i32_0 : i32, i32
  }
  func.func @transform_25(%arg0: i32) -> (i32, i32) {
    %c0_i32 = arith.constant 0 : i32
    %c0_i32_0 = arith.constant 0 : i32
    %c0_i32_1 = arith.constant 0 : i32
    return %c0_i32, %c0_i32_0 : i32, i32
  }
  func.func @transform_26(%arg0: i32) -> (i32, i32) {
    %c0_i32 = arith.constant 0 : i32
    %c0_i32_0 = arith.constant 0 : i32
    %c0_i32_1 = arith.constant 0 : i32
    return %c0_i32, %c0_i32_0 : i32, i32
  }
  func.func @transform_27(%arg0: i32) -> (i32, i32) {
    %c0_i32 = arith.constant 0 : i32
    %c0_i32_0 = arith.constant 0 : i32
    %c0_i32_1 = arith.constant 0 : i32
    return %c0_i32, %c0_i32_0 : i32, i32
  }
  func.func @transform_28(%arg0: i32) -> (i32, i32, i32) {
    %c0_i32 = arith.constant 0 : i32
    %c0_i32_0 = arith.constant 0 : i32
    %c0_i32_1 = arith.constant 0 : i32
    %c0_i32_2 = arith.constant 0 : i32
    return %c0_i32, %c0_i32_0, %c0_i32_1 : i32, i32, i32
  }
}

</mosaic_0001>

<llo_original>
// kernel: cut3r_points_spatial_tower_forward.2
$region0: #{cut3r_points_spatial_tower_forward.2}
  #allocation0 [shape = 'u32[]', space=smem, size = 0x4, offset = 0x4, fixed_abs, tag = 'smem constant byte address 0x4 - core index']
  #allocation1 [shape = 'u32[144,128]{1,0:T(1,128)}', space=vmem, size = 0x12000, scoped, tag = 'internal scratch']
  %s0 = inlined_call_operand.vmem [shape: f32[2,16,48], index: 0, kind: input, shape index: {}]
  %s1 = inlined_call_operand.vmem [shape: bf16[48,64], index: 1, kind: input, shape index: {}]
  %s2 = inlined_call_operand.vmem [shape: f32[16,64], index: 2, kind: input, shape index: {}]
  %s3 = inlined_call_operand.vmem [shape: f32[7,64], index: 3, kind: input, shape index: {}]
  %s4 = inlined_call_operand.vmem [shape: f32[1,128], index: 4, kind: input, shape index: {}]
  %s5 = inlined_call_operand.vmem [shape: bf16[64,64], index: 5, kind: input, shape index: {}]
  %s6 = inlined_call_operand.vmem [shape: bf16[64,64], index: 6, kind: input, shape index: {}]
  %s7 = inlined_call_operand.vmem [shape: bf16[64,64], index: 7, kind: input, shape index: {}]
  %s8 = inlined_call_operand.vmem [shape: bf16[64,64], index: 8, kind: input, shape index: {}]
  %s9 = inlined_call_operand.vmem [shape: bf16[64,128], index: 9, kind: input, shape index: {}]
  %s10 = inlined_call_operand.vmem [shape: bf16[128,64], index: 10, kind: input, shape index: {}]
  %s11 = inlined_call_operand.vmem [shape: f32[2,16,64], index: 11, kind: output, shape index: {}]
  %s12 = sld [smem:[#allocation0]]
  $region54: #{cut3r_points_spatial_tower_forward.2} parent=0
    _
  %s14 = ssub.s32 1, %s12
  %s15 = scalar_select 0, %s14, %s12
  // Predicated region
  $region2: #{cut3r_points_spatial_tower_forward.2} parent=0 // pred_check
    _
  $region3: #{cut3r_points_spatial_tower_forward.2} parent=0 // pred_check_branch
    %17 = sbr.rel (0) target = $region5
  $region4: #{cut3r_points_spatial_tower_forward.2} parent=0 // pred_region
    _
  $region5: #{cut3r_points_spatial_tower_forward.2} parent=0 // pred_fallthru
    _
  // Predicated region
  $region6: #{cut3r_points_spatial_tower_forward.2} parent=0 // pred_check
    _
  $region7: #{cut3r_points_spatial_tower_forward.2} parent=0 // pred_check_branch
    %19 = sbr.rel (0) target = $region9
  $region8: #{cut3r_points_spatial_tower_forward.2} parent=0 // pred_region
    _
  $region9: #{cut3r_points_spatial_tower_forward.2} parent=0 // pred_fallthru
    _
  // Predicated region
  $region10: #{cut3r_points_spatial_tower_forward.2} parent=0 // pred_check
    _
  $region11: #{cut3r_points_spatial_tower_forward.2} parent=0 // pred_check_branch
    %21 = sbr.rel (0) target = $region13
  $region12: #{cut3r_points_spatial_tower_forward.2} parent=0 // pred_region
    _
  $region13: #{cut3r_points_spatial_tower_forward.2} parent=0 // pred_fallthru
    _
  // Predicated region
  $region14: #{cut3r_points_spatial_tower_forward.2} parent=0 // pred_check
    _
  $region15: #{cut3r_points_spatial_tower_forward.2} parent=0 // pred_check_branch
    %23 = sbr.rel (0) target = $region17
  $region16: #{cut3r_points_spatial_tower_forward.2} parent=0 // pred_region
    _
  $region17: #{cut3r_points_spatial_tower_forward.2} parent=0 // pred_fallthru
    _
  // Predicated region
  $region18: #{cut3r_points_spatial_tower_forward.2} parent=0 // pred_check
    _
  $region19: #{cut3r_points_spatial_tower_forward.2} parent=0 // pred_check_branch
    %25 = sbr.rel (0) target = $region21
  $region20: #{cut3r_points_spatial_tower_forward.2} parent=0 // pred_region
    _
  $region21: #{cut3r_points_spatial_tower_forward.2} parent=0 // pred_fallthru
    _
  // Predicated region
  $region22: #{cut3r_points_spatial_tower_forward.2} parent=0 // pred_check
    _
  $region23: #{cut3r_points_spatial_tower_forward.2} parent=0 // pred_check_branch
    %27 = sbr.rel (0) target = $region25
  $region24: #{cut3r_points_spatial_tower_forward.2} parent=0 // pred_region
    _
  $region25: #{cut3r_points_spatial_tower_forward.2} parent=0 // pred_fallthru
    _
  // Predicated region
  $region26: #{cut3r_points_spatial_tower_forward.2} parent=0 // pred_check
    _
  $region27: #{cut3r_points_spatial_tower_forward.2} parent=0 // pred_check_branch
    %29 = sbr.rel (0) target = $region29
  $region28: #{cut3r_points_spatial_tower_forward.2} parent=0 // pred_region
    _
  $region29: #{cut3r_points_spatial_tower_forward.2} parent=0 // pred_fallthru
    _
  // Predicated region
  $region30: #{cut3r_points_spatial_tower_forward.2} parent=0 // pred_check
    _
  $region31: #{cut3r_points_spatial_tower_forward.2} parent=0 // pred_check_branch
    %31 = sbr.rel (0) target = $region33
  $region32: #{cut3r_points_spatial_tower_forward.2} parent=0 // pred_region
    _
  $region33: #{cut3r_points_spatial_tower_forward.2} parent=0 // pred_fallthru
    _
  // Predicated region
  $region34: #{cut3r_points_spatial_tower_forward.2} parent=0 // pred_check
    _
  $region35: #{cut3r_points_spatial_tower_forward.2} parent=0 // pred_check_branch
    %33 = sbr.rel (0) target = $region37
  $region36: #{cut3r_points_spatial_tower_forward.2} parent=0 // pred_region
    _
  $region37: #{cut3r_points_spatial_tower_forward.2} parent=0 // pred_fallthru
    _
  // Predicated region
  $region38: #{cut3r_points_spatial_tower_forward.2} parent=0 // pred_check
    _
  $region39: #{cut3r_points_spatial_tower_forward.2} parent=0 // pred_check_branch
    %35 = sbr.rel (0) target = $region41
  $region40: #{cut3r_points_spatial_tower_forward.2} parent=0 // pred_region
    _
  $region41: #{cut3r_points_spatial_tower_forward.2} parent=0 // pred_fallthru
    _
  // Predicated region
  $region42: #{cut3r_points_spatial_tower_forward.2} parent=0 // pred_check
    _
  $region43: #{cut3r_points_spatial_tower_forward.2} parent=0 // pred_check_branch
    %37 = sbr.rel (0) target = $region45
  $region44: #{cut3r_points_spatial_tower_forward.2} parent=0 // pred_region
    _
  $region45: #{cut3r_points_spatial_tower_forward.2} parent=0 // pred_fallthru
    _
  %v39 = vld [vmem:[%s3] sm:$0x7f]
  %v40 = vld [vmem:[%s4] sm:$0x1]
  %v41 = vld [vmem:[%s0] sm:$0xff]
  %v42 = vld [vmem:[%s0 + $0x8] sm:$0xff]
  %v43 = vld [vmem:[%s0 + $0x10] sm:$0xff]
  %v44 = vld [vmem:[%s0 + $0x18] sm:$0xff]
  %v45 = vld [vmem:[%s1] sm:$0xf]
  %v46 = vld [vmem:[%s1 + $0x4] sm:$0xf]
  %v47 = vld [vmem:[%s1 + $0x8] sm:$0xf]
  %v48 = vld [vmem:[%s1 + $0xc] sm:$0xf]
  %v49 = vld [vmem:[%s1 + $0x10] sm:$0xf]
  %v50 = vld [vmem:[%s1 + $0x14] sm:$0xf]
  %v51 = vpack.c.bf16 %v42, %v41
  %v52 = vpack.c.bf16 %v44, %v43
  %v53 = vlaneseq
  %v54 = vshrl.u32 %v53, 7
  %v55 = vsub.s32 0, %v54
  %v56 = vrot.slane %v39, %v55
  %v63 = vunpack.c.l.b16 %v45
  %v64 = vunpack.c.l.b16 %v46
  %v65 = vunpack.c.l.b16 %v47
  %v66 = vunpack.c.l.b16 %v48
  %v67 = vunpack.c.l.b16 %v49
  %v68 = vunpack.c.l.b16 %v50
  %v69 = vpack.c.b16 %v64, %v63
  %v70 = vpack.c.b16 %v66, %v65
  %v71 = vpack.c.b16 %v68, %v67
  %vm75 = vcmask 392192
  %v77 = vsel %vm75, %v51, 0
  %v80 = vsel %vm75, %v52, 0
  %82 = vmatprep.subr.bf16.mxu0 0
  %83 = vmatpush1.bf16.msra.mxu0 %v69
  %84 = vmatprep.subr.bf16.mxu0 0
  %85 = vmatpush1.bf16.msra.mxu0 %v70
  %86 = vmatprep.subr.bf16.mxu0 0
  %87 = vmatpush1.bf16.msra.mxu0 %v71
  %88 = vmatprep.subr.bf16.mxu0 0
  %89 = vmatpush1.bf16.msra.mxu0 0
  %90 = vmatprep.subr.bf16.mxu0 0
  %91 = vmatpush1.bf16.msra.mxu0 0
  %92 = vmatprep.subr.bf16.mxu0 0
  %93 = vmatpush1.bf16.msra.mxu0 0
  %94 = vmatprep.subr.bf16.mxu0 0
  %95 = vmatpush1.bf16.msra.mxu0 0
  %96 = vmatprep.subr.bf16.mxu0 0
  %97 = vmatpush1.bf16.msra.mxu0 0
  %98 = vmatprep.subr.bf16.mxu0 0
  %99 = vmatpush1.bf16.msra.mxu0 0
  %100 = vmatprep.subr.bf16.mxu0 0
  %101 = vmatpush1.bf16.msra.mxu0 0
  %102 = vmatprep.subr.bf16.mxu0 0
  %103 = vmatpush1.bf16.msra.mxu0 0
  %104 = vmatprep.subr.bf16.mxu0 0
  %105 = vmatpush1.bf16.msra.mxu0 0
  %106 = vmatprep.subr.bf16.mxu0 0
  %107 = vmatpush1.bf16.msra.mxu0 0
  %108 = vmatprep.subr.bf16.mxu0 0
  %109 = vmatpush1.bf16.msra.mxu0 0
  %110 = vmatprep.subr.bf16.mxu0 0
  %111 = vmatpush1.bf16.msra.mxu0 0
  %112 = vmatprep.subr.bf16.mxu0 0
  %113 = vmatpush1.bf16.msra.mxu0 0
  %114 = vmatprep.mubr.bf16.mxu0 0
  %115 = vmatmul.mubr.bf16.gmra.mrb[0].mxu0 %v77
  %v116 = vpop.f32.mrb[0].mxu0
  %v117 = vadd.f32 %v56, %v116
  %v118 = vpop.f32.mrb[0].mxu0
  %v119 = vpop.f32.mrb[0].mxu0
  %v120 = vadd.f32 %v56, %v119
  %v121 = vpop.f32.mrb[0].mxu0
  %122 = vmatprep.mubr.bf16.mxu0 0
  %123 = vmatmul.mubr.bf16.gmra.mrb[0].mxu0 %v80
  %v124 = vpop.f32.mrb[0].mxu0
  %v125 = vadd.f32 %v56, %v124
  %v126 = vpop.f32.mrb[0].mxu0
  %v127 = vpop.f32.mrb[0].mxu0
  %v128 = vadd.f32 %v56, %v127
  %v129 = vpop.f32.mrb[0].mxu0
  %130 = vdwg.mxu0
  %v131 = vld [vmem:[%s2] sm:$0xff]
  %v132 = vld [vmem:[%s2 + $0x8] sm:$0xff]
  %v133 = vadd.f32 %v117, %v131
  %v134 = vadd.f32 %v120, %v132
  %v135 = vadd.f32 %v125, %v131
  %v136 = vadd.f32 %v128, %v132
  %vm137 = vcmask 523264
  %v138 = vsel %vm137, %v133, 0.0
  %139 = vadd.xlane.f32.xlu0 %v138
  %v140 = vpop.xlane.xlu0 %139
  %v141 = vsel %vm137, %v134, 0.0
  %142 = vadd.xlane.f32.xlu0 %v141
  %v143 = vpop.xlane.xlu0 %142
  %v144 = vsel %vm137, %v135, 0.0
  %145 = vadd.xlane.f32.xlu0 %v144
  %v146 = vpop.xlane.xlu0 %145
  %v147 = vsel %vm137, %v136, 0.0
  %148 = vadd.xlane.f32.xlu0 %v147
  %v149 = vpop.xlane.xlu0 %148
  %v150 = vrcp.pop 64.0
  %v151 = vmul.f32 %v140, %v150
  %v152 = vmul.f32 %v143, %v150
  %v153 = vmul.f32 %v146, %v150
  %v154 = vmul.f32 %v149, %v150
  %v155 = vsub.f32 %v133, %v151
  %v156 = vsub.f32 %v134, %v152
  %v157 = vsub.f32 %v135, %v153
  %v158 = vsub.f32 %v136, %v154
  %v159 = vmul.f32 %v155, %v155
  %v160 = vmul.f32 %v156, %v156
  %v161 = vmul.f32 %v157, %v157
  %v162 = vmul.f32 %v158, %v158
  %v163 = vsel %vm137, %v159, 0.0
  %164 = vadd.xlane.f32.xlu0 %v163
  %v165 = vpop.xlane.xlu0 %164
  %v166 = vsel %vm137, %v160, 0.0
  %167 = vadd.xlane.f32.xlu0 %v166
  %v168 = vpop.xlane.xlu0 %167
  %v169 = vsel %vm137, %v161, 0.0
  %170 = vadd.xlane.f32.xlu0 %v169
  %v171 = vpop.xlane.xlu0 %170
  %v172 = vsel %vm137, %v162, 0.0
  %173 = vadd.xlane.f32.xlu0 %v172
  %v174 = vpop.xlane.xlu0 %173
  %v175 = vmul.f32 %v165, %v150
  %v176 = vmul.f32 %v168, %v150
  %v177 = vmul.f32 %v171, %v150
  %v178 = vmul.f32 %v174, %v150
  %v179 = vadd.f32 %v175, 1e-06
  %v180 = vadd.f32 %v176, 1e-06
  %v181 = vadd.f32 %v177, 1e-06
  %v182 = vadd.f32 %v178, 1e-06
  %v183 = vrsqrt.pop %v179
  %v184 = vrsqrt.pop %v180
  %v185 = vrsqrt.pop %v181
  %v186 = vrsqrt.pop %v182
  %v187 = vmul.f32 %v155, %v183
  %v188 = vmul.f32 %v156, %v184
  %v189 = vmul.f32 %v157, %v185
  %v190 = vmul.f32 %v158, %v186
  %v191 = vlaneseq
  %v192 = vshrl.u32 %v191, 7
  %v193 = vsub.s32 1, %v192
  %v194 = vrot.slane %v39, %v193
  %v195 = vmul.f32 %v187, %v194
  %v196 = vmul.f32 %v188, %v194
  %v197 = vmul.f32 %v189, %v194
  %v198 = vmul.f32 %v190, %v194
  %v199 = vlaneseq
  %v200 = vshrl.u32 %v199, 7
  %v201 = vsub.s32 2, %v200
  %v202 = vrot.slane %v39, %v201
  %v203 = vadd.f32 %v195, %v202
  %v204 = vadd.f32 %v196, %v202
  %v205 = vadd.f32 %v197, %v202
  %v206 = vadd.f32 %v198, %v202
  %v207 = vld [vmem:[%s5] sm:$0xf]
  %v208 = vld [vmem:[%s5 + $0x4] sm:$0xf]
  %v209 = vld [vmem:[%s5 + $0x8] sm:$0xf]
  %v210 = vld [vmem:[%s5 + $0xc] sm:$0xf]
  %v211 = vld [vmem:[%s5 + $0x10] sm:$0xf]
  %v212 = vld [vmem:[%s5 + $0x14] sm:$0xf]
  %v213 = vld [vmem:[%s5 + $0x18] sm:$0xf]
  %v214 = vld [vmem:[%s5 + $0x1c] sm:$0xf]
  %v215 = vpack.c.bf16 %v204, %v203
  %v216 = vpack.c.bf16 %v206, %v205
  %v225 = vunpack.c.l.b16 %v207
  %v226 = vunpack.c.l.b16 %v208
  %v227 = vunpack.c.l.b16 %v209
  %v228 = vunpack.c.l.b16 %v210
  %v229 = vunpack.c.l.b16 %v211
  %v230 = vunpack.c.l.b16 %v212
  %v231 = vunpack.c.l.b16 %v213
  %v232 = vunpack.c.l.b16 %v214
  %v233 = vpack.c.b16 %v226, %v225
  %v234 = vpack.c.b16 %v228, %v227
  %v235 = vpack.c.b16 %v230, %v229
  %v236 = vpack.c.b16 %v232, %v231
  %v242 = vsel %vm137, %v215, 0
  %v245 = vsel %vm137, %v216, 0
  %247 = vmatprep.subr.bf16.mxu0 0
  %248 = vmatpush1.bf16.msra.mxu0 %v233
  %249 = vmatprep.subr.bf16.mxu0 0
  %250 = vmatpush1.bf16.msra.mxu0 %v234
  %251 = vmatprep.subr.bf16.mxu0 0
  %252 = vmatpush1.bf16.msra.mxu0 %v235
  %253 = vmatprep.subr.bf16.mxu0 0
  %254 = vmatpush1.bf16.msra.mxu0 %v236
  %255 = vmatprep.subr.bf16.mxu0 0
  %256 = vmatpush1.bf16.msra.mxu0 0
  %257 = vmatprep.subr.bf16.mxu0 0
  %258 = vmatpush1.bf16.msra.mxu0 0
  %259 = vmatprep.subr.bf16.mxu0 0
  %260 = vmatpush1.bf16.msra.mxu0 0
  %261 = vmatprep.subr.bf16.mxu0 0
  %262 = vmatpush1.bf16.msra.mxu0 0
  %263 = vmatprep.subr.bf16.mxu0 0
  %264 = vmatpush1.bf16.msra.mxu0 0
  %265 = vmatprep.subr.bf16.mxu0 0
  %266 = vmatpush1.bf16.msra.mxu0 0
  %267 = vmatprep.subr.bf16.mxu0 0
  %268 = vmatpush1.bf16.msra.mxu0 0
  %269 = vmatprep.subr.bf16.mxu0 0
  %270 = vmatpush1.bf16.msra.mxu0 0
  %271 = vmatprep.subr.bf16.mxu0 0
  %272 = vmatpush1.bf16.msra.mxu0 0
  %273 = vmatprep.subr.bf16.mxu0 0
  %274 = vmatpush1.bf16.msra.mxu0 0
  %275 = vmatprep.subr.bf16.mxu0 0
  %276 = vmatpush1.bf16.msra.mxu0 0
  %277 = vmatprep.subr.bf16.mxu0 0
  %278 = vmatpush1.bf16.msra.mxu0 0
  %279 = vmatprep.mubr.bf16.mxu0 0
  %280 = vmatmul.mubr.bf16.gmra.mrb[0].mxu0 %v242
  %v281 = vpop.f32.mrb[0].mxu0
  %v282 = vadd.f32 0.0, %v281
  %v283 = vpop.f32.mrb[0].mxu0
  %v284 = vpop.f32.mrb[0].mxu0
  %v285 = vadd.f32 0.0, %v284
  %v286 = vpop.f32.mrb[0].mxu0
  %287 = vmatprep.mubr.bf16.mxu0 0
  %288 = vmatmul.mubr.bf16.gmra.mrb[0].mxu0 %v245
  %v289 = vpop.f32.mrb[0].mxu0
  %v290 = vadd.f32 0.0, %v289
  %v291 = vpop.f32.mrb[0].mxu0
  %v292 = vpop.f32.mrb[0].mxu0
  %v293 = vadd.f32 0.0, %v292
  %v294 = vpop.f32.mrb[0].mxu0
  %295 = vdwg.mxu0
  %v296 = vld [vmem:[%s6] sm:$0xf]
  %v297 = vld [vmem:[%s6 + $0x4] sm:$0xf]
  %v298 = vld [vmem:[%s6 + $0x8] sm:$0xf]
  %v299 = vld [vmem:[%s6 + $0xc] sm:$0xf]
  %v300 = vld [vmem:[%s6 + $0x10] sm:$0xf]
  %v301 = vld [vmem:[%s6 + $0x14] sm:$0xf]
  %v302 = vld [vmem:[%s6 + $0x18] sm:$0xf]
  %v303 = vld [vmem:[%s6 + $0x1c] sm:$0xf]
  %v312 = vunpack.c.l.b16 %v296
  %v313 = vunpack.c.l.b16 %v297
  %v314 = vunpack.c.l.b16 %v298
  %v315 = vunpack.c.l.b16 %v299
  %v316 = vunpack.c.l.b16 %v300
  %v317 = vunpack.c.l.b16 %v301
  %v318 = vunpack.c.l.b16 %v302
  %v319 = vunpack.c.l.b16 %v303
  %v320 = vpack.c.b16 %v313, %v312
  %v321 = vpack.c.b16 %v315, %v314
  %v322 = vpack.c.b16 %v317, %v316
  %v323 = vpack.c.b16 %v319, %v318
  %328 = vmatprep.subr.bf16.mxu0 0
  %329 = vmatpush1.bf16.msra.mxu0 %v320
  %330 = vmatprep.subr.bf16.mxu0 0
  %331 = vmatpush1.bf16.msra.mxu0 %v321
  %332 = vmatprep.subr.bf16.mxu0 0
  %333 = vmatpush1.bf16.msra.mxu0 %v322
  %334 = vmatprep.subr.bf16.mxu0 0
  %335 = vmatpush1.bf16.msra.mxu0 %v323
  %336 = vmatprep.subr.bf16.mxu0 0
  %337 = vmatpush1.bf16.msra.mxu0 0
  %338 = vmatprep.subr.bf16.mxu0 0
  %339 = vmatpush1.bf16.msra.mxu0 0
  %340 = vmatprep.subr.bf16.mxu0 0
  %341 = vmatpush1.bf16.msra.mxu0 0
  %342 = vmatprep.subr.bf16.mxu0 0
  %343 = vmatpush1.bf16.msra.mxu0 0
  %344 = vmatprep.subr.bf16.mxu0 0
  %345 = vmatpush1.bf16.msra.mxu0 0
  %346 = vmatprep.subr.bf16.mxu0 0
  %347 = vmatpush1.bf16.msra.mxu0 0
  %348 = vmatprep.subr.bf16.mxu0 0
  %349 = vmatpush1.bf16.msra.mxu0 0
  %350 = vmatprep.subr.bf16.mxu0 0
  %351 = vmatpush1.bf16.msra.mxu0 0
  %352 = vmatprep.subr.bf16.mxu0 0
  %353 = vmatpush1.bf16.msra.mxu0 0
  %354 = vmatprep.subr.bf16.mxu0 0
  %355 = vmatpush1.bf16.msra.mxu0 0
  %356 = vmatprep.subr.bf16.mxu0 0
  %357 = vmatpush1.bf16.msra.mxu0 0
  %358 = vmatprep.subr.bf16.mxu0 0
  %359 = vmatpush1.bf16.msra.mxu0 0
  %360 = vmatprep.mubr.bf16.mxu0 0
  %361 = vmatmul.mubr.bf16.gmra.mrb[0].mxu0 %v242
  %v362 = vpop.f32.mrb[0].mxu0
  %v363 = vadd.f32 0.0, %v362
  %v364 = vpop.f32.mrb[0].mxu0
  %v365 = vpop.f32.mrb[0].mxu0
  %v366 = vadd.f32 0.0, %v365
  %v367 = vpop.f32.mrb[0].mxu0
  %368 = vmatprep.mubr.bf16.mxu0 0
  %369 = vmatmul.mubr.bf16.gmra.mrb[0].mxu0 %v245
  %v370 = vpop.f32.mrb[0].mxu0
  %v371 = vadd.f32 0.0, %v370
  %v372 = vpop.f32.mrb[0].mxu0
  %v373 = vpop.f32.mrb[0].mxu0
  %v374 = vadd.f32 0.0, %v373
  %v375 = vpop.f32.mrb[0].mxu0
  %376 = vdwg.mxu0
  %v377 = vld [vmem:[%s7] sm:$0xf]
  %v378 = vld [vmem:[%s7 + $0x4] sm:$0xf]
  %v379 = vld [vmem:[%s7 + $0x8] sm:$0xf]
  %v380 = vld [vmem:[%s7 + $0xc] sm:$0xf]
  %v381 = vld [vmem:[%s7 + $0x10] sm:$0xf]
  %v382 = vld [vmem:[%s7 + $0x14] sm:$0xf]
  %v383 = vld [vmem:[%s7 + $0x18] sm:$0xf]
  %v384 = vld [vmem:[%s7 + $0x1c] sm:$0xf]
  %v393 = vunpack.c.l.b16 %v377
  %v394 = vunpack.c.l.b16 %v378
  %v395 = vunpack.c.l.b16 %v379
  %v396 = vunpack.c.l.b16 %v380
  %v397 = vunpack.c.l.b16 %v381
  %v398 = vunpack.c.l.b16 %v382
  %v399 = vunpack.c.l.b16 %v383
  %v400 = vunpack.c.l.b16 %v384
  %v401 = vpack.c.b16 %v394, %v393
  %v402 = vpack.c.b16 %v396, %v395
  %v403 = vpack.c.b16 %v398, %v397
  %v404 = vpack.c.b16 %v400, %v399
  %409 = vmatprep.subr.bf16.mxu0 0
  %410 = vmatpush1.bf16.msra.mxu0 %v401
  %411 = vmatprep.subr.bf16.mxu0 0
  %412 = vmatpush1.bf16.msra.mxu0 %v402
  %413 = vmatprep.subr.bf16.mxu0 0
  %414 = vmatpush1.bf16.msra.mxu0 %v403
  %415 = vmatprep.subr.bf16.mxu0 0
  %416 = vmatpush1.bf16.msra.mxu0 %v404
  %417 = vmatprep.subr.bf16.mxu0 0
  %418 = vmatpush1.bf16.msra.mxu0 0
  %419 = vmatprep.subr.bf16.mxu0 0
  %420 = vmatpush1.bf16.msra.mxu0 0
  %421 = vmatprep.subr.bf16.mxu0 0
  %422 = vmatpush1.bf16.msra.mxu0 0
  %423 = vmatprep.subr.bf16.mxu0 0
  %424 = vmatpush1.bf16.msra.mxu0 0
  %425 = vmatprep.subr.bf16.mxu0 0
  %426 = vmatpush1.bf16.msra.mxu0 0
  %427 = vmatprep.subr.bf16.mxu0 0
  %428 = vmatpush1.bf16.msra.mxu0 0
  %429 = vmatprep.subr.bf16.mxu0 0
  %430 = vmatpush1.bf16.msra.mxu0 0
  %431 = vmatprep.subr.bf16.mxu0 0
  %432 = vmatpush1.bf16.msra.mxu0 0
  %433 = vmatprep.subr.bf16.mxu0 0
  %434 = vmatpush1.bf16.msra.mxu0 0
  %435 = vmatprep.subr.bf16.mxu0 0
  %436 = vmatpush1.bf16.msra.mxu0 0
  %437 = vmatprep.subr.bf16.mxu0 0
  %438 = vmatpush1.bf16.msra.mxu0 0
  %439 = vmatprep.subr.bf16.mxu0 0
  %440 = vmatpush1.bf16.msra.mxu0 0
  %441 = vmatprep.mubr.bf16.mxu0 0
  %442 = vmatmul.mubr.bf16.gmra.mrb[0].mxu0 %v242
  %v443 = vpop.f32.mrb[0].mxu0
  %v444 = vadd.f32 0.0, %v443
  %v445 = vpop.f32.mrb[0].mxu0
  %v446 = vpop.f32.mrb[0].mxu0
  %v447 = vadd.f32 0.0, %v446
  %v448 = vpop.f32.mrb[0].mxu0
  %449 = vmatprep.mubr.bf16.mxu0 0
  %450 = vmatmul.mubr.bf16.gmra.mrb[0].mxu0 %v245
  %v451 = vpop.f32.mrb[0].mxu0
  %v452 = vadd.f32 0.0, %v451
  %v453 = vpop.f32.mrb[0].mxu0
  %v454 = vpop.f32.mrb[0].mxu0
  %v455 = vadd.f32 0.0, %v454
  %v456 = vpop.f32.mrb[0].mxu0
  %457 = vdwg.mxu0
  %v458 = vpack.c.bf16 %v285, %v282
  %v459 = vpack.c.bf16 %v293, %v290
  %v460 = vpack.c.bf16 %v366, %v363
  %v461 = vpack.c.bf16 %v374, %v371
  %v463 = vsel %vm137, %v458, 0
  %v466 = vsel %vm137, %v460, 0
  %468 = vmatprep.subr.bf16.mxu0 0
  %469 = vmatpush1.bf16.xpose.msra.mxu0 %v466
  %470 = vmatprep.subr.bf16.mxu0 0
  %471 = vmatpush1.bf16.xpose.msra.mxu0 0
  %472 = vmatprep.subr.bf16.mxu0 0
  %473 = vmatpush1.bf16.xpose.msra.mxu0 0
  %474 = vmatprep.subr.bf16.mxu0 0
  %475 = vmatpush1.bf16.xpose.msra.mxu0 0
  %476 = vmatprep.subr.bf16.mxu0 0
  %477 = vmatpush1.bf16.xpose.msra.mxu0 0
  %478 = vmatprep.subr.bf16.mxu0 0
  %479 = vmatpush1.bf16.xpose.msra.mxu0 0
  %480 = vmatprep.subr.bf16.mxu0 0
  %481 = vmatpush1.bf16.xpose.msra.mxu0 0
  %482 = vmatprep.subr.bf16.mxu0 0
  %483 = vmatpush1.bf16.xpose.msra.mxu0 0
  %484 = vmatprep.subr.bf16.mxu0 0
  %485 = vmatpush1.bf16.xpose.msra.mxu0 0
  %486 = vmatprep.subr.bf16.mxu0 0
  %487 = vmatpush1.bf16.xpose.msra.mxu0 0
  %488 = vmatprep.subr.bf16.mxu0 0
  %489 = vmatpush1.bf16.xpose.msra.mxu0 0
  %490 = vmatprep.subr.bf16.mxu0 0
  %491 = vmatpush1.bf16.xpose.msra.mxu0 0
  %492 = vmatprep.subr.bf16.mxu0 0
  %493 = vmatpush1.bf16.xpose.msra.mxu0 0
  %494 = vmatprep.subr.bf16.mxu0 0
  %495 = vmatpush1.bf16.xpose.msra.mxu0 0
  %496 = vmatprep.subr.bf16.mxu0 0
  %497 = vmatpush1.bf16.xpose.msra.mxu0 0
  %498 = vmatprep.subr.bf16.mxu0 0
  %499 = vmatpush1.bf16.xpose.msra.mxu0 0
  %500 = vmatprep.mubr.bf16.mxu0 0
  %501 = vmatmul.mubr.bf16.gmra.mrb[0].mxu0 %v463
  %v502 = vpop.f32.mrb[0].mxu0
  %v503 = vadd.f32 0.0, %v502
  %v504 = vpop.f32.mrb[0].mxu0
  %v505 = vpop.f32.mrb[0].mxu0
  %v506 = vadd.f32 0.0, %v505
  %v507 = vpop.f32.mrb[0].mxu0
  %508 = vdwg.mxu0
  %v510 = vsel %vm137, %v459, 0
  %v513 = vsel %vm137, %v461, 0
  %515 = vmatprep.subr.bf16.mxu0 0
  %516 = vmatpush1.bf16.xpose.msra.mxu0 %v513
  %517 = vmatprep.subr.bf16.mxu0 0
  %518 = vmatpush1.bf16.xpose.msra.mxu0 0
  %519 = vmatprep.subr.bf16.mxu0 0
  %520 = vmatpush1.bf16.xpose.msra.mxu0 0
  %521 = vmatprep.subr.bf16.mxu0 0
  %522 = vmatpush1.bf16.xpose.msra.mxu0 0
  %523 = vmatprep.subr.bf16.mxu0 0
  %524 = vmatpush1.bf16.xpose.msra.mxu0 0
  %525 = vmatprep.subr.bf16.mxu0 0
  %526 = vmatpush1.bf16.xpose.msra.mxu0 0
  %527 = vmatprep.subr.bf16.mxu0 0
  %528 = vmatpush1.bf16.xpose.msra.mxu0 0
  %529 = vmatprep.subr.bf16.mxu0 0
  %530 = vmatpush1.bf16.xpose.msra.mxu0 0
  %531 = vmatprep.subr.bf16.mxu0 0
  %532 = vmatpush1.bf16.xpose.msra.mxu0 0
  %533 = vmatprep.subr.bf16.mxu0 0
  %534 = vmatpush1.bf16.xpose.msra.mxu0 0
  %535 = vmatprep.subr.bf16.mxu0 0
  %536 = vmatpush1.bf16.xpose.msra.mxu0 0
  %537 = vmatprep.subr.bf16.mxu0 0
  %538 = vmatpush1.bf16.xpose.msra.mxu0 0
  %539 = vmatprep.subr.bf16.mxu0 0
  %540 = vmatpush1.bf16.xpose.msra.mxu0 0
  %541 = vmatprep.subr.bf16.mxu0 0
  %542 = vmatpush1.bf16.xpose.msra.mxu0 0
  %543 = vmatprep.subr.bf16.mxu0 0
  %544 = vmatpush1.bf16.xpose.msra.mxu0 0
  %545 = vmatprep.subr.bf16.mxu0 0
  %546 = vmatpush1.bf16.xpose.msra.mxu0 0
  %547 = vmatprep.mubr.bf16.mxu0 0
  %548 = vmatmul.mubr.bf16.gmra.mrb[0].mxu0 %v510
  %v549 = vpop.f32.mrb[0].mxu0
  %v550 = vadd.f32 0.0, %v549
  %v551 = vpop.f32.mrb[0].mxu0
  %v552 = vpop.f32.mrb[0].mxu0
  %v553 = vadd.f32 0.0, %v552
  %v554 = vpop.f32.mrb[0].mxu0
  %555 = vdwg.mxu0
  %vm556 = vcmask 130048
  %v557 = vsel %vm556, %v503, -inf
  %558 = vmax.xlane.f32.xlu0 %v557
  %v559 = vpop.xlane.xlu0 %558
  %v560 = vsel %vm556, %v506, -inf
  %561 = vmax.xlane.f32.xlu0 %v560
  %v562 = vpop.xlane.xlu0 %561
  %v563 = vsel %vm556, %v550, -inf
  %564 = vmax.xlane.f32.xlu0 %v563
  %v565 = vpop.xlane.xlu0 %564
  %v566 = vsel %vm556, %v553, -inf
  %567 = vmax.xlane.f32.xlu0 %v566
  %v568 = vpop.xlane.xlu0 %567
  %v569 = vsub.f32 %v503, %v559
  %v570 = vsub.f32 %v506, %v562
  %v571 = vsub.f32 %v550, %v565
  %v572 = vsub.f32 %v553, %v568
  %v573 = vmul.f32 %v569, 1.442695
  %v574 = vpow.pop %v573
  %v575 = vmul.f32 %v570, 1.442695
  %v576 = vpow.pop %v575
  %v577 = vmul.f32 %v571, 1.442695
  %v578 = vpow.pop %v577
  %v579 = vmul.f32 %v572, 1.442695
  %v580 = vpow.pop %v579
  %v581 = vsel %vm556, %v574, 0.0
  %582 = vadd.xlane.f32.xlu0 %v581
  %v583 = vpop.xlane.xlu0 %582
  %v584 = vsel %vm556, %v576, 0.0
  %585 = vadd.xlane.f32.xlu0 %v584
  %v586 = vpop.xlane.xlu0 %585
  %v587 = vsel %vm556, %v578, 0.0
  %588 = vadd.xlane.f32.xlu0 %v587
  %v589 = vpop.xlane.xlu0 %588
  %v590 = vsel %vm556, %v580, 0.0
  %591 = vadd.xlane.f32.xlu0 %v590
  %v592 = vpop.xlane.xlu0 %591
  %v593 = vrcp.pop %v583
  %v594 = vrcp.pop %v586
  %v595 = vrcp.pop %v589
  %v596 = vrcp.pop %v592
  %v597 = vmul.f32 %v574, %v593
  %v598 = vmul.f32 %v576, %v594
  %v599 = vmul.f32 %v578, %v595
  %v600 = vmul.f32 %v580, %v596
  %v601 = vpack.c.bf16 %v598, %v597
  %v602 = vpack.c.bf16 %v600, %v599
  %v603 = vpack.c.bf16 %v447, %v444
  %v604 = vpack.c.bf16 %v455, %v452
  %v606 = vsel %vm556, %v601, 0
  %608 = vmatprep.subr.bf16.mxu0 0
  %609 = vmatpush1.bf16.msra.mxu0 %v603
  %610 = vmatprep.subr.bf16.mxu0 0
  %611 = vmatpush1.bf16.msra.mxu0 0
  %612 = vmatprep.subr.bf16.mxu0 0
  %613 = vmatpush1.bf16.msra.mxu0 0
  %614 = vmatprep.subr.bf16.mxu0 0
  %615 = vmatpush1.bf16.msra.mxu0 0
  %616 = vmatprep.subr.bf16.mxu0 0
  %617 = vmatpush1.bf16.msra.mxu0 0
  %618 = vmatprep.subr.bf16.mxu0 0
  %619 = vmatpush1.bf16.msra.mxu0 0
  %620 = vmatprep.subr.bf16.mxu0 0
  %621 = vmatpush1.bf16.msra.mxu0 0
  %622 = vmatprep.subr.bf16.mxu0 0
  %623 = vmatpush1.bf16.msra.mxu0 0
  %624 = vmatprep.subr.bf16.mxu0 0
  %625 = vmatpush1.bf16.msra.mxu0 0
  %626 = vmatprep.subr.bf16.mxu0 0
  %627 = vmatpush1.bf16.msra.mxu0 0
  %628 = vmatprep.subr.bf16.mxu0 0
  %629 = vmatpush1.bf16.msra.mxu0 0
  %630 = vmatprep.subr.bf16.mxu0 0
  %631 = vmatpush1.bf16.msra.mxu0 0
  %632 = vmatprep.subr.bf16.mxu0 0
  %633 = vmatpush1.bf16.msra.mxu0 0
  %634 = vmatprep.subr.bf16.mxu0 0
  %635 = vmatpush1.bf16.msra.mxu0 0
  %636 = vmatprep.subr.bf16.mxu0 0
  %637 = vmatpush1.bf16.msra.mxu0 0
  %638 = vmatprep.subr.bf16.mxu0 0
  %639 = vmatpush1.bf16.msra.mxu0 0
  %640 = vmatprep.mubr.bf16.mxu0 0
  %641 = vmatmul.mubr.bf16.gmra.mrb[0].mxu0 %v606
  %v642 = vpop.f32.mrb[0].mxu0
  %v643 = vadd.f32 0.0, %v642
  %v644 = vpop.f32.mrb[0].mxu0
  %v645 = vpop.f32.mrb[0].mxu0
  %v646 = vadd.f32 0.0, %v645
  %v647 = vpop.f32.mrb[0].mxu0
  %648 = vdwg.mxu0
  %v650 = vsel %vm556, %v602, 0
  %652 = vmatprep.subr.bf16.mxu0 0
  %653 = vmatpush1.bf16.msra.mxu0 %v604
  %654 = vmatprep.subr.bf16.mxu0 0
  %655 = vmatpush1.bf16.msra.mxu0 0
  %656 = vmatprep.subr.bf16.mxu0 0
  %657 = vmatpush1.bf16.msra.mxu0 0
  %658 = vmatprep.subr.bf16.mxu0 0
  %659 = vmatpush1.bf16.msra.mxu0 0
  %660 = vmatprep.subr.bf16.mxu0 0
  %661 = vmatpush1.bf16.msra.mxu0 0
  %662 = vmatprep.subr.bf16.mxu0 0
  %663 = vmatpush1.bf16.msra.mxu0 0
  %664 = vmatprep.subr.bf16.mxu0 0
  %665 = vmatpush1.bf16.msra.mxu0 0
  %666 = vmatprep.subr.bf16.mxu0 0
  %667 = vmatpush1.bf16.msra.mxu0 0
  %668 = vmatprep.subr.bf16.mxu0 0
  %669 = vmatpush1.bf16.msra.mxu0 0
  %670 = vmatprep.subr.bf16.mxu0 0
  %671 = vmatpush1.bf16.msra.mxu0 0
  %672 = vmatprep.subr.bf16.mxu0 0
  %673 = vmatpush1.bf16.msra.mxu0 0
  %674 = vmatprep.subr.bf16.mxu0 0
  %675 = vmatpush1.bf16.msra.mxu0 0
  %676 = vmatprep.subr.bf16.mxu0 0
  %677 = vmatpush1.bf16.msra.mxu0 0
  %678 = vmatprep.subr.bf16.mxu0 0
  %679 = vmatpush1.bf16.msra.mxu0 0
  %680 = vmatprep.subr.bf16.mxu0 0
  %681 = vmatpush1.bf16.msra.mxu0 0
  %682 = vmatprep.subr.bf16.mxu0 0
  %683 = vmatpush1.bf16.msra.mxu0 0
  %684 = vmatprep.mubr.bf16.mxu0 0
  %685 = vmatmul.mubr.bf16.gmra.mrb[0].mxu0 %v650
  %v686 = vpop.f32.mrb[0].mxu0
  %v687 = vadd.f32 0.0, %v686
  %v688 = vpop.f32.mrb[0].mxu0
  %v689 = vpop.f32.mrb[0].mxu0
  %v690 = vadd.f32 0.0, %v689
  %v691 = vpop.f32.mrb[0].mxu0
  %692 = vdwg.mxu0
  %v693 = vld [vmem:[%s8] sm:$0xf]
  %v694 = vld [vmem:[%s8 + $0x4] sm:$0xf]
  %v695 = vld [vmem:[%s8 + $0x8] sm:$0xf]
  %v696 = vld [vmem:[%s8 + $0xc] sm:$0xf]
  %v697 = vld [vmem:[%s8 + $0x10] sm:$0xf]
  %v698 = vld [vmem:[%s8 + $0x14] sm:$0xf]
  %v699 = vld [vmem:[%s8 + $0x18] sm:$0xf]
  %v700 = vld [vmem:[%s8 + $0x1c] sm:$0xf]
  %v701 = vpack.c.bf16 %v646, %v643
  %v702 = vpack.c.bf16 %v690, %v687
  %v711 = vunpack.c.l.b16 %v693
  %v712 = vunpack.c.l.b16 %v694
  %v713 = vunpack.c.l.b16 %v695
  %v714 = vunpack.c.l.b16 %v696
  %v715 = vunpack.c.l.b16 %v697
  %v716 = vunpack.c.l.b16 %v698
  %v717 = vunpack.c.l.b16 %v699
  %v718 = vunpack.c.l.b16 %v700
  %v719 = vpack.c.b16 %v712, %v711
  %v720 = vpack.c.b16 %v714, %v713
  %v721 = vpack.c.b16 %v716, %v715
  %v722 = vpack.c.b16 %v718, %v717
  %v728 = vsel %vm137, %v701, 0
  %v731 = vsel %vm137, %v702, 0
  %733 = vmatprep.subr.bf16.mxu0 0
  %734 = vmatpush1.bf16.msra.mxu0 %v719
  %735 = vmatprep.subr.bf16.mxu0 0
  %736 = vmatpush1.bf16.msra.mxu0 %v720
  %737 = vmatprep.subr.bf16.mxu0 0
  %738 = vmatpush1.bf16.msra.mxu0 %v721
  %739 = vmatprep.subr.bf16.mxu0 0
  %740 = vmatpush1.bf16.msra.mxu0 %v722
  %741 = vmatprep.subr.bf16.mxu0 0
  %742 = vmatpush1.bf16.msra.mxu0 0
  %743 = vmatprep.subr.bf16.mxu0 0
  %744 = vmatpush1.bf16.msra.mxu0 0
  %745 = vmatprep.subr.bf16.mxu0 0
  %746 = vmatpush1.bf16.msra.mxu0 0
  %747 = vmatprep.subr.bf16.mxu0 0
  %748 = vmatpush1.bf16.msra.mxu0 0
  %749 = vmatprep.subr.bf16.mxu0 0
  %750 = vmatpush1.bf16.msra.mxu0 0
  %751 = vmatprep.subr.bf16.mxu0 0
  %752 = vmatpush1.bf16.msra.mxu0 0
  %753 = vmatprep.subr.bf16.mxu0 0
  %754 = vmatpush1.bf16.msra.mxu0 0
  %755 = vmatprep.subr.bf16.mxu0 0
  %756 = vmatpush1.bf16.msra.mxu0 0
  %757 = vmatprep.subr.bf16.mxu0 0
  %758 = vmatpush1.bf16.msra.mxu0 0
  %759 = vmatprep.subr.bf16.mxu0 0
  %760 = vmatpush1.bf16.msra.mxu0 0
  %761 = vmatprep.subr.bf16.mxu0 0
  %762 = vmatpush1.bf16.msra.mxu0 0
  %763 = vmatprep.subr.bf16.mxu0 0
  %764 = vmatpush1.bf16.msra.mxu0 0
  %765 = vmatprep.mubr.bf16.mxu0 0
  %766 = vmatmul.mubr.bf16.gmra.mrb[0].mxu0 %v728
  %v767 = vpop.f32.mrb[0].mxu0
  %v768 = vadd.f32 0.0, %v767
  %v769 = vpop.f32.mrb[0].mxu0
  %v770 = vpop.f32.mrb[0].mxu0
  %v771 = vadd.f32 0.0, %v770
  %v772 = vpop.f32.mrb[0].mxu0
  %773 = vmatprep.mubr.bf16.mxu0 0
  %774 = vmatmul.mubr.bf16.gmra.mrb[0].mxu0 %v731
  %v775 = vpop.f32.mrb[0].mxu0
  %v776 = vadd.f32 0.0, %v775
  %v777 = vpop.f32.mrb[0].mxu0
  %v778 = vpop.f32.mrb[0].mxu0
  %v779 = vadd.f32 0.0, %v778
  %v780 = vpop.f32.mrb[0].mxu0
  %781 = vdwg.mxu0
  %v782 = vadd.f32 %v133, %v768
  %v783 = vadd.f32 %v134, %v771
  %v784 = vadd.f32 %v135, %v776
  %v785 = vadd.f32 %v136, %v779
  %v786 = vlaneseq
  %v787 = vshrl.u32 %v786, 7
  %v788 = vsub.s32 5, %v787
  %v789 = vrot.slane %v39, %v788
  %v790 = vadd.f32 %v782, %v789
  %v791 = vadd.f32 %v783, %v789
  %v792 = vadd.f32 %v784, %v789
  %v793 = vadd.f32 %v785, %v789
  %v794 = vsel %vm137, %v790, 0.0
  %795 = vadd.xlane.f32.xlu0 %v794
  %v796 = vpop.xlane.xlu0 %795
  %v797 = vsel %vm137, %v791, 0.0
  %798 = vadd.xlane.f32.xlu0 %v797
  %v799 = vpop.xlane.xlu0 %798
  %v800 = vsel %vm137, %v792, 0.0
  %801 = vadd.xlane.f32.xlu0 %v800
  %v802 = vpop.xlane.xlu0 %801
  %v803 = vsel %vm137, %v793, 0.0
  %804 = vadd.xlane.f32.xlu0 %v803
  %v805 = vpop.xlane.xlu0 %804
  %v806 = vmul.f32 %v796, %v150
  %v807 = vmul.f32 %v799, %v150
  %v808 = vmul.f32 %v802, %v150
  %v809 = vmul.f32 %v805, %v150
  %v810 = vsub.f32 %v790, %v806
  %v811 = vsub.f32 %v791, %v807
  %v812 = vsub.f32 %v792, %v808
  %v813 = vsub.f32 %v793, %v809
  %v814 = vmul.f32 %v810, %v810
  %v815 = vmul.f32 %v811, %v811
  %v816 = vmul.f32 %v812, %v812
  %v817 = vmul.f32 %v813, %v813
  %v818 = vsel %vm137, %v814, 0.0
  %819 = vadd.xlane.f32.xlu0 %v818
  %v820 = vpop.xlane.xlu0 %819
  %v821 = vsel %vm137, %v815, 0.0
  %822 = vadd.xlane.f32.xlu0 %v821
  %v823 = vpop.xlane.xlu0 %822
  %v824 = vsel %vm137, %v816, 0.0
  %825 = vadd.xlane.f32.xlu0 %v824
  %v826 = vpop.xlane.xlu0 %825
  %v827 = vsel %vm137, %v817, 0.0
  %828 = vadd.xlane.f32.xlu0 %v827
  %v829 = vpop.xlane.xlu0 %828
  %v830 = vmul.f32 %v820, %v150
  %v831 = vmul.f32 %v823, %v150
  %v832 = vmul.f32 %v826, %v150
  %v833 = vmul.f32 %v829, %v150
  %v834 = vadd.f32 %v830, 1e-06
  %v835 = vadd.f32 %v831, 1e-06
  %v836 = vadd.f32 %v832, 1e-06
  %v837 = vadd.f32 %v833, 1e-06
  %v838 = vrsqrt.pop %v834
  %v839 = vrsqrt.pop %v835
  %v840 = vrsqrt.pop %v836
  %v841 = vrsqrt.pop %v837
  %v842 = vmul.f32 %v810, %v838
  %v843 = vmul.f32 %v811, %v839
  %v844 = vmul.f32 %v812, %v840
  %v845 = vmul.f32 %v813, %v841
  %v846 = vlaneseq
  %v847 = vshrl.u32 %v846, 7
  %v848 = vsub.s32 3, %v847
  %v849 = vrot.slane %v39, %v848
  %v850 = vmul.f32 %v842, %v849
  %v851 = vmul.f32 %v843, %v849
  %v852 = vmul.f32 %v844, %v849
  %v853 = vmul.f32 %v845, %v849
  %v854 = vlaneseq
  %v855 = vshrl.u32 %v854, 7
  %v856 = vsub.s32 4, %v855
  %v857 = vrot.slane %v39, %v856
  %v858 = vadd.f32 %v850, %v857
  %v859 = vadd.f32 %v851, %v857
  %v860 = vadd.f32 %v852, %v857
  %v861 = vadd.f32 %v853, %v857
  %v862 = vld [vmem:[%s9] sm:$0xf]
  %v863 = vld [vmem:[%s9 + $0x4] sm:$0xf]
  %v864 = vld [vmem:[%s9 + $0x8] sm:$0xf]
  %v865 = vld [vmem:[%s9 + $0xc] sm:$0xf]
  %v866 = vld [vmem:[%s9 + $0x10] sm:$0xf]
  %v867 = vld [vmem:[%s9 + $0x14] sm:$0xf]
  %v868 = vld [vmem:[%s9 + $0x18] sm:$0xf]
  %v869 = vld [vmem:[%s9 + $0x1c] sm:$0xf]
  %v870 = vld [vmem:[%s10] sm:$0xf]
  %v871 = vld [vmem:[%s10 + $0x4] sm:$0xf]
  %v872 = vld [vmem:[%s10 + $0x8] sm:$0xf]
  %v873 = vld [vmem:[%s10 + $0xc] sm:$0xf]
  %v874 = vld [vmem:[%s10 + $0x10] sm:$0xf]
  %v875 = vld [vmem:[%s10 + $0x14] sm:$0xf]
  %v876 = vld [vmem:[%s10 + $0x18] sm:$0xf]
  %v877 = vld [vmem:[%s10 + $0x1c] sm:$0xf]
  %v878 = vld [vmem:[%s10 + $0x20] sm:$0xf]
  %v879 = vld [vmem:[%s10 + $0x24] sm:$0xf]
  %v880 = vld [vmem:[%s10 + $0x28] sm:$0xf]
  %v881 = vld [vmem:[%s10 + $0x2c] sm:$0xf]
  %v882 = vld [vmem:[%s10 + $0x30] sm:$0xf]
  %v883 = vld [vmem:[%s10 + $0x34] sm:$0xf]
  %v884 = vld [vmem:[%s10 + $0x38] sm:$0xf]
  %v885 = vld [vmem:[%s10 + $0x3c] sm:$0xf]
  %v886 = vpack.c.bf16 %v859, %v858
  %v887 = vpack.c.bf16 %v861, %v860
  %v889 = vlaneseq
  %v890 = vshrl.u32 %v889, 7
  %v891 = vsub.s32 0, %v890
  %v892 = vrot.slane %v40, %v891
  %v902 = vunpack.c.l.b16 %v862
  %v903 = vunpack.c.l.b16 %v863
  %v904 = vunpack.c.l.b16 %v864
  %v905 = vunpack.c.l.b16 %v865
  %v906 = vunpack.c.l.b16 %v866
  %v907 = vunpack.c.l.b16 %v867
  %v908 = vunpack.c.l.b16 %v868
  %v909 = vunpack.c.l.b16 %v869
  %v910 = vpack.c.b16 %v903, %v902
  %v911 = vpack.c.b16 %v905, %v904
  %v912 = vpack.c.b16 %v907, %v906
  %v913 = vpack.c.b16 %v909, %v908
  %v919 = vsel %vm137, %v886, 0
  %v922 = vsel %vm137, %v887, 0
  %924 = vmatprep.subr.bf16.mxu0 0
  %925 = vmatpush1.bf16.msra.mxu0 %v910
  %926 = vmatprep.subr.bf16.mxu0 0
  %927 = vmatpush1.bf16.msra.mxu0 %v911
  %928 = vmatprep.subr.bf16.mxu0 0
  %929 = vmatpush1.bf16.msra.mxu0 %v912
  %930 = vmatprep.subr.bf16.mxu0 0
  %931 = vmatpush1.bf16.msra.mxu0 %v913
  %932 = vmatprep.subr.bf16.mxu0 0
  %933 = vmatpush1.bf16.msra.mxu0 0
  %934 = vmatprep.subr.bf16.mxu0 0
  %935 = vmatpush1.bf16.msra.mxu0 0
  %936 = vmatprep.subr.bf16.mxu0 0
  %937 = vmatpush1.bf16.msra.mxu0 0
  %938 = vmatprep.subr.bf16.mxu0 0
  %939 = vmatpush1.bf16.msra.mxu0 0
  %940 = vmatprep.subr.bf16.mxu0 0
  %941 = vmatpush1.bf16.msra.mxu0 0
  %942 = vmatprep.subr.bf16.mxu0 0
  %943 = vmatpush1.bf16.msra.mxu0 0
  %944 = vmatprep.subr.bf16.mxu0 0
  %945 = vmatpush1.bf16.msra.mxu0 0
  %946 = vmatprep.subr.bf16.mxu0 0
  %947 = vmatpush1.bf16.msra.mxu0 0
  %948 = vmatprep.subr.bf16.mxu0 0
  %949 = vmatpush1.bf16.msra.mxu0 0
  %950 = vmatprep.subr.bf16.mxu0 0
  %951 = vmatpush1.bf16.msra.mxu0 0
  %952 = vmatprep.subr.bf16.mxu0 0
  %953 = vmatpush1.bf16.msra.mxu0 0
  %954 = vmatprep.subr.bf16.mxu0 0
  %955 = vmatpush1.bf16.msra.mxu0 0
  %956 = vmatprep.mubr.bf16.mxu0 0
  %957 = vmatmul.mubr.bf16.gmra.mrb[0].mxu0 %v919
  %v958 = vpop.f32.mrb[0].mxu0
  %v959 = vadd.f32 %v892, %v958
  %v960 = vpop.f32.mrb[0].mxu0
  %v961 = vpop.f32.mrb[0].mxu0
  %v962 = vadd.f32 %v892, %v961
  %v963 = vpop.f32.mrb[0].mxu0
  %964 = vmatprep.mubr.bf16.mxu0 0
  %965 = vmatmul.mubr.bf16.gmra.mrb[0].mxu0 %v922
  %v966 = vpop.f32.mrb[0].mxu0
  %v967 = vadd.f32 %v892, %v966
  %v968 = vpop.f32.mrb[0].mxu0
  %v969 = vpop.f32.mrb[0].mxu0
  %v970 = vadd.f32 %v892, %v969
  %v971 = vpop.f32.mrb[0].mxu0
  %972 = vdwg.mxu0
  %v973 = vmul.f32 %v959, %v959
  %v974 = vmul.f32 %v962, %v962
  %v975 = vmul.f32 %v967, %v967
  %v976 = vmul.f32 %v970, %v970
  %v977 = vmul.f32 %v959, %v973
  %v978 = vmul.f32 %v962, %v974
  %v979 = vmul.f32 %v967, %v975
  %v980 = vmul.f32 %v970, %v976
  %v981 = vmul.f32 %v977, 0.044715
  %v982 = vmul.f32 %v978, 0.044715
  %v983 = vmul.f32 %v979, 0.044715
  %v984 = vmul.f32 %v980, 0.044715
  %v985 = vadd.f32 %v959, %v981
  %v986 = vadd.f32 %v962, %v982
  %v987 = vadd.f32 %v967, %v983
  %v988 = vadd.f32 %v970, %v984
  %v989 = vmul.f32 %v985, 0.7978846
  %v990 = vmul.f32 %v986, 0.7978846
  %v991 = vmul.f32 %v987, 0.7978846
  %v992 = vmul.f32 %v988, 0.7978846
  %v993 = vtanh.pop %v989
  %v994 = vtanh.pop %v990
  %v995 = vtanh.pop %v991
  %v996 = vtanh.pop %v992
  %v997 = vadd.f32 %v993, 1.0
  %v998 = vadd.f32 %v994, 1.0
  %v999 = vadd.f32 %v995, 1.0
  %v1000 = vadd.f32 %v996, 1.0
  %v1001 = vmul.f32 %v997, 0.5
  %v1002 = vmul.f32 %v998, 0.5
  %v1003 = vmul.f32 %v999, 0.5
  %v1004 = vmul.f32 %v1000, 0.5
  %v1005 = vmul.f32 %v959, %v1001
  %v1006 = vmul.f32 %v962, %v1002
  %v1007 = vmul.f32 %v967, %v1003
  %v1008 = vmul.f32 %v970, %v1004
  %v1009 = vpack.c.bf16 %v1006, %v1005
  %v1010 = vpack.c.bf16 %v1008, %v1007
  %v1011 = vlaneseq
  %v1012 = vshrl.u32 %v1011, 7
  %v1013 = vsub.s32 6, %v1012
  %v1014 = vrot.slane %v39, %v1013
  %v1031 = vunpack.c.l.b16 %v870
  %v1032 = vunpack.c.l.b16 %v871
  %v1033 = vunpack.c.l.b16 %v872
  %v1034 = vunpack.c.l.b16 %v873
  %v1035 = vunpack.c.l.b16 %v874
  %v1036 = vunpack.c.l.b16 %v875
  %v1037 = vunpack.c.l.b16 %v876
  %v1038 = vunpack.c.l.b16 %v877
  %v1039 = vunpack.c.l.b16 %v878
  %v1040 = vunpack.c.l.b16 %v879
  %v1041 = vunpack.c.l.b16 %v880
  %v1042 = vunpack.c.l.b16 %v881
  %v1043 = vunpack.c.l.b16 %v882
  %v1044 = vunpack.c.l.b16 %v883
  %v1045 = vunpack.c.l.b16 %v884
  %v1046 = vunpack.c.l.b16 %v885
  %v1047 = vpack.c.b16 %v1032, %v1031
  %v1048 = vpack.c.b16 %v1034, %v1033
  %v1049 = vpack.c.b16 %v1036, %v1035
  %v1050 = vpack.c.b16 %v1038, %v1037
  %v1051 = vpack.c.b16 %v1040, %v1039
  %v1052 = vpack.c.b16 %v1042, %v1041
  %v1053 = vpack.c.b16 %v1044, %v1043
  %v1054 = vpack.c.b16 %v1046, %v1045
  %1063 = vmatprep.subr.bf16.mxu0 0
  %1064 = vmatpush1.bf16.msra.mxu0 %v1047
  %1065 = vmatprep.subr.bf16.mxu0 0
  %1066 = vmatpush1.bf16.msra.mxu0 %v1048
  %1067 = vmatprep.subr.bf16.mxu0 0
  %1068 = vmatpush1.bf16.msra.mxu0 %v1049
  %1069 = vmatprep.subr.bf16.mxu0 0
  %1070 = vmatpush1.bf16.msra.mxu0 %v1050
  %1071 = vmatprep.subr.bf16.mxu0 0
  %1072 = vmatpush1.bf16.msra.mxu0 %v1051
  %1073 = vmatprep.subr.bf16.mxu0 0
  %1074 = vmatpush1.bf16.msra.mxu0 %v1052
  %1075 = vmatprep.subr.bf16.mxu0 0
  %1076 = vmatpush1.bf16.msra.mxu0 %v1053
  %1077 = vmatprep.subr.bf16.mxu0 0
  %1078 = vmatpush1.bf16.msra.mxu0 %v1054
  %1079 = vmatprep.subr.bf16.mxu0 0
  %1080 = vmatpush1.bf16.msra.mxu0 0
  %1081 = vmatprep.subr.bf16.mxu0 0
  %1082 = vmatpush1.bf16.msra.mxu0 0
  %1083 = vmatprep.subr.bf16.mxu0 0
  %1084 = vmatpush1.bf16.msra.mxu0 0
  %1085 = vmatprep.subr.bf16.mxu0 0
  %1086 = vmatpush1.bf16.msra.mxu0 0
  %1087 = vmatprep.subr.bf16.mxu0 0
  %1088 = vmatpush1.bf16.msra.mxu0 0
  %1089 = vmatprep.subr.bf16.mxu0 0
  %1090 = vmatpush1.bf16.msra.mxu0 0
  %1091 = vmatprep.subr.bf16.mxu0 0
  %1092 = vmatpush1.bf16.msra.mxu0 0
  %1093 = vmatprep.subr.bf16.mxu0 0
  %1094 = vmatpush1.bf16.msra.mxu0 0
  %1095 = vmatprep.mubr.bf16.mxu0 0
  %1096 = vmatmul.mubr.bf16.gmra.mrb[0].mxu0 %v1009
  %v1097 = vpop.f32.mrb[0].mxu0
  %v1098 = vadd.f32 %v1014, %v1097
  %v1099 = vpop.f32.mrb[0].mxu0
  %v1100 = vpop.f32.mrb[0].mxu0
  %v1101 = vadd.f32 %v1014, %v1100
  %v1102 = vpop.f32.mrb[0].mxu0
  %1103 = vmatprep.mubr.bf16.mxu0 0
  %1104 = vmatmul.mubr.bf16.gmra.mrb[0].mxu0 %v1010
  %v1105 = vpop.f32.mrb[0].mxu0
  %v1106 = vadd.f32 %v1014, %v1105
  %v1107 = vpop.f32.mrb[0].mxu0
  %v1108 = vpop.f32.mrb[0].mxu0
  %v1109 = vadd.f32 %v1014, %v1108
  %v1110 = vpop.f32.mrb[0].mxu0
  %1111 = vdwg.mxu0
  %v1112 = vadd.f32 %v790, %v1098
  %v1113 = vadd.f32 %v791, %v1101
  %v1114 = vadd.f32 %v792, %v1106
  %v1115 = vadd.f32 %v793, %v1109
  %1116 = vst.msk [vmem:[%s11] sm:$0xff] %vm137, %v1112
  %1117 = vst.msk [vmem:[%s11 + $0x8] sm:$0xff] %vm137, %v1113
  %1118 = vst.msk [vmem:[%s11 + $0x10] sm:$0xff] %vm137, %v1114
  %1119 = vst.msk [vmem:[%s11 + $0x18] sm:$0xff] %vm137, %v1115
  // Predicated region
  $region46: #{cut3r_points_spatial_tower_forward.2} parent=0 // pred_check
    _
  $region47: #{cut3r_points_spatial_tower_forward.2} parent=0 // pred_check_branch
    %1121 = sbr.rel (0) target = $region49
  $region48: #{cut3r_points_spatial_tower_forward.2} parent=0 // pred_region
    _
  $region49: #{cut3r_points_spatial_tower_forward.2} parent=0 // pred_fallthru
    _
  // Predicated region
  $region50: #{cut3r_points_spatial_tower_forward.2} parent=0 // pred_check
    _
  $region51: #{cut3r_points_spatial_tower_forward.2} parent=0 // pred_check_branch
    %1123 = sbr.rel (0) target = $region53
  $region52: #{cut3r_points_spatial_tower_forward.2} parent=0 // pred_region
    _
  $region53: #{cut3r_points_spatial_tower_forward.2} parent=0 // pred_fallthru
    _

// kernel: cut3r_points_spatial_tower_forward.3
$region0: #{cut3r_points_spatial_tower_forward.3}
  #allocation0 [shape = 'u32[]', space=smem, size = 0x4, offset = 0x4, fixed_abs, tag = 'smem constant byte address 0x4 - core index']
  #allocation1 [shape = 'u32[144,128]{1,0:T(1,128)}', space=vmem, size = 0x12000, scoped, tag = 'internal scratch']
  %s0 = inlined_call_operand.vmem [shape: f32[2,16,64], index: 0, kind: input, shape index: {}]
  %s1 = inlined_call_operand.vmem [shape: f32[16,64], index: 1, kind: input, shape index: {}]
  %s2 = inlined_call_operand.vmem [shape: f32[8,64], index: 2, kind: input, shape index: {}]
  %s3 = inlined_call_operand.vmem [shape: f32[21,64], index: 3, kind: input, shape index: {}]
  %s4 = inlined_call_operand.vmem [shape: f32[2,128], index: 4, kind: input, shape index: {}]
  %s5 = inlined_call_operand.vmem [shape: bf16[64,64], index: 5, kind: input, shape index: {}]
  %s6 = inlined_call_operand.vmem [shape: bf16[64,64], index: 6, kind: input, shape index: {}]
  %s7 = inlined_call_operand.vmem [shape: bf16[64,64], index: 7, kind: input, shape index: {}]
  %s8 = inlined_call_operand.vmem [shape: bf16[64,64], index: 8, kind: input, shape index: {}]
  %s9 = inlined_call_operand.vmem [shape: bf16[64,64], index: 9, kind: input, shape index: {}]
  %s10 = inlined_call_operand.vmem [shape: bf16[64,64], index: 10, kind: input, shape index: {}]
  %s11 = inlined_call_operand.vmem [shape: bf16[64,64], index: 11, kind: input, shape index: {}]
  %s12 = inlined_call_operand.vmem [shape: bf16[64,64], index: 12, kind: input, shape index: {}]
  %s13 = inlined_call_operand.vmem [shape: bf16[64,64], index: 13, kind: input, shape index: {}]
  %s14 = inlined_call_operand.vmem [shape: bf16[64,64], index: 14, kind: input, shape index: {}]
  %s15 = inlined_call_operand.vmem [shape: bf16[64,64], index: 15, kind: input, shape index: {}]
  %s16 = inlined_call_operand.vmem [shape: bf16[64,64], index: 16, kind: input, shape index: {}]
  %s17 = inlined_call_operand.vmem [shape: bf16[64,128], index: 17, kind: input, shape index: {}]
  %s18 = inlined_call_operand.vmem [shape: bf16[128,64], index: 18, kind: input, shape index: {}]
  %s19 = inlined_call_operand.vmem [shape: bf16[64,64], index: 19, kind: input, shape index: {}]
  %s20 = inlined_call_operand.vmem [shape: bf16[64,64], index: 20, kind: input, shape index: {}]
  %s21 = inlined_call_operand.vmem [shape: bf16[64,64], index: 21, kind: input, shape index: {}]
  %s22 = inlined_call_operand.vmem [shape: bf16[64,64], index: 22, kind: input, shape index: {}]
  %s23 = inlined_call_operand.vmem [shape: bf16[64,64], index: 23, kind: input, shape index: {}]
  %s24 = inlined_call_operand.vmem [shape: bf16[64,64], index: 24, kind: input, shape index: {}]
  %s25 = inlined_call_operand.vmem [shape: bf16[64,64], index: 25, kind: input, shape index: {}]
  %s26 = inlined_call_operand.vmem [shape: bf16[64,64], index: 26, kind: input, shape index: {}]
  %s27 = inlined_call_operand.vmem [shape: bf16[64,128], index: 27, kind: input, shape index: {}]
  %s28 = inlined_call_operand.vmem [shape: f32[2,16,128], index: 28, kind: output, shape index: {}]
  %s29 = sld [smem:[#allocation0]]
  $region122: #{cut3r_points_spatial_tower_forward.3} parent=0
    _
  %s31 = ssub.s32 1, %s29
  %s32 = scalar_select 0, %s31, %s29
  // Predicated region
  $region2: #{cut3r_points_spatial_tower_forward.3} parent=0 // pred_check
    _
  $region3: #{cut3r_points_spatial_tower_forward.3} parent=0 // pred_check_branch
    %34 = sbr.rel (0) target = $region5
  $region4: #{cut3r_points_spatial_tower_forward.3} parent=0 // pred_region
    _
  $region5: #{cut3r_points_spatial_tower_forward.3} parent=0 // pred_fallthru
    _
  // Predicated region
  $region6: #{cut3r_points_spatial_tower_forward.3} parent=0 // pred_check
    _
  $region7: #{cut3r_points_spatial_tower_forward.3} parent=0 // pred_check_branch
    %36 = sbr.rel (0) target = $region9
  $region8: #{cut3r_points_spatial_tower_forward.3} parent=0 // pred_region
    _
  $region9: #{cut3r_points_spatial_tower_forward.3} parent=0 // pred_fallthru
    _
  // Predicated region
  $region10: #{cut3r_points_spatial_tower_forward.3} parent=0 // pred_check
    _
  $region11: #{cut3r_points_spatial_tower_forward.3} parent=0 // pred_check_branch
    %38 = sbr.rel (0) target = $region13
  $region12: #{cut3r_points_spatial_tower_forward.3} parent=0 // pred_region
    _
  $region13: #{cut3r_points_spatial_tower_forward.3} parent=0 // pred_fallthru
    _
  // Predicated region
  $region14: #{cut3r_points_spatial_tower_forward.3} parent=0 // pred_check
    _
  $region15: #{cut3r_points_spatial_tower_forward.3} parent=0 // pred_check_branch
    %40 = sbr.rel (0) target = $region17
  $region16: #{cut3r_points_spatial_tower_forward.3} parent=0 // pred_region
    _
  $region17: #{cut3r_points_spatial_tower_forward.3} parent=0 // pred_fallthru
    _
  // Predicated region
  $region18: #{cut3r_points_spatial_tower_forward.3} parent=0 // pred_check
    _
  $region19: #{cut3r_points_spatial_tower_forward.3} parent=0 // pred_check_branch
    %42 = sbr.rel (0) target = $region21
  $region20: #{cut3r_points_spatial_tower_forward.3} parent=0 // pred_region
    _
  $region21: #{cut3r_points_spatial_tower_forward.3} parent=0 // pred_fallthru
    _
  // Predicated region
  $region22: #{cut3r_points_spatial_tower_forward.3} parent=0 // pred_check
    _
  $region23: #{cut3r_points_spatial_tower_forward.3} parent=0 // pred_check_branch
    %44 = sbr.rel (0) target = $region25
  $region24: #{cut3r_points_spatial_tower_forward.3} parent=0 // pred_region
    _
  $region25: #{cut3r_points_spatial_tower_forward.3} parent=0 // pred_fallthru
    _
  // Predicated region
  $region26: #{cut3r_points_spatial_tower_forward.3} parent=0 // pred_check
    _
  $region27: #{cut3r_points_spatial_tower_forward.3} parent=0 // pred_check_branch
    %46 = sbr.rel (0) target = $region29
  $region28: #{cut3r_points_spatial_tower_forward.3} parent=0 // pred_region
    _
  $region29: #{cut3r_points_spatial_tower_forward.3} parent=0 // pred_fallthru
    _
  // Predicated region
  $region30: #{cut3r_points_spatial_tower_forward.3} parent=0 // pred_check
    _
  $region31: #{cut3r_points_spatial_tower_forward.3} parent=0 // pred_check_branch
    %48 = sbr.rel (0) target = $region33
  $region32: #{cut3r_points_spatial_tower_forward.3} parent=0 // pred_region
    _
  $region33: #{cut3r_points_spatial_tower_forward.3} parent=0 // pred_fallthru
    _
  // Predicated region
  $region34: #{cut3r_points_spatial_tower_forward.3} parent=0 // pred_check
    _
  $region35: #{cut3r_points_spatial_tower_forward.3} parent=0 // pred_check_branch
    %50 = sbr.rel (0) target = $region37
  $region36: #{cut3r_points_spatial_tower_forward.3} parent=0 // pred_region
    _
  $region37: #{cut3r_points_spatial_tower_forward.3} parent=0 // pred_fallthru
    _
  // Predicated region
  $region38: #{cut3r_points_spatial_tower_forward.3} parent=0 // pred_check
    _
  $region39: #{cut3r_points_spatial_tower_forward.3} parent=0 // pred_check_branch
    %52 = sbr.rel (0) target = $region41
  $region40: #{cut3r_points_spatial_tower_forward.3} parent=0 // pred_region
    _
  $region41: #{cut3r_points_spatial_tower_forward.3} parent=0 // pred_fallthru
    _
  // Predicated region
  $region42: #{cut3r_points_spatial_tower_forward.3} parent=0 // pred_check
    _
  $region43: #{cut3r_points_spatial_tower_forward.3} parent=0 // pred_check_branch
    %54 = sbr.rel (0) target = $region45
  $region44: #{cut3r_points_spatial_tower_forward.3} parent=0 // pred_region
    _
  $region45: #{cut3r_points_spatial_tower_forward.3} parent=0 // pred_fallthru
    _
  // Predicated region
  $region46: #{cut3r_points_spatial_tower_forward.3} parent=0 // pred_check
    _
  $region47: #{cut3r_points_spatial_tower_forward.3} parent=0 // pred_check_branch
    %56 = sbr.rel (0) target = $region49
  $region48: #{cut3r_points_spatial_tower_forward.3} parent=0 // pred_region
    _
  $region49: #{cut3r_points_spatial_tower_forward.3} parent=0 // pred_fallthru
    _
  // Predicated region
  $region50: #{cut3r_points_spatial_tower_forward.3} parent=0 // pred_check
    _
  $region51: #{cut3r_points_spatial_tower_forward.3} parent=0 // pred_check_branch
    %58 = sbr.rel (0) target = $region53
  $region52: #{cut3r_points_spatial_tower_forward.3} parent=0 // pred_region
    _
  $region53: #{cut3r_points_spatial_tower_forward.3} parent=0 // pred_fallthru
    _
  // Predicated region
  $region54: #{cut3r_points_spatial_tower_forward.3} parent=0 // pred_check
    _
  $region55: #{cut3r_points_spatial_tower_forward.3} parent=0 // pred_check_branch
    %60 = sbr.rel (0) target = $region57
  $region56: #{cut3r_points_spatial_tower_forward.3} parent=0 // pred_region
    _
  $region57: #{cut3r_points_spatial_tower_forward.3} parent=0 // pred_fallthru
    _
  // Predicated region
  $region58: #{cut3r_points_spatial_tower_forward.3} parent=0 // pred_check
    _
  $region59: #{cut3r_points_spatial_tower_forward.3} parent=0 // pred_check_branch
    %62 = sbr.rel (0) target = $region61
  $region60: #{cut3r_points_spatial_tower_forward.3} parent=0 // pred_region
    _
  $region61: #{cut3r_points_spatial_tower_forward.3} parent=0 // pred_fallthru
    _
  // Predicated region
  $region62: #{cut3r_points_spatial_tower_forward.3} parent=0 // pred_check
    _
  $region63: #{cut3r_points_spatial_tower_forward.3} parent=0 // pred_check_branch
    %64 = sbr.rel (0) target = $region65
  $region64: #{cut3r_points_spatial_tower_forward.3} parent=0 // pred_region
    _
  $region65: #{cut3r_points_spatial_tower_forward.3} parent=0 // pred_fallthru
    _
  // Predicated region
  $region66: #{cut3r_points_spatial_tower_forward.3} parent=0 // pred_check
    _
  $region67: #{cut3r_points_spatial_tower_forward.3} parent=0 // pred_check_branch
    %66 = sbr.rel (0) target = $region69
  $region68: #{cut3r_points_spatial_tower_forward.3} parent=0 // pred_region
    _
  $region69: #{cut3r_points_spatial_tower_forward.3} parent=0 // pred_fallthru
    _
  // Predicated region
  $region70: #{cut3r_points_spatial_tower_forward.3} parent=0 // pred_check
    _
  $region71: #{cut3r_points_spatial_tower_forward.3} parent=0 // pred_check_branch
    %68 = sbr.rel (0) target = $region73
  $region72: #{cut3r_points_spatial_tower_forward.3} parent=0 // pred_region
    _
  $region73: #{cut3r_points_spatial_tower_forward.3} parent=0 // pred_fallthru
    _
  // Predicated region
  $region74: #{cut3r_points_spatial_tower_forward.3} parent=0 // pred_check
    _
  $region75: #{cut3r_points_spatial_tower_forward.3} parent=0 // pred_check_branch
    %70 = sbr.rel (0) target = $region77
  $region76: #{cut3r_points_spatial_tower_forward.3} parent=0 // pred_region
    _
  $region77: #{cut3r_points_spatial_tower_forward.3} parent=0 // pred_fallthru
    _
  // Predicated region
  $region78: #{cut3r_points_spatial_tower_forward.3} parent=0 // pred_check
    _
  $region79: #{cut3r_points_spatial_tower_forward.3} parent=0 // pred_check_branch
    %72 = sbr.rel (0) target = $region81
  $region80: #{cut3r_points_spatial_tower_forward.3} parent=0 // pred_region
    _
  $region81: #{cut3r_points_spatial_tower_forward.3} parent=0 // pred_fallthru
    _
  // Predicated region
  $region82: #{cut3r_points_spatial_tower_forward.3} parent=0 // pred_check
    _
  $region83: #{cut3r_points_spatial_tower_forward.3} parent=0 // pred_check_branch
    %74 = sbr.rel (0) target = $region85
  $region84: #{cut3r_points_spatial_tower_forward.3} parent=0 // pred_region
    _
  $region85: #{cut3r_points_spatial_tower_forward.3} parent=0 // pred_fallthru
    _
  // Predicated region
  $region86: #{cut3r_points_spatial_tower_forward.3} parent=0 // pred_check
    _
  $region87: #{cut3r_points_spatial_tower_forward.3} parent=0 // pred_check_branch
    %76 = sbr.rel (0) target = $region89
  $region88: #{cut3r_points_spatial_tower_forward.3} parent=0 // pred_region
    _
  $region89: #{cut3r_points_spatial_tower_forward.3} parent=0 // pred_fallthru
    _
  // Predicated region
  $region90: #{cut3r_points_spatial_tower_forward.3} parent=0 // pred_check
    _
  $region91: #{cut3r_points_spatial_tower_forward.3} parent=0 // pred_check_branch
    %78 = sbr.rel (0) target = $region93
  $region92: #{cut3r_points_spatial_tower_forward.3} parent=0 // pred_region
    _
  $region93: #{cut3r_points_spatial_tower_forward.3} parent=0 // pred_fallthru
    _
  // Predicated region
  $region94: #{cut3r_points_spatial_tower_forward.3} parent=0 // pred_check
    _
  $region95: #{cut3r_points_spatial_tower_forward.3} parent=0 // pred_check_branch
    %80 = sbr.rel (0) target = $region97
  $region96: #{cut3r_points_spatial_tower_forward.3} parent=0 // pred_region
    _
  $region97: #{cut3r_points_spatial_tower_forward.3} parent=0 // pred_fallthru
    _
  // Predicated region
  $region98: #{cut3r_points_spatial_tower_forward.3} parent=0 // pred_check
    _
  $region99: #{cut3r_points_spatial_tower_forward.3} parent=0 // pred_check_branch
    %82 = sbr.rel (0) target = $region101
  $region100: #{cut3r_points_spatial_tower_forward.3} parent=0 // pred_region
    _
  $region101: #{cut3r_points_spatial_tower_forward.3} parent=0 // pred_fallthru
    _
  // Predicated region
  $region102: #{cut3r_points_spatial_tower_forward.3} parent=0 // pred_check
    _
  $region103: #{cut3r_points_spatial_tower_forward.3} parent=0 // pred_check_branch
    %84 = sbr.rel (0) target = $region105
  $region104: #{cut3r_points_spatial_tower_forward.3} parent=0 // pred_region
    _
  $region105: #{cut3r_points_spatial_tower_forward.3} parent=0 // pred_fallthru
    _
  // Predicated region
  $region106: #{cut3r_points_spatial_tower_forward.3} parent=0 // pred_check
    _
  $region107: #{cut3r_points_spatial_tower_forward.3} parent=0 // pred_check_branch
    %86 = sbr.rel (0) target = $region109
  $region108: #{cut3r_points_spatial_tower_forward.3} parent=0 // pred_region
    _
  $region109: #{cut3r_points_spatial_tower_forward.3} parent=0 // pred_fallthru
    _
  // Predicated region
  $region110: #{cut3r_points_spatial_tower_forward.3} parent=0 // pred_check
    _
  $region111: #{cut3r_points_spatial_tower_forward.3} parent=0 // pred_check_branch
    %88 = sbr.rel (0) target = $region113
  $region112: #{cut3r_points_spatial_tower_forward.3} parent=0 // pred_region
    _
  $region113: #{cut3r_points_spatial_tower_forward.3} parent=0 // pred_fallthru
    _
  %v90 = vld [vmem:[%s3] sm:$0xff]
  %v91 = vld [vmem:[%s3 + $0x8] sm:$0xff]
  %v92 = vld [vmem:[%s3 + $0x10] sm:$0x1f]
  %v93 = vld [vmem:[%s4] sm:$0x3]
  %v94 = vlaneseq
  %v95 = vand.u32 %v94, 127
  %vm96 = vcmp.lt.s32.totalorder %v95, 17
  %v97 = vsel %vm96, 0.0, -1e+30
  %v98 = vld [vmem:[%s1] sm:$0xff]
  %v99 = vld [vmem:[%s1 + $0x8] sm:$0xff]
  %v100 = vld [vmem:[%s2] sm:$0xff]
  %v101 = vld [vmem:[%s0] sm:$0xff]
  %v102 = vld [vmem:[%s0 + $0x8] sm:$0xff]
  %vm103 = vcmask 523264
  %v104 = vsel %vm103, %v101, 0.0
  %v105 = vsel %vm103, %v102, 0.0
  %v106 = vadd.f32 %v104, %v105
  %v107 = vrot.slane %v106, 4
  %v108 = vadd.f32 %v106, %v107
  %v109 = vrot.slane %v108, 2
  %v110 = vadd.f32 %v108, %v109
  %v111 = vrot.slane %v110, 1
  %v112 = vadd.f32 %v110, %v111
  %v113 = vrcp.pop 16.0
  %v114 = vmul.f32 %v112, %v113
  %v116 = vrot.slane %v92, 4
  %vm118 = vcmask 1040384
  %v119 = vsel %vm118, %v116, 0.0
  %120 = vadd.xlane.f32.xlu0 %v104
  %v121 = vpop.xlane.xlu0 %120
  %122 = vadd.xlane.f32.xlu0 %v105
  %v123 = vpop.xlane.xlu0 %122
  %v124 = vsel %vm103, %v119, 0.0
  %125 = vadd.xlane.f32.xlu0 %v124
  %v126 = vpop.xlane.xlu0 %125
  %v127 = vrcp.pop 64.0
  %v128 = vmul.f32 %v121, %v127
  %v129 = vmul.f32 %v123, %v127
  %v130 = vmul.f32 %v126, %v127
  %v131 = vsub.f32 %v101, %v128
  %v132 = vsub.f32 %v102, %v129
  %v133 = vsub.f32 %v119, %v130
  %v134 = vmul.f32 %v131, %v131
  %v135 = vmul.f32 %v132, %v132
  %v136 = vmul.f32 %v133, %v133
  %v137 = vsel %vm103, %v134, 0.0
  %138 = vadd.xlane.f32.xlu0 %v137
  %v139 = vpop.xlane.xlu0 %138
  %v140 = vsel %vm103, %v135, 0.0
  %141 = vadd.xlane.f32.xlu0 %v140
  %v142 = vpop.xlane.xlu0 %141
  %v143 = vsel %vm103, %v136, 0.0
  %144 = vadd.xlane.f32.xlu0 %v143
  %v145 = vpop.xlane.xlu0 %144
  %v146 = vmul.f32 %v139, %v127
  %v147 = vmul.f32 %v142, %v127
  %v148 = vmul.f32 %v145, %v127
  %v149 = vadd.f32 %v146, 1e-06
  %v150 = vadd.f32 %v147, 1e-06
  %v151 = vadd.f32 %v148, 1e-06
  %v152 = vrsqrt.pop %v149
  %v153 = vrsqrt.pop %v150
  %v154 = vrsqrt.pop %v151
  %v155 = vmul.f32 %v131, %v152
  %v156 = vmul.f32 %v132, %v153
  %v157 = vmul.f32 %v133, %v154
  %v158 = vlaneseq
  %v159 = vshrl.u32 %v158, 7
  %v160 = vsub.s32 1, %v159
  %v161 = vrot.slane %v90, %v160
  %v162 = vmul.f32 %v155, %v161
  %v163 = vmul.f32 %v156, %v161
  %v164 = vmul.f32 %v157, %v161
  %v165 = vlaneseq
  %v166 = vshrl.u32 %v165, 7
  %v167 = vsub.s32 2, %v166
  %v168 = vrot.slane %v90, %v167
  %v169 = vadd.f32 %v162, %v168
  %v170 = vadd.f32 %v163, %v168
  %v171 = vadd.f32 %v164, %v168
  %v172 = vld [vmem:[%s9] sm:$0xf]
  %v173 = vld [vmem:[%s9 + $0x4] sm:$0xf]
  %v174 = vld [vmem:[%s9 + $0x8] sm:$0xf]
  %v175 = vld [vmem:[%s9 + $0xc] sm:$0xf]
  %v176 = vld [vmem:[%s9 + $0x10] sm:$0xf]
  %v177 = vld [vmem:[%s9 + $0x14] sm:$0xf]
  %v178 = vld [vmem:[%s9 + $0x18] sm:$0xf]
  %v179 = vld [vmem:[%s9 + $0x1c] sm:$0xf]
  %v180 = vld [vmem:[%s10] sm:$0xf]
  %v181 = vld [vmem:[%s10 + $0x4] sm:$0xf]
  %v182 = vld [vmem:[%s10 + $0x8] sm:$0xf]
  %v183 = vld [vmem:[%s10 + $0xc] sm:$0xf]
  %v184 = vld [vmem:[%s10 + $0x10] sm:$0xf]
  %v185 = vld [vmem:[%s10 + $0x14] sm:$0xf]
  %v186 = vld [vmem:[%s10 + $0x18] sm:$0xf]
  %v187 = vld [vmem:[%s10 + $0x1c] sm:$0xf]
  %v188 = vld [vmem:[%s11] sm:$0xf]
  %v189 = vld [vmem:[%s11 + $0x4] sm:$0xf]
  %v190 = vld [vmem:[%s11 + $0x8] sm:$0xf]
  %v191 = vld [vmem:[%s11 + $0xc] sm:$0xf]
  %v192 = vld [vmem:[%s11 + $0x10] sm:$0xf]
  %v193 = vld [vmem:[%s11 + $0x14] sm:$0xf]
  %v194 = vld [vmem:[%s11 + $0x18] sm:$0xf]
  %v195 = vld [vmem:[%s11 + $0x1c] sm:$0xf]
  %v196 = vld [vmem:[%s12] sm:$0xf]
  %v197 = vld [vmem:[%s12 + $0x4] sm:$0xf]
  %v198 = vld [vmem:[%s12 + $0x8] sm:$0xf]
  %v199 = vld [vmem:[%s12 + $0xc] sm:$0xf]
  %v200 = vld [vmem:[%s12 + $0x10] sm:$0xf]
  %v201 = vld [vmem:[%s12 + $0x14] sm:$0xf]
  %v202 = vld [vmem:[%s12 + $0x18] sm:$0xf]
  %v203 = vld [vmem:[%s12 + $0x1c] sm:$0xf]
  %v204 = vpack.c.bf16 %v170, %v169
  %v205 = vpack.c.bf16 %v171, %v171
  %v214 = vunpack.c.l.b16 %v172
  %v215 = vunpack.c.l.b16 %v173
  %v216 = vunpack.c.l.b16 %v174
  %v217 = vunpack.c.l.b16 %v175
  %v218 = vunpack.c.l.b16 %v176
  %v219 = vunpack.c.l.b16 %v177
  %v220 = vunpack.c.l.b16 %v178
  %v221 = vunpack.c.l.b16 %v179
  %v222 = vpack.c.b16 %v215, %v214
  %v223 = vpack.c.b16 %v217, %v216
  %v224 = vpack.c.b16 %v219, %v218
  %v225 = vpack.c.b16 %v221, %v220
  %v231 = vsel %vm103, %v204, 0
  %v234 = vsel %vm103, %v205, 0
  %236 = vmatprep.subr.bf16.mxu0 0
  %237 = vmatpush1.bf16.msra.mxu0 %v222
  %238 = vmatprep.subr.bf16.mxu0 0
  %239 = vmatpush1.bf16.msra.mxu0 %v223
  %240 = vmatprep.subr.bf16.mxu0 0
  %241 = vmatpush1.bf16.msra.mxu0 %v224
  %242 = vmatprep.subr.bf16.mxu0 0
  %243 = vmatpush1.bf16.msra.mxu0 %v225
  %244 = vmatprep.subr.bf16.mxu0 0
  %245 = vmatpush1.bf16.msra.mxu0 0
  %246 = vmatprep.subr.bf16.mxu0 0
  %247 = vmatpush1.bf16.msra.mxu0 0
  %248 = vmatprep.subr.bf16.mxu0 0
  %249 = vmatpush1.bf16.msra.mxu0 0
  %250 = vmatprep.subr.bf16.mxu0 0
  %251 = vmatpush1.bf16.msra.mxu0 0
  %252 = vmatprep.subr.bf16.mxu0 0
  %253 = vmatpush1.bf16.msra.mxu0 0
  %254 = vmatprep.subr.bf16.mxu0 0
  %255 = vmatpush1.bf16.msra.mxu0 0
  %256 = vmatprep.subr.bf16.mxu0 0
  %257 = vmatpush1.bf16.msra.mxu0 0
  %258 = vmatprep.subr.bf16.mxu0 0
  %259 = vmatpush1.bf16.msra.mxu0 0
  %260 = vmatprep.subr.bf16.mxu0 0
  %261 = vmatpush1.bf16.msra.mxu0 0
  %262 = vmatprep.subr.bf16.mxu0 0
  %263 = vmatpush1.bf16.msra.mxu0 0
  %264 = vmatprep.subr.bf16.mxu0 0
  %265 = vmatpush1.bf16.msra.mxu0 0
  %266 = vmatprep.subr.bf16.mxu0 0
  %267 = vmatpush1.bf16.msra.mxu0 0
  %268 = vmatprep.mubr.bf16.mxu0 0
  %269 = vmatmul.mubr.bf16.gmra.mrb[0].mxu0 %v231
  %v270 = vpop.f32.mrb[0].mxu0
  %v271 = vadd.f32 0.0, %v270
  %v272 = vpop.f32.mrb[0].mxu0
  %v273 = vpop.f32.mrb[0].mxu0
  %v274 = vadd.f32 0.0, %v273
  %v275 = vpop.f32.mrb[0].mxu0
  %276 = vmatprep.mubr.bf16.mxu0 0
  %277 = vmatmul.mubr.bf16.gmra.mrb[0].mxu0 %v234
  %v278 = vpop.f32.mrb[0].mxu0
  %v279 = vadd.f32 0.0, %v278
  %v280 = vpop.f32.mrb[0].mxu0
  %v281 = vpop.f32.mrb[0].mxu0
  %v282 = vpop.f32.mrb[0].mxu0
  %283 = vdwg.mxu0
  %v292 = vunpack.c.l.b16 %v180
  %v293 = vunpack.c.l.b16 %v181
  %v294 = vunpack.c.l.b16 %v182
  %v295 = vunpack.c.l.b16 %v183
  %v296 = vunpack.c.l.b16 %v184
  %v297 = vunpack.c.l.b16 %v185
  %v298 = vunpack.c.l.b16 %v186
  %v299 = vunpack.c.l.b16 %v187
  %v300 = vpack.c.b16 %v293, %v292
  %v301 = vpack.c.b16 %v295, %v294
  %v302 = vpack.c.b16 %v297, %v296
  %v303 = vpack.c.b16 %v299, %v298
  %308 = vmatprep.subr.bf16.mxu0 0
  %309 = vmatpush1.bf16.msra.mxu0 %v300
  %310 = vmatprep.subr.bf16.mxu0 0
  %311 = vmatpush1.bf16.msra.mxu0 %v301
  %312 = vmatprep.subr.bf16.mxu0 0
  %313 = vmatpush1.bf16.msra.mxu0 %v302
  %314 = vmatprep.subr.bf16.mxu0 0
  %315 = vmatpush1.bf16.msra.mxu0 %v303
  %316 = vmatprep.subr.bf16.mxu0 0
  %317 = vmatpush1.bf16.msra.mxu0 0
  %318 = vmatprep.subr.bf16.mxu0 0
  %319 = vmatpush1.bf16.msra.mxu0 0
  %320 = vmatprep.subr.bf16.mxu0 0
  %321 = vmatpush1.bf16.msra.mxu0 0
  %322 = vmatprep.subr.bf16.mxu0 0
  %323 = vmatpush1.bf16.msra.mxu0 0
  %324 = vmatprep.subr.bf16.mxu0 0
  %325 = vmatpush1.bf16.msra.mxu0 0
  %326 = vmatprep.subr.bf16.mxu0 0
  %327 = vmatpush1.bf16.msra.mxu0 0
  %328 = vmatprep.subr.bf16.mxu0 0
  %329 = vmatpush1.bf16.msra.mxu0 0
  %330 = vmatprep.subr.bf16.mxu0 0
  %331 = vmatpush1.bf16.msra.mxu0 0
  %332 = vmatprep.subr.bf16.mxu0 0
  %333 = vmatpush1.bf16.msra.mxu0 0
  %334 = vmatprep.subr.bf16.mxu0 0
  %335 = vmatpush1.bf16.msra.mxu0 0
  %336 = vmatprep.subr.bf16.mxu0 0
  %337 = vmatpush1.bf16.msra.mxu0 0
  %338 = vmatprep.subr.bf16.mxu0 0
  %339 = vmatpush1.bf16.msra.mxu0 0
  %340 = vmatprep.mubr.bf16.mxu0 0
  %341 = vmatmul.mubr.bf16.gmra.mrb[0].mxu0 %v231
  %v342 = vpop.f32.mrb[0].mxu0
  %v343 = vadd.f32 0.0, %v342
  %v344 = vpop.f32.mrb[0].mxu0
  %v345 = vpop.f32.mrb[0].mxu0
  %v346 = vadd.f32 0.0, %v345
  %v347 = vpop.f32.mrb[0].mxu0
  %348 = vmatprep.mubr.bf16.mxu0 0
  %349 = vmatmul.mubr.bf16.gmra.mrb[0].mxu0 %v234
  %v350 = vpop.f32.mrb[0].mxu0
  %v351 = vadd.f32 0.0, %v350
  %v352 = vpop.f32.mrb[0].mxu0
  %v353 = vpop.f32.mrb[0].mxu0
  %v354 = vpop.f32.mrb[0].mxu0
  %355 = vdwg.mxu0
  %v364 = vunpack.c.l.b16 %v188
  %v365 = vunpack.c.l.b16 %v189
  %v366 = vunpack.c.l.b16 %v190
  %v367 = vunpack.c.l.b16 %v191
  %v368 = vunpack.c.l.b16 %v192
  %v369 = vunpack.c.l.b16 %v193
  %v370 = vunpack.c.l.b16 %v194
  %v371 = vunpack.c.l.b16 %v195
  %v372 = vpack.c.b16 %v365, %v364
  %v373 = vpack.c.b16 %v367, %v366
  %v374 = vpack.c.b16 %v369, %v368
  %v375 = vpack.c.b16 %v371, %v370
  %380 = vmatprep.subr.bf16.mxu0 0
  %381 = vmatpush1.bf16.msra.mxu0 %v372
  %382 = vmatprep.subr.bf16.mxu0 0
  %383 = vmatpush1.bf16.msra.mxu0 %v373
  %384 = vmatprep.subr.bf16.mxu0 0
  %385 = vmatpush1.bf16.msra.mxu0 %v374
  %386 = vmatprep.subr.bf16.mxu0 0
  %387 = vmatpush1.bf16.msra.mxu0 %v375
  %388 = vmatprep.subr.bf16.mxu0 0
  %389 = vmatpush1.bf16.msra.mxu0 0
  %390 = vmatprep.subr.bf16.mxu0 0
  %391 = vmatpush1.bf16.msra.mxu0 0
  %392 = vmatprep.subr.bf16.mxu0 0
  %393 = vmatpush1.bf16.msra.mxu0 0
  %394 = vmatprep.subr.bf16.mxu0 0
  %395 = vmatpush1.bf16.msra.mxu0 0
  %396 = vmatprep.subr.bf16.mxu0 0
  %397 = vmatpush1.bf16.msra.mxu0 0
  %398 = vmatprep.subr.bf16.mxu0 0
  %399 = vmatpush1.bf16.msra.mxu0 0
  %400 = vmatprep.subr.bf16.mxu0 0
  %401 = vmatpush1.bf16.msra.mxu0 0
  %402 = vmatprep.subr.bf16.mxu0 0
  %403 = vmatpush1.bf16.msra.mxu0 0
  %404 = vmatprep.subr.bf16.mxu0 0
  %405 = vmatpush1.bf16.msra.mxu0 0
  %406 = vmatprep.subr.bf16.mxu0 0
  %407 = vmatpush1.bf16.msra.mxu0 0
  %408 = vmatprep.subr.bf16.mxu0 0
  %409 = vmatpush1.bf16.msra.mxu0 0
  %410 = vmatprep.subr.bf16.mxu0 0
  %411 = vmatpush1.bf16.msra.mxu0 0
  %412 = vmatprep.mubr.bf16.mxu0 0
  %413 = vmatmul.mubr.bf16.gmra.mrb[0].mxu0 %v231
  %v414 = vpop.f32.mrb[0].mxu0
  %v415 = vadd.f32 0.0, %v414
  %v416 = vpop.f32.mrb[0].mxu0
  %v417 = vpop.f32.mrb[0].mxu0
  %v418 = vadd.f32 0.0, %v417
  %v419 = vpop.f32.mrb[0].mxu0
  %420 = vmatprep.mubr.bf16.mxu0 0
  %421 = vmatmul.mubr.bf16.gmra.mrb[0].mxu0 %v234
  %v422 = vpop.f32.mrb[0].mxu0
  %v423 = vadd.f32 0.0, %v422
  %v424 = vpop.f32.mrb[0].mxu0
  %v425 = vpop.f32.mrb[0].mxu0
  %v426 = vpop.f32.mrb[0].mxu0
  %427 = vdwg.mxu0
  %v428 = vpack.c.bf16 %v274, %v271
  %v429 = vpack.c.bf16 %v279, %v279
  %v430 = vpack.c.bf16 %v346, %v343
  %v431 = vpack.c.bf16 %v351, %v351
  %v433 = vsel %vm103, %v428, 0
  %v436 = vsel %vm103, %v429, 0
  %v439 = vsel %vm103, %v430, 0
  %v442 = vsel %vm103, %v431, 0
  %444 = vmatprep.subr.bf16.mxu0 0
  %445 = vmatpush1.bf16.xpose.msra.mxu0 %v439
  %446 = vmatprep.subr.bf16.mxu0 0
  %447 = vmatpush1.bf16.xpose.msra.mxu0 %v442
  %448 = vmatprep.subr.bf16.mxu0 0
  %449 = vmatpush1.bf16.xpose.msra.mxu0 0
  %450 = vmatprep.subr.bf16.mxu0 0
  %451 = vmatpush1.bf16.xpose.msra.mxu0 0
  %452 = vmatprep.subr.bf16.mxu0 0
  %453 = vmatpush1.bf16.xpose.msra.mxu0 0
  %454 = vmatprep.subr.bf16.mxu0 0
  %455 = vmatpush1.bf16.xpose.msra.mxu0 0
  %456 = vmatprep.subr.bf16.mxu0 0
  %457 = vmatpush1.bf16.xpose.msra.mxu0 0
  %458 = vmatprep.subr.bf16.mxu0 0
  %459 = vmatpush1.bf16.xpose.msra.mxu0 0
  %460 = vmatprep.subr.bf16.mxu0 0
  %461 = vmatpush1.bf16.xpose.msra.mxu0 0
  %462 = vmatprep.subr.bf16.mxu0 0
  %463 = vmatpush1.bf16.xpose.msra.mxu0 0
  %464 = vmatprep.subr.bf16.mxu0 0
  %465 = vmatpush1.bf16.xpose.msra.mxu0 0
  %466 = vmatprep.subr.bf16.mxu0 0
  %467 = vmatpush1.bf16.xpose.msra.mxu0 0
  %468 = vmatprep.subr.bf16.mxu0 0
  %469 = vmatpush1.bf16.xpose.msra.mxu0 0
  %470 = vmatprep.subr.bf16.mxu0 0
  %471 = vmatpush1.bf16.xpose.msra.mxu0 0
  %472 = vmatprep.subr.bf16.mxu0 0
  %473 = vmatpush1.bf16.xpose.msra.mxu0 0
  %474 = vmatprep.subr.bf16.mxu0 0
  %475 = vmatpush1.bf16.xpose.msra.mxu0 0
  %476 = vmatprep.mubr.bf16.mxu0 0
  %477 = vmatmul.mubr.bf16.gmra.mrb[0].mxu0 %v433
  %v478 = vpop.f32.mrb[0].mxu0
  %v479 = vadd.f32 %v97, %v478
  %v480 = vpop.f32.mrb[0].mxu0
  %v481 = vpop.f32.mrb[0].mxu0
  %v482 = vadd.f32 %v97, %v481
  %v483 = vpop.f32.mrb[0].mxu0
  %484 = vmatprep.mubr.bf16.mxu0 0
  %485 = vmatmul.mubr.bf16.gmra.mrb[0].mxu0 %v436
  %v486 = vpop.f32.mrb[0].mxu0
  %v487 = vadd.f32 %v97, %v486
  %v488 = vpop.f32.mrb[0].mxu0
  %v489 = vpop.f32.mrb[0].mxu0
  %v490 = vpop.f32.mrb[0].mxu0
  %491 = vdwg.mxu0
  %vm492 = vcmask 195584
  %v493 = vsel %vm492, %v479, -inf
  %494 = vmax.xlane.f32.xlu0 %v493
  %v495 = vpop.xlane.xlu0 %494
  %v496 = vsel %vm492, %v482, -inf
  %497 = vmax.xlane.f32.xlu0 %v496
  %v498 = vpop.xlane.xlu0 %497
  %v499 = vsel %vm492, %v487, -inf
  %500 = vmax.xlane.f32.xlu0 %v499
  %v501 = vpop.xlane.xlu0 %500
  %v502 = vsub.f32 %v479, %v495
  %v503 = vsub.f32 %v482, %v498
  %v504 = vsub.f32 %v487, %v501
  %v505 = vmul.f32 %v502, 1.442695
  %v506 = vpow.pop %v505
  %v507 = vmul.f32 %v503, 1.442695
  %v508 = vpow.pop %v507
  %v509 = vmul.f32 %v504, 1.442695
  %v510 = vpow.pop %v509
  %v511 = vsel %vm492, %v506, 0.0
  %512 = vadd.xlane.f32.xlu0 %v511
  %v513 = vpop.xlane.xlu0 %512
  %v514 = vsel %vm492, %v508, 0.0
  %515 = vadd.xlane.f32.xlu0 %v514
  %v516 = vpop.xlane.xlu0 %515
  %v517 = vsel %vm492, %v510, 0.0
  %518 = vadd.xlane.f32.xlu0 %v517
  %v519 = vpop.xlane.xlu0 %518
  %v520 = vrcp.pop %v513
  %v521 = vrcp.pop %v516
  %v522 = vrcp.pop %v519
  %v523 = vmul.f32 %v506, %v520
  %v524 = vmul.f32 %v508, %v521
  %v525 = vmul.f32 %v510, %v522
  %v526 = vpack.c.bf16 %v524, %v523
  %v527 = vpack.c.bf16 %v525, %v525
  %v528 = vpack.c.bf16 %v418, %v415
  %v529 = vpack.c.bf16 %v423, %v423
  %v531 = vsel %vm492, %v526, 0
  %v534 = vsel %vm492, %v527, 0
  %vm536 = vcmask 1043456
  %v538 = vsel %vm536, %v529, 0
  %540 = vmatprep.subr.bf16.mxu0 0
  %541 = vmatpush1.bf16.msra.mxu0 %v528
  %542 = vmatprep.subr.bf16.mxu0 0
  %543 = vmatpush1.bf16.msra.mxu0 %v538
  %544 = vmatprep.subr.bf16.mxu0 0
  %545 = vmatpush1.bf16.msra.mxu0 0
  %546 = vmatprep.subr.bf16.mxu0 0
  %547 = vmatpush1.bf16.msra.mxu0 0
  %548 = vmatprep.subr.bf16.mxu0 0
  %549 = vmatpush1.bf16.msra.mxu0 0
  %550 = vmatprep.subr.bf16.mxu0 0
  %551 = vmatpush1.bf16.msra.mxu0 0
  %552 = vmatprep.subr.bf16.mxu0 0
  %553 = vmatpush1.bf16.msra.mxu0 0
  %554 = vmatprep.subr.bf16.mxu0 0
  %555 = vmatpush1.bf16.msra.mxu0 0
  %556 = vmatprep.subr.bf16.mxu0 0
  %557 = vmatpush1.bf16.msra.mxu0 0
  %558 = vmatprep.subr.bf16.mxu0 0
  %559 = vmatpush1.bf16.msra.mxu0 0
  %560 = vmatprep.subr.bf16.mxu0 0
  %561 = vmatpush1.bf16.msra.mxu0 0
  %562 = vmatprep.subr.bf16.mxu0 0
  %563 = vmatpush1.bf16.msra.mxu0 0
  %564 = vmatprep.subr.bf16.mxu0 0
  %565 = vmatpush1.bf16.msra.mxu0 0
  %566 = vmatprep.subr.bf16.mxu0 0
  %567 = vmatpush1.bf16.msra.mxu0 0
  %568 = vmatprep.subr.bf16.mxu0 0
  %569 = vmatpush1.bf16.msra.mxu0 0
  %570 = vmatprep.subr.bf16.mxu0 0
  %571 = vmatpush1.bf16.msra.mxu0 0
  %572 = vmatprep.mubr.bf16.mxu0 0
  %573 = vmatmul.mubr.bf16.gmra.mrb[0].mxu0 %v531
  %v574 = vpop.f32.mrb[0].mxu0
  %v575 = vadd.f32 0.0, %v574
  %v576 = vpop.f32.mrb[0].mxu0
  %v577 = vpop.f32.mrb[0].mxu0
  %v578 = vadd.f32 0.0, %v577
  %v579 = vpop.f32.mrb[0].mxu0
  %580 = vmatprep.mubr.bf16.mxu0 0
  %581 = vmatmul.mubr.bf16.gmra.mrb[0].mxu0 %v534
  %v582 = vpop.f32.mrb[0].mxu0
  %v583 = vadd.f32 0.0, %v582
  %v584 = vpop.f32.mrb[0].mxu0
  %v585 = vpop.f32.mrb[0].mxu0
  %v586 = vpop.f32.mrb[0].mxu0
  %587 = vdwg.mxu0
  %v588 = vpack.c.bf16 %v578, %v575
  %v589 = vpack.c.bf16 %v583, %v583
  %v590 = vlaneseq
  %v591 = vshrl.u32 %v590, 7
  %v592 = vsub.s32 3, %v591
  %v593 = vrot.slane %v90, %v592
  %v602 = vunpack.c.l.b16 %v196
  %v603 = vunpack.c.l.b16 %v197
  %v604 = vunpack.c.l.b16 %v198
  %v605 = vunpack.c.l.b16 %v199
  %v606 = vunpack.c.l.b16 %v200
  %v607 = vunpack.c.l.b16 %v201
  %v608 = vunpack.c.l.b16 %v202
  %v609 = vunpack.c.l.b16 %v203
  %v610 = vpack.c.b16 %v603, %v602
  %v611 = vpack.c.b16 %v605, %v604
  %v612 = vpack.c.b16 %v607, %v606
  %v613 = vpack.c.b16 %v609, %v608
  %v619 = vsel %vm103, %v588, 0
  %v622 = vsel %vm103, %v589, 0
  %624 = vmatprep.subr.bf16.mxu0 0
  %625 = vmatpush1.bf16.msra.mxu0 %v610
  %626 = vmatprep.subr.bf16.mxu0 0
  %627 = vmatpush1.bf16.msra.mxu0 %v611
  %628 = vmatprep.subr.bf16.mxu0 0
  %629 = vmatpush1.bf16.msra.mxu0 %v612
  %630 = vmatprep.subr.bf16.mxu0 0
  %631 = vmatpush1.bf16.msra.mxu0 %v613
  %632 = vmatprep.subr.bf16.mxu0 0
  %633 = vmatpush1.bf16.msra.mxu0 0
  %634 = vmatprep.subr.bf16.mxu0 0
  %635 = vmatpush1.bf16.msra.mxu0 0
  %636 = vmatprep.subr.bf16.mxu0 0
  %637 = vmatpush1.bf16.msra.mxu0 0
  %638 = vmatprep.subr.bf16.mxu0 0
  %639 = vmatpush1.bf16.msra.mxu0 0
  %640 = vmatprep.subr.bf16.mxu0 0
  %641 = vmatpush1.bf16.msra.mxu0 0
  %642 = vmatprep.subr.bf16.mxu0 0
  %643 = vmatpush1.bf16.msra.mxu0 0
  %644 = vmatprep.subr.bf16.mxu0 0
  %645 = vmatpush1.bf16.msra.mxu0 0
  %646 = vmatprep.subr.bf16.mxu0 0
  %647 = vmatpush1.bf16.msra.mxu0 0
  %648 = vmatprep.subr.bf16.mxu0 0
  %649 = vmatpush1.bf16.msra.mxu0 0
  %650 = vmatprep.subr.bf16.mxu0 0
  %651 = vmatpush1.bf16.msra.mxu0 0
  %652 = vmatprep.subr.bf16.mxu0 0
  %653 = vmatpush1.bf16.msra.mxu0 0
  %654 = vmatprep.subr.bf16.mxu0 0
  %655 = vmatpush1.bf16.msra.mxu0 0
  %656 = vmatprep.mubr.bf16.mxu0 0
  %657 = vmatmul.mubr.bf16.gmra.mrb[0].mxu0 %v619
  %v658 = vpop.f32.mrb[0].mxu0
  %v659 = vadd.f32 %v593, %v658
  %v660 = vpop.f32.mrb[0].mxu0
  %v661 = vpop.f32.mrb[0].mxu0
  %v662 = vadd.f32 %v593, %v661
  %v663 = vpop.f32.mrb[0].mxu0
  %664 = vmatprep.mubr.bf16.mxu0 0
  %665 = vmatmul.mubr.bf16.gmra.mrb[0].mxu0 %v622
  %v666 = vpop.f32.mrb[0].mxu0
  %v667 = vadd.f32 %v593, %v666
  %v668 = vpop.f32.mrb[0].mxu0
  %v669 = vpop.f32.mrb[0].mxu0
  %v670 = vpop.f32.mrb[0].mxu0
  %671 = vdwg.mxu0
  %v672 = vadd.f32 %v101, %v659
  %v673 = vadd.f32 %v102, %v662
  %v674 = vadd.f32 %v119, %v667
  %v675 = vsel %vm103, %v672, 0.0
  %676 = vadd.xlane.f32.xlu0 %v675
  %v677 = vpop.xlane.xlu0 %676
  %v678 = vsel %vm103, %v673, 0.0
  %679 = vadd.xlane.f32.xlu0 %v678
  %v680 = vpop.xlane.xlu0 %679
  %v681 = vsel %vm103, %v674, 0.0
  %682 = vadd.xlane.f32.xlu0 %v681
  %v683 = vpop.xlane.xlu0 %682
  %v684 = vmul.f32 %v677, %v127
  %v685 = vmul.f32 %v680, %v127
  %v686 = vmul.f32 %v683, %v127
  %v687 = vsub.f32 %v672, %v684
  %v688 = vsub.f32 %v673, %v685
  %v689 = vsub.f32 %v674, %v686
  %v690 = vmul.f32 %v687, %v687
  %v691 = vmul.f32 %v688, %v688
  %v692 = vmul.f32 %v689, %v689
  %v693 = vsel %vm103, %v690, 0.0
  %694 = vadd.xlane.f32.xlu0 %v693
  %v695 = vpop.xlane.xlu0 %694
  %v696 = vsel %vm103, %v691, 0.0
  %697 = vadd.xlane.f32.xlu0 %v696
  %v698 = vpop.xlane.xlu0 %697
  %v699 = vsel %vm103, %v692, 0.0
  %700 = vadd.xlane.f32.xlu0 %v699
  %v701 = vpop.xlane.xlu0 %700
  %v702 = vmul.f32 %v695, %v127
  %v703 = vmul.f32 %v698, %v127
  %v704 = vmul.f32 %v701, %v127
  %v705 = vadd.f32 %v702, 1e-06
  %v706 = vadd.f32 %v703, 1e-06
  %v707 = vadd.f32 %v704, 1e-06
  %v708 = vrsqrt.pop %v705
  %v709 = vrsqrt.pop %v706
  %v710 = vrsqrt.pop %v707
  %v711 = vmul.f32 %v687, %v708
  %v712 = vmul.f32 %v688, %v709
  %v713 = vmul.f32 %v689, %v710
  %v714 = vlaneseq
  %v715 = vshrl.u32 %v714, 7
  %v716 = vsub.s32 4, %v715
  %v717 = vrot.slane %v90, %v716
  %v718 = vmul.f32 %v711, %v717
  %v719 = vmul.f32 %v712, %v717
  %v720 = vmul.f32 %v713, %v717
  %v721 = vlaneseq
  %v722 = vshrl.u32 %v721, 7
  %v723 = vsub.s32 5, %v722
  %v724 = vrot.slane %v90, %v723
  %v725 = vadd.f32 %v718, %v724
  %v726 = vadd.f32 %v719, %v724
  %v727 = vadd.f32 %v720, %v724
  %v728 = vsel %vm103, %v98, 0.0
  %729 = vadd.xlane.f32.xlu0 %v728
  %v730 = vpop.xlane.xlu0 %729
  %v731 = vsel %vm103, %v99, 0.0
  %732 = vadd.xlane.f32.xlu0 %v731
  %v733 = vpop.xlane.xlu0 %732
  %v734 = vmul.f32 %v730, %v127
  %v735 = vmul.f32 %v733, %v127
  %v736 = vsub.f32 %v98, %v734
  %v737 = vsub.f32 %v99, %v735
  %v738 = vmul.f32 %v736, %v736
  %v739 = vmul.f32 %v737, %v737
  %v740 = vsel %vm103, %v738, 0.0
  %741 = vadd.xlane.f32.xlu0 %v740
  %v742 = vpop.xlane.xlu0 %741
  %v743 = vsel %vm103, %v739, 0.0
  %744 = vadd.xlane.f32.xlu0 %v743
  %v745 = vpop.xlane.xlu0 %744
  %v746 = vmul.f32 %v742, %v127
  %v747 = vmul.f32 %v745, %v127
  %v748 = vadd.f32 %v746, 1e-06
  %v749 = vadd.f32 %v747, 1e-06
  %v750 = vrsqrt.pop %v748
  %v751 = vrsqrt.pop %v749
  %v752 = vmul.f32 %v736, %v750
  %v753 = vmul.f32 %v737, %v751
  %v754 = vlaneseq
  %v755 = vshrl.u32 %v754, 7
  %v756 = vsub.s32 6, %v755
  %v757 = vrot.slane %v90, %v756
  %v758 = vmul.f32 %v752, %v757
  %v759 = vmul.f32 %v753, %v757
  %v760 = vlaneseq
  %v761 = vshrl.u32 %v760, 7
  %v762 = vsub.s32 7, %v761
  %v763 = vrot.slane %v90, %v762
  %v764 = vadd.f32 %v758, %v763
  %v765 = vadd.f32 %v759, %v763
  %v766 = vld [vmem:[%s13] sm:$0xf]
  %v767 = vld [vmem:[%s13 + $0x4] sm:$0xf]
  %v768 = vld [vmem:[%s13 + $0x8] sm:$0xf]
  %v769 = vld [vmem:[%s13 + $0xc] sm:$0xf]
  %v770 = vld [vmem:[%s13 + $0x10] sm:$0xf]
  %v771 = vld [vmem:[%s13 + $0x14] sm:$0xf]
  %v772 = vld [vmem:[%s13 + $0x18] sm:$0xf]
  %v773 = vld [vmem:[%s13 + $0x1c] sm:$0xf]
  %v774 = vld [vmem:[%s14] sm:$0xf]
  %v775 = vld [vmem:[%s14 + $0x4] sm:$0xf]
  %v776 = vld [vmem:[%s14 + $0x8] sm:$0xf]
  %v777 = vld [vmem:[%s14 + $0xc] sm:$0xf]
  %v778 = vld [vmem:[%s14 + $0x10] sm:$0xf]
  %v779 = vld [vmem:[%s14 + $0x14] sm:$0xf]
  %v780 = vld [vmem:[%s14 + $0x18] sm:$0xf]
  %v781 = vld [vmem:[%s14 + $0x1c] sm:$0xf]
  %v782 = vld [vmem:[%s15] sm:$0xf]
  %v783 = vld [vmem:[%s15 + $0x4] sm:$0xf]
  %v784 = vld [vmem:[%s15 + $0x8] sm:$0xf]
  %v785 = vld [vmem:[%s15 + $0xc] sm:$0xf]
  %v786 = vld [vmem:[%s15 + $0x10] sm:$0xf]
  %v787 = vld [vmem:[%s15 + $0x14] sm:$0xf]
  %v788 = vld [vmem:[%s15 + $0x18] sm:$0xf]
  %v789 = vld [vmem:[%s15 + $0x1c] sm:$0xf]
  %v790 = vld [vmem:[%s16] sm:$0xf]
  %v791 = vld [vmem:[%s16 + $0x4] sm:$0xf]
  %v792 = vld [vmem:[%s16 + $0x8] sm:$0xf]
  %v793 = vld [vmem:[%s16 + $0xc] sm:$0xf]
  %v794 = vld [vmem:[%s16 + $0x10] sm:$0xf]
  %v795 = vld [vmem:[%s16 + $0x14] sm:$0xf]
  %v796 = vld [vmem:[%s16 + $0x18] sm:$0xf]
  %v797 = vld [vmem:[%s16 + $0x1c] sm:$0xf]
  %v798 = vpack.c.bf16 %v726, %v725
  %v799 = vpack.c.bf16 %v727, %v727
  %v808 = vunpack.c.l.b16 %v766
  %v809 = vunpack.c.l.b16 %v767
  %v810 = vunpack.c.l.b16 %v768
  %v811 = vunpack.c.l.b16 %v769
  %v812 = vunpack.c.l.b16 %v770
  %v813 = vunpack.c.l.b16 %v771
  %v814 = vunpack.c.l.b16 %v772
  %v815 = vunpack.c.l.b16 %v773
  %v816 = vpack.c.b16 %v809, %v808
  %v817 = vpack.c.b16 %v811, %v810
  %v818 = vpack.c.b16 %v813, %v812
  %v819 = vpack.c.b16 %v815, %v814
  %v825 = vsel %vm103, %v798, 0
  %v828 = vsel %vm103, %v799, 0
  %830 = vmatprep.subr.bf16.mxu0 0
  %831 = vmatpush1.bf16.msra.mxu0 %v816
  %832 = vmatprep.subr.bf16.mxu0 0
  %833 = vmatpush1.bf16.msra.mxu0 %v817
  %834 = vmatprep.subr.bf16.mxu0 0
  %835 = vmatpush1.bf16.msra.mxu0 %v818
  %836 = vmatprep.subr.bf16.mxu0 0
  %837 = vmatpush1.bf16.msra.mxu0 %v819
  %838 = vmatprep.subr.bf16.mxu0 0
  %839 = vmatpush1.bf16.msra.mxu0 0
  %840 = vmatprep.subr.bf16.mxu0 0
  %841 = vmatpush1.bf16.msra.mxu0 0
  %842 = vmatprep.subr.bf16.mxu0 0
  %843 = vmatpush1.bf16.msra.mxu0 0
  %844 = vmatprep.subr.bf16.mxu0 0
  %845 = vmatpush1.bf16.msra.mxu0 0
  %846 = vmatprep.subr.bf16.mxu0 0
  %847 = vmatpush1.bf16.msra.mxu0 0
  %848 = vmatprep.subr.bf16.mxu0 0
  %849 = vmatpush1.bf16.msra.mxu0 0
  %850 = vmatprep.subr.bf16.mxu0 0
  %851 = vmatpush1.bf16.msra.mxu0 0
  %852 = vmatprep.subr.bf16.mxu0 0
  %853 = vmatpush1.bf16.msra.mxu0 0
  %854 = vmatprep.subr.bf16.mxu0 0
  %855 = vmatpush1.bf16.msra.mxu0 0
  %856 = vmatprep.subr.bf16.mxu0 0
  %857 = vmatpush1.bf16.msra.mxu0 0
  %858 = vmatprep.subr.bf16.mxu0 0
  %859 = vmatpush1.bf16.msra.mxu0 0
  %860 = vmatprep.subr.bf16.mxu0 0
  %861 = vmatpush1.bf16.msra.mxu0 0
  %862 = vmatprep.mubr.bf16.mxu0 0
  %863 = vmatmul.mubr.bf16.gmra.mrb[0].mxu0 %v825
  %v864 = vpop.f32.mrb[0].mxu0
  %v865 = vadd.f32 0.0, %v864
  %v866 = vpop.f32.mrb[0].mxu0
  %v867 = vpop.f32.mrb[0].mxu0
  %v868 = vadd.f32 0.0, %v867
  %v869 = vpop.f32.mrb[0].mxu0
  %870 = vmatprep.mubr.bf16.mxu0 0
  %871 = vmatmul.mubr.bf16.gmra.mrb[0].mxu0 %v828
  %v872 = vpop.f32.mrb[0].mxu0
  %v873 = vadd.f32 0.0, %v872
  %v874 = vpop.f32.mrb[0].mxu0
  %v875 = vpop.f32.mrb[0].mxu0
  %v876 = vpop.f32.mrb[0].mxu0
  %877 = vdwg.mxu0
  %v878 = vpack.c.bf16 %v765, %v764
  %v887 = vunpack.c.l.b16 %v774
  %v888 = vunpack.c.l.b16 %v775
  %v889 = vunpack.c.l.b16 %v776
  %v890 = vunpack.c.l.b16 %v777
  %v891 = vunpack.c.l.b16 %v778
  %v892 = vunpack.c.l.b16 %v779
  %v893 = vunpack.c.l.b16 %v780
  %v894 = vunpack.c.l.b16 %v781
  %v895 = vpack.c.b16 %v888, %v887
  %v896 = vpack.c.b16 %v890, %v889
  %v897 = vpack.c.b16 %v892, %v891
  %v898 = vpack.c.b16 %v894, %v893
  %v904 = vsel %vm103, %v878, 0
  %906 = vmatprep.subr.bf16.mxu0 0
  %907 = vmatpush1.bf16.msra.mxu0 %v895
  %908 = vmatprep.subr.bf16.mxu0 0
  %909 = vmatpush1.bf16.msra.mxu0 %v896
  %910 = vmatprep.subr.bf16.mxu0 0
  %911 = vmatpush1.bf16.msra.mxu0 %v897
  %912 = vmatprep.subr.bf16.mxu0 0
  %913 = vmatpush1.bf16.msra.mxu0 %v898
  %914 = vmatprep.subr.bf16.mxu0 0
  %915 = vmatpush1.bf16.msra.mxu0 0
  %916 = vmatprep.subr.bf16.mxu0 0
  %917 = vmatpush1.bf16.msra.mxu0 0
  %918 = vmatprep.subr.bf16.mxu0 0
  %919 = vmatpush1.bf16.msra.mxu0 0
  %920 = vmatprep.subr.bf16.mxu0 0
  %921 = vmatpush1.bf16.msra.mxu0 0
  %922 = vmatprep.subr.bf16.mxu0 0
  %923 = vmatpush1.bf16.msra.mxu0 0
  %924 = vmatprep.subr.bf16.mxu0 0
  %925 = vmatpush1.bf16.msra.mxu0 0
  %926 = vmatprep.subr.bf16.mxu0 0
  %927 = vmatpush1.bf16.msra.mxu0 0
  %928 = vmatprep.subr.bf16.mxu0 0
  %929 = vmatpush1.bf16.msra.mxu0 0
  %930 = vmatprep.subr.bf16.mxu0 0
  %931 = vmatpush1.bf16.msra.mxu0 0
  %932 = vmatprep.subr.bf16.mxu0 0
  %933 = vmatpush1.bf16.msra.mxu0 0
  %934 = vmatprep.subr.bf16.mxu0 0
  %935 = vmatpush1.bf16.msra.mxu0 0
  %936 = vmatprep.subr.bf16.mxu0 0
  %937 = vmatpush1.bf16.msra.mxu0 0
  %938 = vmatprep.mubr.bf16.mxu0 0
  %939 = vmatmul.mubr.bf16.gmra.mrb[0].mxu0 %v904
  %v940 = vpop.f32.mrb[0].mxu0
  %v941 = vadd.f32 0.0, %v940
  %v942 = vpop.f32.mrb[0].mxu0
  %v943 = vpop.f32.mrb[0].mxu0
  %v944 = vadd.f32 0.0, %v943
  %v945 = vpop.f32.mrb[0].mxu0
  %946 = vdwg.mxu0
  %v955 = vunpack.c.l.b16 %v782
  %v956 = vunpack.c.l.b16 %v783
  %v957 = vunpack.c.l.b16 %v784
  %v958 = vunpack.c.l.b16 %v785
  %v959 = vunpack.c.l.b16 %v786
  %v960 = vunpack.c.l.b16 %v787
  %v961 = vunpack.c.l.b16 %v788
  %v962 = vunpack.c.l.b16 %v789
  %v963 = vpack.c.b16 %v956, %v955
  %v964 = vpack.c.b16 %v958, %v957
  %v965 = vpack.c.b16 %v960, %v959
  %v966 = vpack.c.b16 %v962, %v961
  %971 = vmatprep.subr.bf16.mxu0 0
  %972 = vmatpush1.bf16.msra.mxu0 %v963
  %973 = vmatprep.subr.bf16.mxu0 0
  %974 = vmatpush1.bf16.msra.mxu0 %v964
  %975 = vmatprep.subr.bf16.mxu0 0
  %976 = vmatpush1.bf16.msra.mxu0 %v965
  %977 = vmatprep.subr.bf16.mxu0 0
  %978 = vmatpush1.bf16.msra.mxu0 %v966
  %979 = vmatprep.subr.bf16.mxu0 0
  %980 = vmatpush1.bf16.msra.mxu0 0
  %981 = vmatprep.subr.bf16.mxu0 0
  %982 = vmatpush1.bf16.msra.mxu0 0
  %983 = vmatprep.subr.bf16.mxu0 0
  %984 = vmatpush1.bf16.msra.mxu0 0
  %985 = vmatprep.subr.bf16.mxu0 0
  %986 = vmatpush1.bf16.msra.mxu0 0
  %987 = vmatprep.subr.bf16.mxu0 0
  %988 = vmatpush1.bf16.msra.mxu0 0
  %989 = vmatprep.subr.bf16.mxu0 0
  %990 = vmatpush1.bf16.msra.mxu0 0
  %991 = vmatprep.subr.bf16.mxu0 0
  %992 = vmatpush1.bf16.msra.mxu0 0
  %993 = vmatprep.subr.bf16.mxu0 0
  %994 = vmatpush1.bf16.msra.mxu0 0
  %995 = vmatprep.subr.bf16.mxu0 0
  %996 = vmatpush1.bf16.msra.mxu0 0
  %997 = vmatprep.subr.bf16.mxu0 0
  %998 = vmatpush1.bf16.msra.mxu0 0
  %999 = vmatprep.subr.bf16.mxu0 0
  %1000 = vmatpush1.bf16.msra.mxu0 0
  %1001 = vmatprep.subr.bf16.mxu0 0
  %1002 = vmatpush1.bf16.msra.mxu0 0
  %1003 = vmatprep.mubr.bf16.mxu0 0
  %1004 = vmatmul.mubr.bf16.gmra.mrb[0].mxu0 %v904
  %v1005 = vpop.f32.mrb[0].mxu0
  %v1006 = vadd.f32 0.0, %v1005
  %v1007 = vpop.f32.mrb[0].mxu0
  %v1008 = vpop.f32.mrb[0].mxu0
  %v1009 = vadd.f32 0.0, %v1008
  %v1010 = vpop.f32.mrb[0].mxu0
  %1011 = vdwg.mxu0
  %v1012 = vpack.c.bf16 %v868, %v865
  %v1013 = vpack.c.bf16 %v873, %v873
  %v1014 = vpack.c.bf16 %v944, %v941
  %v1016 = vsel %vm103, %v1012, 0
  %v1019 = vsel %vm103, %v1013, 0
  %v1022 = vsel %vm103, %v1014, 0
  %1024 = vmatprep.subr.bf16.mxu0 0
  %1025 = vmatpush1.bf16.xpose.msra.mxu0 %v1022
  %1026 = vmatprep.subr.bf16.mxu0 0
  %1027 = vmatpush1.bf16.xpose.msra.mxu0 0
  %1028 = vmatprep.subr.bf16.mxu0 0
  %1029 = vmatpush1.bf16.xpose.msra.mxu0 0
  %1030 = vmatprep.subr.bf16.mxu0 0
  %1031 = vmatpush1.bf16.xpose.msra.mxu0 0
  %1032 = vmatprep.subr.bf16.mxu0 0
  %1033 = vmatpush1.bf16.xpose.msra.mxu0 0
  %1034 = vmatprep.subr.bf16.mxu0 0
  %1035 = vmatpush1.bf16.xpose.msra.mxu0 0
  %1036 = vmatprep.subr.bf16.mxu0 0
  %1037 = vmatpush1.bf16.xpose.msra.mxu0 0
  %1038 = vmatprep.subr.bf16.mxu0 0
  %1039 = vmatpush1.bf16.xpose.msra.mxu0 0
  %1040 = vmatprep.subr.bf16.mxu0 0
  %1041 = vmatpush1.bf16.xpose.msra.mxu0 0
  %1042 = vmatprep.subr.bf16.mxu0 0
  %1043 = vmatpush1.bf16.xpose.msra.mxu0 0
  %1044 = vmatprep.subr.bf16.mxu0 0
  %1045 = vmatpush1.bf16.xpose.msra.mxu0 0
  %1046 = vmatprep.subr.bf16.mxu0 0
  %1047 = vmatpush1.bf16.xpose.msra.mxu0 0
  %1048 = vmatprep.subr.bf16.mxu0 0
  %1049 = vmatpush1.bf16.xpose.msra.mxu0 0
  %1050 = vmatprep.subr.bf16.mxu0 0
  %1051 = vmatpush1.bf16.xpose.msra.mxu0 0
  %1052 = vmatprep.subr.bf16.mxu0 0
  %1053 = vmatpush1.bf16.xpose.msra.mxu0 0
  %1054 = vmatprep.subr.bf16.mxu0 0
  %1055 = vmatpush1.bf16.xpose.msra.mxu0 0
  %1056 = vmatprep.mubr.bf16.mxu0 0
  %1057 = vmatmul.mubr.bf16.gmra.mrb[0].mxu0 %v1016
  %v1058 = vpop.f32.mrb[0].mxu0
  %v1059 = vadd.f32 0.0, %v1058
  %v1060 = vpop.f32.mrb[0].mxu0
  %v1061 = vpop.f32.mrb[0].mxu0
  %v1062 = vadd.f32 0.0, %v1061
  %v1063 = vpop.f32.mrb[0].mxu0
  %1064 = vmatprep.mubr.bf16.mxu0 0
  %1065 = vmatmul.mubr.bf16.gmra.mrb[0].mxu0 %v1019
  %v1066 = vpop.f32.mrb[0].mxu0
  %v1067 = vadd.f32 0.0, %v1066
  %v1068 = vpop.f32.mrb[0].mxu0
  %v1069 = vpop.f32.mrb[0].mxu0
  %v1070 = vpop.f32.mrb[0].mxu0
  %1071 = vdwg.mxu0
  %vm1072 = vcmask 130048
  %v1073 = vsel %vm1072, %v1059, -inf
  %1074 = vmax.xlane.f32.xlu0 %v1073
  %v1075 = vpop.xlane.xlu0 %1074
  %v1076 = vsel %vm1072, %v1062, -inf
  %1077 = vmax.xlane.f32.xlu0 %v1076
  %v1078 = vpop.xlane.xlu0 %1077
  %v1079 = vsel %vm1072, %v1067, -inf
  %1080 = vmax.xlane.f32.xlu0 %v1079
  %v1081 = vpop.xlane.xlu0 %1080
  %v1082 = vsub.f32 %v1059, %v1075
  %v1083 = vsub.f32 %v1062, %v1078
  %v1084 = vsub.f32 %v1067, %v1081
  %v1085 = vmul.f32 %v1082, 1.442695
  %v1086 = vpow.pop %v1085
  %v1087 = vmul.f32 %v1083, 1.442695
  %v1088 = vpow.pop %v1087
  %v1089 = vmul.f32 %v1084, 1.442695
  %v1090 = vpow.pop %v1089
  %v1091 = vsel %vm1072, %v1086, 0.0
  %1092 = vadd.xlane.f32.xlu0 %v1091
  %v1093 = vpop.xlane.xlu0 %1092
  %v1094 = vsel %vm1072, %v1088, 0.0
  %1095 = vadd.xlane.f32.xlu0 %v1094
  %v1096 = vpop.xlane.xlu0 %1095
  %v1097 = vsel %vm1072, %v1090, 0.0
  %1098 = vadd.xlane.f32.xlu0 %v1097
  %v1099 = vpop.xlane.xlu0 %1098
  %v1100 = vrcp.pop %v1093
  %v1101 = vrcp.pop %v1096
  %v1102 = vrcp.pop %v1099
  %v1103 = vmul.f32 %v1086, %v1100
  %v1104 = vmul.f32 %v1088, %v1101
  %v1105 = vmul.f32 %v1090, %v1102
  %v1106 = vpack.c.bf16 %v1104, %v1103
  %v1107 = vpack.c.bf16 %v1105, %v1105
  %v1108 = vpack.c.bf16 %v1009, %v1006
  %v1110 = vsel %vm1072, %v1106, 0
  %v1113 = vsel %vm1072, %v1107, 0
  %1115 = vmatprep.subr.bf16.mxu0 0
  %1116 = vmatpush1.bf16.msra.mxu0 %v1108
  %1117 = vmatprep.subr.bf16.mxu0 0
  %1118 = vmatpush1.bf16.msra.mxu0 0
  %1119 = vmatprep.subr.bf16.mxu0 0
  %1120 = vmatpush1.bf16.msra.mxu0 0
  %1121 = vmatprep.subr.bf16.mxu0 0
  %1122 = vmatpush1.bf16.msra.mxu0 0
  %1123 = vmatprep.subr.bf16.mxu0 0
  %1124 = vmatpush1.bf16.msra.mxu0 0
  %1125 = vmatprep.subr.bf16.mxu0 0
  %1126 = vmatpush1.bf16.msra.mxu0 0
  %1127 = vmatprep.subr.bf16.mxu0 0
  %1128 = vmatpush1.bf16.msra.mxu0 0
  %1129 = vmatprep.subr.bf16.mxu0 0
  %1130 = vmatpush1.bf16.msra.mxu0 0
  %1131 = vmatprep.subr.bf16.mxu0 0
  %1132 = vmatpush1.bf16.msra.mxu0 0
  %1133 = vmatprep.subr.bf16.mxu0 0
  %1134 = vmatpush1.bf16.msra.mxu0 0
  %1135 = vmatprep.subr.bf16.mxu0 0
  %1136 = vmatpush1.bf16.msra.mxu0 0
  %1137 = vmatprep.subr.bf16.mxu0 0
  %1138 = vmatpush1.bf16.msra.mxu0 0
  %1139 = vmatprep.subr.bf16.mxu0 0
  %1140 = vmatpush1.bf16.msra.mxu0 0
  %1141 = vmatprep.subr.bf16.mxu0 0
  %1142 = vmatpush1.bf16.msra.mxu0 0
  %1143 = vmatprep.subr.bf16.mxu0 0
  %1144 = vmatpush1.bf16.msra.mxu0 0
  %1145 = vmatprep.subr.bf16.mxu0 0
  %1146 = vmatpush1.bf16.msra.mxu0 0
  %1147 = vmatprep.mubr.bf16.mxu0 0
  %1148 = vmatmul.mubr.bf16.gmra.mrb[0].mxu0 %v1110
  %v1149 = vpop.f32.mrb[0].mxu0
  %v1150 = vadd.f32 0.0, %v1149
  %v1151 = vpop.f32.mrb[0].mxu0
  %v1152 = vpop.f32.mrb[0].mxu0
  %v1153 = vadd.f32 0.0, %v1152
  %v1154 = vpop.f32.mrb[0].mxu0
  %1155 = vmatprep.mubr.bf16.mxu0 0
  %1156 = vmatmul.mubr.bf16.gmra.mrb[0].mxu0 %v1113
  %v1157 = vpop.f32.mrb[0].mxu0
  %v1158 = vadd.f32 0.0, %v1157
  %v1159 = vpop.f32.mrb[0].mxu0
  %v1160 = vpop.f32.mrb[0].mxu0
  %v1161 = vpop.f32.mrb[0].mxu0
  %1162 = vdwg.mxu0
  %v1163 = vpack.c.bf16 %v1153, %v1150
  %v1164 = vpack.c.bf16 %v1158, %v1158
  %v1165 = vlaneseq
  %v1166 = vshrl.u32 %v1165, 7
  %v1167 = vsub.s32 0, %v1166
  %v1168 = vrot.slane %v91, %v1167
  %v1177 = vunpack.c.l.b16 %v790
  %v1178 = vunpack.c.l.b16 %v791
  %v1179 = vunpack.c.l.b16 %v792
  %v1180 = vunpack.c.l.b16 %v793
  %v1181 = vunpack.c.l.b16 %v794
  %v1182 = vunpack.c.l.b16 %v795
  %v1183 = vunpack.c.l.b16 %v796
  %v1184 = vunpack.c.l.b16 %v797
  %v1185 = vpack.c.b16 %v1178, %v1177
  %v1186 = vpack.c.b16 %v1180, %v1179
  %v1187 = vpack.c.b16 %v1182, %v1181
  %v1188 = vpack.c.b16 %v1184, %v1183
  %v1194 = vsel %vm103, %v1163, 0
  %v1197 = vsel %vm103, %v1164, 0
  %1199 = vmatprep.subr.bf16.mxu0 0
  %1200 = vmatpush1.bf16.msra.mxu0 %v1185
  %1201 = vmatprep.subr.bf16.mxu0 0
  %1202 = vmatpush1.bf16.msra.mxu0 %v1186
  %1203 = vmatprep.subr.bf16.mxu0 0
  %1204 = vmatpush1.bf16.msra.mxu0 %v1187
  %1205 = vmatprep.subr.bf16.mxu0 0
  %1206 = vmatpush1.bf16.msra.mxu0 %v1188
  %1207 = vmatprep.subr.bf16.mxu0 0
  %1208 = vmatpush1.bf16.msra.mxu0 0
  %1209 = vmatprep.subr.bf16.mxu0 0
  %1210 = vmatpush1.bf16.msra.mxu0 0
  %1211 = vmatprep.subr.bf16.mxu0 0
  %1212 = vmatpush1.bf16.msra.mxu0 0
  %1213 = vmatprep.subr.bf16.mxu0 0
  %1214 = vmatpush1.bf16.msra.mxu0 0
  %1215 = vmatprep.subr.bf16.mxu0 0
  %1216 = vmatpush1.bf16.msra.mxu0 0
  %1217 = vmatprep.subr.bf16.mxu0 0
  %1218 = vmatpush1.bf16.msra.mxu0 0
  %1219 = vmatprep.subr.bf16.mxu0 0
  %1220 = vmatpush1.bf16.msra.mxu0 0
  %1221 = vmatprep.subr.bf16.mxu0 0
  %1222 = vmatpush1.bf16.msra.mxu0 0
  %1223 = vmatprep.subr.bf16.mxu0 0
  %1224 = vmatpush1.bf16.msra.mxu0 0
  %1225 = vmatprep.subr.bf16.mxu0 0
  %1226 = vmatpush1.bf16.msra.mxu0 0
  %1227 = vmatprep.subr.bf16.mxu0 0
  %1228 = vmatpush1.bf16.msra.mxu0 0
  %1229 = vmatprep.subr.bf16.mxu0 0
  %1230 = vmatpush1.bf16.msra.mxu0 0
  %1231 = vmatprep.mubr.bf16.mxu0 0
  %1232 = vmatmul.mubr.bf16.gmra.mrb[0].mxu0 %v1194
  %v1233 = vpop.f32.mrb[0].mxu0
  %v1234 = vadd.f32 %v1168, %v1233
  %v1235 = vpop.f32.mrb[0].mxu0
  %v1236 = vpop.f32.mrb[0].mxu0
  %v1237 = vadd.f32 %v1168, %v1236
  %v1238 = vpop.f32.mrb[0].mxu0
  %1239 = vmatprep.mubr.bf16.mxu0 0
  %1240 = vmatmul.mubr.bf16.gmra.mrb[0].mxu0 %v1197
  %v1241 = vpop.f32.mrb[0].mxu0
  %v1242 = vadd.f32 %v1168, %v1241
  %v1243 = vpop.f32.mrb[0].mxu0
  %v1244 = vpop.f32.mrb[0].mxu0
  %v1245 = vpop.f32.mrb[0].mxu0
  %1246 = vdwg.mxu0
  %v1247 = vadd.f32 %v672, %v1234
  %v1248 = vadd.f32 %v673, %v1237
  %v1249 = vadd.f32 %v674, %v1242
  %v1250 = vsel %vm103, %v1247, 0.0
  %1251 = vadd.xlane.f32.xlu0 %v1250
  %v1252 = vpop.xlane.xlu0 %1251
  %v1253 = vsel %vm103, %v1248, 0.0
  %1254 = vadd.xlane.f32.xlu0 %v1253
  %v1255 = vpop.xlane.xlu0 %1254
  %v1256 = vsel %vm103, %v1249, 0.0
  %1257 = vadd.xlane.f32.xlu0 %v1256
  %v1258 = vpop.xlane.xlu0 %1257
  %v1259 = vmul.f32 %v1252, %v127
  %v1260 = vmul.f32 %v1255, %v127
  %v1261 = vmul.f32 %v1258, %v127
  %v1262 = vsub.f32 %v1247, %v1259
  %v1263 = vsub.f32 %v1248, %v1260
  %v1264 = vsub.f32 %v1249, %v1261
  %v1265 = vmul.f32 %v1262, %v1262
  %v1266 = vmul.f32 %v1263, %v1263
  %v1267 = vmul.f32 %v1264, %v1264
  %v1268 = vsel %vm103, %v1265, 0.0
  %1269 = vadd.xlane.f32.xlu0 %v1268
  %v1270 = vpop.xlane.xlu0 %1269
  %v1271 = vsel %vm103, %v1266, 0.0
  %1272 = vadd.xlane.f32.xlu0 %v1271
  %v1273 = vpop.xlane.xlu0 %1272
  %v1274 = vsel %vm103, %v1267, 0.0
  %1275 = vadd.xlane.f32.xlu0 %v1274
  %v1276 = vpop.xlane.xlu0 %1275
  %v1277 = vmul.f32 %v1270, %v127
  %v1278 = vmul.f32 %v1273, %v127
  %v1279 = vmul.f32 %v1276, %v127
  %v1280 = vadd.f32 %v1277, 1e-06
  %v1281 = vadd.f32 %v1278, 1e-06
  %v1282 = vadd.f32 %v1279, 1e-06
  %v1283 = vrsqrt.pop %v1280
  %v1284 = vrsqrt.pop %v1281
  %v1285 = vrsqrt.pop %v1282
  %v1286 = vmul.f32 %v1262, %v1283
  %v1287 = vmul.f32 %v1263, %v1284
  %v1288 = vmul.f32 %v1264, %v1285
  %v1289 = vlaneseq
  %v1290 = vshrl.u32 %v1289, 7
  %v1291 = vsub.s32 1, %v1290
  %v1292 = vrot.slane %v91, %v1291
  %v1293 = vmul.f32 %v1286, %v1292
  %v1294 = vmul.f32 %v1287, %v1292
  %v1295 = vmul.f32 %v1288, %v1292
  %v1296 = vlaneseq
  %v1297 = vshrl.u32 %v1296, 7
  %v1298 = vsub.s32 2, %v1297
  %v1299 = vrot.slane %v91, %v1298
  %v1300 = vadd.f32 %v1293, %v1299
  %v1301 = vadd.f32 %v1294, %v1299
  %v1302 = vadd.f32 %v1295, %v1299
  %v1303 = vld [vmem:[%s17] sm:$0xf]
  %v1304 = vld [vmem:[%s17 + $0x4] sm:$0xf]
  %v1305 = vld [vmem:[%s17 + $0x8] sm:$0xf]
  %v1306 = vld [vmem:[%s17 + $0xc] sm:$0xf]
  %v1307 = vld [vmem:[%s17 + $0x10] sm:$0xf]
  %v1308 = vld [vmem:[%s17 + $0x14] sm:$0xf]
  %v1309 = vld [vmem:[%s17 + $0x18] sm:$0xf]
  %v1310 = vld [vmem:[%s17 + $0x1c] sm:$0xf]
  %v1311 = vld [vmem:[%s18] sm:$0xf]
  %v1312 = vld [vmem:[%s18 + $0x4] sm:$0xf]
  %v1313 = vld [vmem:[%s18 + $0x8] sm:$0xf]
  %v1314 = vld [vmem:[%s18 + $0xc] sm:$0xf]
  %v1315 = vld [vmem:[%s18 + $0x10] sm:$0xf]
  %v1316 = vld [vmem:[%s18 + $0x14] sm:$0xf]
  %v1317 = vld [vmem:[%s18 + $0x18] sm:$0xf]
  %v1318 = vld [vmem:[%s18 + $0x1c] sm:$0xf]
  %v1319 = vld [vmem:[%s18 + $0x20] sm:$0xf]
  %v1320 = vld [vmem:[%s18 + $0x24] sm:$0xf]
  %v1321 = vld [vmem:[%s18 + $0x28] sm:$0xf]
  %v1322 = vld [vmem:[%s18 + $0x2c] sm:$0xf]
  %v1323 = vld [vmem:[%s18 + $0x30] sm:$0xf]
  %v1324 = vld [vmem:[%s18 + $0x34] sm:$0xf]
  %v1325 = vld [vmem:[%s18 + $0x38] sm:$0xf]
  %v1326 = vld [vmem:[%s18 + $0x3c] sm:$0xf]
  %v1327 = vpack.c.bf16 %v1301, %v1300
  %v1328 = vpack.c.bf16 %v1302, %v1302
  %v1329 = vlaneseq
  %v1330 = vshrl.u32 %v1329, 7
  %v1331 = vsub.s32 0, %v1330
  %v1332 = vrot.slane %v93, %v1331
  %v1341 = vunpack.c.l.b16 %v1303
  %v1342 = vunpack.c.l.b16 %v1304
  %v1343 = vunpack.c.l.b16 %v1305
  %v1344 = vunpack.c.l.b16 %v1306
  %v1345 = vunpack.c.l.b16 %v1307
  %v1346 = vunpack.c.l.b16 %v1308
  %v1347 = vunpack.c.l.b16 %v1309
  %v1348 = vunpack.c.l.b16 %v1310
  %v1349 = vpack.c.b16 %v1342, %v1341
  %v1350 = vpack.c.b16 %v1344, %v1343
  %v1351 = vpack.c.b16 %v1346, %v1345
  %v1352 = vpack.c.b16 %v1348, %v1347
  %v1358 = vsel %vm103, %v1327, 0
  %v1361 = vsel %vm103, %v1328, 0
  %1363 = vmatprep.subr.bf16.mxu0 0
  %1364 = vmatpush1.bf16.msra.mxu0 %v1349
  %1365 = vmatprep.subr.bf16.mxu0 0
  %1366 = vmatpush1.bf16.msra.mxu0 %v1350
  %1367 = vmatprep.subr.bf16.mxu0 0
  %1368 = vmatpush1.bf16.msra.mxu0 %v1351
  %1369 = vmatprep.subr.bf16.mxu0 0
  %1370 = vmatpush1.bf16.msra.mxu0 %v1352
  %1371 = vmatprep.subr.bf16.mxu0 0
  %1372 = vmatpush1.bf16.msra.mxu0 0
  %1373 = vmatprep.subr.bf16.mxu0 0
  %1374 = vmatpush1.bf16.msra.mxu0 0
  %1375 = vmatprep.subr.bf16.mxu0 0
  %1376 = vmatpush1.bf16.msra.mxu0 0
  %1377 = vmatprep.subr.bf16.mxu0 0
  %1378 = vmatpush1.bf16.msra.mxu0 0
  %1379 = vmatprep.subr.bf16.mxu0 0
  %1380 = vmatpush1.bf16.msra.mxu0 0
  %1381 = vmatprep.subr.bf16.mxu0 0
  %1382 = vmatpush1.bf16.msra.mxu0 0
  %1383 = vmatprep.subr.bf16.mxu0 0
  %1384 = vmatpush1.bf16.msra.mxu0 0
  %1385 = vmatprep.subr.bf16.mxu0 0
  %1386 = vmatpush1.bf16.msra.mxu0 0
  %1387 = vmatprep.subr.bf16.mxu0 0
  %1388 = vmatpush1.bf16.msra.mxu0 0
  %1389 = vmatprep.subr.bf16.mxu0 0
  %1390 = vmatpush1.bf16.msra.mxu0 0
  %1391 = vmatprep.subr.bf16.mxu0 0
  %1392 = vmatpush1.bf16.msra.mxu0 0
  %1393 = vmatprep.subr.bf16.mxu0 0
  %1394 = vmatpush1.bf16.msra.mxu0 0
  %1395 = vmatprep.mubr.bf16.mxu0 0
  %1396 = vmatmul.mubr.bf16.gmra.mrb[0].mxu0 %v1358
  %v1397 = vpop.f32.mrb[0].mxu0
  %v1398 = vadd.f32 %v1332, %v1397
  %v1399 = vpop.f32.mrb[0].mxu0
  %v1400 = vpop.f32.mrb[0].mxu0
  %v1401 = vadd.f32 %v1332, %v1400
  %v1402 = vpop.f32.mrb[0].mxu0
  %1403 = vmatprep.mubr.bf16.mxu0 0
  %1404 = vmatmul.mubr.bf16.gmra.mrb[0].mxu0 %v1361
  %v1405 = vpop.f32.mrb[0].mxu0
  %v1406 = vadd.f32 %v1332, %v1405
  %v1407 = vpop.f32.mrb[0].mxu0
  %v1408 = vpop.f32.mrb[0].mxu0
  %v1409 = vpop.f32.mrb[0].mxu0
  %1410 = vdwg.mxu0
  %v1411 = vmul.f32 %v1398, %v1398
  %v1412 = vmul.f32 %v1401, %v1401
  %v1413 = vmul.f32 %v1406, %v1406
  %v1414 = vmul.f32 %v1398, %v1411
  %v1415 = vmul.f32 %v1401, %v1412
  %v1416 = vmul.f32 %v1406, %v1413
  %v1417 = vmul.f32 %v1414, 0.044715
  %v1418 = vmul.f32 %v1415, 0.044715
  %v1419 = vmul.f32 %v1416, 0.044715
  %v1420 = vadd.f32 %v1398, %v1417
  %v1421 = vadd.f32 %v1401, %v1418
  %v1422 = vadd.f32 %v1406, %v1419
  %v1423 = vmul.f32 %v1420, 0.7978846
  %v1424 = vmul.f32 %v1421, 0.7978846
  %v1425 = vmul.f32 %v1422, 0.7978846
  %v1426 = vtanh.pop %v1423
  %v1427 = vtanh.pop %v1424
  %v1428 = vtanh.pop %v1425
  %v1429 = vadd.f32 %v1426, 1.0
  %v1430 = vadd.f32 %v1427, 1.0
  %v1431 = vadd.f32 %v1428, 1.0
  %v1432 = vmul.f32 %v1429, 0.5
  %v1433 = vmul.f32 %v1430, 0.5
  %v1434 = vmul.f32 %v1431, 0.5
  %v1435 = vmul.f32 %v1398, %v1432
  %v1436 = vmul.f32 %v1401, %v1433
  %v1437 = vmul.f32 %v1406, %v1434
  %v1438 = vpack.c.bf16 %v1436, %v1435
  %v1439 = vpack.c.bf16 %v1437, %v1437
  %v1440 = vlaneseq
  %v1441 = vshrl.u32 %v1440, 7
  %v1442 = vsub.s32 3, %v1441
  %v1443 = vrot.slane %v91, %v1442
  %v1460 = vunpack.c.l.b16 %v1311
  %v1461 = vunpack.c.l.b16 %v1312
  %v1462 = vunpack.c.l.b16 %v1313
  %v1463 = vunpack.c.l.b16 %v1314
  %v1464 = vunpack.c.l.b16 %v1315
  %v1465 = vunpack.c.l.b16 %v1316
  %v1466 = vunpack.c.l.b16 %v1317
  %v1467 = vunpack.c.l.b16 %v1318
  %v1468 = vunpack.c.l.b16 %v1319
  %v1469 = vunpack.c.l.b16 %v1320
  %v1470 = vunpack.c.l.b16 %v1321
  %v1471 = vunpack.c.l.b16 %v1322
  %v1472 = vunpack.c.l.b16 %v1323
  %v1473 = vunpack.c.l.b16 %v1324
  %v1474 = vunpack.c.l.b16 %v1325
  %v1475 = vunpack.c.l.b16 %v1326
  %v1476 = vpack.c.b16 %v1461, %v1460
  %v1477 = vpack.c.b16 %v1463, %v1462
  %v1478 = vpack.c.b16 %v1465, %v1464
  %v1479 = vpack.c.b16 %v1467, %v1466
  %v1480 = vpack.c.b16 %v1469, %v1468
  %v1481 = vpack.c.b16 %v1471, %v1470
  %v1482 = vpack.c.b16 %v1473, %v1472
  %v1483 = vpack.c.b16 %v1475, %v1474
  %1492 = vmatprep.subr.bf16.mxu0 0
  %1493 = vmatpush1.bf16.msra.mxu0 %v1476
  %1494 = vmatprep.subr.bf16.mxu0 0
  %1495 = vmatpush1.bf16.msra.mxu0 %v1477
  %1496 = vmatprep.subr.bf16.mxu0 0
  %1497 = vmatpush1.bf16.msra.mxu0 %v1478
  %1498 = vmatprep.subr.bf16.mxu0 0
  %1499 = vmatpush1.bf16.msra.mxu0 %v1479
  %1500 = vmatprep.subr.bf16.mxu0 0
  %1501 = vmatpush1.bf16.msra.mxu0 %v1480
  %1502 = vmatprep.subr.bf16.mxu0 0
  %1503 = vmatpush1.bf16.msra.mxu0 %v1481
  %1504 = vmatprep.subr.bf16.mxu0 0
  %1505 = vmatpush1.bf16.msra.mxu0 %v1482
  %1506 = vmatprep.subr.bf16.mxu0 0
  %1507 = vmatpush1.bf16.msra.mxu0 %v1483
  %1508 = vmatprep.subr.bf16.mxu0 0
  %1509 = vmatpush1.bf16.msra.mxu0 0
  %1510 = vmatprep.subr.bf16.mxu0 0
  %1511 = vmatpush1.bf16.msra.mxu0 0
  %1512 = vmatprep.subr.bf16.mxu0 0
  %1513 = vmatpush1.bf16.msra.mxu0 0
  %1514 = vmatprep.subr.bf16.mxu0 0
  %1515 = vmatpush1.bf16.msra.mxu0 0
  %1516 = vmatprep.subr.bf16.mxu0 0
  %1517 = vmatpush1.bf16.msra.mxu0 0
  %1518 = vmatprep.subr.bf16.mxu0 0
  %1519 = vmatpush1.bf16.msra.mxu0 0
  %1520 = vmatprep.subr.bf16.mxu0 0
  %1521 = vmatpush1.bf16.msra.mxu0 0
  %1522 = vmatprep.subr.bf16.mxu0 0
  %1523 = vmatpush1.bf16.msra.mxu0 0
  %1524 = vmatprep.mubr.bf16.mxu0 0
  %1525 = vmatmul.mubr.bf16.gmra.mrb[0].mxu0 %v1438
  %v1526 = vpop.f32.mrb[0].mxu0
  %v1527 = vadd.f32 %v1443, %v1526
  %v1528 = vpop.f32.mrb[0].mxu0
  %v1529 = vpop.f32.mrb[0].mxu0
  %v1530 = vadd.f32 %v1443, %v1529
  %v1531 = vpop.f32.mrb[0].mxu0
  %1532 = vmatprep.mubr.bf16.mxu0 0
  %1533 = vmatmul.mubr.bf16.gmra.mrb[0].mxu0 %v1439
  %v1534 = vpop.f32.mrb[0].mxu0
  %v1535 = vadd.f32 %v1443, %v1534
  %v1536 = vpop.f32.mrb[0].mxu0
  %v1537 = vpop.f32.mrb[0].mxu0
  %v1538 = vpop.f32.mrb[0].mxu0
  %1539 = vdwg.mxu0
  %v1540 = vadd.f32 %v1247, %v1527
  %v1541 = vadd.f32 %v1248, %v1530
  %v1542 = vadd.f32 %v1249, %v1535
  %v1543 = vlaneseq
  %v1544 = vshrl.u32 %v1543, 7
  %v1545 = vsub.s32 4, %v1544
  %v1546 = vrot.slane %v91, %v1545
  %v1547 = vmul.f32 %v752, %v1546
  %v1548 = vmul.f32 %v753, %v1546
  %v1549 = vlaneseq
  %v1550 = vshrl.u32 %v1549, 7
  %v1551 = vsub.s32 5, %v1550
  %v1552 = vrot.slane %v91, %v1551
  %v1553 = vadd.f32 %v1547, %v1552
  %v1554 = vadd.f32 %v1548, %v1552
  %v1555 = vsel %vm103, %v1540, 0.0
  %1556 = vadd.xlane.f32.xlu0 %v1555
  %v1557 = vpop.xlane.xlu0 %1556
  %v1558 = vsel %vm103, %v1541, 0.0
  %1559 = vadd.xlane.f32.xlu0 %v1558
  %v1560 = vpop.xlane.xlu0 %1559
  %v1561 = vsel %vm103, %v1542, 0.0
  %1562 = vadd.xlane.f32.xlu0 %v1561
  %v1563 = vpop.xlane.xlu0 %1562
  %v1564 = vmul.f32 %v1557, %v127
  %v1565 = vmul.f32 %v1560, %v127
  %v1566 = vmul.f32 %v1563, %v127
  %v1567 = vsub.f32 %v1540, %v1564
  %v1568 = vsub.f32 %v1541, %v1565
  %v1569 = vsub.f32 %v1542, %v1566
  %v1570 = vmul.f32 %v1567, %v1567
  %v1571 = vmul.f32 %v1568, %v1568
  %v1572 = vmul.f32 %v1569, %v1569
  %v1573 = vsel %vm103, %v1570, 0.0
  %1574 = vadd.xlane.f32.xlu0 %v1573
  %v1575 = vpop.xlane.xlu0 %1574
  %v1576 = vsel %vm103, %v1571, 0.0
  %1577 = vadd.xlane.f32.xlu0 %v1576
  %v1578 = vpop.xlane.xlu0 %1577
  %v1579 = vsel %vm103, %v1572, 0.0
  %1580 = vadd.xlane.f32.xlu0 %v1579
  %v1581 = vpop.xlane.xlu0 %1580
  %v1582 = vmul.f32 %v1575, %v127
  %v1583 = vmul.f32 %v1578, %v127
  %v1584 = vmul.f32 %v1581, %v127
  %v1585 = vadd.f32 %v1582, 1e-06
  %v1586 = vadd.f32 %v1583, 1e-06
  %v1587 = vadd.f32 %v1584, 1e-06
  %v1588 = vrsqrt.pop %v1585
  %v1589 = vrsqrt.pop %v1586
  %v1590 = vrsqrt.pop %v1587
  %v1591 = vmul.f32 %v1567, %v1588
  %v1592 = vmul.f32 %v1568, %v1589
  %v1593 = vmul.f32 %v1569, %v1590
  %v1594 = vlaneseq
  %v1595 = vshrl.u32 %v1594, 7
  %v1596 = vsub.s32 6, %v1595
  %v1597 = vrot.slane %v91, %v1596
  %v1598 = vmul.f32 %v1591, %v1597
  %v1599 = vmul.f32 %v1592, %v1597
  %v1600 = vmul.f32 %v1593, %v1597
  %v1601 = vlaneseq
  %v1602 = vshrl.u32 %v1601, 7
  %v1603 = vsub.s32 7, %v1602
  %v1604 = vrot.slane %v91, %v1603
  %v1605 = vadd.f32 %v1598, %v1604
  %v1606 = vadd.f32 %v1599, %v1604
  %v1607 = vadd.f32 %v1600, %v1604
  %v1608 = vld [vmem:[%s19] sm:$0xf]
  %v1609 = vld [vmem:[%s19 + $0x4] sm:$0xf]
  %v1610 = vld [vmem:[%s19 + $0x8] sm:$0xf]
  %v1611 = vld [vmem:[%s19 + $0xc] sm:$0xf]
  %v1612 = vld [vmem:[%s19 + $0x10] sm:$0xf]
  %v1613 = vld [vmem:[%s19 + $0x14] sm:$0xf]
  %v1614 = vld [vmem:[%s19 + $0x18] sm:$0xf]
  %v1615 = vld [vmem:[%s19 + $0x1c] sm:$0xf]
  %v1616 = vld [vmem:[%s20] sm:$0xf]
  %v1617 = vld [vmem:[%s20 + $0x4] sm:$0xf]
  %v1618 = vld [vmem:[%s20 + $0x8] sm:$0xf]
  %v1619 = vld [vmem:[%s20 + $0xc] sm:$0xf]
  %v1620 = vld [vmem:[%s20 + $0x10] sm:$0xf]
  %v1621 = vld [vmem:[%s20 + $0x14] sm:$0xf]
  %v1622 = vld [vmem:[%s20 + $0x18] sm:$0xf]
  %v1623 = vld [vmem:[%s20 + $0x1c] sm:$0xf]
  %v1624 = vld [vmem:[%s21] sm:$0xf]
  %v1625 = vld [vmem:[%s21 + $0x4] sm:$0xf]
  %v1626 = vld [vmem:[%s21 + $0x8] sm:$0xf]
  %v1627 = vld [vmem:[%s21 + $0xc] sm:$0xf]
  %v1628 = vld [vmem:[%s21 + $0x10] sm:$0xf]
  %v1629 = vld [vmem:[%s21 + $0x14] sm:$0xf]
  %v1630 = vld [vmem:[%s21 + $0x18] sm:$0xf]
  %v1631 = vld [vmem:[%s21 + $0x1c] sm:$0xf]
  %v1632 = vld [vmem:[%s22] sm:$0xf]
  %v1633 = vld [vmem:[%s22 + $0x4] sm:$0xf]
  %v1634 = vld [vmem:[%s22 + $0x8] sm:$0xf]
  %v1635 = vld [vmem:[%s22 + $0xc] sm:$0xf]
  %v1636 = vld [vmem:[%s22 + $0x10] sm:$0xf]
  %v1637 = vld [vmem:[%s22 + $0x14] sm:$0xf]
  %v1638 = vld [vmem:[%s22 + $0x18] sm:$0xf]
  %v1639 = vld [vmem:[%s22 + $0x1c] sm:$0xf]
  %v1640 = vpack.c.bf16 %v1554, %v1553
  %v1649 = vunpack.c.l.b16 %v1608
  %v1650 = vunpack.c.l.b16 %v1609
  %v1651 = vunpack.c.l.b16 %v1610
  %v1652 = vunpack.c.l.b16 %v1611
  %v1653 = vunpack.c.l.b16 %v1612
  %v1654 = vunpack.c.l.b16 %v1613
  %v1655 = vunpack.c.l.b16 %v1614
  %v1656 = vunpack.c.l.b16 %v1615
  %v1657 = vpack.c.b16 %v1650, %v1649
  %v1658 = vpack.c.b16 %v1652, %v1651
  %v1659 = vpack.c.b16 %v1654, %v1653
  %v1660 = vpack.c.b16 %v1656, %v1655
  %v1666 = vsel %vm103, %v1640, 0
  %1668 = vmatprep.subr.bf16.mxu0 0
  %1669 = vmatpush1.bf16.msra.mxu0 %v1657
  %1670 = vmatprep.subr.bf16.mxu0 0
  %1671 = vmatpush1.bf16.msra.mxu0 %v1658
  %1672 = vmatprep.subr.bf16.mxu0 0
  %1673 = vmatpush1.bf16.msra.mxu0 %v1659
  %1674 = vmatprep.subr.bf16.mxu0 0
  %1675 = vmatpush1.bf16.msra.mxu0 %v1660
  %1676 = vmatprep.subr.bf16.mxu0 0
  %1677 = vmatpush1.bf16.msra.mxu0 0
  %1678 = vmatprep.subr.bf16.mxu0 0
  %1679 = vmatpush1.bf16.msra.mxu0 0
  %1680 = vmatprep.subr.bf16.mxu0 0
  %1681 = vmatpush1.bf16.msra.mxu0 0
  %1682 = vmatprep.subr.bf16.mxu0 0
  %1683 = vmatpush1.bf16.msra.mxu0 0
  %1684 = vmatprep.subr.bf16.mxu0 0
  %1685 = vmatpush1.bf16.msra.mxu0 0
  %1686 = vmatprep.subr.bf16.mxu0 0
  %1687 = vmatpush1.bf16.msra.mxu0 0
  %1688 = vmatprep.subr.bf16.mxu0 0
  %1689 = vmatpush1.bf16.msra.mxu0 0
  %1690 = vmatprep.subr.bf16.mxu0 0
  %1691 = vmatpush1.bf16.msra.mxu0 0
  %1692 = vmatprep.subr.bf16.mxu0 0
  %1693 = vmatpush1.bf16.msra.mxu0 0
  %1694 = vmatprep.subr.bf16.mxu0 0
  %1695 = vmatpush1.bf16.msra.mxu0 0
  %1696 = vmatprep.subr.bf16.mxu0 0
  %1697 = vmatpush1.bf16.msra.mxu0 0
  %1698 = vmatprep.subr.bf16.mxu0 0
  %1699 = vmatpush1.bf16.msra.mxu0 0
  %1700 = vmatprep.mubr.bf16.mxu0 0
  %1701 = vmatmul.mubr.bf16.gmra.mrb[0].mxu0 %v1666
  %v1702 = vpop.f32.mrb[0].mxu0
  %v1703 = vadd.f32 0.0, %v1702
  %v1704 = vpop.f32.mrb[0].mxu0
  %v1705 = vpop.f32.mrb[0].mxu0
  %v1706 = vadd.f32 0.0, %v1705
  %v1707 = vpop.f32.mrb[0].mxu0
  %1708 = vdwg.mxu0
  %v1709 = vpack.c.bf16 %v1606, %v1605
  %v1710 = vpack.c.bf16 %v1607, %v1607
  %v1719 = vunpack.c.l.b16 %v1616
  %v1720 = vunpack.c.l.b16 %v1617
  %v1721 = vunpack.c.l.b16 %v1618
  %v1722 = vunpack.c.l.b16 %v1619
  %v1723 = vunpack.c.l.b16 %v1620
  %v1724 = vunpack.c.l.b16 %v1621
  %v1725 = vunpack.c.l.b16 %v1622
  %v1726 = vunpack.c.l.b16 %v1623
  %v1727 = vpack.c.b16 %v1720, %v1719
  %v1728 = vpack.c.b16 %v1722, %v1721
  %v1729 = vpack.c.b16 %v1724, %v1723
  %v1730 = vpack.c.b16 %v1726, %v1725
  %v1736 = vsel %vm103, %v1709, 0
  %v1739 = vsel %vm103, %v1710, 0
  %1741 = vmatprep.subr.bf16.mxu0 0
  %1742 = vmatpush1.bf16.msra.mxu0 %v1727
  %1743 = vmatprep.subr.bf16.mxu0 0
  %1744 = vmatpush1.bf16.msra.mxu0 %v1728
  %1745 = vmatprep.subr.bf16.mxu0 0
  %1746 = vmatpush1.bf16.msra.mxu0 %v1729
  %1747 = vmatprep.subr.bf16.mxu0 0
  %1748 = vmatpush1.bf16.msra.mxu0 %v1730
  %1749 = vmatprep.subr.bf16.mxu0 0
  %1750 = vmatpush1.bf16.msra.mxu0 0
  %1751 = vmatprep.subr.bf16.mxu0 0
  %1752 = vmatpush1.bf16.msra.mxu0 0
  %1753 = vmatprep.subr.bf16.mxu0 0
  %1754 = vmatpush1.bf16.msra.mxu0 0
  %1755 = vmatprep.subr.bf16.mxu0 0
  %1756 = vmatpush1.bf16.msra.mxu0 0
  %1757 = vmatprep.subr.bf16.mxu0 0
  %1758 = vmatpush1.bf16.msra.mxu0 0
  %1759 = vmatprep.subr.bf16.mxu0 0
  %1760 = vmatpush1.bf16.msra.mxu0 0
  %1761 = vmatprep.subr.bf16.mxu0 0
  %1762 = vmatpush1.bf16.msra.mxu0 0
  %1763 = vmatprep.subr.bf16.mxu0 0
  %1764 = vmatpush1.bf16.msra.mxu0 0
  %1765 = vmatprep.subr.bf16.mxu0 0
  %1766 = vmatpush1.bf16.msra.mxu0 0
  %1767 = vmatprep.subr.bf16.mxu0 0
  %1768 = vmatpush1.bf16.msra.mxu0 0
  %1769 = vmatprep.subr.bf16.mxu0 0
  %1770 = vmatpush1.bf16.msra.mxu0 0
  %1771 = vmatprep.subr.bf16.mxu0 0
  %1772 = vmatpush1.bf16.msra.mxu0 0
  %1773 = vmatprep.mubr.bf16.mxu0 0
  %1774 = vmatmul.mubr.bf16.gmra.mrb[0].mxu0 %v1736
  %v1775 = vpop.f32.mrb[0].mxu0
  %v1776 = vadd.f32 0.0, %v1775
  %v1777 = vpop.f32.mrb[0].mxu0
  %v1778 = vpop.f32.mrb[0].mxu0
  %v1779 = vadd.f32 0.0, %v1778
  %v1780 = vpop.f32.mrb[0].mxu0
  %1781 = vmatprep.mubr.bf16.mxu0 0
  %1782 = vmatmul.mubr.bf16.gmra.mrb[0].mxu0 %v1739
  %v1783 = vpop.f32.mrb[0].mxu0
  %v1784 = vadd.f32 0.0, %v1783
  %v1785 = vpop.f32.mrb[0].mxu0
  %v1786 = vpop.f32.mrb[0].mxu0
  %v1787 = vpop.f32.mrb[0].mxu0
  %1788 = vdwg.mxu0
  %v1797 = vunpack.c.l.b16 %v1624
  %v1798 = vunpack.c.l.b16 %v1625
  %v1799 = vunpack.c.l.b16 %v1626
  %v1800 = vunpack.c.l.b16 %v1627
  %v1801 = vunpack.c.l.b16 %v1628
  %v1802 = vunpack.c.l.b16 %v1629
  %v1803 = vunpack.c.l.b16 %v1630
  %v1804 = vunpack.c.l.b16 %v1631
  %v1805 = vpack.c.b16 %v1798, %v1797
  %v1806 = vpack.c.b16 %v1800, %v1799
  %v1807 = vpack.c.b16 %v1802, %v1801
  %v1808 = vpack.c.b16 %v1804, %v1803
  %1813 = vmatprep.subr.bf16.mxu0 0
  %1814 = vmatpush1.bf16.msra.mxu0 %v1805
  %1815 = vmatprep.subr.bf16.mxu0 0
  %1816 = vmatpush1.bf16.msra.mxu0 %v1806
  %1817 = vmatprep.subr.bf16.mxu0 0
  %1818 = vmatpush1.bf16.msra.mxu0 %v1807
  %1819 = vmatprep.subr.bf16.mxu0 0
  %1820 = vmatpush1.bf16.msra.mxu0 %v1808
  %1821 = vmatprep.subr.bf16.mxu0 0
  %1822 = vmatpush1.bf16.msra.mxu0 0
  %1823 = vmatprep.subr.bf16.mxu0 0
  %1824 = vmatpush1.bf16.msra.mxu0 0
  %1825 = vmatprep.subr.bf16.mxu0 0
  %1826 = vmatpush1.bf16.msra.mxu0 0
  %1827 = vmatprep.subr.bf16.mxu0 0
  %1828 = vmatpush1.bf16.msra.mxu0 0
  %1829 = vmatprep.subr.bf16.mxu0 0
  %1830 = vmatpush1.bf16.msra.mxu0 0
  %1831 = vmatprep.subr.bf16.mxu0 0
  %1832 = vmatpush1.bf16.msra.mxu0 0
  %1833 = vmatprep.subr.bf16.mxu0 0
  %1834 = vmatpush1.bf16.msra.mxu0 0
  %1835 = vmatprep.subr.bf16.mxu0 0
  %1836 = vmatpush1.bf16.msra.mxu0 0
  %1837 = vmatprep.subr.bf16.mxu0 0
  %1838 = vmatpush1.bf16.msra.mxu0 0
  %1839 = vmatprep.subr.bf16.mxu0 0
  %1840 = vmatpush1.bf16.msra.mxu0 0
  %1841 = vmatprep.subr.bf16.mxu0 0
  %1842 = vmatpush1.bf16.msra.mxu0 0
  %1843 = vmatprep.subr.bf16.mxu0 0
  %1844 = vmatpush1.bf16.msra.mxu0 0
  %1845 = vmatprep.mubr.bf16.mxu0 0
  %1846 = vmatmul.mubr.bf16.gmra.mrb[0].mxu0 %v1736
  %v1847 = vpop.f32.mrb[0].mxu0
  %v1848 = vadd.f32 0.0, %v1847
  %v1849 = vpop.f32.mrb[0].mxu0
  %v1850 = vpop.f32.mrb[0].mxu0
  %v1851 = vadd.f32 0.0, %v1850
  %v1852 = vpop.f32.mrb[0].mxu0
  %1853 = vmatprep.mubr.bf16.mxu0 0
  %1854 = vmatmul.mubr.bf16.gmra.mrb[0].mxu0 %v1739
  %v1855 = vpop.f32.mrb[0].mxu0
  %v1856 = vadd.f32 0.0, %v1855
  %v1857 = vpop.f32.mrb[0].mxu0
  %v1858 = vpop.f32.mrb[0].mxu0
  %v1859 = vpop.f32.mrb[0].mxu0
  %1860 = vdwg.mxu0
  %v1861 = vpack.c.bf16 %v1706, %v1703
  %v1862 = vpack.c.bf16 %v1779, %v1776
  %v1863 = vpack.c.bf16 %v1784, %v1784
  %v1865 = vsel %vm103, %v1861, 0
  %v1868 = vsel %vm103, %v1862, 0
  %v1871 = vsel %vm103, %v1863, 0
  %1873 = vmatprep.subr.bf16.mxu0 0
  %1874 = vmatpush1.bf16.xpose.msra.mxu0 %v1868
  %1875 = vmatprep.subr.bf16.mxu0 0
  %1876 = vmatpush1.bf16.xpose.msra.mxu0 %v1871
  %1877 = vmatprep.subr.bf16.mxu0 0
  %1878 = vmatpush1.bf16.xpose.msra.mxu0 0
  %1879 = vmatprep.subr.bf16.mxu0 0
  %1880 = vmatpush1.bf16.xpose.msra.mxu0 0
  %1881 = vmatprep.subr.bf16.mxu0 0
  %1882 = vmatpush1.bf16.xpose.msra.mxu0 0
  %1883 = vmatprep.subr.bf16.mxu0 0
  %1884 = vmatpush1.bf16.xpose.msra.mxu0 0
  %1885 = vmatprep.subr.bf16.mxu0 0
  %1886 = vmatpush1.bf16.xpose.msra.mxu0 0
  %1887 = vmatprep.subr.bf16.mxu0 0
  %1888 = vmatpush1.bf16.xpose.msra.mxu0 0
  %1889 = vmatprep.subr.bf16.mxu0 0
  %1890 = vmatpush1.bf16.xpose.msra.mxu0 0
  %1891 = vmatprep.subr.bf16.mxu0 0
  %1892 = vmatpush1.bf16.xpose.msra.mxu0 0
  %1893 = vmatprep.subr.bf16.mxu0 0
  %1894 = vmatpush1.bf16.xpose.msra.mxu0 0
  %1895 = vmatprep.subr.bf16.mxu0 0
  %1896 = vmatpush1.bf16.xpose.msra.mxu0 0
  %1897 = vmatprep.subr.bf16.mxu0 0
  %1898 = vmatpush1.bf16.xpose.msra.mxu0 0
  %1899 = vmatprep.subr.bf16.mxu0 0
  %1900 = vmatpush1.bf16.xpose.msra.mxu0 0
  %1901 = vmatprep.subr.bf16.mxu0 0
  %1902 = vmatpush1.bf16.xpose.msra.mxu0 0
  %1903 = vmatprep.subr.bf16.mxu0 0
  %1904 = vmatpush1.bf16.xpose.msra.mxu0 0
  %1905 = vmatprep.mubr.bf16.mxu0 0
  %1906 = vmatmul.mubr.bf16.gmra.mrb[0].mxu0 %v1865
  %v1907 = vpop.f32.mrb[0].mxu0
  %v1908 = vadd.f32 %v97, %v1907
  %v1909 = vpop.f32.mrb[0].mxu0
  %v1910 = vpop.f32.mrb[0].mxu0
  %v1911 = vadd.f32 %v97, %v1910
  %v1912 = vpop.f32.mrb[0].mxu0
  %1913 = vdwg.mxu0
  %v1914 = vsel %vm492, %v1908, -inf
  %1915 = vmax.xlane.f32.xlu0 %v1914
  %v1916 = vpop.xlane.xlu0 %1915
  %v1917 = vsel %vm492, %v1911, -inf
  %1918 = vmax.xlane.f32.xlu0 %v1917
  %v1919 = vpop.xlane.xlu0 %1918
  %v1920 = vsub.f32 %v1908, %v1916
  %v1921 = vsub.f32 %v1911, %v1919
  %v1922 = vmul.f32 %v1920, 1.442695
  %v1923 = vpow.pop %v1922
  %v1924 = vmul.f32 %v1921, 1.442695
  %v1925 = vpow.pop %v1924
  %v1926 = vsel %vm492, %v1923, 0.0
  %1927 = vadd.xlane.f32.xlu0 %v1926
  %v1928 = vpop.xlane.xlu0 %1927
  %v1929 = vsel %vm492, %v1925, 0.0
  %1930 = vadd.xlane.f32.xlu0 %v1929
  %v1931 = vpop.xlane.xlu0 %1930
  %v1932 = vrcp.pop %v1928
  %v1933 = vrcp.pop %v1931
  %v1934 = vmul.f32 %v1923, %v1932
  %v1935 = vmul.f32 %v1925, %v1933
  %v1936 = vpack.c.bf16 %v1935, %v1934
  %v1937 = vpack.c.bf16 %v1851, %v1848
  %v1938 = vpack.c.bf16 %v1856, %v1856
  %v1940 = vsel %vm492, %v1936, 0
  %v1943 = vsel %vm536, %v1938, 0
  %1945 = vmatprep.subr.bf16.mxu0 0
  %1946 = vmatpush1.bf16.msra.mxu0 %v1937
  %1947 = vmatprep.subr.bf16.mxu0 0
  %1948 = vmatpush1.bf16.msra.mxu0 %v1943
  %1949 = vmatprep.subr.bf16.mxu0 0
  %1950 = vmatpush1.bf16.msra.mxu0 0
  %1951 = vmatprep.subr.bf16.mxu0 0
  %1952 = vmatpush1.bf16.msra.mxu0 0
  %1953 = vmatprep.subr.bf16.mxu0 0
  %1954 = vmatpush1.bf16.msra.mxu0 0
  %1955 = vmatprep.subr.bf16.mxu0 0
  %1956 = vmatpush1.bf16.msra.mxu0 0
  %1957 = vmatprep.subr.bf16.mxu0 0
  %1958 = vmatpush1.bf16.msra.mxu0 0
  %1959 = vmatprep.subr.bf16.mxu0 0
  %1960 = vmatpush1.bf16.msra.mxu0 0
  %1961 = vmatprep.subr.bf16.mxu0 0
  %1962 = vmatpush1.bf16.msra.mxu0 0
  %1963 = vmatprep.subr.bf16.mxu0 0
  %1964 = vmatpush1.bf16.msra.mxu0 0
  %1965 = vmatprep.subr.bf16.mxu0 0
  %1966 = vmatpush1.bf16.msra.mxu0 0
  %1967 = vmatprep.subr.bf16.mxu0 0
  %1968 = vmatpush1.bf16.msra.mxu0 0
  %1969 = vmatprep.subr.bf16.mxu0 0
  %1970 = vmatpush1.bf16.msra.mxu0 0
  %1971 = vmatprep.subr.bf16.mxu0 0
  %1972 = vmatpush1.bf16.msra.mxu0 0
  %1973 = vmatprep.subr.bf16.mxu0 0
  %1974 = vmatpush1.bf16.msra.mxu0 0
  %1975 = vmatprep.subr.bf16.mxu0 0
  %1976 = vmatpush1.bf16.msra.mxu0 0
  %1977 = vmatprep.mubr.bf16.mxu0 0
  %1978 = vmatmul.mubr.bf16.gmra.mrb[0].mxu0 %v1940
  %v1979 = vpop.f32.mrb[0].mxu0
  %v1980 = vadd.f32 0.0, %v1979
  %v1981 = vpop.f32.mrb[0].mxu0
  %v1982 = vpop.f32.mrb[0].mxu0
  %v1983 = vadd.f32 0.0, %v1982
  %v1984 = vpop.f32.mrb[0].mxu0
  %1985 = vdwg.mxu0
  %v1986 = vpack.c.bf16 %v1983, %v1980
  %v1987 = vlaneseq
  %v1988 = vshrl.u32 %v1987, 7
  %v1989 = vsub.s32 0, %v1988
  %v1990 = vrot.slane %v92, %v1989
  %v1999 = vunpack.c.l.b16 %v1632
  %v2000 = vunpack.c.l.b16 %v1633
  %v2001 = vunpack.c.l.b16 %v1634
  %v2002 = vunpack.c.l.b16 %v1635
  %v2003 = vunpack.c.l.b16 %v1636
  %v2004 = vunpack.c.l.b16 %v1637
  %v2005 = vunpack.c.l.b16 %v1638
  %v2006 = vunpack.c.l.b16 %v1639
  %v2007 = vpack.c.b16 %v2000, %v1999
  %v2008 = vpack.c.b16 %v2002, %v2001
  %v2009 = vpack.c.b16 %v2004, %v2003
  %v2010 = vpack.c.b16 %v2006, %v2005
  %v2016 = vsel %vm103, %v1986, 0
  %2018 = vmatprep.subr.bf16.mxu0 0
  %2019 = vmatpush1.bf16.msra.mxu0 %v2007
  %2020 = vmatprep.subr.bf16.mxu0 0
  %2021 = vmatpush1.bf16.msra.mxu0 %v2008
  %2022 = vmatprep.subr.bf16.mxu0 0
  %2023 = vmatpush1.bf16.msra.mxu0 %v2009
  %2024 = vmatprep.subr.bf16.mxu0 0
  %2025 = vmatpush1.bf16.msra.mxu0 %v2010
  %2026 = vmatprep.subr.bf16.mxu0 0
  %2027 = vmatpush1.bf16.msra.mxu0 0
  %2028 = vmatprep.subr.bf16.mxu0 0
  %2029 = vmatpush1.bf16.msra.mxu0 0
  %2030 = vmatprep.subr.bf16.mxu0 0
  %2031 = vmatpush1.bf16.msra.mxu0 0
  %2032 = vmatprep.subr.bf16.mxu0 0
  %2033 = vmatpush1.bf16.msra.mxu0 0
  %2034 = vmatprep.subr.bf16.mxu0 0
  %2035 = vmatpush1.bf16.msra.mxu0 0
  %2036 = vmatprep.subr.bf16.mxu0 0
  %2037 = vmatpush1.bf16.msra.mxu0 0
  %2038 = vmatprep.subr.bf16.mxu0 0
  %2039 = vmatpush1.bf16.msra.mxu0 0
  %2040 = vmatprep.subr.bf16.mxu0 0
  %2041 = vmatpush1.bf16.msra.mxu0 0
  %2042 = vmatprep.subr.bf16.mxu0 0
  %2043 = vmatpush1.bf16.msra.mxu0 0
  %2044 = vmatprep.subr.bf16.mxu0 0
  %2045 = vmatpush1.bf16.msra.mxu0 0
  %2046 = vmatprep.subr.bf16.mxu0 0
  %2047 = vmatpush1.bf16.msra.mxu0 0
  %2048 = vmatprep.subr.bf16.mxu0 0
  %2049 = vmatpush1.bf16.msra.mxu0 0
  %2050 = vmatprep.mubr.bf16.mxu0 0
  %2051 = vmatmul.mubr.bf16.gmra.mrb[0].mxu0 %v2016
  %v2052 = vpop.f32.mrb[0].mxu0
  %v2053 = vadd.f32 %v1990, %v2052
  %v2054 = vpop.f32.mrb[0].mxu0
  %v2055 = vpop.f32.mrb[0].mxu0
  %v2056 = vadd.f32 %v1990, %v2055
  %v2057 = vpop.f32.mrb[0].mxu0
  %2058 = vdwg.mxu0
  %v2059 = vadd.f32 %v98, %v2053
  %v2060 = vadd.f32 %v99, %v2056
  %v2062 = vrot.slane %v1542, 7
  %v2064 = vsel %vm118, %v114, %v2062
  %v2065 = vsel %vm103, %v100, 0.0
  %2066 = vadd.xlane.f32.xlu0 %v2065
  %v2067 = vpop.xlane.xlu0 %2066
  %v2068 = vmul.f32 %v2067, %v127
  %v2069 = vsub.f32 %v100, %v2068
  %v2070 = vmul.f32 %v2069, %v2069
  %v2071 = vsel %vm103, %v2070, 0.0
  %2072 = vadd.xlane.f32.xlu0 %v2071
  %v2073 = vpop.xlane.xlu0 %2072
  %v2074 = vmul.f32 %v2073, %v127
  %v2075 = vadd.f32 %v2074, 1e-06
  %v2076 = vrsqrt.pop %v2075
  %v2077 = vmul.f32 %v2069, %v2076
  %v2078 = vlaneseq
  %v2079 = vshrl.u32 %v2078, 7
  %v2080 = vsub.s32 1, %v2079
  %v2081 = vrot.slane %v92, %v2080
  %v2082 = vmul.f32 %v2077, %v2081
  %v2083 = vlaneseq
  %v2084 = vshrl.u32 %v2083, 7
  %v2085 = vsub.s32 2, %v2084
  %v2086 = vrot.slane %v92, %v2085
  %v2087 = vadd.f32 %v2082, %v2086
  %v2088 = vld [vmem:[%s23] sm:$0xf]
  %v2089 = vld [vmem:[%s23 + $0x4] sm:$0xf]
  %v2090 = vld [vmem:[%s23 + $0x8] sm:$0xf]
  %v2091 = vld [vmem:[%s23 + $0xc] sm:$0xf]
  %v2092 = vld [vmem:[%s23 + $0x10] sm:$0xf]
  %v2093 = vld [vmem:[%s23 + $0x14] sm:$0xf]
  %v2094 = vld [vmem:[%s23 + $0x18] sm:$0xf]
  %v2095 = vld [vmem:[%s23 + $0x1c] sm:$0xf]
  %v2096 = vld [vmem:[%s24] sm:$0xf]
  %v2097 = vld [vmem:[%s24 + $0x4] sm:$0xf]
  %v2098 = vld [vmem:[%s24 + $0x8] sm:$0xf]
  %v2099 = vld [vmem:[%s24 + $0xc] sm:$0xf]
  %v2100 = vld [vmem:[%s24 + $0x10] sm:$0xf]
  %v2101 = vld [vmem:[%s24 + $0x14] sm:$0xf]
  %v2102 = vld [vmem:[%s24 + $0x18] sm:$0xf]
  %v2103 = vld [vmem:[%s24 + $0x1c] sm:$0xf]
  %v2104 = vld [vmem:[%s25] sm:$0xf]
  %v2105 = vld [vmem:[%s25 + $0x4] sm:$0xf]
  %v2106 = vld [vmem:[%s25 + $0x8] sm:$0xf]
  %v2107 = vld [vmem:[%s25 + $0xc] sm:$0xf]
  %v2108 = vld [vmem:[%s25 + $0x10] sm:$0xf]
  %v2109 = vld [vmem:[%s25 + $0x14] sm:$0xf]
  %v2110 = vld [vmem:[%s25 + $0x18] sm:$0xf]
  %v2111 = vld [vmem:[%s25 + $0x1c] sm:$0xf]
  %v2112 = vld [vmem:[%s26] sm:$0xf]
  %v2113 = vld [vmem:[%s26 + $0x4] sm:$0xf]
  %v2114 = vld [vmem:[%s26 + $0x8] sm:$0xf]
  %v2115 = vld [vmem:[%s26 + $0xc] sm:$0xf]
  %v2116 = vld [vmem:[%s26 + $0x10] sm:$0xf]
  %v2117 = vld [vmem:[%s26 + $0x14] sm:$0xf]
  %v2118 = vld [vmem:[%s26 + $0x18] sm:$0xf]
  %v2119 = vld [vmem:[%s26 + $0x1c] sm:$0xf]
  %v2120 = vpack.c.bf16 %v2087, %v2087
  %v2129 = vunpack.c.l.b16 %v2088
  %v2130 = vunpack.c.l.b16 %v2089
  %v2131 = vunpack.c.l.b16 %v2090
  %v2132 = vunpack.c.l.b16 %v2091
  %v2133 = vunpack.c.l.b16 %v2092
  %v2134 = vunpack.c.l.b16 %v2093
  %v2135 = vunpack.c.l.b16 %v2094
  %v2136 = vunpack.c.l.b16 %v2095
  %v2137 = vpack.c.b16 %v2130, %v2129
  %v2138 = vpack.c.b16 %v2132, %v2131
  %v2139 = vpack.c.b16 %v2134, %v2133
  %v2140 = vpack.c.b16 %v2136, %v2135
  %v2146 = vsel %vm103, %v2120, 0
  %2148 = vmatprep.subr.bf16.mxu0 0
  %2149 = vmatpush1.bf16.msra.mxu0 %v2137
  %2150 = vmatprep.subr.bf16.mxu0 0
  %2151 = vmatpush1.bf16.msra.mxu0 %v2138
  %2152 = vmatprep.subr.bf16.mxu0 0
  %2153 = vmatpush1.bf16.msra.mxu0 %v2139
  %2154 = vmatprep.subr.bf16.mxu0 0
  %2155 = vmatpush1.bf16.msra.mxu0 %v2140
  %2156 = vmatprep.subr.bf16.mxu0 0
  %2157 = vmatpush1.bf16.msra.mxu0 0
  %2158 = vmatprep.subr.bf16.mxu0 0
  %2159 = vmatpush1.bf16.msra.mxu0 0
  %2160 = vmatprep.subr.bf16.mxu0 0
  %2161 = vmatpush1.bf16.msra.mxu0 0
  %2162 = vmatprep.subr.bf16.mxu0 0
  %2163 = vmatpush1.bf16.msra.mxu0 0
  %2164 = vmatprep.subr.bf16.mxu0 0
  %2165 = vmatpush1.bf16.msra.mxu0 0
  %2166 = vmatprep.subr.bf16.mxu0 0
  %2167 = vmatpush1.bf16.msra.mxu0 0
  %2168 = vmatprep.subr.bf16.mxu0 0
  %2169 = vmatpush1.bf16.msra.mxu0 0
  %2170 = vmatprep.subr.bf16.mxu0 0
  %2171 = vmatpush1.bf16.msra.mxu0 0
  %2172 = vmatprep.subr.bf16.mxu0 0
  %2173 = vmatpush1.bf16.msra.mxu0 0
  %2174 = vmatprep.subr.bf16.mxu0 0
  %2175 = vmatpush1.bf16.msra.mxu0 0
  %2176 = vmatprep.subr.bf16.mxu0 0
  %2177 = vmatpush1.bf16.msra.mxu0 0
  %2178 = vmatprep.subr.bf16.mxu0 0
  %2179 = vmatpush1.bf16.msra.mxu0 0
  %2180 = vmatprep.mubr.bf16.mxu0 0
  %2181 = vmatmul.mubr.bf16.gmra.mrb[0].mxu0 %v2146
  %v2182 = vpop.f32.mrb[0].mxu0
  %v2183 = vadd.f32 0.0, %v2182
  %v2184 = vpop.f32.mrb[0].mxu0
  %v2185 = vpop.f32.mrb[0].mxu0
  %v2186 = vpop.f32.mrb[0].mxu0
  %2187 = vdwg.mxu0
  %v2188 = vpack.c.bf16 %v2064, %v2064
  %v2197 = vunpack.c.l.b16 %v2096
  %v2198 = vunpack.c.l.b16 %v2097
  %v2199 = vunpack.c.l.b16 %v2098
  %v2200 = vunpack.c.l.b16 %v2099
  %v2201 = vunpack.c.l.b16 %v2100
  %v2202 = vunpack.c.l.b16 %v2101
  %v2203 = vunpack.c.l.b16 %v2102
  %v2204 = vunpack.c.l.b16 %v2103
  %v2205 = vpack.c.b16 %v2198, %v2197
  %v2206 = vpack.c.b16 %v2200, %v2199
  %v2207 = vpack.c.b16 %v2202, %v2201
  %v2208 = vpack.c.b16 %v2204, %v2203
  %v2214 = vsel %vm103, %v2188, 0
  %2216 = vmatprep.subr.bf16.mxu0 0
  %2217 = vmatpush1.bf16.msra.mxu0 %v2205
  %2218 = vmatprep.subr.bf16.mxu0 0
  %2219 = vmatpush1.bf16.msra.mxu0 %v2206
  %2220 = vmatprep.subr.bf16.mxu0 0
  %2221 = vmatpush1.bf16.msra.mxu0 %v2207
  %2222 = vmatprep.subr.bf16.mxu0 0
  %2223 = vmatpush1.bf16.msra.mxu0 %v2208
  %2224 = vmatprep.subr.bf16.mxu0 0
  %2225 = vmatpush1.bf16.msra.mxu0 0
  %2226 = vmatprep.subr.bf16.mxu0 0
  %2227 = vmatpush1.bf16.msra.mxu0 0
  %2228 = vmatprep.subr.bf16.mxu0 0
  %2229 = vmatpush1.bf16.msra.mxu0 0
  %2230 = vmatprep.subr.bf16.mxu0 0
  %2231 = vmatpush1.bf16.msra.mxu0 0
  %2232 = vmatprep.subr.bf16.mxu0 0
  %2233 = vmatpush1.bf16.msra.mxu0 0
  %2234 = vmatprep.subr.bf16.mxu0 0
  %2235 = vmatpush1.bf16.msra.mxu0 0
  %2236 = vmatprep.subr.bf16.mxu0 0
  %2237 = vmatpush1.bf16.msra.mxu0 0
  %2238 = vmatprep.subr.bf16.mxu0 0
  %2239 = vmatpush1.bf16.msra.mxu0 0
  %2240 = vmatprep.subr.bf16.mxu0 0
  %2241 = vmatpush1.bf16.msra.mxu0 0
  %2242 = vmatprep.subr.bf16.mxu0 0
  %2243 = vmatpush1.bf16.msra.mxu0 0
  %2244 = vmatprep.subr.bf16.mxu0 0
  %2245 = vmatpush1.bf16.msra.mxu0 0
  %2246 = vmatprep.subr.bf16.mxu0 0
  %2247 = vmatpush1.bf16.msra.mxu0 0
  %2248 = vmatprep.mubr.bf16.mxu0 0
  %2249 = vmatmul.mubr.bf16.gmra.mrb[0].mxu0 %v2214
  %v2250 = vpop.f32.mrb[0].mxu0
  %v2251 = vadd.f32 0.0, %v2250
  %v2252 = vpop.f32.mrb[0].mxu0
  %v2253 = vpop.f32.mrb[0].mxu0
  %v2254 = vpop.f32.mrb[0].mxu0
  %2255 = vdwg.mxu0
  %v2264 = vunpack.c.l.b16 %v2104
  %v2265 = vunpack.c.l.b16 %v2105
  %v2266 = vunpack.c.l.b16 %v2106
  %v2267 = vunpack.c.l.b16 %v2107
  %v2268 = vunpack.c.l.b16 %v2108
  %v2269 = vunpack.c.l.b16 %v2109
  %v2270 = vunpack.c.l.b16 %v2110
  %v2271 = vunpack.c.l.b16 %v2111
  %v2272 = vpack.c.b16 %v2265, %v2264
  %v2273 = vpack.c.b16 %v2267, %v2266
  %v2274 = vpack.c.b16 %v2269, %v2268
  %v2275 = vpack.c.b16 %v2271, %v2270
  %2280 = vmatprep.subr.bf16.mxu0 0
  %2281 = vmatpush1.bf16.msra.mxu0 %v2272
  %2282 = vmatprep.subr.bf16.mxu0 0
  %2283 = vmatpush1.bf16.msra.mxu0 %v2273
  %2284 = vmatprep.subr.bf16.mxu0 0
  %2285 = vmatpush1.bf16.msra.mxu0 %v2274
  %2286 = vmatprep.subr.bf16.mxu0 0
  %2287 = vmatpush1.bf16.msra.mxu0 %v2275
  %2288 = vmatprep.subr.bf16.mxu0 0
  %2289 = vmatpush1.bf16.msra.mxu0 0
  %2290 = vmatprep.subr.bf16.mxu0 0
  %2291 = vmatpush1.bf16.msra.mxu0 0
  %2292 = vmatprep.subr.bf16.mxu0 0
  %2293 = vmatpush1.bf16.msra.mxu0 0
  %2294 = vmatprep.subr.bf16.mxu0 0
  %2295 = vmatpush1.bf16.msra.mxu0 0
  %2296 = vmatprep.subr.bf16.mxu0 0
  %2297 = vmatpush1.bf16.msra.mxu0 0
  %2298 = vmatprep.subr.bf16.mxu0 0
  %2299 = vmatpush1.bf16.msra.mxu0 0
  %2300 = vmatprep.subr.bf16.mxu0 0
  %2301 = vmatpush1.bf16.msra.mxu0 0
  %2302 = vmatprep.subr.bf16.mxu0 0
  %2303 = vmatpush1.bf16.msra.mxu0 0
  %2304 = vmatprep.subr.bf16.mxu0 0
  %2305 = vmatpush1.bf16.msra.mxu0 0
  %2306 = vmatprep.subr.bf16.mxu0 0
  %2307 = vmatpush1.bf16.msra.mxu0 0
  %2308 = vmatprep.subr.bf16.mxu0 0
  %2309 = vmatpush1.bf16.msra.mxu0 0
  %2310 = vmatprep.subr.bf16.mxu0 0
  %2311 = vmatpush1.bf16.msra.mxu0 0
  %2312 = vmatprep.mubr.bf16.mxu0 0
  %2313 = vmatmul.mubr.bf16.gmra.mrb[0].mxu0 %v2214
  %v2314 = vpop.f32.mrb[0].mxu0
  %v2315 = vadd.f32 0.0, %v2314
  %v2316 = vpop.f32.mrb[0].mxu0
  %v2317 = vpop.f32.mrb[0].mxu0
  %v2318 = vpop.f32.mrb[0].mxu0
  %2319 = vdwg.mxu0
  %v2320 = vpack.c.bf16 %v2183, %v2183
  %v2321 = vpack.c.bf16 %v2251, %v2251
  %v2323 = vsel %vm103, %v2320, 0
  %v2326 = vsel %vm103, %v2321, 0
  %2328 = vmatprep.subr.bf16.mxu0 0
  %2329 = vmatpush1.bf16.xpose.msra.mxu0 %v2326
  %2330 = vmatprep.subr.bf16.mxu0 0
  %2331 = vmatpush1.bf16.xpose.msra.mxu0 0
  %2332 = vmatprep.subr.bf16.mxu0 0
  %2333 = vmatpush1.bf16.xpose.msra.mxu0 0
  %2334 = vmatprep.subr.bf16.mxu0 0
  %2335 = vmatpush1.bf16.xpose.msra.mxu0 0
  %2336 = vmatprep.subr.bf16.mxu0 0
  %2337 = vmatpush1.bf16.xpose.msra.mxu0 0
  %2338 = vmatprep.subr.bf16.mxu0 0
  %2339 = vmatpush1.bf16.xpose.msra.mxu0 0
  %2340 = vmatprep.subr.bf16.mxu0 0
  %2341 = vmatpush1.bf16.xpose.msra.mxu0 0
  %2342 = vmatprep.subr.bf16.mxu0 0
  %2343 = vmatpush1.bf16.xpose.msra.mxu0 0
  %2344 = vmatprep.subr.bf16.mxu0 0
  %2345 = vmatpush1.bf16.xpose.msra.mxu0 0
  %2346 = vmatprep.subr.bf16.mxu0 0
  %2347 = vmatpush1.bf16.xpose.msra.mxu0 0
  %2348 = vmatprep.subr.bf16.mxu0 0
  %2349 = vmatpush1.bf16.xpose.msra.mxu0 0
  %2350 = vmatprep.subr.bf16.mxu0 0
  %2351 = vmatpush1.bf16.xpose.msra.mxu0 0
  %2352 = vmatprep.subr.bf16.mxu0 0
  %2353 = vmatpush1.bf16.xpose.msra.mxu0 0
  %2354 = vmatprep.subr.bf16.mxu0 0
  %2355 = vmatpush1.bf16.xpose.msra.mxu0 0
  %2356 = vmatprep.subr.bf16.mxu0 0
  %2357 = vmatpush1.bf16.xpose.msra.mxu0 0
  %2358 = vmatprep.subr.bf16.mxu0 0
  %2359 = vmatpush1.bf16.xpose.msra.mxu0 0
  %2360 = vmatprep.mubr.bf16.mxu0 0
  %2361 = vmatmul.mubr.bf16.gmra.mrb[0].mxu0 %v2323
  %v2362 = vpop.f32.mrb[0].mxu0
  %v2363 = vadd.f32 0.0, %v2362
  %v2364 = vpop.f32.mrb[0].mxu0
  %v2365 = vpop.f32.mrb[0].mxu0
  %v2366 = vpop.f32.mrb[0].mxu0
  %2367 = vdwg.mxu0
  %vm2368 = vcmask 15360
  %v2369 = vsel %vm2368, %v2363, -inf
  %2370 = vmax.xlane.f32.xlu0 %v2369
  %v2371 = vpop.xlane.xlu0 %2370
  %v2372 = vsub.f32 %v2363, %v2371
  %v2373 = vmul.f32 %v2372, 1.442695
  %v2374 = vpow.pop %v2373
  %v2375 = vsel %vm2368, %v2374, 0.0
  %2376 = vadd.xlane.f32.xlu0 %v2375
  %v2377 = vpop.xlane.xlu0 %2376
  %v2378 = vrcp.pop %v2377
  %v2379 = vmul.f32 %v2374, %v2378
  %v2380 = vpack.c.bf16 %v2379, %v2379
  %v2381 = vpack.c.bf16 %v2315, %v2315
  %v2383 = vsel %vm2368, %v2380, 0
  %v2386 = vsel %vm118, %v2381, 0
  %2388 = vmatprep.subr.bf16.mxu0 0
  %2389 = vmatpush1.bf16.msra.mxu0 %v2386
  %2390 = vmatprep.subr.bf16.mxu0 0
  %2391 = vmatpush1.bf16.msra.mxu0 0
  %2392 = vmatprep.subr.bf16.mxu0 0
  %2393 = vmatpush1.bf16.msra.mxu0 0
  %2394 = vmatprep.subr.bf16.mxu0 0
  %2395 = vmatpush1.bf16.msra.mxu0 0
  %2396 = vmatprep.subr.bf16.mxu0 0
  %2397 = vmatpush1.bf16.msra.mxu0 0
  %2398 = vmatprep.subr.bf16.mxu0 0
  %2399 = vmatpush1.bf16.msra.mxu0 0
  %2400 = vmatprep.subr.bf16.mxu0 0
  %2401 = vmatpush1.bf16.msra.mxu0 0
  %2402 = vmatprep.subr.bf16.mxu0 0
  %2403 = vmatpush1.bf16.msra.mxu0 0
  %2404 = vmatprep.subr.bf16.mxu0 0
  %2405 = vmatpush1.bf16.msra.mxu0 0
  %2406 = vmatprep.subr.bf16.mxu0 0
  %2407 = vmatpush1.bf16.msra.mxu0 0
  %2408 = vmatprep.subr.bf16.mxu0 0
  %2409 = vmatpush1.bf16.msra.mxu0 0
  %2410 = vmatprep.subr.bf16.mxu0 0
  %2411 = vmatpush1.bf16.msra.mxu0 0
  %2412 = vmatprep.subr.bf16.mxu0 0
  %2413 = vmatpush1.bf16.msra.mxu0 0
  %2414 = vmatprep.subr.bf16.mxu0 0
  %2415 = vmatpush1.bf16.msra.mxu0 0
  %2416 = vmatprep.subr.bf16.mxu0 0
  %2417 = vmatpush1.bf16.msra.mxu0 0
  %2418 = vmatprep.subr.bf16.mxu0 0
  %2419 = vmatpush1.bf16.msra.mxu0 0
  %2420 = vmatprep.mubr.bf16.mxu0 0
  %2421 = vmatmul.mubr.bf16.gmra.mrb[0].mxu0 %v2383
  %v2422 = vpop.f32.mrb[0].mxu0
  %v2423 = vadd.f32 0.0, %v2422
  %v2424 = vpop.f32.mrb[0].mxu0
  %v2425 = vpop.f32.mrb[0].mxu0
  %v2426 = vpop.f32.mrb[0].mxu0
  %2427 = vdwg.mxu0
  %v2428 = vpack.c.bf16 %v2423, %v2423
  %v2429 = vlaneseq
  %v2430 = vshrl.u32 %v2429, 7
  %v2431 = vsub.s32 3, %v2430
  %v2432 = vrot.slane %v92, %v2431
  %v2441 = vunpack.c.l.b16 %v2112
  %v2442 = vunpack.c.l.b16 %v2113
  %v2443 = vunpack.c.l.b16 %v2114
  %v2444 = vunpack.c.l.b16 %v2115
  %v2445 = vunpack.c.l.b16 %v2116
  %v2446 = vunpack.c.l.b16 %v2117
  %v2447 = vunpack.c.l.b16 %v2118
  %v2448 = vunpack.c.l.b16 %v2119
  %v2449 = vpack.c.b16 %v2442, %v2441
  %v2450 = vpack.c.b16 %v2444, %v2443
  %v2451 = vpack.c.b16 %v2446, %v2445
  %v2452 = vpack.c.b16 %v2448, %v2447
  %v2458 = vsel %vm103, %v2428, 0
  %2460 = vmatprep.subr.bf16.mxu0 0
  %2461 = vmatpush1.bf16.msra.mxu0 %v2449
  %2462 = vmatprep.subr.bf16.mxu0 0
  %2463 = vmatpush1.bf16.msra.mxu0 %v2450
  %2464 = vmatprep.subr.bf16.mxu0 0
  %2465 = vmatpush1.bf16.msra.mxu0 %v2451
  %2466 = vmatprep.subr.bf16.mxu0 0
  %2467 = vmatpush1.bf16.msra.mxu0 %v2452
  %2468 = vmatprep.subr.bf16.mxu0 0
  %2469 = vmatpush1.bf16.msra.mxu0 0
  %2470 = vmatprep.subr.bf16.mxu0 0
  %2471 = vmatpush1.bf16.msra.mxu0 0
  %2472 = vmatprep.subr.bf16.mxu0 0
  %2473 = vmatpush1.bf16.msra.mxu0 0
  %2474 = vmatprep.subr.bf16.mxu0 0
  %2475 = vmatpush1.bf16.msra.mxu0 0
  %2476 = vmatprep.subr.bf16.mxu0 0
  %2477 = vmatpush1.bf16.msra.mxu0 0
  %2478 = vmatprep.subr.bf16.mxu0 0
  %2479 = vmatpush1.bf16.msra.mxu0 0
  %2480 = vmatprep.subr.bf16.mxu0 0
  %2481 = vmatpush1.bf16.msra.mxu0 0
  %2482 = vmatprep.subr.bf16.mxu0 0
  %2483 = vmatpush1.bf16.msra.mxu0 0
  %2484 = vmatprep.subr.bf16.mxu0 0
  %2485 = vmatpush1.bf16.msra.mxu0 0
  %2486 = vmatprep.subr.bf16.mxu0 0
  %2487 = vmatpush1.bf16.msra.mxu0 0
  %2488 = vmatprep.subr.bf16.mxu0 0
  %2489 = vmatpush1.bf16.msra.mxu0 0
  %2490 = vmatprep.subr.bf16.mxu0 0
  %2491 = vmatpush1.bf16.msra.mxu0 0
  %2492 = vmatprep.mubr.bf16.mxu0 0
  %2493 = vmatmul.mubr.bf16.gmra.mrb[0].mxu0 %v2458
  %v2494 = vpop.f32.mrb[0].mxu0
  %v2495 = vadd.f32 %v2432, %v2494
  %v2496 = vpop.f32.mrb[0].mxu0
  %v2497 = vpop.f32.mrb[0].mxu0
  %v2498 = vpop.f32.mrb[0].mxu0
  %2499 = vdwg.mxu0
  %v2500 = vadd.f32 %v100, %v2495
  %v2501 = vld [vmem:[%s27] sm:$0xf]
  %v2502 = vld [vmem:[%s27 + $0x4] sm:$0xf]
  %v2503 = vld [vmem:[%s27 + $0x8] sm:$0xf]
  %v2504 = vld [vmem:[%s27 + $0xc] sm:$0xf]
  %v2505 = vld [vmem:[%s27 + $0x10] sm:$0xf]
  %v2506 = vld [vmem:[%s27 + $0x14] sm:$0xf]
  %v2507 = vld [vmem:[%s27 + $0x18] sm:$0xf]
  %v2508 = vld [vmem:[%s27 + $0x1c] sm:$0xf]
  %v2509 = vpack.c.bf16 %v1541, %v1540
  %v2510 = vlaneseq
  %v2511 = vshrl.u32 %v2510, 7
  %v2512 = vsub.s32 1, %v2511
  %v2513 = vrot.slane %v93, %v2512
  %v2522 = vunpack.c.l.b16 %v2501
  %v2523 = vunpack.c.l.b16 %v2502
  %v2524 = vunpack.c.l.b16 %v2503
  %v2525 = vunpack.c.l.b16 %v2504
  %v2526 = vunpack.c.l.b16 %v2505
  %v2527 = vunpack.c.l.b16 %v2506
  %v2528 = vunpack.c.l.b16 %v2507
  %v2529 = vunpack.c.l.b16 %v2508
  %v2530 = vpack.c.b16 %v2523, %v2522
  %v2531 = vpack.c.b16 %v2525, %v2524
  %v2532 = vpack.c.b16 %v2527, %v2526
  %v2533 = vpack.c.b16 %v2529, %v2528
  %v2539 = vsel %vm103, %v2509, 0
  %2541 = vmatprep.subr.bf16.mxu0 0
  %2542 = vmatpush1.bf16.msra.mxu0 %v2530
  %2543 = vmatprep.subr.bf16.mxu0 0
  %2544 = vmatpush1.bf16.msra.mxu0 %v2531
  %2545 = vmatprep.subr.bf16.mxu0 0
  %2546 = vmatpush1.bf16.msra.mxu0 %v2532
  %2547 = vmatprep.subr.bf16.mxu0 0
  %2548 = vmatpush1.bf16.msra.mxu0 %v2533
  %2549 = vmatprep.subr.bf16.mxu0 0
  %2550 = vmatpush1.bf16.msra.mxu0 0
  %2551 = vmatprep.subr.bf16.mxu0 0
  %2552 = vmatpush1.bf16.msra.mxu0 0
  %2553 = vmatprep.subr.bf16.mxu0 0
  %2554 = vmatpush1.bf16.msra.mxu0 0
  %2555 = vmatprep.subr.bf16.mxu0 0
  %2556 = vmatpush1.bf16.msra.mxu0 0
  %2557 = vmatprep.subr.bf16.mxu0 0
  %2558 = vmatpush1.bf16.msra.mxu0 0
  %2559 = vmatprep.subr.bf16.mxu0 0
  %2560 = vmatpush1.bf16.msra.mxu0 0
  %2561 = vmatprep.subr.bf16.mxu0 0
  %2562 = vmatpush1.bf16.msra.mxu0 0
  %2563 = vmatprep.subr.bf16.mxu0 0
  %2564 = vmatpush1.bf16.msra.mxu0 0
  %2565 = vmatprep.subr.bf16.mxu0 0
  %2566 = vmatpush1.bf16.msra.mxu0 0
  %2567 = vmatprep.subr.bf16.mxu0 0
  %2568 = vmatpush1.bf16.msra.mxu0 0
  %2569 = vmatprep.subr.bf16.mxu0 0
  %2570 = vmatpush1.bf16.msra.mxu0 0
  %2571 = vmatprep.subr.bf16.mxu0 0
  %2572 = vmatpush1.bf16.msra.mxu0 0
  %2573 = vmatprep.mubr.bf16.mxu0 0
  %2574 = vmatmul.mubr.bf16.gmra.mrb[0].mxu0 %v2539
  %v2575 = vpop.f32.mrb[0].mxu0
  %v2576 = vadd.f32 %v2513, %v2575
  %v2577 = vpop.f32.mrb[0].mxu0
  %v2578 = vpop.f32.mrb[0].mxu0
  %v2579 = vadd.f32 %v2513, %v2578
  %v2580 = vpop.f32.mrb[0].mxu0
  %2581 = vdwg.mxu0
  %2582 = vst [vmem:[%s28] sm:$0xff] %v2576
  %2583 = vst [vmem:[%s28 + $0x8] sm:$0xff] %v2579
  %s2584 = scalar_lea.vmem %s0, 16
  %v2585 = vld [vmem:[%s2584] sm:$0xff]
  %v2586 = vld [vmem:[%s2584 + $0x8] sm:$0xff]
  %v2587 = vsel %vm103, %v2585, 0.0
  %v2588 = vsel %vm103, %v2586, 0.0
  %v2589 = vadd.f32 %v2587, %v2588
  %v2590 = vrot.slane %v2589, 4
  %v2591 = vadd.f32 %v2589, %v2590
  %v2592 = vrot.slane %v2591, 2
  %v2593 = vadd.f32 %v2591, %v2592
  %v2594 = vrot.slane %v2593, 1
  %v2595 = vadd.f32 %v2593, %v2594
  %v2596 = vmul.f32 %v2595, %v113
  %v2597 = vld [vmem:[%s5] sm:$0xf]
  %v2598 = vld [vmem:[%s5 + $0x4] sm:$0xf]
  %v2599 = vld [vmem:[%s5 + $0x8] sm:$0xf]
  %v2600 = vld [vmem:[%s5 + $0xc] sm:$0xf]
  %v2601 = vld [vmem:[%s5 + $0x10] sm:$0xf]
  %v2602 = vld [vmem:[%s5 + $0x14] sm:$0xf]
  %v2603 = vld [vmem:[%s5 + $0x18] sm:$0xf]
  %v2604 = vld [vmem:[%s5 + $0x1c] sm:$0xf]
  %v2605 = vld [vmem:[%s6] sm:$0xf]
  %v2606 = vld [vmem:[%s6 + $0x4] sm:$0xf]
  %v2607 = vld [vmem:[%s6 + $0x8] sm:$0xf]
  %v2608 = vld [vmem:[%s6 + $0xc] sm:$0xf]
  %v2609 = vld [vmem:[%s6 + $0x10] sm:$0xf]
  %v2610 = vld [vmem:[%s6 + $0x14] sm:$0xf]
  %v2611 = vld [vmem:[%s6 + $0x18] sm:$0xf]
  %v2612 = vld [vmem:[%s6 + $0x1c] sm:$0xf]
  %v2613 = vld [vmem:[%s7] sm:$0xf]
  %v2614 = vld [vmem:[%s7 + $0x4] sm:$0xf]
  %v2615 = vld [vmem:[%s7 + $0x8] sm:$0xf]
  %v2616 = vld [vmem:[%s7 + $0xc] sm:$0xf]
  %v2617 = vld [vmem:[%s7 + $0x10] sm:$0xf]
  %v2618 = vld [vmem:[%s7 + $0x14] sm:$0xf]
  %v2619 = vld [vmem:[%s7 + $0x18] sm:$0xf]
  %v2620 = vld [vmem:[%s7 + $0x1c] sm:$0xf]
  %v2621 = vld [vmem:[%s8] sm:$0xf]
  %v2622 = vld [vmem:[%s8 + $0x4] sm:$0xf]
  %v2623 = vld [vmem:[%s8 + $0x8] sm:$0xf]
  %v2624 = vld [vmem:[%s8 + $0xc] sm:$0xf]
  %v2625 = vld [vmem:[%s8 + $0x10] sm:$0xf]
  %v2626 = vld [vmem:[%s8 + $0x14] sm:$0xf]
  %v2627 = vld [vmem:[%s8 + $0x18] sm:$0xf]
  %v2628 = vld [vmem:[%s8 + $0x1c] sm:$0xf]
  %v2629 = vpack.c.bf16 %v2596, %v2596
  %v2638 = vunpack.c.l.b16 %v2597
  %v2639 = vunpack.c.l.b16 %v2598
  %v2640 = vunpack.c.l.b16 %v2599
  %v2641 = vunpack.c.l.b16 %v2600
  %v2642 = vunpack.c.l.b16 %v2601
  %v2643 = vunpack.c.l.b16 %v2602
  %v2644 = vunpack.c.l.b16 %v2603
  %v2645 = vunpack.c.l.b16 %v2604
  %v2646 = vpack.c.b16 %v2639, %v2638
  %v2647 = vpack.c.b16 %v2641, %v2640
  %v2648 = vpack.c.b16 %v2643, %v2642
  %v2649 = vpack.c.b16 %v2645, %v2644
  %v2655 = vsel %vm103, %v2629, 0
  %2657 = vmatprep.subr.bf16.mxu0 0
  %2658 = vmatpush1.bf16.msra.mxu0 %v2646
  %2659 = vmatprep.subr.bf16.mxu0 0
  %2660 = vmatpush1.bf16.msra.mxu0 %v2647
  %2661 = vmatprep.subr.bf16.mxu0 0
  %2662 = vmatpush1.bf16.msra.mxu0 %v2648
  %2663 = vmatprep.subr.bf16.mxu0 0
  %2664 = vmatpush1.bf16.msra.mxu0 %v2649
  %2665 = vmatprep.subr.bf16.mxu0 0
  %2666 = vmatpush1.bf16.msra.mxu0 0
  %2667 = vmatprep.subr.bf16.mxu0 0
  %2668 = vmatpush1.bf16.msra.mxu0 0
  %2669 = vmatprep.subr.bf16.mxu0 0
  %2670 = vmatpush1.bf16.msra.mxu0 0
  %2671 = vmatprep.subr.bf16.mxu0 0
  %2672 = vmatpush1.bf16.msra.mxu0 0
  %2673 = vmatprep.subr.bf16.mxu0 0
  %2674 = vmatpush1.bf16.msra.mxu0 0
  %2675 = vmatprep.subr.bf16.mxu0 0
  %2676 = vmatpush1.bf16.msra.mxu0 0
  %2677 = vmatprep.subr.bf16.mxu0 0
  %2678 = vmatpush1.bf16.msra.mxu0 0
  %2679 = vmatprep.subr.bf16.mxu0 0
  %2680 = vmatpush1.bf16.msra.mxu0 0
  %2681 = vmatprep.subr.bf16.mxu0 0
  %2682 = vmatpush1.bf16.msra.mxu0 0
  %2683 = vmatprep.subr.bf16.mxu0 0
  %2684 = vmatpush1.bf16.msra.mxu0 0
  %2685 = vmatprep.subr.bf16.mxu0 0
  %2686 = vmatpush1.bf16.msra.mxu0 0
  %2687 = vmatprep.subr.bf16.mxu0 0
  %2688 = vmatpush1.bf16.msra.mxu0 0
  %2689 = vmatprep.mubr.bf16.mxu0 0
  %2690 = vmatmul.mubr.bf16.gmra.mrb[0].mxu0 %v2655
  %v2691 = vpop.f32.mrb[0].mxu0
  %v2692 = vadd.f32 0.0, %v2691
  %v2693 = vpop.f32.mrb[0].mxu0
  %v2694 = vpop.f32.mrb[0].mxu0
  %v2695 = vpop.f32.mrb[0].mxu0
  %2696 = vdwg.mxu0
  %v2697 = vpack.c.bf16 %v2500, %v2500
  %v2706 = vunpack.c.l.b16 %v2605
  %v2707 = vunpack.c.l.b16 %v2606
  %v2708 = vunpack.c.l.b16 %v2607
  %v2709 = vunpack.c.l.b16 %v2608
  %v2710 = vunpack.c.l.b16 %v2609
  %v2711 = vunpack.c.l.b16 %v2610
  %v2712 = vunpack.c.l.b16 %v2611
  %v2713 = vunpack.c.l.b16 %v2612
  %v2714 = vpack.c.b16 %v2707, %v2706
  %v2715 = vpack.c.b16 %v2709, %v2708
  %v2716 = vpack.c.b16 %v2711, %v2710
  %v2717 = vpack.c.b16 %v2713, %v2712
  %v2723 = vsel %vm103, %v2697, 0
  %2725 = vmatprep.subr.bf16.mxu0 0
  %2726 = vmatpush1.bf16.msra.mxu0 %v2714
  %2727 = vmatprep.subr.bf16.mxu0 0
  %2728 = vmatpush1.bf16.msra.mxu0 %v2715
  %2729 = vmatprep.subr.bf16.mxu0 0
  %2730 = vmatpush1.bf16.msra.mxu0 %v2716
  %2731 = vmatprep.subr.bf16.mxu0 0
  %2732 = vmatpush1.bf16.msra.mxu0 %v2717
  %2733 = vmatprep.subr.bf16.mxu0 0
  %2734 = vmatpush1.bf16.msra.mxu0 0
  %2735 = vmatprep.subr.bf16.mxu0 0
  %2736 = vmatpush1.bf16.msra.mxu0 0
  %2737 = vmatprep.subr.bf16.mxu0 0
  %2738 = vmatpush1.bf16.msra.mxu0 0
  %2739 = vmatprep.subr.bf16.mxu0 0
  %2740 = vmatpush1.bf16.msra.mxu0 0
  %2741 = vmatprep.subr.bf16.mxu0 0
  %2742 = vmatpush1.bf16.msra.mxu0 0
  %2743 = vmatprep.subr.bf16.mxu0 0
  %2744 = vmatpush1.bf16.msra.mxu0 0
  %2745 = vmatprep.subr.bf16.mxu0 0
  %2746 = vmatpush1.bf16.msra.mxu0 0
  %2747 = vmatprep.subr.bf16.mxu0 0
  %2748 = vmatpush1.bf16.msra.mxu0 0
  %2749 = vmatprep.subr.bf16.mxu0 0
  %2750 = vmatpush1.bf16.msra.mxu0 0
  %2751 = vmatprep.subr.bf16.mxu0 0
  %2752 = vmatpush1.bf16.msra.mxu0 0
  %2753 = vmatprep.subr.bf16.mxu0 0
  %2754 = vmatpush1.bf16.msra.mxu0 0
  %2755 = vmatprep.subr.bf16.mxu0 0
  %2756 = vmatpush1.bf16.msra.mxu0 0
  %2757 = vmatprep.mubr.bf16.mxu0 0
  %2758 = vmatmul.mubr.bf16.gmra.mrb[0].mxu0 %v2723
  %v2759 = vpop.f32.mrb[0].mxu0
  %v2760 = vadd.f32 0.0, %v2759
  %v2761 = vpop.f32.mrb[0].mxu0
  %v2762 = vpop.f32.mrb[0].mxu0
  %v2763 = vpop.f32.mrb[0].mxu0
  %2764 = vdwg.mxu0
  %v2773 = vunpack.c.l.b16 %v2613
  %v2774 = vunpack.c.l.b16 %v2614
  %v2775 = vunpack.c.l.b16 %v2615
  %v2776 = vunpack.c.l.b16 %v2616
  %v2777 = vunpack.c.l.b16 %v2617
  %v2778 = vunpack.c.l.b16 %v2618
  %v2779 = vunpack.c.l.b16 %v2619
  %v2780 = vunpack.c.l.b16 %v2620
  %v2781 = vpack.c.b16 %v2774, %v2773
  %v2782 = vpack.c.b16 %v2776, %v2775
  %v2783 = vpack.c.b16 %v2778, %v2777
  %v2784 = vpack.c.b16 %v2780, %v2779
  %2789 = vmatprep.subr.bf16.mxu0 0
  %2790 = vmatpush1.bf16.msra.mxu0 %v2781
  %2791 = vmatprep.subr.bf16.mxu0 0
  %2792 = vmatpush1.bf16.msra.mxu0 %v2782
  %2793 = vmatprep.subr.bf16.mxu0 0
  %2794 = vmatpush1.bf16.msra.mxu0 %v2783
  %2795 = vmatprep.subr.bf16.mxu0 0
  %2796 = vmatpush1.bf16.msra.mxu0 %v2784
  %2797 = vmatprep.subr.bf16.mxu0 0
  %2798 = vmatpush1.bf16.msra.mxu0 0
  %2799 = vmatprep.subr.bf16.mxu0 0
  %2800 = vmatpush1.bf16.msra.mxu0 0
  %2801 = vmatprep.subr.bf16.mxu0 0
  %2802 = vmatpush1.bf16.msra.mxu0 0
  %2803 = vmatprep.subr.bf16.mxu0 0
  %2804 = vmatpush1.bf16.msra.mxu0 0
  %2805 = vmatprep.subr.bf16.mxu0 0
  %2806 = vmatpush1.bf16.msra.mxu0 0
  %2807 = vmatprep.subr.bf16.mxu0 0
  %2808 = vmatpush1.bf16.msra.mxu0 0
  %2809 = vmatprep.subr.bf16.mxu0 0
  %2810 = vmatpush1.bf16.msra.mxu0 0
  %2811 = vmatprep.subr.bf16.mxu0 0
  %2812 = vmatpush1.bf16.msra.mxu0 0
  %2813 = vmatprep.subr.bf16.mxu0 0
  %2814 = vmatpush1.bf16.msra.mxu0 0
  %2815 = vmatprep.subr.bf16.mxu0 0
  %2816 = vmatpush1.bf16.msra.mxu0 0
  %2817 = vmatprep.subr.bf16.mxu0 0
  %2818 = vmatpush1.bf16.msra.mxu0 0
  %2819 = vmatprep.subr.bf16.mxu0 0
  %2820 = vmatpush1.bf16.msra.mxu0 0
  %2821 = vmatprep.mubr.bf16.mxu0 0
  %2822 = vmatmul.mubr.bf16.gmra.mrb[0].mxu0 %v2723
  %v2823 = vpop.f32.mrb[0].mxu0
  %v2824 = vadd.f32 0.0, %v2823
  %v2825 = vpop.f32.mrb[0].mxu0
  %v2826 = vpop.f32.mrb[0].mxu0
  %v2827 = vpop.f32.mrb[0].mxu0
  %2828 = vdwg.mxu0
  %v2829 = vpack.c.bf16 %v2692, %v2692
  %v2830 = vpack.c.bf16 %v2760, %v2760
  %v2832 = vsel %vm103, %v2829, 0
  %v2835 = vsel %vm103, %v2830, 0
  %2837 = vmatprep.subr.bf16.mxu0 0
  %2838 = vmatpush1.bf16.xpose.msra.mxu0 %v2835
  %2839 = vmatprep.subr.bf16.mxu0 0
  %2840 = vmatpush1.bf16.xpose.msra.mxu0 0
  %2841 = vmatprep.subr.bf16.mxu0 0
  %2842 = vmatpush1.bf16.xpose.msra.mxu0 0
  %2843 = vmatprep.subr.bf16.mxu0 0
  %2844 = vmatpush1.bf16.xpose.msra.mxu0 0
  %2845 = vmatprep.subr.bf16.mxu0 0
  %2846 = vmatpush1.bf16.xpose.msra.mxu0 0
  %2847 = vmatprep.subr.bf16.mxu0 0
  %2848 = vmatpush1.bf16.xpose.msra.mxu0 0
  %2849 = vmatprep.subr.bf16.mxu0 0
  %2850 = vmatpush1.bf16.xpose.msra.mxu0 0
  %2851 = vmatprep.subr.bf16.mxu0 0
  %2852 = vmatpush1.bf16.xpose.msra.mxu0 0
  %2853 = vmatprep.subr.bf16.mxu0 0
  %2854 = vmatpush1.bf16.xpose.msra.mxu0 0
  %2855 = vmatprep.subr.bf16.mxu0 0
  %2856 = vmatpush1.bf16.xpose.msra.mxu0 0
  %2857 = vmatprep.subr.bf16.mxu0 0
  %2858 = vmatpush1.bf16.xpose.msra.mxu0 0
  %2859 = vmatprep.subr.bf16.mxu0 0
  %2860 = vmatpush1.bf16.xpose.msra.mxu0 0
  %2861 = vmatprep.subr.bf16.mxu0 0
  %2862 = vmatpush1.bf16.xpose.msra.mxu0 0
  %2863 = vmatprep.subr.bf16.mxu0 0
  %2864 = vmatpush1.bf16.xpose.msra.mxu0 0
  %2865 = vmatprep.subr.bf16.mxu0 0
  %2866 = vmatpush1.bf16.xpose.msra.mxu0 0
  %2867 = vmatprep.subr.bf16.mxu0 0
  %2868 = vmatpush1.bf16.xpose.msra.mxu0 0
  %2869 = vmatprep.mubr.bf16.mxu0 0
  %2870 = vmatmul.mubr.bf16.gmra.mrb[0].mxu0 %v2832
  %v2871 = vpop.f32.mrb[0].mxu0
  %v2872 = vadd.f32 0.0, %v2871
  %v2873 = vpop.f32.mrb[0].mxu0
  %v2874 = vpop.f32.mrb[0].mxu0
  %v2875 = vpop.f32.mrb[0].mxu0
  %2876 = vdwg.mxu0
  %vm2877 = vcmask 57344
  %v2878 = vsel %vm2877, %v2872, -inf
  %2879 = vmax.xlane.f32.xlu0 %v2878
  %v2880 = vpop.xlane.xlu0 %2879
  %v2881 = vsub.f32 %v2872, %v2880
  %v2882 = vmul.f32 %v2881, 1.442695
  %v2883 = vpow.pop %v2882
  %v2884 = vsel %vm2877, %v2883, 0.0
  %2885 = vadd.xlane.f32.xlu0 %v2884
  %v2886 = vpop.xlane.xlu0 %2885
  %v2887 = vrcp.pop %v2886
  %v2888 = vmul.f32 %v2883, %v2887
  %v2889 = vpack.c.bf16 %v2888, %v2888
  %v2890 = vpack.c.bf16 %v2824, %v2824
  %vm2891 = vcmask 64512
  %v2893 = vsel %vm2891, %v2889, 0
  %v2896 = vsel %vm536, %v2890, 0
  %2898 = vmatprep.subr.bf16.mxu0 0
  %2899 = vmatpush1.bf16.msra.mxu0 %v2896
  %2900 = vmatprep.subr.bf16.mxu0 0
  %2901 = vmatpush1.bf16.msra.mxu0 0
  %2902 = vmatprep.subr.bf16.mxu0 0
  %2903 = vmatpush1.bf16.msra.mxu0 0
  %2904 = vmatprep.subr.bf16.mxu0 0
  %2905 = vmatpush1.bf16.msra.mxu0 0
  %2906 = vmatprep.subr.bf16.mxu0 0
  %2907 = vmatpush1.bf16.msra.mxu0 0
  %2908 = vmatprep.subr.bf16.mxu0 0
  %2909 = vmatpush1.bf16.msra.mxu0 0
  %2910 = vmatprep.subr.bf16.mxu0 0
  %2911 = vmatpush1.bf16.msra.mxu0 0
  %2912 = vmatprep.subr.bf16.mxu0 0
  %2913 = vmatpush1.bf16.msra.mxu0 0
  %2914 = vmatprep.subr.bf16.mxu0 0
  %2915 = vmatpush1.bf16.msra.mxu0 0
  %2916 = vmatprep.subr.bf16.mxu0 0
  %2917 = vmatpush1.bf16.msra.mxu0 0
  %2918 = vmatprep.subr.bf16.mxu0 0
  %2919 = vmatpush1.bf16.msra.mxu0 0
  %2920 = vmatprep.subr.bf16.mxu0 0
  %2921 = vmatpush1.bf16.msra.mxu0 0
  %2922 = vmatprep.subr.bf16.mxu0 0
  %2923 = vmatpush1.bf16.msra.mxu0 0
  %2924 = vmatprep.subr.bf16.mxu0 0
  %2925 = vmatpush1.bf16.msra.mxu0 0
  %2926 = vmatprep.subr.bf16.mxu0 0
  %2927 = vmatpush1.bf16.msra.mxu0 0
  %2928 = vmatprep.subr.bf16.mxu0 0
  %2929 = vmatpush1.bf16.msra.mxu0 0
  %2930 = vmatprep.mubr.bf16.mxu0 0
  %2931 = vmatmul.mubr.bf16.gmra.mrb[0].mxu0 %v2893
  %v2932 = vpop.f32.mrb[0].mxu0
  %v2933 = vadd.f32 0.0, %v2932
  %v2934 = vpop.f32.mrb[0].mxu0
  %v2935 = vpop.f32.mrb[0].mxu0
  %v2936 = vpop.f32.mrb[0].mxu0
  %2937 = vdwg.mxu0
  %v2938 = vpack.c.bf16 %v2933, %v2933
  %v2947 = vunpack.c.l.b16 %v2621
  %v2948 = vunpack.c.l.b16 %v2622
  %v2949 = vunpack.c.l.b16 %v2623
  %v2950 = vunpack.c.l.b16 %v2624
  %v2951 = vunpack.c.l.b16 %v2625
  %v2952 = vunpack.c.l.b16 %v2626
  %v2953 = vunpack.c.l.b16 %v2627
  %v2954 = vunpack.c.l.b16 %v2628
  %v2955 = vpack.c.b16 %v2948, %v2947
  %v2956 = vpack.c.b16 %v2950, %v2949
  %v2957 = vpack.c.b16 %v2952, %v2951
  %v2958 = vpack.c.b16 %v2954, %v2953
  %v2964 = vsel %vm103, %v2938, 0
  %2966 = vmatprep.subr.bf16.mxu0 0
  %2967 = vmatpush1.bf16.msra.mxu0 %v2955
  %2968 = vmatprep.subr.bf16.mxu0 0
  %2969 = vmatpush1.bf16.msra.mxu0 %v2956
  %2970 = vmatprep.subr.bf16.mxu0 0
  %2971 = vmatpush1.bf16.msra.mxu0 %v2957
  %2972 = vmatprep.subr.bf16.mxu0 0
  %2973 = vmatpush1.bf16.msra.mxu0 %v2958
  %2974 = vmatprep.subr.bf16.mxu0 0
  %2975 = vmatpush1.bf16.msra.mxu0 0
  %2976 = vmatprep.subr.bf16.mxu0 0
  %2977 = vmatpush1.bf16.msra.mxu0 0
  %2978 = vmatprep.subr.bf16.mxu0 0
  %2979 = vmatpush1.bf16.msra.mxu0 0
  %2980 = vmatprep.subr.bf16.mxu0 0
  %2981 = vmatpush1.bf16.msra.mxu0 0
  %2982 = vmatprep.subr.bf16.mxu0 0
  %2983 = vmatpush1.bf16.msra.mxu0 0
  %2984 = vmatprep.subr.bf16.mxu0 0
  %2985 = vmatpush1.bf16.msra.mxu0 0
  %2986 = vmatprep.subr.bf16.mxu0 0
  %2987 = vmatpush1.bf16.msra.mxu0 0
  %2988 = vmatprep.subr.bf16.mxu0 0
  %2989 = vmatpush1.bf16.msra.mxu0 0
  %2990 = vmatprep.subr.bf16.mxu0 0
  %2991 = vmatpush1.bf16.msra.mxu0 0
  %2992 = vmatprep.subr.bf16.mxu0 0
  %2993 = vmatpush1.bf16.msra.mxu0 0
  %2994 = vmatprep.subr.bf16.mxu0 0
  %2995 = vmatpush1.bf16.msra.mxu0 0
  %2996 = vmatprep.subr.bf16.mxu0 0
  %2997 = vmatpush1.bf16.msra.mxu0 0
  %2998 = vmatprep.mubr.bf16.mxu0 0
  %2999 = vmatmul.mubr.bf16.gmra.mrb[0].mxu0 %v2964
  %v3000 = vpop.f32.mrb[0].mxu0
  %v3001 = vadd.f32 %v90, %v3000
  %v3002 = vpop.f32.mrb[0].mxu0
  %v3003 = vpop.f32.mrb[0].mxu0
  %v3004 = vpop.f32.mrb[0].mxu0
  %3005 = vdwg.mxu0
  %v3006 = vsel %vm118, %v3001, 0.0
  %3007 = vadd.xlane.f32.xlu0 %v2587
  %v3008 = vpop.xlane.xlu0 %3007
  %3009 = vadd.xlane.f32.xlu0 %v2588
  %v3010 = vpop.xlane.xlu0 %3009
  %v3011 = vsel %vm103, %v3006, 0.0
  %3012 = vadd.xlane.f32.xlu0 %v3011
  %v3013 = vpop.xlane.xlu0 %3012
  %v3014 = vmul.f32 %v3008, %v127
  %v3015 = vmul.f32 %v3010, %v127
  %v3016 = vmul.f32 %v3013, %v127
  %v3017 = vsub.f32 %v2585, %v3014
  %v3018 = vsub.f32 %v2586, %v3015
  %v3019 = vsub.f32 %v3006, %v3016
  %v3020 = vmul.f32 %v3017, %v3017
  %v3021 = vmul.f32 %v3018, %v3018
  %v3022 = vmul.f32 %v3019, %v3019
  %v3023 = vsel %vm103, %v3020, 0.0
  %3024 = vadd.xlane.f32.xlu0 %v3023
  %v3025 = vpop.xlane.xlu0 %3024
  %v3026 = vsel %vm103, %v3021, 0.0
  %3027 = vadd.xlane.f32.xlu0 %v3026
  %v3028 = vpop.xlane.xlu0 %3027
  %v3029 = vsel %vm103, %v3022, 0.0
  %3030 = vadd.xlane.f32.xlu0 %v3029
  %v3031 = vpop.xlane.xlu0 %3030
  %v3032 = vmul.f32 %v3025, %v127
  %v3033 = vmul.f32 %v3028, %v127
  %v3034 = vmul.f32 %v3031, %v127
  %v3035 = vadd.f32 %v3032, 1e-06
  %v3036 = vadd.f32 %v3033, 1e-06
  %v3037 = vadd.f32 %v3034, 1e-06
  %v3038 = vrsqrt.pop %v3035
  %v3039 = vrsqrt.pop %v3036
  %v3040 = vrsqrt.pop %v3037
  %v3041 = vmul.f32 %v3017, %v3038
  %v3042 = vmul.f32 %v3018, %v3039
  %v3043 = vmul.f32 %v3019, %v3040
  %v3044 = vmul.f32 %v3041, %v161
  %v3045 = vmul.f32 %v3042, %v161
  %v3046 = vmul.f32 %v3043, %v161
  %v3047 = vadd.f32 %v3044, %v168
  %v3048 = vadd.f32 %v3045, %v168
  %v3049 = vadd.f32 %v3046, %v168
  %v3050 = vld [vmem:[%s9] sm:$0xf]
  %v3051 = vld [vmem:[%s9 + $0x4] sm:$0xf]
  %v3052 = vld [vmem:[%s9 + $0x8] sm:$0xf]
  %v3053 = vld [vmem:[%s9 + $0xc] sm:$0xf]
  %v3054 = vld [vmem:[%s9 + $0x10] sm:$0xf]
  %v3055 = vld [vmem:[%s9 + $0x14] sm:$0xf]
  %v3056 = vld [vmem:[%s9 + $0x18] sm:$0xf]
  %v3057 = vld [vmem:[%s9 + $0x1c] sm:$0xf]
  %v3058 = vld [vmem:[%s10] sm:$0xf]
  %v3059 = vld [vmem:[%s10 + $0x4] sm:$0xf]
  %v3060 = vld [vmem:[%s10 + $0x8] sm:$0xf]
  %v3061 = vld [vmem:[%s10 + $0xc] sm:$0xf]
  %v3062 = vld [vmem:[%s10 + $0x10] sm:$0xf]
  %v3063 = vld [vmem:[%s10 + $0x14] sm:$0xf]
  %v3064 = vld [vmem:[%s10 + $0x18] sm:$0xf]
  %v3065 = vld [vmem:[%s10 + $0x1c] sm:$0xf]
  %v3066 = vld [vmem:[%s11] sm:$0xf]
  %v3067 = vld [vmem:[%s11 + $0x4] sm:$0xf]
  %v3068 = vld [vmem:[%s11 + $0x8] sm:$0xf]
  %v3069 = vld [vmem:[%s11 + $0xc] sm:$0xf]
  %v3070 = vld [vmem:[%s11 + $0x10] sm:$0xf]
  %v3071 = vld [vmem:[%s11 + $0x14] sm:$0xf]
  %v3072 = vld [vmem:[%s11 + $0x18] sm:$0xf]
  %v3073 = vld [vmem:[%s11 + $0x1c] sm:$0xf]
  %v3074 = vld [vmem:[%s12] sm:$0xf]
  %v3075 = vld [vmem:[%s12 + $0x4] sm:$0xf]
  %v3076 = vld [vmem:[%s12 + $0x8] sm:$0xf]
  %v3077 = vld [vmem:[%s12 + $0xc] sm:$0xf]
  %v3078 = vld [vmem:[%s12 + $0x10] sm:$0xf]
  %v3079 = vld [vmem:[%s12 + $0x14] sm:$0xf]
  %v3080 = vld [vmem:[%s12 + $0x18] sm:$0xf]
  %v3081 = vld [vmem:[%s12 + $0x1c] sm:$0xf]
  %v3082 = vpack.c.bf16 %v3048, %v3047
  %v3083 = vpack.c.bf16 %v3049, %v3049
  %v3092 = vunpack.c.l.b16 %v3050
  %v3093 = vunpack.c.l.b16 %v3051
  %v3094 = vunpack.c.l.b16 %v3052
  %v3095 = vunpack.c.l.b16 %v3053
  %v3096 = vunpack.c.l.b16 %v3054
  %v3097 = vunpack.c.l.b16 %v3055
  %v3098 = vunpack.c.l.b16 %v3056
  %v3099 = vunpack.c.l.b16 %v3057
  %v3100 = vpack.c.b16 %v3093, %v3092
  %v3101 = vpack.c.b16 %v3095, %v3094
  %v3102 = vpack.c.b16 %v3097, %v3096
  %v3103 = vpack.c.b16 %v3099, %v3098
  %v3109 = vsel %vm103, %v3082, 0
  %v3112 = vsel %vm103, %v3083, 0
  %3114 = vmatprep.subr.bf16.mxu0 0
  %3115 = vmatpush1.bf16.msra.mxu0 %v3100
  %3116 = vmatprep.subr.bf16.mxu0 0
  %3117 = vmatpush1.bf16.msra.mxu0 %v3101
  %3118 = vmatprep.subr.bf16.mxu0 0
  %3119 = vmatpush1.bf16.msra.mxu0 %v3102
  %3120 = vmatprep.subr.bf16.mxu0 0
  %3121 = vmatpush1.bf16.msra.mxu0 %v3103
  %3122 = vmatprep.subr.bf16.mxu0 0
  %3123 = vmatpush1.bf16.msra.mxu0 0
  %3124 = vmatprep.subr.bf16.mxu0 0
  %3125 = vmatpush1.bf16.msra.mxu0 0
  %3126 = vmatprep.subr.bf16.mxu0 0
  %3127 = vmatpush1.bf16.msra.mxu0 0
  %3128 = vmatprep.subr.bf16.mxu0 0
  %3129 = vmatpush1.bf16.msra.mxu0 0
  %3130 = vmatprep.subr.bf16.mxu0 0
  %3131 = vmatpush1.bf16.msra.mxu0 0
  %3132 = vmatprep.subr.bf16.mxu0 0
  %3133 = vmatpush1.bf16.msra.mxu0 0
  %3134 = vmatprep.subr.bf16.mxu0 0
  %3135 = vmatpush1.bf16.msra.mxu0 0
  %3136 = vmatprep.subr.bf16.mxu0 0
  %3137 = vmatpush1.bf16.msra.mxu0 0
  %3138 = vmatprep.subr.bf16.mxu0 0
  %3139 = vmatpush1.bf16.msra.mxu0 0
  %3140 = vmatprep.subr.bf16.mxu0 0
  %3141 = vmatpush1.bf16.msra.mxu0 0
  %3142 = vmatprep.subr.bf16.mxu0 0
  %3143 = vmatpush1.bf16.msra.mxu0 0
  %3144 = vmatprep.subr.bf16.mxu0 0
  %3145 = vmatpush1.bf16.msra.mxu0 0
  %3146 = vmatprep.mubr.bf16.mxu0 0
  %3147 = vmatmul.mubr.bf16.gmra.mrb[0].mxu0 %v3109
  %v3148 = vpop.f32.mrb[0].mxu0
  %v3149 = vadd.f32 0.0, %v3148
  %v3150 = vpop.f32.mrb[0].mxu0
  %v3151 = vpop.f32.mrb[0].mxu0
  %v3152 = vadd.f32 0.0, %v3151
  %v3153 = vpop.f32.mrb[0].mxu0
  %3154 = vmatprep.mubr.bf16.mxu0 0
  %3155 = vmatmul.mubr.bf16.gmra.mrb[0].mxu0 %v3112
  %v3156 = vpop.f32.mrb[0].mxu0
  %v3157 = vadd.f32 0.0, %v3156
  %v3158 = vpop.f32.mrb[0].mxu0
  %v3159 = vpop.f32.mrb[0].mxu0
  %v3160 = vpop.f32.mrb[0].mxu0
  %3161 = vdwg.mxu0
  %v3170 = vunpack.c.l.b16 %v3058
  %v3171 = vunpack.c.l.b16 %v3059
  %v3172 = vunpack.c.l.b16 %v3060
  %v3173 = vunpack.c.l.b16 %v3061
  %v3174 = vunpack.c.l.b16 %v3062
  %v3175 = vunpack.c.l.b16 %v3063
  %v3176 = vunpack.c.l.b16 %v3064
  %v3177 = vunpack.c.l.b16 %v3065
  %v3178 = vpack.c.b16 %v3171, %v3170
  %v3179 = vpack.c.b16 %v3173, %v3172
  %v3180 = vpack.c.b16 %v3175, %v3174
  %v3181 = vpack.c.b16 %v3177, %v3176
  %3186 = vmatprep.subr.bf16.mxu0 0
  %3187 = vmatpush1.bf16.msra.mxu0 %v3178
  %3188 = vmatprep.subr.bf16.mxu0 0
  %3189 = vmatpush1.bf16.msra.mxu0 %v3179
  %3190 = vmatprep.subr.bf16.mxu0 0
  %3191 = vmatpush1.bf16.msra.mxu0 %v3180
  %3192 = vmatprep.subr.bf16.mxu0 0
  %3193 = vmatpush1.bf16.msra.mxu0 %v3181
  %3194 = vmatprep.subr.bf16.mxu0 0
  %3195 = vmatpush1.bf16.msra.mxu0 0
  %3196 = vmatprep.subr.bf16.mxu0 0
  %3197 = vmatpush1.bf16.msra.mxu0 0
  %3198 = vmatprep.subr.bf16.mxu0 0
  %3199 = vmatpush1.bf16.msra.mxu0 0
  %3200 = vmatprep.subr.bf16.mxu0 0
  %3201 = vmatpush1.bf16.msra.mxu0 0
  %3202 = vmatprep.subr.bf16.mxu0 0
  %3203 = vmatpush1.bf16.msra.mxu0 0
  %3204 = vmatprep.subr.bf16.mxu0 0
  %3205 = vmatpush1.bf16.msra.mxu0 0
  %3206 = vmatprep.subr.bf16.mxu0 0
  %3207 = vmatpush1.bf16.msra.mxu0 0
  %3208 = vmatprep.subr.bf16.mxu0 0
  %3209 = vmatpush1.bf16.msra.mxu0 0
  %3210 = vmatprep.subr.bf16.mxu0 0
  %3211 = vmatpush1.bf16.msra.mxu0 0
  %3212 = vmatprep.subr.bf16.mxu0 0
  %3213 = vmatpush1.bf16.msra.mxu0 0
  %3214 = vmatprep.subr.bf16.mxu0 0
  %3215 = vmatpush1.bf16.msra.mxu0 0
  %3216 = vmatprep.subr.bf16.mxu0 0
  %3217 = vmatpush1.bf16.msra.mxu0 0
  %3218 = vmatprep.mubr.bf16.mxu0 0
  %3219 = vmatmul.mubr.bf16.gmra.mrb[0].mxu0 %v3109
  %v3220 = vpop.f32.mrb[0].mxu0
  %v3221 = vadd.f32 0.0, %v3220
  %v3222 = vpop.f32.mrb[0].mxu0
  %v3223 = vpop.f32.mrb[0].mxu0
  %v3224 = vadd.f32 0.0, %v3223
  %v3225 = vpop.f32.mrb[0].mxu0
  %3226 = vmatprep.mubr.bf16.mxu0 0
  %3227 = vmatmul.mubr.bf16.gmra.mrb[0].mxu0 %v3112
  %v3228 = vpop.f32.mrb[0].mxu0
  %v3229 = vadd.f32 0.0, %v3228
  %v3230 = vpop.f32.mrb[0].mxu0
  %v3231 = vpop.f32.mrb[0].mxu0
  %v3232 = vpop.f32.mrb[0].mxu0
  %3233 = vdwg.mxu0
  %v3242 = vunpack.c.l.b16 %v3066
  %v3243 = vunpack.c.l.b16 %v3067
  %v3244 = vunpack.c.l.b16 %v3068
  %v3245 = vunpack.c.l.b16 %v3069
  %v3246 = vunpack.c.l.b16 %v3070
  %v3247 = vunpack.c.l.b16 %v3071
  %v3248 = vunpack.c.l.b16 %v3072
  %v3249 = vunpack.c.l.b16 %v3073
  %v3250 = vpack.c.b16 %v3243, %v3242
  %v3251 = vpack.c.b16 %v3245, %v3244
  %v3252 = vpack.c.b16 %v3247, %v3246
  %v3253 = vpack.c.b16 %v3249, %v3248
  %3258 = vmatprep.subr.bf16.mxu0 0
  %3259 = vmatpush1.bf16.msra.mxu0 %v3250
  %3260 = vmatprep.subr.bf16.mxu0 0
  %3261 = vmatpush1.bf16.msra.mxu0 %v3251
  %3262 = vmatprep.subr.bf16.mxu0 0
  %3263 = vmatpush1.bf16.msra.mxu0 %v3252
  %3264 = vmatprep.subr.bf16.mxu0 0
  %3265 = vmatpush1.bf16.msra.mxu0 %v3253
  %3266 = vmatprep.subr.bf16.mxu0 0
  %3267 = vmatpush1.bf16.msra.mxu0 0
  %3268 = vmatprep.subr.bf16.mxu0 0
  %3269 = vmatpush1.bf16.msra.mxu0 0
  %3270 = vmatprep.subr.bf16.mxu0 0
  %3271 = vmatpush1.bf16.msra.mxu0 0
  %3272 = vmatprep.subr.bf16.mxu0 0
  %3273 = vmatpush1.bf16.msra.mxu0 0
  %3274 = vmatprep.subr.bf16.mxu0 0
  %3275 = vmatpush1.bf16.msra.mxu0 0
  %3276 = vmatprep.subr.bf16.mxu0 0
  %3277 = vmatpush1.bf16.msra.mxu0 0
  %3278 = vmatprep.subr.bf16.mxu0 0
  %3279 = vmatpush1.bf16.msra.mxu0 0
  %3280 = vmatprep.subr.bf16.mxu0 0
  %3281 = vmatpush1.bf16.msra.mxu0 0
  %3282 = vmatprep.subr.bf16.mxu0 0
  %3283 = vmatpush1.bf16.msra.mxu0 0
  %3284 = vmatprep.subr.bf16.mxu0 0
  %3285 = vmatpush1.bf16.msra.mxu0 0
  %3286 = vmatprep.subr.bf16.mxu0 0
  %3287 = vmatpush1.bf16.msra.mxu0 0
  %3288 = vmatprep.subr.bf16.mxu0 0
  %3289 = vmatpush1.bf16.msra.mxu0 0
  %3290 = vmatprep.mubr.bf16.mxu0 0
  %3291 = vmatmul.mubr.bf16.gmra.mrb[0].mxu0 %v3109
  %v3292 = vpop.f32.mrb[0].mxu0
  %v3293 = vadd.f32 0.0, %v3292
  %v3294 = vpop.f32.mrb[0].mxu0
  %v3295 = vpop.f32.mrb[0].mxu0
  %v3296 = vadd.f32 0.0, %v3295
  %v3297 = vpop.f32.mrb[0].mxu0
  %3298 = vmatprep.mubr.bf16.mxu0 0
  %3299 = vmatmul.mubr.bf16.gmra.mrb[0].mxu0 %v3112
  %v3300 = vpop.f32.mrb[0].mxu0
  %v3301 = vadd.f32 0.0, %v3300
  %v3302 = vpop.f32.mrb[0].mxu0
  %v3303 = vpop.f32.mrb[0].mxu0
  %v3304 = vpop.f32.mrb[0].mxu0
  %3305 = vdwg.mxu0
  %v3306 = vpack.c.bf16 %v3152, %v3149
  %v3307 = vpack.c.bf16 %v3157, %v3157
  %v3308 = vpack.c.bf16 %v3224, %v3221
  %v3309 = vpack.c.bf16 %v3229, %v3229
  %v3311 = vsel %vm103, %v3306, 0
  %v3314 = vsel %vm103, %v3307, 0
  %v3317 = vsel %vm103, %v3308, 0
  %v3320 = vsel %vm103, %v3309, 0
  %3322 = vmatprep.subr.bf16.mxu0 0
  %3323 = vmatpush1.bf16.xpose.msra.mxu0 %v3317
  %3324 = vmatprep.subr.bf16.mxu0 0
  %3325 = vmatpush1.bf16.xpose.msra.mxu0 %v3320
  %3326 = vmatprep.subr.bf16.mxu0 0
  %3327 = vmatpush1.bf16.xpose.msra.mxu0 0
  %3328 = vmatprep.subr.bf16.mxu0 0
  %3329 = vmatpush1.bf16.xpose.msra.mxu0 0
  %3330 = vmatprep.subr.bf16.mxu0 0
  %3331 = vmatpush1.bf16.xpose.msra.mxu0 0
  %3332 = vmatprep.subr.bf16.mxu0 0
  %3333 = vmatpush1.bf16.xpose.msra.mxu0 0
  %3334 = vmatprep.subr.bf16.mxu0 0
  %3335 = vmatpush1.bf16.xpose.msra.mxu0 0
  %3336 = vmatprep.subr.bf16.mxu0 0
  %3337 = vmatpush1.bf16.xpose.msra.mxu0 0
  %3338 = vmatprep.subr.bf16.mxu0 0
  %3339 = vmatpush1.bf16.xpose.msra.mxu0 0
  %3340 = vmatprep.subr.bf16.mxu0 0
  %3341 = vmatpush1.bf16.xpose.msra.mxu0 0
  %3342 = vmatprep.subr.bf16.mxu0 0
  %3343 = vmatpush1.bf16.xpose.msra.mxu0 0
  %3344 = vmatprep.subr.bf16.mxu0 0
  %3345 = vmatpush1.bf16.xpose.msra.mxu0 0
  %3346 = vmatprep.subr.bf16.mxu0 0
  %3347 = vmatpush1.bf16.xpose.msra.mxu0 0
  %3348 = vmatprep.subr.bf16.mxu0 0
  %3349 = vmatpush1.bf16.xpose.msra.mxu0 0
  %3350 = vmatprep.subr.bf16.mxu0 0
  %3351 = vmatpush1.bf16.xpose.msra.mxu0 0
  %3352 = vmatprep.subr.bf16.mxu0 0
  %3353 = vmatpush1.bf16.xpose.msra.mxu0 0
  %3354 = vmatprep.mubr.bf16.mxu0 0
  %3355 = vmatmul.mubr.bf16.gmra.mrb[0].mxu0 %v3311
  %v3356 = vpop.f32.mrb[0].mxu0
  %v3357 = vadd.f32 %v97, %v3356
  %v3358 = vpop.f32.mrb[0].mxu0
  %v3359 = vpop.f32.mrb[0].mxu0
  %v3360 = vadd.f32 %v97, %v3359
  %v3361 = vpop.f32.mrb[0].mxu0
  %3362 = vmatprep.mubr.bf16.mxu0 0
  %3363 = vmatmul.mubr.bf16.gmra.mrb[0].mxu0 %v3314
  %v3364 = vpop.f32.mrb[0].mxu0
  %v3365 = vadd.f32 %v97, %v3364
  %v3366 = vpop.f32.mrb[0].mxu0
  %v3367 = vpop.f32.mrb[0].mxu0
  %v3368 = vpop.f32.mrb[0].mxu0
  %3369 = vdwg.mxu0
  %v3370 = vsel %vm492, %v3357, -inf
  %3371 = vmax.xlane.f32.xlu0 %v3370
  %v3372 = vpop.xlane.xlu0 %3371
  %v3373 = vsel %vm492, %v3360, -inf
  %3374 = vmax.xlane.f32.xlu0 %v3373
  %v3375 = vpop.xlane.xlu0 %3374
  %v3376 = vsel %vm492, %v3365, -inf
  %3377 = vmax.xlane.f32.xlu0 %v3376
  %v3378 = vpop.xlane.xlu0 %3377
  %v3379 = vsub.f32 %v3357, %v3372
  %v3380 = vsub.f32 %v3360, %v3375
  %v3381 = vsub.f32 %v3365, %v3378
  %v3382 = vmul.f32 %v3379, 1.442695
  %v3383 = vpow.pop %v3382
  %v3384 = vmul.f32 %v3380, 1.442695
  %v3385 = vpow.pop %v3384
  %v3386 = vmul.f32 %v3381, 1.442695
  %v3387 = vpow.pop %v3386
  %v3388 = vsel %vm492, %v3383, 0.0
  %3389 = vadd.xlane.f32.xlu0 %v3388
  %v3390 = vpop.xlane.xlu0 %3389
  %v3391 = vsel %vm492, %v3385, 0.0
  %3392 = vadd.xlane.f32.xlu0 %v3391
  %v3393 = vpop.xlane.xlu0 %3392
  %v3394 = vsel %vm492, %v3387, 0.0
  %3395 = vadd.xlane.f32.xlu0 %v3394
  %v3396 = vpop.xlane.xlu0 %3395
  %v3397 = vrcp.pop %v3390
  %v3398 = vrcp.pop %v3393
  %v3399 = vrcp.pop %v3396
  %v3400 = vmul.f32 %v3383, %v3397
  %v3401 = vmul.f32 %v3385, %v3398
  %v3402 = vmul.f32 %v3387, %v3399
  %v3403 = vpack.c.bf16 %v3401, %v3400
  %v3404 = vpack.c.bf16 %v3402, %v3402
  %v3405 = vpack.c.bf16 %v3296, %v3293
  %v3406 = vpack.c.bf16 %v3301, %v3301
  %v3408 = vsel %vm492, %v3403, 0
  %v3411 = vsel %vm492, %v3404, 0
  %v3414 = vsel %vm536, %v3406, 0
  %3416 = vmatprep.subr.bf16.mxu0 0
  %3417 = vmatpush1.bf16.msra.mxu0 %v3405
  %3418 = vmatprep.subr.bf16.mxu0 0
  %3419 = vmatpush1.bf16.msra.mxu0 %v3414
  %3420 = vmatprep.subr.bf16.mxu0 0
  %3421 = vmatpush1.bf16.msra.mxu0 0
  %3422 = vmatprep.subr.bf16.mxu0 0
  %3423 = vmatpush1.bf16.msra.mxu0 0
  %3424 = vmatprep.subr.bf16.mxu0 0
  %3425 = vmatpush1.bf16.msra.mxu0 0
  %3426 = vmatprep.subr.bf16.mxu0 0
  %3427 = vmatpush1.bf16.msra.mxu0 0
  %3428 = vmatprep.subr.bf16.mxu0 0
  %3429 = vmatpush1.bf16.msra.mxu0 0
  %3430 = vmatprep.subr.bf16.mxu0 0
  %3431 = vmatpush1.bf16.msra.mxu0 0
  %3432 = vmatprep.subr.bf16.mxu0 0
  %3433 = vmatpush1.bf16.msra.mxu0 0
  %3434 = vmatprep.subr.bf16.mxu0 0
  %3435 = vmatpush1.bf16.msra.mxu0 0
  %3436 = vmatprep.subr.bf16.mxu0 0
  %3437 = vmatpush1.bf16.msra.mxu0 0
  %3438 = vmatprep.subr.bf16.mxu0 0
  %3439 = vmatpush1.bf16.msra.mxu0 0
  %3440 = vmatprep.subr.bf16.mxu0 0
  %3441 = vmatpush1.bf16.msra.mxu0 0
  %3442 = vmatprep.subr.bf16.mxu0 0
  %3443 = vmatpush1.bf16.msra.mxu0 0
  %3444 = vmatprep.subr.bf16.mxu0 0
  %3445 = vmatpush1.bf16.msra.mxu0 0
  %3446 = vmatprep.subr.bf16.mxu0 0
  %3447 = vmatpush1.bf16.msra.mxu0 0
  %3448 = vmatprep.mubr.bf16.mxu0 0
  %3449 = vmatmul.mubr.bf16.gmra.mrb[0].mxu0 %v3408
  %v3450 = vpop.f32.mrb[0].mxu0
  %v3451 = vadd.f32 0.0, %v3450
  %v3452 = vpop.f32.mrb[0].mxu0
  %v3453 = vpop.f32.mrb[0].mxu0
  %v3454 = vadd.f32 0.0, %v3453
  %v3455 = vpop.f32.mrb[0].mxu0
  %3456 = vmatprep.mubr.bf16.mxu0 0
  %3457 = vmatmul.mubr.bf16.gmra.mrb[0].mxu0 %v3411
  %v3458 = vpop.f32.mrb[0].mxu0
  %v3459 = vadd.f32 0.0, %v3458
  %v3460 = vpop.f32.mrb[0].mxu0
  %v3461 = vpop.f32.mrb[0].mxu0
  %v3462 = vpop.f32.mrb[0].mxu0
  %3463 = vdwg.mxu0
  %v3464 = vpack.c.bf16 %v3454, %v3451
  %v3465 = vpack.c.bf16 %v3459, %v3459
  %v3474 = vunpack.c.l.b16 %v3074
  %v3475 = vunpack.c.l.b16 %v3075
  %v3476 = vunpack.c.l.b16 %v3076
  %v3477 = vunpack.c.l.b16 %v3077
  %v3478 = vunpack.c.l.b16 %v3078
  %v3479 = vunpack.c.l.b16 %v3079
  %v3480 = vunpack.c.l.b16 %v3080
  %v3481 = vunpack.c.l.b16 %v3081
  %v3482 = vpack.c.b16 %v3475, %v3474
  %v3483 = vpack.c.b16 %v3477, %v3476
  %v3484 = vpack.c.b16 %v3479, %v3478
  %v3485 = vpack.c.b16 %v3481, %v3480
  %v3491 = vsel %vm103, %v3464, 0
  %v3494 = vsel %vm103, %v3465, 0
  %3496 = vmatprep.subr.bf16.mxu0 0
  %3497 = vmatpush1.bf16.msra.mxu0 %v3482
  %3498 = vmatprep.subr.bf16.mxu0 0
  %3499 = vmatpush1.bf16.msra.mxu0 %v3483
  %3500 = vmatprep.subr.bf16.mxu0 0
  %3501 = vmatpush1.bf16.msra.mxu0 %v3484
  %3502 = vmatprep.subr.bf16.mxu0 0
  %3503 = vmatpush1.bf16.msra.mxu0 %v3485
  %3504 = vmatprep.subr.bf16.mxu0 0
  %3505 = vmatpush1.bf16.msra.mxu0 0
  %3506 = vmatprep.subr.bf16.mxu0 0
  %3507 = vmatpush1.bf16.msra.mxu0 0
  %3508 = vmatprep.subr.bf16.mxu0 0
  %3509 = vmatpush1.bf16.msra.mxu0 0
  %3510 = vmatprep.subr.bf16.mxu0 0
  %3511 = vmatpush1.bf16.msra.mxu0 0
  %3512 = vmatprep.subr.bf16.mxu0 0
  %3513 = vmatpush1.bf16.msra.mxu0 0
  %3514 = vmatprep.subr.bf16.mxu0 0
  %3515 = vmatpush1.bf16.msra.mxu0 0
  %3516 = vmatprep.subr.bf16.mxu0 0
  %3517 = vmatpush1.bf16.msra.mxu0 0
  %3518 = vmatprep.subr.bf16.mxu0 0
  %3519 = vmatpush1.bf16.msra.mxu0 0
  %3520 = vmatprep.subr.bf16.mxu0 0
  %3521 = vmatpush1.bf16.msra.mxu0 0
  %3522 = vmatprep.subr.bf16.mxu0 0
  %3523 = vmatpush1.bf16.msra.mxu0 0
  %3524 = vmatprep.subr.bf16.mxu0 0
  %3525 = vmatpush1.bf16.msra.mxu0 0
  %3526 = vmatprep.subr.bf16.mxu0 0
  %3527 = vmatpush1.bf16.msra.mxu0 0
  %3528 = vmatprep.mubr.bf16.mxu0 0
  %3529 = vmatmul.mubr.bf16.gmra.mrb[0].mxu0 %v3491
  %v3530 = vpop.f32.mrb[0].mxu0
  %v3531 = vadd.f32 %v593, %v3530
  %v3532 = vpop.f32.mrb[0].mxu0
  %v3533 = vpop.f32.mrb[0].mxu0
  %v3534 = vadd.f32 %v593, %v3533
  %v3535 = vpop.f32.mrb[0].mxu0
  %3536 = vmatprep.mubr.bf16.mxu0 0
  %3537 = vmatmul.mubr.bf16.gmra.mrb[0].mxu0 %v3494
  %v3538 = vpop.f32.mrb[0].mxu0
  %v3539 = vadd.f32 %v593, %v3538
  %v3540 = vpop.f32.mrb[0].mxu0
  %v3541 = vpop.f32.mrb[0].mxu0
  %v3542 = vpop.f32.mrb[0].mxu0
  %3543 = vdwg.mxu0
  %v3544 = vadd.f32 %v2585, %v3531
  %v3545 = vadd.f32 %v2586, %v3534
  %v3546 = vadd.f32 %v3006, %v3539
  %v3547 = vsel %vm103, %v3544, 0.0
  %3548 = vadd.xlane.f32.xlu0 %v3547
  %v3549 = vpop.xlane.xlu0 %3548
  %v3550 = vsel %vm103, %v3545, 0.0
  %3551 = vadd.xlane.f32.xlu0 %v3550
  %v3552 = vpop.xlane.xlu0 %3551
  %v3553 = vsel %vm103, %v3546, 0.0
  %3554 = vadd.xlane.f32.xlu0 %v3553
  %v3555 = vpop.xlane.xlu0 %3554
  %v3556 = vmul.f32 %v3549, %v127
  %v3557 = vmul.f32 %v3552, %v127
  %v3558 = vmul.f32 %v3555, %v127
  %v3559 = vsub.f32 %v3544, %v3556
  %v3560 = vsub.f32 %v3545, %v3557
  %v3561 = vsub.f32 %v3546, %v3558
  %v3562 = vmul.f32 %v3559, %v3559
  %v3563 = vmul.f32 %v3560, %v3560
  %v3564 = vmul.f32 %v3561, %v3561
  %v3565 = vsel %vm103, %v3562, 0.0
  %3566 = vadd.xlane.f32.xlu0 %v3565
  %v3567 = vpop.xlane.xlu0 %3566
  %v3568 = vsel %vm103, %v3563, 0.0
  %3569 = vadd.xlane.f32.xlu0 %v3568
  %v3570 = vpop.xlane.xlu0 %3569
  %v3571 = vsel %vm103, %v3564, 0.0
  %3572 = vadd.xlane.f32.xlu0 %v3571
  %v3573 = vpop.xlane.xlu0 %3572
  %v3574 = vmul.f32 %v3567, %v127
  %v3575 = vmul.f32 %v3570, %v127
  %v3576 = vmul.f32 %v3573, %v127
  %v3577 = vadd.f32 %v3574, 1e-06
  %v3578 = vadd.f32 %v3575, 1e-06
  %v3579 = vadd.f32 %v3576, 1e-06
  %v3580 = vrsqrt.pop %v3577
  %v3581 = vrsqrt.pop %v3578
  %v3582 = vrsqrt.pop %v3579
  %v3583 = vmul.f32 %v3559, %v3580
  %v3584 = vmul.f32 %v3560, %v3581
  %v3585 = vmul.f32 %v3561, %v3582
  %v3586 = vmul.f32 %v3583, %v717
  %v3587 = vmul.f32 %v3584, %v717
  %v3588 = vmul.f32 %v3585, %v717
  %v3589 = vadd.f32 %v3586, %v724
  %v3590 = vadd.f32 %v3587, %v724
  %v3591 = vadd.f32 %v3588, %v724
  %v3592 = vsel %vm103, %v2059, 0.0
  %3593 = vadd.xlane.f32.xlu0 %v3592
  %v3594 = vpop.xlane.xlu0 %3593
  %v3595 = vsel %vm103, %v2060, 0.0
  %3596 = vadd.xlane.f32.xlu0 %v3595
  %v3597 = vpop.xlane.xlu0 %3596
  %v3598 = vmul.f32 %v3594, %v127
  %v3599 = vmul.f32 %v3597, %v127
  %v3600 = vsub.f32 %v2059, %v3598
  %v3601 = vsub.f32 %v2060, %v3599
  %v3602 = vmul.f32 %v3600, %v3600
  %v3603 = vmul.f32 %v3601, %v3601
  %v3604 = vsel %vm103, %v3602, 0.0
  %3605 = vadd.xlane.f32.xlu0 %v3604
  %v3606 = vpop.xlane.xlu0 %3605
  %v3607 = vsel %vm103, %v3603, 0.0
  %3608 = vadd.xlane.f32.xlu0 %v3607
  %v3609 = vpop.xlane.xlu0 %3608
  %v3610 = vmul.f32 %v3606, %v127
  %v3611 = vmul.f32 %v3609, %v127
  %v3612 = vadd.f32 %v3610, 1e-06
  %v3613 = vadd.f32 %v3611, 1e-06
  %v3614 = vrsqrt.pop %v3612
  %v3615 = vrsqrt.pop %v3613
  %v3616 = vmul.f32 %v3600, %v3614
  %v3617 = vmul.f32 %v3601, %v3615
  %v3618 = vmul.f32 %v3616, %v757
  %v3619 = vmul.f32 %v3617, %v757
  %v3620 = vadd.f32 %v3618, %v763
  %v3621 = vadd.f32 %v3619, %v763
  %v3622 = vld [vmem:[%s13] sm:$0xf]
  %v3623 = vld [vmem:[%s13 + $0x4] sm:$0xf]
  %v3624 = vld [vmem:[%s13 + $0x8] sm:$0xf]
  %v3625 = vld [vmem:[%s13 + $0xc] sm:$0xf]
  %v3626 = vld [vmem:[%s13 + $0x10] sm:$0xf]
  %v3627 = vld [vmem:[%s13 + $0x14] sm:$0xf]
  %v3628 = vld [vmem:[%s13 + $0x18] sm:$0xf]
  %v3629 = vld [vmem:[%s13 + $0x1c] sm:$0xf]
  %v3630 = vld [vmem:[%s14] sm:$0xf]
  %v3631 = vld [vmem:[%s14 + $0x4] sm:$0xf]
  %v3632 = vld [vmem:[%s14 + $0x8] sm:$0xf]
  %v3633 = vld [vmem:[%s14 + $0xc] sm:$0xf]
  %v3634 = vld [vmem:[%s14 + $0x10] sm:$0xf]
  %v3635 = vld [vmem:[%s14 + $0x14] sm:$0xf]
  %v3636 = vld [vmem:[%s14 + $0x18] sm:$0xf]
  %v3637 = vld [vmem:[%s14 + $0x1c] sm:$0xf]
  %v3638 = vld [vmem:[%s15] sm:$0xf]
  %v3639 = vld [vmem:[%s15 + $0x4] sm:$0xf]
  %v3640 = vld [vmem:[%s15 + $0x8] sm:$0xf]
  %v3641 = vld [vmem:[%s15 + $0xc] sm:$0xf]
  %v3642 = vld [vmem:[%s15 + $0x10] sm:$0xf]
  %v3643 = vld [vmem:[%s15 + $0x14] sm:$0xf]
  %v3644 = vld [vmem:[%s15 + $0x18] sm:$0xf]
  %v3645 = vld [vmem:[%s15 + $0x1c] sm:$0xf]
  %v3646 = vld [vmem:[%s16] sm:$0xf]
  %v3647 = vld [vmem:[%s16 + $0x4] sm:$0xf]
  %v3648 = vld [vmem:[%s16 + $0x8] sm:$0xf]
  %v3649 = vld [vmem:[%s16 + $0xc] sm:$0xf]
  %v3650 = vld [vmem:[%s16 + $0x10] sm:$0xf]
  %v3651 = vld [vmem:[%s16 + $0x14] sm:$0xf]
  %v3652 = vld [vmem:[%s16 + $0x18] sm:$0xf]
  %v3653 = vld [vmem:[%s16 + $0x1c] sm:$0xf]
  %v3654 = vpack.c.bf16 %v3590, %v3589
  %v3655 = vpack.c.bf16 %v3591, %v3591
  %v3664 = vunpack.c.l.b16 %v3622
  %v3665 = vunpack.c.l.b16 %v3623
  %v3666 = vunpack.c.l.b16 %v3624
  %v3667 = vunpack.c.l.b16 %v3625
  %v3668 = vunpack.c.l.b16 %v3626
  %v3669 = vunpack.c.l.b16 %v3627
  %v3670 = vunpack.c.l.b16 %v3628
  %v3671 = vunpack.c.l.b16 %v3629
  %v3672 = vpack.c.b16 %v3665, %v3664
  %v3673 = vpack.c.b16 %v3667, %v3666
  %v3674 = vpack.c.b16 %v3669, %v3668
  %v3675 = vpack.c.b16 %v3671, %v3670
  %v3681 = vsel %vm103, %v3654, 0
  %v3684 = vsel %vm103, %v3655, 0
  %3686 = vmatprep.subr.bf16.mxu0 0
  %3687 = vmatpush1.bf16.msra.mxu0 %v3672
  %3688 = vmatprep.subr.bf16.mxu0 0
  %3689 = vmatpush1.bf16.msra.mxu0 %v3673
  %3690 = vmatprep.subr.bf16.mxu0 0
  %3691 = vmatpush1.bf16.msra.mxu0 %v3674
  %3692 = vmatprep.subr.bf16.mxu0 0
  %3693 = vmatpush1.bf16.msra.mxu0 %v3675
  %3694 = vmatprep.subr.bf16.mxu0 0
  %3695 = vmatpush1.bf16.msra.mxu0 0
  %3696 = vmatprep.subr.bf16.mxu0 0
  %3697 = vmatpush1.bf16.msra.mxu0 0
  %3698 = vmatprep.subr.bf16.mxu0 0
  %3699 = vmatpush1.bf16.msra.mxu0 0
  %3700 = vmatprep.subr.bf16.mxu0 0
  %3701 = vmatpush1.bf16.msra.mxu0 0
  %3702 = vmatprep.subr.bf16.mxu0 0
  %3703 = vmatpush1.bf16.msra.mxu0 0
  %3704 = vmatprep.subr.bf16.mxu0 0
  %3705 = vmatpush1.bf16.msra.mxu0 0
  %3706 = vmatprep.subr.bf16.mxu0 0
  %3707 = vmatpush1.bf16.msra.mxu0 0
  %3708 = vmatprep.subr.bf16.mxu0 0
  %3709 = vmatpush1.bf16.msra.mxu0 0
  %3710 = vmatprep.subr.bf16.mxu0 0
  %3711 = vmatpush1.bf16.msra.mxu0 0
  %3712 = vmatprep.subr.bf16.mxu0 0
  %3713 = vmatpush1.bf16.msra.mxu0 0
  %3714 = vmatprep.subr.bf16.mxu0 0
  %3715 = vmatpush1.bf16.msra.mxu0 0
  %3716 = vmatprep.subr.bf16.mxu0 0
  %3717 = vmatpush1.bf16.msra.mxu0 0
  %3718 = vmatprep.mubr.bf16.mxu0 0
  %3719 = vmatmul.mubr.bf16.gmra.mrb[0].mxu0 %v3681
  %v3720 = vpop.f32.mrb[0].mxu0
  %v3721 = vadd.f32 0.0, %v3720
  %v3722 = vpop.f32.mrb[0].mxu0
  %v3723 = vpop.f32.mrb[0].mxu0
  %v3724 = vadd.f32 0.0, %v3723
  %v3725 = vpop.f32.mrb[0].mxu0
  %3726 = vmatprep.mubr.bf16.mxu0 0
  %3727 = vmatmul.mubr.bf16.gmra.mrb[0].mxu0 %v3684
  %v3728 = vpop.f32.mrb[0].mxu0
  %v3729 = vadd.f32 0.0, %v3728
  %v3730 = vpop.f32.mrb[0].mxu0
  %v3731 = vpop.f32.mrb[0].mxu0
  %v3732 = vpop.f32.mrb[0].mxu0
  %3733 = vdwg.mxu0
  %v3734 = vpack.c.bf16 %v3621, %v3620
  %v3743 = vunpack.c.l.b16 %v3630
  %v3744 = vunpack.c.l.b16 %v3631
  %v3745 = vunpack.c.l.b16 %v3632
  %v3746 = vunpack.c.l.b16 %v3633
  %v3747 = vunpack.c.l.b16 %v3634
  %v3748 = vunpack.c.l.b16 %v3635
  %v3749 = vunpack.c.l.b16 %v3636
  %v3750 = vunpack.c.l.b16 %v3637
  %v3751 = vpack.c.b16 %v3744, %v3743
  %v3752 = vpack.c.b16 %v3746, %v3745
  %v3753 = vpack.c.b16 %v3748, %v3747
  %v3754 = vpack.c.b16 %v3750, %v3749
  %v3760 = vsel %vm103, %v3734, 0
  %3762 = vmatprep.subr.bf16.mxu0 0
  %3763 = vmatpush1.bf16.msra.mxu0 %v3751
  %3764 = vmatprep.subr.bf16.mxu0 0
  %3765 = vmatpush1.bf16.msra.mxu0 %v3752
  %3766 = vmatprep.subr.bf16.mxu0 0
  %3767 = vmatpush1.bf16.msra.mxu0 %v3753
  %3768 = vmatprep.subr.bf16.mxu0 0
  %3769 = vmatpush1.bf16.msra.mxu0 %v3754
  %3770 = vmatprep.subr.bf16.mxu0 0
  %3771 = vmatpush1.bf16.msra.mxu0 0
  %3772 = vmatprep.subr.bf16.mxu0 0
  %3773 = vmatpush1.bf16.msra.mxu0 0
  %3774 = vmatprep.subr.bf16.mxu0 0
  %3775 = vmatpush1.bf16.msra.mxu0 0
  %3776 = vmatprep.subr.bf16.mxu0 0
  %3777 = vmatpush1.bf16.msra.mxu0 0
  %3778 = vmatprep.subr.bf16.mxu0 0
  %3779 = vmatpush1.bf16.msra.mxu0 0
  %3780 = vmatprep.subr.bf16.mxu0 0
  %3781 = vmatpush1.bf16.msra.mxu0 0
  %3782 = vmatprep.subr.bf16.mxu0 0
  %3783 = vmatpush1.bf16.msra.mxu0 0
  %3784 = vmatprep.subr.bf16.mxu0 0
  %3785 = vmatpush1.bf16.msra.mxu0 0
  %3786 = vmatprep.subr.bf16.mxu0 0
  %3787 = vmatpush1.bf16.msra.mxu0 0
  %3788 = vmatprep.subr.bf16.mxu0 0
  %3789 = vmatpush1.bf16.msra.mxu0 0
  %3790 = vmatprep.subr.bf16.mxu0 0
  %3791 = vmatpush1.bf16.msra.mxu0 0
  %3792 = vmatprep.subr.bf16.mxu0 0
  %3793 = vmatpush1.bf16.msra.mxu0 0
  %3794 = vmatprep.mubr.bf16.mxu0 0
  %3795 = vmatmul.mubr.bf16.gmra.mrb[0].mxu0 %v3760
  %v3796 = vpop.f32.mrb[0].mxu0
  %v3797 = vadd.f32 0.0, %v3796
  %v3798 = vpop.f32.mrb[0].mxu0
  %v3799 = vpop.f32.mrb[0].mxu0
  %v3800 = vadd.f32 0.0, %v3799
  %v3801 = vpop.f32.mrb[0].mxu0
  %3802 = vdwg.mxu0
  %v3811 = vunpack.c.l.b16 %v3638
  %v3812 = vunpack.c.l.b16 %v3639
  %v3813 = vunpack.c.l.b16 %v3640
  %v3814 = vunpack.c.l.b16 %v3641
  %v3815 = vunpack.c.l.b16 %v3642
  %v3816 = vunpack.c.l.b16 %v3643
  %v3817 = vunpack.c.l.b16 %v3644
  %v3818 = vunpack.c.l.b16 %v3645
  %v3819 = vpack.c.b16 %v3812, %v3811
  %v3820 = vpack.c.b16 %v3814, %v3813
  %v3821 = vpack.c.b16 %v3816, %v3815
  %v3822 = vpack.c.b16 %v3818, %v3817
  %3827 = vmatprep.subr.bf16.mxu0 0
  %3828 = vmatpush1.bf16.msra.mxu0 %v3819
  %3829 = vmatprep.subr.bf16.mxu0 0
  %3830 = vmatpush1.bf16.msra.mxu0 %v3820
  %3831 = vmatprep.subr.bf16.mxu0 0
  %3832 = vmatpush1.bf16.msra.mxu0 %v3821
  %3833 = vmatprep.subr.bf16.mxu0 0
  %3834 = vmatpush1.bf16.msra.mxu0 %v3822
  %3835 = vmatprep.subr.bf16.mxu0 0
  %3836 = vmatpush1.bf16.msra.mxu0 0
  %3837 = vmatprep.subr.bf16.mxu0 0
  %3838 = vmatpush1.bf16.msra.mxu0 0
  %3839 = vmatprep.subr.bf16.mxu0 0
  %3840 = vmatpush1.bf16.msra.mxu0 0
  %3841 = vmatprep.subr.bf16.mxu0 0
  %3842 = vmatpush1.bf16.msra.mxu0 0
  %3843 = vmatprep.subr.bf16.mxu0 0
  %3844 = vmatpush1.bf16.msra.mxu0 0
  %3845 = vmatprep.subr.bf16.mxu0 0
  %3846 = vmatpush1.bf16.msra.mxu0 0
  %3847 = vmatprep.subr.bf16.mxu0 0
  %3848 = vmatpush1.bf16.msra.mxu0 0
  %3849 = vmatprep.subr.bf16.mxu0 0
  %3850 = vmatpush1.bf16.msra.mxu0 0
  %3851 = vmatprep.subr.bf16.mxu0 0
  %3852 = vmatpush1.bf16.msra.mxu0 0
  %3853 = vmatprep.subr.bf16.mxu0 0
  %3854 = vmatpush1.bf16.msra.mxu0 0
  %3855 = vmatprep.subr.bf16.mxu0 0
  %3856 = vmatpush1.bf16.msra.mxu0 0
  %3857 = vmatprep.subr.bf16.mxu0 0
  %3858 = vmatpush1.bf16.msra.mxu0 0
  %3859 = vmatprep.mubr.bf16.mxu0 0
  %3860 = vmatmul.mubr.bf16.gmra.mrb[0].mxu0 %v3760
  %v3861 = vpop.f32.mrb[0].mxu0
  %v3862 = vadd.f32 0.0, %v3861
  %v3863 = vpop.f32.mrb[0].mxu0
  %v3864 = vpop.f32.mrb[0].mxu0
  %v3865 = vadd.f32 0.0, %v3864
  %v3866 = vpop.f32.mrb[0].mxu0
  %3867 = vdwg.mxu0
  %v3868 = vpack.c.bf16 %v3724, %v3721
  %v3869 = vpack.c.bf16 %v3729, %v3729
  %v3870 = vpack.c.bf16 %v3800, %v3797
  %v3872 = vsel %vm103, %v3868, 0
  %v3875 = vsel %vm103, %v3869, 0
  %v3878 = vsel %vm103, %v3870, 0
  %3880 = vmatprep.subr.bf16.mxu0 0
  %3881 = vmatpush1.bf16.xpose.msra.mxu0 %v3878
  %3882 = vmatprep.subr.bf16.mxu0 0
  %3883 = vmatpush1.bf16.xpose.msra.mxu0 0
  %3884 = vmatprep.subr.bf16.mxu0 0
  %3885 = vmatpush1.bf16.xpose.msra.mxu0 0
  %3886 = vmatprep.subr.bf16.mxu0 0
  %3887 = vmatpush1.bf16.xpose.msra.mxu0 0
  %3888 = vmatprep.subr.bf16.mxu0 0
  %3889 = vmatpush1.bf16.xpose.msra.mxu0 0
  %3890 = vmatprep.subr.bf16.mxu0 0
  %3891 = vmatpush1.bf16.xpose.msra.mxu0 0
  %3892 = vmatprep.subr.bf16.mxu0 0
  %3893 = vmatpush1.bf16.xpose.msra.mxu0 0
  %3894 = vmatprep.subr.bf16.mxu0 0
  %3895 = vmatpush1.bf16.xpose.msra.mxu0 0
  %3896 = vmatprep.subr.bf16.mxu0 0
  %3897 = vmatpush1.bf16.xpose.msra.mxu0 0
  %3898 = vmatprep.subr.bf16.mxu0 0
  %3899 = vmatpush1.bf16.xpose.msra.mxu0 0
  %3900 = vmatprep.subr.bf16.mxu0 0
  %3901 = vmatpush1.bf16.xpose.msra.mxu0 0
  %3902 = vmatprep.subr.bf16.mxu0 0
  %3903 = vmatpush1.bf16.xpose.msra.mxu0 0
  %3904 = vmatprep.subr.bf16.mxu0 0
  %3905 = vmatpush1.bf16.xpose.msra.mxu0 0
  %3906 = vmatprep.subr.bf16.mxu0 0
  %3907 = vmatpush1.bf16.xpose.msra.mxu0 0
  %3908 = vmatprep.subr.bf16.mxu0 0
  %3909 = vmatpush1.bf16.xpose.msra.mxu0 0
  %3910 = vmatprep.subr.bf16.mxu0 0
  %3911 = vmatpush1.bf16.xpose.msra.mxu0 0
  %3912 = vmatprep.mubr.bf16.mxu0 0
  %3913 = vmatmul.mubr.bf16.gmra.mrb[0].mxu0 %v3872
  %v3914 = vpop.f32.mrb[0].mxu0
  %v3915 = vadd.f32 0.0, %v3914
  %v3916 = vpop.f32.mrb[0].mxu0
  %v3917 = vpop.f32.mrb[0].mxu0
  %v3918 = vadd.f32 0.0, %v3917
  %v3919 = vpop.f32.mrb[0].mxu0
  %3920 = vmatprep.mubr.bf16.mxu0 0
  %3921 = vmatmul.mubr.bf16.gmra.mrb[0].mxu0 %v3875
  %v3922 = vpop.f32.mrb[0].mxu0
  %v3923 = vadd.f32 0.0, %v3922
  %v3924 = vpop.f32.mrb[0].mxu0
  %v3925 = vpop.f32.mrb[0].mxu0
  %v3926 = vpop.f32.mrb[0].mxu0
  %3927 = vdwg.mxu0
  %v3928 = vsel %vm1072, %v3915, -inf
  %3929 = vmax.xlane.f32.xlu0 %v3928
  %v3930 = vpop.xlane.xlu0 %3929
  %v3931 = vsel %vm1072, %v3918, -inf
  %3932 = vmax.xlane.f32.xlu0 %v3931
  %v3933 = vpop.xlane.xlu0 %3932
  %v3934 = vsel %vm1072, %v3923, -inf
  %3935 = vmax.xlane.f32.xlu0 %v3934
  %v3936 = vpop.xlane.xlu0 %3935
  %v3937 = vsub.f32 %v3915, %v3930
  %v3938 = vsub.f32 %v3918, %v3933
  %v3939 = vsub.f32 %v3923, %v3936
  %v3940 = vmul.f32 %v3937, 1.442695
  %v3941 = vpow.pop %v3940
  %v3942 = vmul.f32 %v3938, 1.442695
  %v3943 = vpow.pop %v3942
  %v3944 = vmul.f32 %v3939, 1.442695
  %v3945 = vpow.pop %v3944
  %v3946 = vsel %vm1072, %v3941, 0.0
  %3947 = vadd.xlane.f32.xlu0 %v3946
  %v3948 = vpop.xlane.xlu0 %3947
  %v3949 = vsel %vm1072, %v3943, 0.0
  %3950 = vadd.xlane.f32.xlu0 %v3949
  %v3951 = vpop.xlane.xlu0 %3950
  %v3952 = vsel %vm1072, %v3945, 0.0
  %3953 = vadd.xlane.f32.xlu0 %v3952
  %v3954 = vpop.xlane.xlu0 %3953
  %v3955 = vrcp.pop %v3948
  %v3956 = vrcp.pop %v3951
  %v3957 = vrcp.pop %v3954
  %v3958 = vmul.f32 %v3941, %v3955
  %v3959 = vmul.f32 %v3943, %v3956
  %v3960 = vmul.f32 %v3945, %v3957
  %v3961 = vpack.c.bf16 %v3959, %v3958
  %v3962 = vpack.c.bf16 %v3960, %v3960
  %v3963 = vpack.c.bf16 %v3865, %v3862
  %v3965 = vsel %vm1072, %v3961, 0
  %v3968 = vsel %vm1072, %v3962, 0
  %3970 = vmatprep.subr.bf16.mxu0 0
  %3971 = vmatpush1.bf16.msra.mxu0 %v3963
  %3972 = vmatprep.subr.bf16.mxu0 0
  %3973 = vmatpush1.bf16.msra.mxu0 0
  %3974 = vmatprep.subr.bf16.mxu0 0
  %3975 = vmatpush1.bf16.msra.mxu0 0
  %3976 = vmatprep.subr.bf16.mxu0 0
  %3977 = vmatpush1.bf16.msra.mxu0 0
  %3978 = vmatprep.subr.bf16.mxu0 0
  %3979 = vmatpush1.bf16.msra.mxu0 0
  %3980 = vmatprep.subr.bf16.mxu0 0
  %3981 = vmatpush1.bf16.msra.mxu0 0
  %3982 = vmatprep.subr.bf16.mxu0 0
  %3983 = vmatpush1.bf16.msra.mxu0 0
  %3984 = vmatprep.subr.bf16.mxu0 0
  %3985 = vmatpush1.bf16.msra.mxu0 0
  %3986 = vmatprep.subr.bf16.mxu0 0
  %3987 = vmatpush1.bf16.msra.mxu0 0
  %3988 = vmatprep.subr.bf16.mxu0 0
  %3989 = vmatpush1.bf16.msra.mxu0 0
  %3990 = vmatprep.subr.bf16.mxu0 0
  %3991 = vmatpush1.bf16.msra.mxu0 0
  %3992 = vmatprep.subr.bf16.mxu0 0
  %3993 = vmatpush1.bf16.msra.mxu0 0
  %3994 = vmatprep.subr.bf16.mxu0 0
  %3995 = vmatpush1.bf16.msra.mxu0 0
  %3996 = vmatprep.subr.bf16.mxu0 0
  %3997 = vmatpush1.bf16.msra.mxu0 0
  %3998 = vmatprep.subr.bf16.mxu0 0
  %3999 = vmatpush1.bf16.msra.mxu0 0
  %4000 = vmatprep.subr.bf16.mxu0 0
  %4001 = vmatpush1.bf16.msra.mxu0 0
  %4002 = vmatprep.mubr.bf16.mxu0 0
  %4003 = vmatmul.mubr.bf16.gmra.mrb[0].mxu0 %v3965
  %v4004 = vpop.f32.mrb[0].mxu0
  %v4005 = vadd.f32 0.0, %v4004
  %v4006 = vpop.f32.mrb[0].mxu0
  %v4007 = vpop.f32.mrb[0].mxu0
  %v4008 = vadd.f32 0.0, %v4007
  %v4009 = vpop.f32.mrb[0].mxu0
  %4010 = vmatprep.mubr.bf16.mxu0 0
  %4011 = vmatmul.mubr.bf16.gmra.mrb[0].mxu0 %v3968
  %v4012 = vpop.f32.mrb[0].mxu0
  %v4013 = vadd.f32 0.0, %v4012
  %v4014 = vpop.f32.mrb[0].mxu0
  %v4015 = vpop.f32.mrb[0].mxu0
  %v4016 = vpop.f32.mrb[0].mxu0
  %4017 = vdwg.mxu0
  %v4018 = vpack.c.bf16 %v4008, %v4005
  %v4019 = vpack.c.bf16 %v4013, %v4013
  %v4028 = vunpack.c.l.b16 %v3646
  %v4029 = vunpack.c.l.b16 %v3647
  %v4030 = vunpack.c.l.b16 %v3648
  %v4031 = vunpack.c.l.b16 %v3649
  %v4032 = vunpack.c.l.b16 %v3650
  %v4033 = vunpack.c.l.b16 %v3651
  %v4034 = vunpack.c.l.b16 %v3652
  %v4035 = vunpack.c.l.b16 %v3653
  %v4036 = vpack.c.b16 %v4029, %v4028
  %v4037 = vpack.c.b16 %v4031, %v4030
  %v4038 = vpack.c.b16 %v4033, %v4032
  %v4039 = vpack.c.b16 %v4035, %v4034
  %v4045 = vsel %vm103, %v4018, 0
  %v4048 = vsel %vm103, %v4019, 0
  %4050 = vmatprep.subr.bf16.mxu0 0
  %4051 = vmatpush1.bf16.msra.mxu0 %v4036
  %4052 = vmatprep.subr.bf16.mxu0 0
  %4053 = vmatpush1.bf16.msra.mxu0 %v4037
  %4054 = vmatprep.subr.bf16.mxu0 0
  %4055 = vmatpush1.bf16.msra.mxu0 %v4038
  %4056 = vmatprep.subr.bf16.mxu0 0
  %4057 = vmatpush1.bf16.msra.mxu0 %v4039
  %4058 = vmatprep.subr.bf16.mxu0 0
  %4059 = vmatpush1.bf16.msra.mxu0 0
  %4060 = vmatprep.subr.bf16.mxu0 0
  %4061 = vmatpush1.bf16.msra.mxu0 0
  %4062 = vmatprep.subr.bf16.mxu0 0
  %4063 = vmatpush1.bf16.msra.mxu0 0
  %4064 = vmatprep.subr.bf16.mxu0 0
  %4065 = vmatpush1.bf16.msra.mxu0 0
  %4066 = vmatprep.subr.bf16.mxu0 0
  %4067 = vmatpush1.bf16.msra.mxu0 0
  %4068 = vmatprep.subr.bf16.mxu0 0
  %4069 = vmatpush1.bf16.msra.mxu0 0
  %4070 = vmatprep.subr.bf16.mxu0 0
  %4071 = vmatpush1.bf16.msra.mxu0 0
  %4072 = vmatprep.subr.bf16.mxu0 0
  %4073 = vmatpush1.bf16.msra.mxu0 0
  %4074 = vmatprep.subr.bf16.mxu0 0
  %4075 = vmatpush1.bf16.msra.mxu0 0
  %4076 = vmatprep.subr.bf16.mxu0 0
  %4077 = vmatpush1.bf16.msra.mxu0 0
  %4078 = vmatprep.subr.bf16.mxu0 0
  %4079 = vmatpush1.bf16.msra.mxu0 0
  %4080 = vmatprep.subr.bf16.mxu0 0
  %4081 = vmatpush1.bf16.msra.mxu0 0
  %4082 = vmatprep.mubr.bf16.mxu0 0
  %4083 = vmatmul.mubr.bf16.gmra.mrb[0].mxu0 %v4045
  %v4084 = vpop.f32.mrb[0].mxu0
  %v4085 = vadd.f32 %v1168, %v4084
  %v4086 = vpop.f32.mrb[0].mxu0
  %v4087 = vpop.f32.mrb[0].mxu0
  %v4088 = vadd.f32 %v1168, %v4087
  %v4089 = vpop.f32.mrb[0].mxu0
  %4090 = vmatprep.mubr.bf16.mxu0 0
  %4091 = vmatmul.mubr.bf16.gmra.mrb[0].mxu0 %v4048
  %v4092 = vpop.f32.mrb[0].mxu0
  %v4093 = vadd.f32 %v1168, %v4092
  %v4094 = vpop.f32.mrb[0].mxu0
  %v4095 = vpop.f32.mrb[0].mxu0
  %v4096 = vpop.f32.mrb[0].mxu0
  %4097 = vdwg.mxu0
  %v4098 = vadd.f32 %v3544, %v4085
  %v4099 = vadd.f32 %v3545, %v4088
  %v4100 = vadd.f32 %v3546, %v4093
  %v4101 = vsel %vm103, %v4098, 0.0
  %4102 = vadd.xlane.f32.xlu0 %v4101
  %v4103 = vpop.xlane.xlu0 %4102
  %v4104 = vsel %vm103, %v4099, 0.0
  %4105 = vadd.xlane.f32.xlu0 %v4104
  %v4106 = vpop.xlane.xlu0 %4105
  %v4107 = vsel %vm103, %v4100, 0.0
  %4108 = vadd.xlane.f32.xlu0 %v4107
  %v4109 = vpop.xlane.xlu0 %4108
  %v4110 = vmul.f32 %v4103, %v127
  %v4111 = vmul.f32 %v4106, %v127
  %v4112 = vmul.f32 %v4109, %v127
  %v4113 = vsub.f32 %v4098, %v4110
  %v4114 = vsub.f32 %v4099, %v4111
  %v4115 = vsub.f32 %v4100, %v4112
  %v4116 = vmul.f32 %v4113, %v4113
  %v4117 = vmul.f32 %v4114, %v4114
  %v4118 = vmul.f32 %v4115, %v4115
  %v4119 = vsel %vm103, %v4116, 0.0
  %4120 = vadd.xlane.f32.xlu0 %v4119
  %v4121 = vpop.xlane.xlu0 %4120
  %v4122 = vsel %vm103, %v4117, 0.0
  %4123 = vadd.xlane.f32.xlu0 %v4122
  %v4124 = vpop.xlane.xlu0 %4123
  %v4125 = vsel %vm103, %v4118, 0.0
  %4126 = vadd.xlane.f32.xlu0 %v4125
  %v4127 = vpop.xlane.xlu0 %4126
  %v4128 = vmul.f32 %v4121, %v127
  %v4129 = vmul.f32 %v4124, %v127
  %v4130 = vmul.f32 %v4127, %v127
  %v4131 = vadd.f32 %v4128, 1e-06
  %v4132 = vadd.f32 %v4129, 1e-06
  %v4133 = vadd.f32 %v4130, 1e-06
  %v4134 = vrsqrt.pop %v4131
  %v4135 = vrsqrt.pop %v4132
  %v4136 = vrsqrt.pop %v4133
  %v4137 = vmul.f32 %v4113, %v4134
  %v4138 = vmul.f32 %v4114, %v4135
  %v4139 = vmul.f32 %v4115, %v4136
  %v4140 = vmul.f32 %v4137, %v1292
  %v4141 = vmul.f32 %v4138, %v1292
  %v4142 = vmul.f32 %v4139, %v1292
  %v4143 = vadd.f32 %v4140, %v1299
  %v4144 = vadd.f32 %v4141, %v1299
  %v4145 = vadd.f32 %v4142, %v1299
  %v4146 = vld [vmem:[%s17] sm:$0xf]
  %v4147 = vld [vmem:[%s17 + $0x4] sm:$0xf]
  %v4148 = vld [vmem:[%s17 + $0x8] sm:$0xf]
  %v4149 = vld [vmem:[%s17 + $0xc] sm:$0xf]
  %v4150 = vld [vmem:[%s17 + $0x10] sm:$0xf]
  %v4151 = vld [vmem:[%s17 + $0x14] sm:$0xf]
  %v4152 = vld [vmem:[%s17 + $0x18] sm:$0xf]
  %v4153 = vld [vmem:[%s17 + $0x1c] sm:$0xf]
  %v4154 = vld [vmem:[%s18] sm:$0xf]
  %v4155 = vld [vmem:[%s18 + $0x4] sm:$0xf]
  %v4156 = vld [vmem:[%s18 + $0x8] sm:$0xf]
  %v4157 = vld [vmem:[%s18 + $0xc] sm:$0xf]
  %v4158 = vld [vmem:[%s18 + $0x10] sm:$0xf]
  %v4159 = vld [vmem:[%s18 + $0x14] sm:$0xf]
  %v4160 = vld [vmem:[%s18 + $0x18] sm:$0xf]
  %v4161 = vld [vmem:[%s18 + $0x1c] sm:$0xf]
  %v4162 = vld [vmem:[%s18 + $0x20] sm:$0xf]
  %v4163 = vld [vmem:[%s18 + $0x24] sm:$0xf]
  %v4164 = vld [vmem:[%s18 + $0x28] sm:$0xf]
  %v4165 = vld [vmem:[%s18 + $0x2c] sm:$0xf]
  %v4166 = vld [vmem:[%s18 + $0x30] sm:$0xf]
  %v4167 = vld [vmem:[%s18 + $0x34] sm:$0xf]
  %v4168 = vld [vmem:[%s18 + $0x38] sm:$0xf]
  %v4169 = vld [vmem:[%s18 + $0x3c] sm:$0xf]
  %v4170 = vpack.c.bf16 %v4144, %v4143
  %v4171 = vpack.c.bf16 %v4145, %v4145
  %v4180 = vunpack.c.l.b16 %v4146
  %v4181 = vunpack.c.l.b16 %v4147
  %v4182 = vunpack.c.l.b16 %v4148
  %v4183 = vunpack.c.l.b16 %v4149
  %v4184 = vunpack.c.l.b16 %v4150
  %v4185 = vunpack.c.l.b16 %v4151
  %v4186 = vunpack.c.l.b16 %v4152
  %v4187 = vunpack.c.l.b16 %v4153
  %v4188 = vpack.c.b16 %v4181, %v4180
  %v4189 = vpack.c.b16 %v4183, %v4182
  %v4190 = vpack.c.b16 %v4185, %v4184
  %v4191 = vpack.c.b16 %v4187, %v4186
  %v4197 = vsel %vm103, %v4170, 0
  %v4200 = vsel %vm103, %v4171, 0
  %4202 = vmatprep.subr.bf16.mxu0 0
  %4203 = vmatpush1.bf16.msra.mxu0 %v4188
  %4204 = vmatprep.subr.bf16.mxu0 0
  %4205 = vmatpush1.bf16.msra.mxu0 %v4189
  %4206 = vmatprep.subr.bf16.mxu0 0
  %4207 = vmatpush1.bf16.msra.mxu0 %v4190
  %4208 = vmatprep.subr.bf16.mxu0 0
  %4209 = vmatpush1.bf16.msra.mxu0 %v4191
  %4210 = vmatprep.subr.bf16.mxu0 0
  %4211 = vmatpush1.bf16.msra.mxu0 0
  %4212 = vmatprep.subr.bf16.mxu0 0
  %4213 = vmatpush1.bf16.msra.mxu0 0
  %4214 = vmatprep.subr.bf16.mxu0 0
  %4215 = vmatpush1.bf16.msra.mxu0 0
  %4216 = vmatprep.subr.bf16.mxu0 0
  %4217 = vmatpush1.bf16.msra.mxu0 0
  %4218 = vmatprep.subr.bf16.mxu0 0
  %4219 = vmatpush1.bf16.msra.mxu0 0
  %4220 = vmatprep.subr.bf16.mxu0 0
  %4221 = vmatpush1.bf16.msra.mxu0 0
  %4222 = vmatprep.subr.bf16.mxu0 0
  %4223 = vmatpush1.bf16.msra.mxu0 0
  %4224 = vmatprep.subr.bf16.mxu0 0
  %4225 = vmatpush1.bf16.msra.mxu0 0
  %4226 = vmatprep.subr.bf16.mxu0 0
  %4227 = vmatpush1.bf16.msra.mxu0 0
  %4228 = vmatprep.subr.bf16.mxu0 0
  %4229 = vmatpush1.bf16.msra.mxu0 0
  %4230 = vmatprep.subr.bf16.mxu0 0
  %4231 = vmatpush1.bf16.msra.mxu0 0
  %4232 = vmatprep.subr.bf16.mxu0 0
  %4233 = vmatpush1.bf16.msra.mxu0 0
  %4234 = vmatprep.mubr.bf16.mxu0 0
  %4235 = vmatmul.mubr.bf16.gmra.mrb[0].mxu0 %v4197
  %v4236 = vpop.f32.mrb[0].mxu0
  %v4237 = vadd.f32 %v1332, %v4236
  %v4238 = vpop.f32.mrb[0].mxu0
  %v4239 = vpop.f32.mrb[0].mxu0
  %v4240 = vadd.f32 %v1332, %v4239
  %v4241 = vpop.f32.mrb[0].mxu0
  %4242 = vmatprep.mubr.bf16.mxu0 0
  %4243 = vmatmul.mubr.bf16.gmra.mrb[0].mxu0 %v4200
  %v4244 = vpop.f32.mrb[0].mxu0
  %v4245 = vadd.f32 %v1332, %v4244
  %v4246 = vpop.f32.mrb[0].mxu0
  %v4247 = vpop.f32.mrb[0].mxu0
  %v4248 = vpop.f32.mrb[0].mxu0
  %4249 = vdwg.mxu0
  %v4250 = vmul.f32 %v4237, %v4237
  %v4251 = vmul.f32 %v4240, %v4240
  %v4252 = vmul.f32 %v4245, %v4245
  %v4253 = vmul.f32 %v4237, %v4250
  %v4254 = vmul.f32 %v4240, %v4251
  %v4255 = vmul.f32 %v4245, %v4252
  %v4256 = vmul.f32 %v4253, 0.044715
  %v4257 = vmul.f32 %v4254, 0.044715
  %v4258 = vmul.f32 %v4255, 0.044715
  %v4259 = vadd.f32 %v4237, %v4256
  %v4260 = vadd.f32 %v4240, %v4257
  %v4261 = vadd.f32 %v4245, %v4258
  %v4262 = vmul.f32 %v4259, 0.7978846
  %v4263 = vmul.f32 %v4260, 0.7978846
  %v4264 = vmul.f32 %v4261, 0.7978846
  %v4265 = vtanh.pop %v4262
  %v4266 = vtanh.pop %v4263
  %v4267 = vtanh.pop %v4264
  %v4268 = vadd.f32 %v4265, 1.0
  %v4269 = vadd.f32 %v4266, 1.0
  %v4270 = vadd.f32 %v4267, 1.0
  %v4271 = vmul.f32 %v4268, 0.5
  %v4272 = vmul.f32 %v4269, 0.5
  %v4273 = vmul.f32 %v4270, 0.5
  %v4274 = vmul.f32 %v4237, %v4271
  %v4275 = vmul.f32 %v4240, %v4272
  %v4276 = vmul.f32 %v4245, %v4273
  %v4277 = vpack.c.bf16 %v4275, %v4274
  %v4278 = vpack.c.bf16 %v4276, %v4276
  %v4295 = vunpack.c.l.b16 %v4154
  %v4296 = vunpack.c.l.b16 %v4155
  %v4297 = vunpack.c.l.b16 %v4156
  %v4298 = vunpack.c.l.b16 %v4157
  %v4299 = vunpack.c.l.b16 %v4158
  %v4300 = vunpack.c.l.b16 %v4159
  %v4301 = vunpack.c.l.b16 %v4160
  %v4302 = vunpack.c.l.b16 %v4161
  %v4303 = vunpack.c.l.b16 %v4162
  %v4304 = vunpack.c.l.b16 %v4163
  %v4305 = vunpack.c.l.b16 %v4164
  %v4306 = vunpack.c.l.b16 %v4165
  %v4307 = vunpack.c.l.b16 %v4166
  %v4308 = vunpack.c.l.b16 %v4167
  %v4309 = vunpack.c.l.b16 %v4168
  %v4310 = vunpack.c.l.b16 %v4169
  %v4311 = vpack.c.b16 %v4296, %v4295
  %v4312 = vpack.c.b16 %v4298, %v4297
  %v4313 = vpack.c.b16 %v4300, %v4299
  %v4314 = vpack.c.b16 %v4302, %v4301
  %v4315 = vpack.c.b16 %v4304, %v4303
  %v4316 = vpack.c.b16 %v4306, %v4305
  %v4317 = vpack.c.b16 %v4308, %v4307
  %v4318 = vpack.c.b16 %v4310, %v4309
  %4327 = vmatprep.subr.bf16.mxu0 0
  %4328 = vmatpush1.bf16.msra.mxu0 %v4311
  %4329 = vmatprep.subr.bf16.mxu0 0
  %4330 = vmatpush1.bf16.msra.mxu0 %v4312
  %4331 = vmatprep.subr.bf16.mxu0 0
  %4332 = vmatpush1.bf16.msra.mxu0 %v4313
  %4333 = vmatprep.subr.bf16.mxu0 0
  %4334 = vmatpush1.bf16.msra.mxu0 %v4314
  %4335 = vmatprep.subr.bf16.mxu0 0
  %4336 = vmatpush1.bf16.msra.mxu0 %v4315
  %4337 = vmatprep.subr.bf16.mxu0 0
  %4338 = vmatpush1.bf16.msra.mxu0 %v4316
  %4339 = vmatprep.subr.bf16.mxu0 0
  %4340 = vmatpush1.bf16.msra.mxu0 %v4317
  %4341 = vmatprep.subr.bf16.mxu0 0
  %4342 = vmatpush1.bf16.msra.mxu0 %v4318
  %4343 = vmatprep.subr.bf16.mxu0 0
  %4344 = vmatpush1.bf16.msra.mxu0 0
  %4345 = vmatprep.subr.bf16.mxu0 0
  %4346 = vmatpush1.bf16.msra.mxu0 0
  %4347 = vmatprep.subr.bf16.mxu0 0
  %4348 = vmatpush1.bf16.msra.mxu0 0
  %4349 = vmatprep.subr.bf16.mxu0 0
  %4350 = vmatpush1.bf16.msra.mxu0 0
  %4351 = vmatprep.subr.bf16.mxu0 0
  %4352 = vmatpush1.bf16.msra.mxu0 0
  %4353 = vmatprep.subr.bf16.mxu0 0
  %4354 = vmatpush1.bf16.msra.mxu0 0
  %4355 = vmatprep.subr.bf16.mxu0 0
  %4356 = vmatpush1.bf16.msra.mxu0 0
  %4357 = vmatprep.subr.bf16.mxu0 0
  %4358 = vmatpush1.bf16.msra.mxu0 0
  %4359 = vmatprep.mubr.bf16.mxu0 0
  %4360 = vmatmul.mubr.bf16.gmra.mrb[0].mxu0 %v4277
  %v4361 = vpop.f32.mrb[0].mxu0
  %v4362 = vadd.f32 %v1443, %v4361
  %v4363 = vpop.f32.mrb[0].mxu0
  %v4364 = vpop.f32.mrb[0].mxu0
  %v4365 = vadd.f32 %v1443, %v4364
  %v4366 = vpop.f32.mrb[0].mxu0
  %4367 = vmatprep.mubr.bf16.mxu0 0
  %4368 = vmatmul.mubr.bf16.gmra.mrb[0].mxu0 %v4278
  %v4369 = vpop.f32.mrb[0].mxu0
  %v4370 = vpop.f32.mrb[0].mxu0
  %v4371 = vpop.f32.mrb[0].mxu0
  %v4372 = vpop.f32.mrb[0].mxu0
  %4373 = vdwg.mxu0
  %v4374 = vadd.f32 %v4098, %v4362
  %v4375 = vadd.f32 %v4099, %v4365
  %v4376 = vld [vmem:[%s27] sm:$0xf]
  %v4377 = vld [vmem:[%s27 + $0x4] sm:$0xf]
  %v4378 = vld [vmem:[%s27 + $0x8] sm:$0xf]
  %v4379 = vld [vmem:[%s27 + $0xc] sm:$0xf]
  %v4380 = vld [vmem:[%s27 + $0x10] sm:$0xf]
  %v4381 = vld [vmem:[%s27 + $0x14] sm:$0xf]
  %v4382 = vld [vmem:[%s27 + $0x18] sm:$0xf]
  %v4383 = vld [vmem:[%s27 + $0x1c] sm:$0xf]
  %v4384 = vpack.c.bf16 %v4375, %v4374
  %v4393 = vunpack.c.l.b16 %v4376
  %v4394 = vunpack.c.l.b16 %v4377
  %v4395 = vunpack.c.l.b16 %v4378
  %v4396 = vunpack.c.l.b16 %v4379
  %v4397 = vunpack.c.l.b16 %v4380
  %v4398 = vunpack.c.l.b16 %v4381
  %v4399 = vunpack.c.l.b16 %v4382
  %v4400 = vunpack.c.l.b16 %v4383
  %v4401 = vpack.c.b16 %v4394, %v4393
  %v4402 = vpack.c.b16 %v4396, %v4395
  %v4403 = vpack.c.b16 %v4398, %v4397
  %v4404 = vpack.c.b16 %v4400, %v4399
  %v4410 = vsel %vm103, %v4384, 0
  %4412 = vmatprep.subr.bf16.mxu0 0
  %4413 = vmatpush1.bf16.msra.mxu0 %v4401
  %4414 = vmatprep.subr.bf16.mxu0 0
  %4415 = vmatpush1.bf16.msra.mxu0 %v4402
  %4416 = vmatprep.subr.bf16.mxu0 0
  %4417 = vmatpush1.bf16.msra.mxu0 %v4403
  %4418 = vmatprep.subr.bf16.mxu0 0
  %4419 = vmatpush1.bf16.msra.mxu0 %v4404
  %4420 = vmatprep.subr.bf16.mxu0 0
  %4421 = vmatpush1.bf16.msra.mxu0 0
  %4422 = vmatprep.subr.bf16.mxu0 0
  %4423 = vmatpush1.bf16.msra.mxu0 0
  %4424 = vmatprep.subr.bf16.mxu0 0
  %4425 = vmatpush1.bf16.msra.mxu0 0
  %4426 = vmatprep.subr.bf16.mxu0 0
  %4427 = vmatpush1.bf16.msra.mxu0 0
  %4428 = vmatprep.subr.bf16.mxu0 0
  %4429 = vmatpush1.bf16.msra.mxu0 0
  %4430 = vmatprep.subr.bf16.mxu0 0
  %4431 = vmatpush1.bf16.msra.mxu0 0
  %4432 = vmatprep.subr.bf16.mxu0 0
  %4433 = vmatpush1.bf16.msra.mxu0 0
  %4434 = vmatprep.subr.bf16.mxu0 0
  %4435 = vmatpush1.bf16.msra.mxu0 0
  %4436 = vmatprep.subr.bf16.mxu0 0
  %4437 = vmatpush1.bf16.msra.mxu0 0
  %4438 = vmatprep.subr.bf16.mxu0 0
  %4439 = vmatpush1.bf16.msra.mxu0 0
  %4440 = vmatprep.subr.bf16.mxu0 0
  %4441 = vmatpush1.bf16.msra.mxu0 0
  %4442 = vmatprep.subr.bf16.mxu0 0
  %4443 = vmatpush1.bf16.msra.mxu0 0
  %4444 = vmatprep.mubr.bf16.mxu0 0
  %4445 = vmatmul.mubr.bf16.gmra.mrb[0].mxu0 %v4410
  %v4446 = vpop.f32.mrb[0].mxu0
  %v4447 = vadd.f32 %v2513, %v4446
  %v4448 = vpop.f32.mrb[0].mxu0
  %v4449 = vpop.f32.mrb[0].mxu0
  %v4450 = vadd.f32 %v2513, %v4449
  %v4451 = vpop.f32.mrb[0].mxu0
  %4452 = vdwg.mxu0
  %s4453 = scalar_lea.vmem %s28, 16
  %4454 = vst [vmem:[%s4453] sm:$0xff] %v4447
  %4455 = vst [vmem:[%s4453 + $0x8] sm:$0xff] %v4450
  // Predicated region
  $region114: #{cut3r_points_spatial_tower_forward.3} parent=0 // pred_check
    _
  $region115: #{cut3r_points_spatial_tower_forward.3} parent=0 // pred_check_branch
    %4457 = sbr.rel (0) target = $region117
  $region116: #{cut3r_points_spatial_tower_forward.3} parent=0 // pred_region
    _
  $region117: #{cut3r_points_spatial_tower_forward.3} parent=0 // pred_fallthru
    _
  // Predicated region
  $region118: #{cut3r_points_spatial_tower_forward.3} parent=0 // pred_check
    _
  $region119: #{cut3r_points_spatial_tower_forward.3} parent=0 // pred_check_branch
    %4459 = sbr.rel (0) target = $region121
  $region120: #{cut3r_points_spatial_tower_forward.3} parent=0 // pred_region
    _
  $region121: #{cut3r_points_spatial_tower_forward.3} parent=0 // pred_fallthru
    _

</llo_original>
